<compile_context>
chip_gen: v6e
topology: v6e:2x2x1
jax: 0.10.0
libtpu: 0.0.40
codegen_flags: <defaults>
</compile_context>

<pallas_src>
import math
import functools

import jax
import jax.numpy as jnp
from jax import lax
from jax.experimental import pallas as pl
from jax.experimental.pallas import tpu as pltpu


_BN_EPS = 1e-5
_XLA_M_THRESHOLD = 128          # below this, pallas_call overhead dominates
_MAX_SINGLE_K = 4096            # K up to this fits a single VMEM block (bf16)
_VMEM_BUDGET = 12 * 1024 * 1024  # double-buffered working set cap (v5e-safe)


def _round_up(x, m):
    return (x + m - 1) // m * m


# -----------------------------------------------------------------------------
# Pallas kernels: tiled matmul + per-output-channel affine (folded BN)
#                 + optional fused residual add + optional ReLU
# -----------------------------------------------------------------------------
def _mm_affine_kernel(*refs, relu, has_res, nsteps):
    if has_res:
        a_ref, b_ref, s_ref, t_ref, r_ref = refs[:5]
        rest = refs[5:]
    else:
        a_ref, b_ref, s_ref, t_ref = refs[:4]
        r_ref = None
        rest = refs[4:]

    def epilogue(acc):
        y = acc * s_ref[...] + t_ref[...]
        if r_ref is not None:
            y = y + r_ref[...].astype(jnp.float32)
        if relu:
            y = jnp.maximum(y, 0.0)
        return y

    if nsteps == 1:
        # Single K step: no accumulator scratch, write straight to the output.
        (o_ref,) = rest
        acc = jnp.dot(a_ref[...], b_ref[...], preferred_element_type=jnp.float32)
        o_ref[...] = epilogue(acc).astype(o_ref.dtype)
    else:
        o_ref, acc_ref = rest
        k = pl.program_id(2)

        @pl.when(k == 0)
        def _():
            acc_ref[...] = jnp.zeros_like(acc_ref)

        acc_ref[...] += jnp.dot(a_ref[...], b_ref[...],
                                preferred_element_type=jnp.float32)

        @pl.when(k == nsteps - 1)
        def _():
            o_ref[...] = epilogue(acc_ref[...]).astype(o_ref.dtype)


def _mm_affine_batched_kernel(a_ref, b_ref, s_ref, t_ref, o_ref, *, relu):
    # One independent (M,K)x(K,N) problem per leading-grid-axis index.
    acc = jnp.dot(a_ref[0], b_ref[0], preferred_element_type=jnp.float32)
    y = acc * s_ref[0] + t_ref[0]
    if relu:
        y = jnp.maximum(y, 0.0)
    o_ref[0] = y.astype(o_ref.dtype)


# -----------------------------------------------------------------------------
# Tile selection (VMEM-budgeted, megacore-aware)
# -----------------------------------------------------------------------------
def _vmem_bytes(tm, tk, tn, has_res, multi_k):
    a = 2 * tm * tk * 2            # bf16, double-buffered
    b = 2 * tk * tn * 2
    o = 2 * tm * tn * 2            # bf16 output, double-buffered
    r = 2 * tm * tn * 2 if has_res else 0
    acc = tm * tn * 4 if multi_k else 0
    return a + b + o + r + acc + 8 * tn * 4


def _select_tiles(M, Np, tk, has_res, multi_k):
    # Lane tile: full-128-multiple (lane-dense stores).
    tn = 256 if (Np % 256 == 0 and Np >= 256) else 128
    n_tiles_j = Np // tn
    cands = [tm for tm in (512, 256, 128)
             if tm <= M and _vmem_bytes(tm, tk, tn, has_res, multi_k) <= _VMEM_BUDGET]
    if not cands:
        cands = [128]
    # v7x has 2 TensorCores sharded over "parallel" axes: prefer >= 2 blocks.
    for tm in cands:
        if pl.cdiv(M, tm) * n_tiles_j >= 2:
            return tm, tn
    return cands[0], tn


# -----------------------------------------------------------------------------
# Fused matmul + affine (+ residual, + ReLU) wrappers
# -----------------------------------------------------------------------------
def matmul_affine(a, b, scale, shift, relu, residual=None):
    """relu_opt((a @ b) * scale + shift [+ residual]) -> bf16 (M, N).

    a:(M,K)  b:(K,N)  scale/shift:(N,)  residual: optional (M,N) (any float dtype).
    MXU operands are bf16; accumulation and epilogue math are fp32.
    """
    M, K = a.shape
    K2, N = b.shape
    assert K == K2

    a_bf = a.astype(jnp.bfloat16)
    b_bf = b.astype(jnp.bfloat16)
    scale = scale.astype(jnp.float32)
    shift = shift.astype(jnp.float32)

    # ---- tiny-matmul fallback: plain XLA (still bf16 MXU, fp32 accumulate) ---
    if M < _XLA_M_THRESHOLD:
        y = jnp.dot(a_bf, b_bf, preferred_element_type=jnp.float32)
        y = y * scale[None, :] + shift[None, :]
        if residual is not None:
            y = y + residual.astype(jnp.float32)
        if relu:
            y = jnp.maximum(y, 0.0)
        return y.astype(jnp.bfloat16)

    # ---- lane-dense output: pad weights / affine to a 128 multiple -----------
    # (weights are jit closure constants, so these pads are compile-time.)
    Np = _round_up(N, 128)
    if Np != N:
        b_bf = jnp.pad(b_bf, ((0, 0), (0, Np - N)))
        scale = jnp.pad(scale, (0, Np - N))
        shift = jnp.pad(shift, (0, Np - N))

    # ---- K handling: single VMEM K block whenever possible -------------------
    if K <= _MAX_SINGLE_K:
        Kp = K if K % 8 == 0 else _round_up(K, 8)
        tk, nk = Kp, 1
    else:
        tk = 512
        Kp = _round_up(K, tk)
        nk = Kp // tk
    if Kp != K:
        a_bf = jnp.pad(a_bf, ((0, 0), (0, Kp - K)))   # only when K % 8 != 0
        b_bf = jnp.pad(b_bf, ((0, Kp - K), (0, 0)))

    has_res = residual is not None
    tm, tn = _select_tiles(M, Np, tk, has_res, nk > 1)

    s2 = scale.reshape(1, Np)
    t2 = shift.reshape(1, Np)

    inputs = [a_bf, b_bf, s2, t2]
    in_specs = [
        pl.BlockSpec((tm, tk), lambda i, j, k: (i, k)),
        pl.BlockSpec((tk, tn), lambda i, j, k: (k, j)),
        pl.BlockSpec((1, tn), lambda i, j, k: (0, j)),
        pl.BlockSpec((1, tn), lambda i, j, k: (0, j)),
    ]
    if has_res:
        r = residual.astype(jnp.bfloat16)
        if Np != N:
            # TODO(synk): a kernel-side partial-lane add would avoid this pad copy.
            r = jnp.pad(r, ((0, 0), (0, Np - N)))
        inputs.append(r)
        in_specs.append(pl.BlockSpec((tm, tn), lambda i, j, k: (i, j)))

    scratch = [] if nk == 1 else [pltpu.VMEM((tm, tn), jnp.float32)]

    out = pl.pallas_call(
        functools.partial(_mm_affine_kernel, relu=relu, has_res=has_res, nsteps=nk),
        out_shape=jax.ShapeDtypeStruct((M, Np), jnp.bfloat16),
        grid_spec=pltpu.PrefetchScalarGridSpec(
            num_scalar_prefetch=0,
            grid=(pl.cdiv(M, tm), Np // tn, nk),
            in_specs=in_specs,
            out_specs=pl.BlockSpec((tm, tn), lambda i, j, k: (i, j)),
            scratch_shapes=scratch,
        ),
        compiler_params=pltpu.CompilerParams(
            dimension_semantics=("parallel", "parallel", "arbitrary")),
    )(*inputs)

    if Np != N:
        out = out[:, :N]
    return out


def matmul_affine_batched(a, b, scale, shift, relu=True):
    """G independent fused matmul+affine(+ReLU) problems in one pallas_call.

    a:(G,M,K)  b:(G,K,N)  scale/shift:(G,N) -> bf16 (G,M,N).
    """
    G, M, K = a.shape
    _, K2, N = b.shape
    assert K == K2

    a_bf = a.astype(jnp.bfloat16)
    b_bf = b.astype(jnp.bfloat16)
    scale = scale.astype(jnp.float32)
    shift = shift.astype(jnp.float32)

    if M < _XLA_M_THRESHOLD or K > _MAX_SINGLE_K or K % 8 != 0:
        y = jnp.einsum("gmk,gkn->gmn", a_bf, b_bf,
                       preferred_element_type=jnp.float32)
        y = y * scale[:, None, :] + shift[:, None, :]
        if relu:
            y = jnp.maximum(y, 0.0)
        return y.astype(jnp.bfloat16)

    Np = _round_up(N, 128)
    if Np != N:
        b_bf = jnp.pad(b_bf, ((0, 0), (0, 0), (0, Np - N)))
        scale = jnp.pad(scale, ((0, 0), (0, Np - N)))
        shift = jnp.pad(shift, ((0, 0), (0, Np - N)))

    tm, tn = _select_tiles(M, Np, K, False, False)
    s3 = scale.reshape(G, 1, Np)
    t3 = shift.reshape(G, 1, Np)

    out = pl.pallas_call(
        functools.partial(_mm_affine_batched_kernel, relu=relu),
        out_shape=jax.ShapeDtypeStruct((G, M, Np), jnp.bfloat16),
        grid_spec=pltpu.PrefetchScalarGridSpec(
            num_scalar_prefetch=0,
            grid=(G, pl.cdiv(M, tm), Np // tn),
            in_specs=[
                pl.BlockSpec((1, tm, K), lambda g, i, j: (g, i, 0)),
                pl.BlockSpec((1, K, tn), lambda g, i, j: (g, 0, j)),
                pl.BlockSpec((1, 1, tn), lambda g, i, j: (g, 0, j)),
                pl.BlockSpec((1, 1, tn), lambda g, i, j: (g, 0, j)),
            ],
            out_specs=pl.BlockSpec((1, tm, tn), lambda g, i, j: (g, i, j)),
        ),
        compiler_params=pltpu.CompilerParams(
            dimension_semantics=("parallel", "parallel", "parallel")),
    )(a_bf, b_bf, s3, t3)

    if Np != N:
        out = out[:, :, :N]
    return out


# -----------------------------------------------------------------------------
# im2col (plain JAX glue, bf16) + conv wrappers
# -----------------------------------------------------------------------------
def im2col(x, kh, kw, stride, padding, dilation=1):
    # x: (B, H, W, C) NHWC
    B, H, W, C = x.shape
    xp = jnp.pad(x, ((0, 0), (padding, padding), (padding, padding), (0, 0)))
    Ho = (H + 2 * padding - dilation * (kh - 1) - 1) // stride + 1
    Wo = (W + 2 * padding - dilation * (kw - 1) - 1) // stride + 1
    cols = []
    for i in range(kh):
        for j in range(kw):
            patch = xp[:, i * dilation: i * dilation + (Ho - 1) * stride + 1: stride,
                          j * dilation: j * dilation + (Wo - 1) * stride + 1: stride, :]
            cols.append(patch)
    # order: tap-major (i*kw+j slow), input-channel fast -> (B, Ho, Wo, kh*kw*C)
    return jnp.concatenate(cols, axis=-1), Ho, Wo


def _fold_bn(bn, cout, bias):
    if bn is not None:
        scale = bn["gamma"] / jnp.sqrt(bn["var"] + _BN_EPS)
        shift = bn["beta"] - bn["mean"] * scale
    else:
        scale = jnp.ones((cout,), jnp.float32)
        shift = jnp.zeros((cout,), jnp.float32)
    if bias is not None:
        shift = shift + bias * scale
    return scale, shift


def conv_bn(x, cp, bn, *, stride, padding, relu, dilation=1, residual=None):
    # TODO(synk): replace im2col with a direct-conv Pallas kernel (tap axis on the
    #             reduction grid axis) to kill the ~9x HBM inflation for 3x3 convs.
    B, H, W, C = x.shape
    kh, kw = cp["kh"], cp["kw"]
    cout = cp["w"].shape[1]
    patches, Ho, Wo = im2col(x.astype(jnp.bfloat16), kh, kw, stride, padding, dilation)
    a = patches.reshape(B * Ho * Wo, kh * kw * C)
    scale, shift = _fold_bn(bn, cout, cp["b"])
    res2d = None
    if residual is not None:
        res2d = residual.reshape(B * Ho * Wo, cout)
    y = matmul_affine(a, cp["w"], scale, shift, relu, residual=res2d)
    return y.reshape(B, Ho, Wo, cout)


def conv_bn_direct(x, cp, bn, *, stride, padding, relu):
    # 7x7 stem: im2col would inflate HBM traffic 49x; use XLA's direct conv.
    kh, kw = cp["kh"], cp["kw"]
    cin = x.shape[-1]
    cout = cp["w"].shape[1]
    w = cp["w"].reshape(kh, kw, cin, cout).astype(jnp.bfloat16)
    y = lax.conv_general_dilated(
        x.astype(jnp.bfloat16), w,
        window_strides=(stride, stride),
        padding=[(padding, padding), (padding, padding)],
        dimension_numbers=("NHWC", "HWIO", "NHWC"),
        preferred_element_type=jnp.float32)
    scale, shift = _fold_bn(bn, cout, cp["b"])
    y = y * scale[None, None, None, :] + shift[None, None, None, :]
    if relu:
        y = jnp.maximum(y, 0.0)
    return y.astype(jnp.bfloat16)


# -----------------------------------------------------------------------------
# Parameter construction (deterministic, synthetic)
# -----------------------------------------------------------------------------
def conv_params(key, kh, kw, cin, cout, bias=False):
    k1, k2 = jax.random.split(key)
    fan_in = kh * kw * cin
    w = jax.random.normal(k1, (fan_in, cout), jnp.float32) / math.sqrt(fan_in)
    b = (0.01 * jax.random.normal(k2, (cout,), jnp.float32)) if bias else None
    return {"w": w, "b": b, "kh": kh, "kw": kw}


def bn_params(key, c):
    k1, k2, k3, k4 = jax.random.split(key, 4)
    return {
        "gamma": 1.0 + 0.1 * jax.random.normal(k1, (c,), jnp.float32),
        "beta": 0.1 * jax.random.normal(k2, (c,), jnp.float32),
        "mean": 0.1 * jax.random.normal(k3, (c,), jnp.float32),
        "var": 1.0 + 0.5 * jax.random.uniform(k4, (c,), jnp.float32),
    }


def make_layer(nk, in_c, out_c, blocks, stride):
    layer = []
    cur_in = in_c
    for b in range(blocks):
        s = stride if b == 0 else 1
        blk = {
            "conv1": conv_params(nk(), 3, 3, cur_in, out_c),
            "bn1": bn_params(nk(), out_c),
            "conv2": conv_params(nk(), 3, 3, out_c, out_c),
            "bn2": bn_params(nk(), out_c),
            "stride": s,
        }
        if s != 1 or cur_in != out_c:
            blk["down_conv"] = conv_params(nk(), 1, 1, cur_in, out_c)
            blk["down_bn"] = bn_params(nk(), out_c)
        layer.append(blk)
        cur_in = out_c
    return layer


def build_params(num_classes=19, block_channel=32, seed=1):
    keys = iter(jax.random.split(jax.random.PRNGKey(seed), 256))
    nk = lambda: next(keys)
    bc = block_channel
    c_apf = 2 * bc            # 64
    d = max(c_apf // 16, num_classes)
    params = {
        "conv1": conv_params(nk(), 7, 7, 3, bc, bias=False),
        "bn1": bn_params(nk(), bc),
        "layer1": make_layer(nk, bc, bc, 2, 1),
        "layer2": make_layer(nk, bc, 2 * bc, 2, 2),
        "layer3": make_layer(nk, 2 * bc, 4 * bc, 2, 2),
        "layer4": make_layer(nk, 4 * bc, 8 * bc, 2, 2),
        "cb4_conv": conv_params(nk(), 3, 3, 8 * bc, 2 * bc, bias=True),
        "cb4_bn": bn_params(nk(), 2 * bc),
        "cb1_conv": conv_params(nk(), 3, 3, bc, 2 * bc, bias=True),
        "cb1_bn": bn_params(nk(), 2 * bc),
        "apf": {
            "branch_conv": [conv_params(nk(), 3, 3, c_apf, c_apf) for _ in range(3)],
            "branch_bn": [bn_params(nk(), c_apf) for _ in range(3)],
            "fc1_w": jax.random.normal(nk(), (c_apf, d), jnp.float32) / math.sqrt(c_apf),
            "fc1_bn": bn_params(nk(), d),
            "fc2_w": jax.random.normal(nk(), (d, 3 * c_apf), jnp.float32) / math.sqrt(d),
        },
        "cls_conv1": conv_params(nk(), 3, 3, c_apf, 64),
        "cls_bn1": bn_params(nk(), 64),
        "cls_conv2": conv_params(nk(), 3, 3, 64, num_classes),
    }
    return params


# -----------------------------------------------------------------------------
# Forward pass
# -----------------------------------------------------------------------------
def basic_block(x, p):
    out = conv_bn(x, p["conv1"], p["bn1"], stride=p["stride"], padding=1, relu=True)
    if "down_conv" in p:
        identity = conv_bn(x, p["down_conv"], p["down_bn"],
                           stride=p["stride"], padding=0, relu=False)
    else:
        identity = x
    # Residual add + ReLU fused into conv2's Pallas epilogue (residual is bf16).
    out = conv_bn(out, p["conv2"], p["bn2"], stride=1, padding=1, relu=True,
                  residual=identity)
    return out


def run_layer(x, layer):
    for blk in layer:
        x = basic_block(x, blk)
    return x


def avg_pool_3x3_s2(x):
    # PyTorch AvgPool2d(3, stride=2, padding=1), count_include_pad=True
    s = lax.reduce_window(x.astype(jnp.float32), 0.0, lax.add,
                          (1, 3, 3, 1), (1, 2, 2, 1),
                          [(0, 0), (1, 1), (1, 1), (0, 0)])
    return s / 9.0


def bilinear_resize(x, h, w):
    # matches F.interpolate(mode='bilinear', align_corners=False) for upsampling
    B, _, _, C = x.shape
    return jax.image.resize(x, (B, h, w, C), method="bilinear")


def apf_module(inputs, p):
    # inputs: list of 3 NHWC tensors, identical shape (B,H,W,C)
    B, H, W, C = inputs[0].shape
    Cb = p["branch_conv"][0]["w"].shape[1]
    M = B * H * W
    K = 3 * 3 * C

    # --- 3 branch convs batched into ONE pallas_call (leading grid axis of 3) ---
    a = jnp.stack([im2col(inp.astype(jnp.bfloat16), 3, 3, 1, 1)[0].reshape(M, K)
                   for inp in inputs])                                  # (3, M, K)
    w = jnp.stack([p["branch_conv"][i]["w"] for i in range(3)])         # (3, K, Cb)
    sc, sh = [], []
    for i in range(3):
        s_i, t_i = _fold_bn(p["branch_bn"][i], Cb, p["branch_conv"][i]["b"])
        sc.append(s_i)
        sh.append(t_i)
    scale = jnp.stack(sc)
    shift = jnp.stack(sh)
    outs = matmul_affine_batched(a, w, scale, shift, relu=True)         # (3, M, Cb)
    outs = outs.reshape(3, B, H, W, Cb)

    U = (outs[0].astype(jnp.float32) + outs[1].astype(jnp.float32)
         + outs[2].astype(jnp.float32))
    s = jnp.mean(U, axis=(1, 2))                       # (B, Cb) global avg pool

    # fc1: 1x1 conv + BN + ReLU  (tiny M -> XLA fallback inside matmul_affine)
    scale1, shift1 = _fold_bn(p["fc1_bn"], p["fc1_w"].shape[1], None)
    z = matmul_affine(s, p["fc1_w"], scale1, shift1, relu=True)         # (B, d)
    # fc2: 1x1 conv, no BN
    n2 = p["fc2_w"].shape[1]
    a_b = matmul_affine(z, p["fc2_w"], jnp.ones((n2,), jnp.float32),
                        jnp.zeros((n2,), jnp.float32), relu=False)      # (B, 3*Cb)
    att = jax.nn.softmax(a_b.reshape(B, 3, Cb).astype(jnp.float32), axis=1)
    V = sum(outs[i].astype(jnp.float32) * att[:, i][:, None, None, :]
            for i in range(3))
    return V


def apfnet_forward(params, x):
    # x: NHWC (B, H, W, 3)
    p = params
    h = conv_bn_direct(x, p["conv1"], p["bn1"], stride=2, padding=3, relu=True)
    b1 = run_layer(h, p["layer1"])
    b2 = run_layer(b1, p["layer2"])
    b3 = run_layer(b2, p["layer3"])
    b4 = run_layer(b3, p["layer4"])

    b4_up = conv_bn(b4, p["cb4_conv"], p["cb4_bn"], stride=1, padding=1, relu=True)
    b4_up = bilinear_resize(b4_up.astype(jnp.float32),
                            b2.shape[1], b2.shape[2]).astype(jnp.bfloat16)

    b1_dn = avg_pool_3x3_s2(b1)
    b1_dn = conv_bn(b1_dn, p["cb1_conv"], p["cb1_bn"], stride=1, padding=1, relu=True)

    fused = apf_module([b1_dn, b2, b4_up], p["apf"])

    out = conv_bn(fused, p["cls_conv1"], p["cls_bn1"], stride=1, padding=1, relu=True)
    out = conv_bn(out, p["cls_conv2"], None, stride=1, padding=1, relu=False)

    out = bilinear_resize(out.astype(jnp.float32), x.shape[1], x.shape[2])
    return [out]


# -----------------------------------------------------------------------------
if __name__ == "__main__":
    NUM_CLASSES = 19
    BLOCK_CHANNEL = 32
    B, H, W = 2, 32, 32

    params = build_params(num_classes=NUM_CLASSES, block_channel=BLOCK_CHANNEL, seed=1)

    # layout: input is NHWC (B, H, W, 3); PyTorch equivalent is NCHW (B, 3, H, W)
    x = jax.random.normal(jax.random.PRNGKey(0), (B, H, W, 3), jnp.float32)

    fwd = jax.jit(lambda inp: apfnet_forward(params, inp))
    outs = fwd(x)
    out = jax.block_until_ready(outs[0])

    assert out.shape == (B, H, W, NUM_CLASSES), out.shape
    assert jnp.all(jnp.isfinite(out))
    print("KERNEL_OK")
</pallas_src>

<mosaic_0001>
module attributes {stable_mosaic.version = 11 : i64} {
  func.func @_mm_affine_kernel(%arg0: i32, %arg1: i32, %arg2: i32, %arg3: memref<256x288xbf16, #tpu.memory_space<vmem>>, %arg4: memref<288x128xbf16, #tpu.memory_space<vmem>>, %arg5: memref<1x128xf32, #tpu.memory_space<vmem>>, %arg6: memref<1x128xf32, #tpu.memory_space<vmem>>, %arg7: memref<256x128xbf16, #tpu.memory_space<vmem>>) attributes {dimension_semantics = [#tpu.dimension_semantics<parallel>, #tpu.dimension_semantics<parallel>, #tpu.dimension_semantics<arbitrary>], iteration_bounds = array<i64: 2, 1, 1>, scalar_prefetch = 0 : i64, scratch_operands = 0 : i64, tpu.core_type = #tpu.core_type<tc>, window_params = [{transform_indices = @transform_0, window_bounds = array<i64: 256, 288>}, {transform_indices = @transform_1, window_bounds = array<i64: 288, 128>}, {transform_indices = @transform_2, window_bounds = array<i64: 1, 128>}, {transform_indices = @transform_3, window_bounds = array<i64: 1, 128>}, {transform_indices = @transform_4, window_bounds = array<i64: 256, 128>}]} {
    %c0 = arith.constant 0 : index
    %c0_0 = arith.constant 0 : index
    %0 = vector.load %arg3[%c0, %c0_0] : memref<256x288xbf16, #tpu.memory_space<vmem>>, vector<256x288xbf16>
    %c0_1 = arith.constant 0 : index
    %c0_2 = arith.constant 0 : index
    %1 = vector.load %arg4[%c0_1, %c0_2] : memref<288x128xbf16, #tpu.memory_space<vmem>>, vector<288x128xbf16>
    %cst = arith.constant dense<0.000000e+00> : vector<256x128xf32>
    %2 = tpu.matmul %0, %1, %cst {dimension_numbers = #tpu.dot_dimension_numbers<[1], [0], [0], [1], [0, 0, 1, 1], [], []>} : vector<256x288xbf16>, vector<288x128xbf16>, vector<256x128xf32> -> vector<256x128xf32>
    %c0_3 = arith.constant 0 : index
    %c0_4 = arith.constant 0 : index
    %3 = vector.load %arg5[%c0_3, %c0_4] : memref<1x128xf32, #tpu.memory_space<vmem>>, vector<1x128xf32>
    %4 = vector.broadcast %3 : vector<1x128xf32> to vector<256x128xf32>
    %5 = arith.mulf %2, %4 : vector<256x128xf32>
    %c0_5 = arith.constant 0 : index
    %c0_6 = arith.constant 0 : index
    %6 = vector.load %arg6[%c0_5, %c0_6] : memref<1x128xf32, #tpu.memory_space<vmem>>, vector<1x128xf32>
    %7 = vector.broadcast %6 : vector<1x128xf32> to vector<256x128xf32>
    %8 = arith.addf %5, %7 : vector<256x128xf32>
    %cst_7 = arith.constant 0.000000e+00 : f32
    %9 = vector.broadcast %cst_7 : f32 to vector<256x128xf32>
    %10 = arith.maximumf %8, %9 : vector<256x128xf32>
    %11 = arith.truncf %10 : vector<256x128xf32> to vector<256x128xbf16>
    %c0_8 = arith.constant 0 : index
    %c0_9 = arith.constant 0 : index
    %12 = vector.load %arg7[%c0_8, %c0_9] : memref<256x128xbf16, #tpu.memory_space<vmem>>, vector<256x128xbf16>
    tpu.vector_store %arg7[%c0_8, %c0_9], %11 {strides = array<i32>} : memref<256x128xbf16, #tpu.memory_space<vmem>>, vector<256x128xbf16>,
    return
  }
  func.func @transform_0(%arg0: i32, %arg1: i32, %arg2: i32) -> (i32, i32) {
    %c0_i32 = arith.constant 0 : i32
    return %arg0, %arg2 : i32, i32
  }
  func.func @transform_1(%arg0: i32, %arg1: i32, %arg2: i32) -> (i32, i32) {
    %c0_i32 = arith.constant 0 : i32
    return %arg2, %arg1 : i32, i32
  }
  func.func @transform_2(%arg0: i32, %arg1: i32, %arg2: i32) -> (i32, i32) {
    %c0_i32 = arith.constant 0 : i32
    %c0_i32_0 = arith.constant 0 : i32
    return %c0_i32, %arg1 : i32, i32
  }
  func.func @transform_3(%arg0: i32, %arg1: i32, %arg2: i32) -> (i32, i32) {
    %c0_i32 = arith.constant 0 : i32
    %c0_i32_0 = arith.constant 0 : i32
    return %c0_i32, %arg1 : i32, i32
  }
  func.func @transform_4(%arg0: i32, %arg1: i32, %arg2: i32) -> (i32, i32) {
    %c0_i32 = arith.constant 0 : i32
    return %arg0, %arg1 : i32, i32
  }
}

module attributes {stable_mosaic.version = 11 : i64} {
  func.func @_mm_affine_kernel(%arg0: i32, %arg1: i32, %arg2: i32, %arg3: memref<256x288xbf16, #tpu.memory_space<vmem>>, %arg4: memref<288x128xbf16, #tpu.memory_space<vmem>>, %arg5: memref<1x128xf32, #tpu.memory_space<vmem>>, %arg6: memref<1x128xf32, #tpu.memory_space<vmem>>, %arg7: memref<256x128xbf16, #tpu.memory_space<vmem>>, %arg8: memref<256x128xbf16, #tpu.memory_space<vmem>>) attributes {dimension_semantics = [#tpu.dimension_semantics<parallel>, #tpu.dimension_semantics<parallel>, #tpu.dimension_semantics<arbitrary>], iteration_bounds = array<i64: 2, 1, 1>, scalar_prefetch = 0 : i64, scratch_operands = 0 : i64, tpu.core_type = #tpu.core_type<tc>, window_params = [{transform_indices = @transform_0, window_bounds = array<i64: 256, 288>}, {transform_indices = @transform_1, window_bounds = array<i64: 288, 128>}, {transform_indices = @transform_2, window_bounds = array<i64: 1, 128>}, {transform_indices = @transform_3, window_bounds = array<i64: 1, 128>}, {transform_indices = @transform_4, window_bounds = array<i64: 256, 128>}, {transform_indices = @transform_5, window_bounds = array<i64: 256, 128>}]} {
    %c0 = arith.constant 0 : index
    %c0_0 = arith.constant 0 : index
    %0 = vector.load %arg3[%c0, %c0_0] : memref<256x288xbf16, #tpu.memory_space<vmem>>, vector<256x288xbf16>
    %c0_1 = arith.constant 0 : index
    %c0_2 = arith.constant 0 : index
    %1 = vector.load %arg4[%c0_1, %c0_2] : memref<288x128xbf16, #tpu.memory_space<vmem>>, vector<288x128xbf16>
    %cst = arith.constant dense<0.000000e+00> : vector<256x128xf32>
    %2 = tpu.matmul %0, %1, %cst {dimension_numbers = #tpu.dot_dimension_numbers<[1], [0], [0], [1], [0, 0, 1, 1], [], []>} : vector<256x288xbf16>, vector<288x128xbf16>, vector<256x128xf32> -> vector<256x128xf32>
    %c0_3 = arith.constant 0 : index
    %c0_4 = arith.constant 0 : index
    %3 = vector.load %arg5[%c0_3, %c0_4] : memref<1x128xf32, #tpu.memory_space<vmem>>, vector<1x128xf32>
    %4 = vector.broadcast %3 : vector<1x128xf32> to vector<256x128xf32>
    %5 = arith.mulf %2, %4 : vector<256x128xf32>
    %c0_5 = arith.constant 0 : index
    %c0_6 = arith.constant 0 : index
    %6 = vector.load %arg6[%c0_5, %c0_6] : memref<1x128xf32, #tpu.memory_space<vmem>>, vector<1x128xf32>
    %7 = vector.broadcast %6 : vector<1x128xf32> to vector<256x128xf32>
    %8 = arith.addf %5, %7 : vector<256x128xf32>
    %c0_7 = arith.constant 0 : index
    %c0_8 = arith.constant 0 : index
    %9 = vector.load %arg7[%c0_7, %c0_8] : memref<256x128xbf16, #tpu.memory_space<vmem>>, vector<256x128xbf16>
    %10 = arith.extf %9 : vector<256x128xbf16> to vector<256x128xf32>
    %11 = arith.addf %8, %10 : vector<256x128xf32>
    %cst_9 = arith.constant 0.000000e+00 : f32
    %12 = vector.broadcast %cst_9 : f32 to vector<256x128xf32>
    %13 = arith.maximumf %11, %12 : vector<256x128xf32>
    %14 = arith.truncf %13 : vector<256x128xf32> to vector<256x128xbf16>
    %c0_10 = arith.constant 0 : index
    %c0_11 = arith.constant 0 : index
    %15 = vector.load %arg8[%c0_10, %c0_11] : memref<256x128xbf16, #tpu.memory_space<vmem>>, vector<256x128xbf16>
    tpu.vector_store %arg8[%c0_10, %c0_11], %14 {strides = array<i32>} : memref<256x128xbf16, #tpu.memory_space<vmem>>, vector<256x128xbf16>,
    return
  }
  func.func @transform_0(%arg0: i32, %arg1: i32, %arg2: i32) -> (i32, i32) {
    %c0_i32 = arith.constant 0 : i32
    return %arg0, %arg2 : i32, i32
  }
  func.func @transform_1(%arg0: i32, %arg1: i32, %arg2: i32) -> (i32, i32) {
    %c0_i32 = arith.constant 0 : i32
    return %arg2, %arg1 : i32, i32
  }
  func.func @transform_2(%arg0: i32, %arg1: i32, %arg2: i32) -> (i32, i32) {
    %c0_i32 = arith.constant 0 : i32
    %c0_i32_0 = arith.constant 0 : i32
    return %c0_i32, %arg1 : i32, i32
  }
  func.func @transform_3(%arg0: i32, %arg1: i32, %arg2: i32) -> (i32, i32) {
    %c0_i32 = arith.constant 0 : i32
    %c0_i32_0 = arith.constant 0 : i32
    return %c0_i32, %arg1 : i32, i32
  }
  func.func @transform_4(%arg0: i32, %arg1: i32, %arg2: i32) -> (i32, i32) {
    %c0_i32 = arith.constant 0 : i32
    return %arg0, %arg1 : i32, i32
  }
  func.func @transform_5(%arg0: i32, %arg1: i32, %arg2: i32) -> (i32, i32) {
    %c0_i32 = arith.constant 0 : i32
    return %arg0, %arg1 : i32, i32
  }
}

module attributes {stable_mosaic.version = 11 : i64} {
  func.func @_mm_affine_kernel(%arg0: i32, %arg1: i32, %arg2: i32, %arg3: memref<128x288xbf16, #tpu.memory_space<vmem>>, %arg4: memref<288x128xbf16, #tpu.memory_space<vmem>>, %arg5: memref<1x128xf32, #tpu.memory_space<vmem>>, %arg6: memref<1x128xf32, #tpu.memory_space<vmem>>, %arg7: memref<128x128xbf16, #tpu.memory_space<vmem>>) attributes {dimension_semantics = [#tpu.dimension_semantics<parallel>, #tpu.dimension_semantics<parallel>, #tpu.dimension_semantics<arbitrary>], iteration_bounds = array<i64: 1, 1, 1>, scalar_prefetch = 0 : i64, scratch_operands = 0 : i64, tpu.core_type = #tpu.core_type<tc>, window_params = [{transform_indices = @transform_0, window_bounds = array<i64: 128, 288>}, {transform_indices = @transform_1, window_bounds = array<i64: 288, 128>}, {transform_indices = @transform_2, window_bounds = array<i64: 1, 128>}, {transform_indices = @transform_3, window_bounds = array<i64: 1, 128>}, {transform_indices = @transform_4, window_bounds = array<i64: 128, 128>}]} {
    %c0 = arith.constant 0 : index
    %c0_0 = arith.constant 0 : index
    %0 = vector.load %arg3[%c0, %c0_0] : memref<128x288xbf16, #tpu.memory_space<vmem>>, vector<128x288xbf16>
    %c0_1 = arith.constant 0 : index
    %c0_2 = arith.constant 0 : index
    %1 = vector.load %arg4[%c0_1, %c0_2] : memref<288x128xbf16, #tpu.memory_space<vmem>>, vector<288x128xbf16>
    %cst = arith.constant dense<0.000000e+00> : vector<128x128xf32>
    %2 = tpu.matmul %0, %1, %cst {dimension_numbers = #tpu.dot_dimension_numbers<[1], [0], [0], [1], [0, 0, 1, 1], [], []>} : vector<128x288xbf16>, vector<288x128xbf16>, vector<128x128xf32> -> vector<128x128xf32>
    %c0_3 = arith.constant 0 : index
    %c0_4 = arith.constant 0 : index
    %3 = vector.load %arg5[%c0_3, %c0_4] : memref<1x128xf32, #tpu.memory_space<vmem>>, vector<1x128xf32>
    %4 = vector.broadcast %3 : vector<1x128xf32> to vector<128x128xf32>
    %5 = arith.mulf %2, %4 : vector<128x128xf32>
    %c0_5 = arith.constant 0 : index
    %c0_6 = arith.constant 0 : index
    %6 = vector.load %arg6[%c0_5, %c0_6] : memref<1x128xf32, #tpu.memory_space<vmem>>, vector<1x128xf32>
    %7 = vector.broadcast %6 : vector<1x128xf32> to vector<128x128xf32>
    %8 = arith.addf %5, %7 : vector<128x128xf32>
    %cst_7 = arith.constant 0.000000e+00 : f32
    %9 = vector.broadcast %cst_7 : f32 to vector<128x128xf32>
    %10 = arith.maximumf %8, %9 : vector<128x128xf32>
    %11 = arith.truncf %10 : vector<128x128xf32> to vector<128x128xbf16>
    %c0_8 = arith.constant 0 : index
    %c0_9 = arith.constant 0 : index
    %12 = vector.load %arg7[%c0_8, %c0_9] : memref<128x128xbf16, #tpu.memory_space<vmem>>, vector<128x128xbf16>
    tpu.vector_store %arg7[%c0_8, %c0_9], %11 {strides = array<i32>} : memref<128x128xbf16, #tpu.memory_space<vmem>>, vector<128x128xbf16>,
    return
  }
  func.func @transform_0(%arg0: i32, %arg1: i32, %arg2: i32) -> (i32, i32) {
    %c0_i32 = arith.constant 0 : i32
    return %arg0, %arg2 : i32, i32
  }
  func.func @transform_1(%arg0: i32, %arg1: i32, %arg2: i32) -> (i32, i32) {
    %c0_i32 = arith.constant 0 : i32
    return %arg2, %arg1 : i32, i32
  }
  func.func @transform_2(%arg0: i32, %arg1: i32, %arg2: i32) -> (i32, i32) {
    %c0_i32 = arith.constant 0 : i32
    %c0_i32_0 = arith.constant 0 : i32
    return %c0_i32, %arg1 : i32, i32
  }
  func.func @transform_3(%arg0: i32, %arg1: i32, %arg2: i32) -> (i32, i32) {
    %c0_i32 = arith.constant 0 : i32
    %c0_i32_0 = arith.constant 0 : i32
    return %c0_i32, %arg1 : i32, i32
  }
  func.func @transform_4(%arg0: i32, %arg1: i32, %arg2: i32) -> (i32, i32) {
    %c0_i32 = arith.constant 0 : i32
    return %arg0, %arg1 : i32, i32
  }
}

module attributes {stable_mosaic.version = 11 : i64} {
  func.func @_mm_affine_kernel(%arg0: i32, %arg1: i32, %arg2: i32, %arg3: memref<128x32xbf16, #tpu.memory_space<vmem>>, %arg4: memref<32x128xbf16, #tpu.memory_space<vmem>>, %arg5: memref<1x128xf32, #tpu.memory_space<vmem>>, %arg6: memref<1x128xf32, #tpu.memory_space<vmem>>, %arg7: memref<128x128xbf16, #tpu.memory_space<vmem>>) attributes {dimension_semantics = [#tpu.dimension_semantics<parallel>, #tpu.dimension_semantics<parallel>, #tpu.dimension_semantics<arbitrary>], iteration_bounds = array<i64: 1, 1, 1>, scalar_prefetch = 0 : i64, scratch_operands = 0 : i64, tpu.core_type = #tpu.core_type<tc>, window_params = [{transform_indices = @transform_0, window_bounds = array<i64: 128, 32>}, {transform_indices = @transform_1, window_bounds = array<i64: 32, 128>}, {transform_indices = @transform_2, window_bounds = array<i64: 1, 128>}, {transform_indices = @transform_3, window_bounds = array<i64: 1, 128>}, {transform_indices = @transform_4, window_bounds = array<i64: 128, 128>}]} {
    %c0 = arith.constant 0 : index
    %c0_0 = arith.constant 0 : index
    %0 = vector.load %arg3[%c0, %c0_0] : memref<128x32xbf16, #tpu.memory_space<vmem>>, vector<128x32xbf16>
    %c0_1 = arith.constant 0 : index
    %c0_2 = arith.constant 0 : index
    %1 = vector.load %arg4[%c0_1, %c0_2] : memref<32x128xbf16, #tpu.memory_space<vmem>>, vector<32x128xbf16>
    %cst = arith.constant dense<0.000000e+00> : vector<128x128xf32>
    %2 = tpu.matmul %0, %1, %cst {dimension_numbers = #tpu.dot_dimension_numbers<[1], [0], [0], [1], [0, 0, 1, 1], [], []>} : vector<128x32xbf16>, vector<32x128xbf16>, vector<128x128xf32> -> vector<128x128xf32>
    %c0_3 = arith.constant 0 : index
    %c0_4 = arith.constant 0 : index
    %3 = vector.load %arg5[%c0_3, %c0_4] : memref<1x128xf32, #tpu.memory_space<vmem>>, vector<1x128xf32>
    %4 = vector.broadcast %3 : vector<1x128xf32> to vector<128x128xf32>
    %5 = arith.mulf %2, %4 : vector<128x128xf32>
    %c0_5 = arith.constant 0 : index
    %c0_6 = arith.constant 0 : index
    %6 = vector.load %arg6[%c0_5, %c0_6] : memref<1x128xf32, #tpu.memory_space<vmem>>, vector<1x128xf32>
    %7 = vector.broadcast %6 : vector<1x128xf32> to vector<128x128xf32>
    %8 = arith.addf %5, %7 : vector<128x128xf32>
    %9 = arith.truncf %8 : vector<128x128xf32> to vector<128x128xbf16>
    %c0_7 = arith.constant 0 : index
    %c0_8 = arith.constant 0 : index
    %10 = vector.load %arg7[%c0_7, %c0_8] : memref<128x128xbf16, #tpu.memory_space<vmem>>, vector<128x128xbf16>
    tpu.vector_store %arg7[%c0_7, %c0_8], %9 {strides = array<i32>} : memref<128x128xbf16, #tpu.memory_space<vmem>>, vector<128x128xbf16>,
    return
  }
  func.func @transform_0(%arg0: i32, %arg1: i32, %arg2: i32) -> (i32, i32) {
    %c0_i32 = arith.constant 0 : i32
    return %arg0, %arg2 : i32, i32
  }
  func.func @transform_1(%arg0: i32, %arg1: i32, %arg2: i32) -> (i32, i32) {
    %c0_i32 = arith.constant 0 : i32
    return %arg2, %arg1 : i32, i32
  }
  func.func @transform_2(%arg0: i32, %arg1: i32, %arg2: i32) -> (i32, i32) {
    %c0_i32 = arith.constant 0 : i32
    %c0_i32_0 = arith.constant 0 : i32
    return %c0_i32, %arg1 : i32, i32
  }
  func.func @transform_3(%arg0: i32, %arg1: i32, %arg2: i32) -> (i32, i32) {
    %c0_i32 = arith.constant 0 : i32
    %c0_i32_0 = arith.constant 0 : i32
    return %c0_i32, %arg1 : i32, i32
  }
  func.func @transform_4(%arg0: i32, %arg1: i32, %arg2: i32) -> (i32, i32) {
    %c0_i32 = arith.constant 0 : i32
    return %arg0, %arg1 : i32, i32
  }
}

module attributes {stable_mosaic.version = 11 : i64} {
  func.func @_mm_affine_kernel(%arg0: i32, %arg1: i32, %arg2: i32, %arg3: memref<128x576xbf16, #tpu.memory_space<vmem>>, %arg4: memref<576x128xbf16, #tpu.memory_space<vmem>>, %arg5: memref<1x128xf32, #tpu.memory_space<vmem>>, %arg6: memref<1x128xf32, #tpu.memory_space<vmem>>, %arg7: memref<128x128xbf16, #tpu.memory_space<vmem>>) attributes {dimension_semantics = [#tpu.dimension_semantics<parallel>, #tpu.dimension_semantics<parallel>, #tpu.dimension_semantics<arbitrary>], iteration_bounds = array<i64: 1, 1, 1>, scalar_prefetch = 0 : i64, scratch_operands = 0 : i64, tpu.core_type = #tpu.core_type<tc>, window_params = [{transform_indices = @transform_0, window_bounds = array<i64: 128, 576>}, {transform_indices = @transform_1, window_bounds = array<i64: 576, 128>}, {transform_indices = @transform_2, window_bounds = array<i64: 1, 128>}, {transform_indices = @transform_3, window_bounds = array<i64: 1, 128>}, {transform_indices = @transform_4, window_bounds = array<i64: 128, 128>}]} {
    %c0 = arith.constant 0 : index
    %c0_0 = arith.constant 0 : index
    %0 = vector.load %arg3[%c0, %c0_0] : memref<128x576xbf16, #tpu.memory_space<vmem>>, vector<128x576xbf16>
    %c0_1 = arith.constant 0 : index
    %c0_2 = arith.constant 0 : index
    %1 = vector.load %arg4[%c0_1, %c0_2] : memref<576x128xbf16, #tpu.memory_space<vmem>>, vector<576x128xbf16>
    %cst = arith.constant dense<0.000000e+00> : vector<128x128xf32>
    %2 = tpu.matmul %0, %1, %cst {dimension_numbers = #tpu.dot_dimension_numbers<[1], [0], [0], [1], [0, 0, 1, 1], [], []>} : vector<128x576xbf16>, vector<576x128xbf16>, vector<128x128xf32> -> vector<128x128xf32>
    %c0_3 = arith.constant 0 : index
    %c0_4 = arith.constant 0 : index
    %3 = vector.load %arg5[%c0_3, %c0_4] : memref<1x128xf32, #tpu.memory_space<vmem>>, vector<1x128xf32>
    %4 = vector.broadcast %3 : vector<1x128xf32> to vector<128x128xf32>
    %5 = arith.mulf %2, %4 : vector<128x128xf32>
    %c0_5 = arith.constant 0 : index
    %c0_6 = arith.constant 0 : index
    %6 = vector.load %arg6[%c0_5, %c0_6] : memref<1x128xf32, #tpu.memory_space<vmem>>, vector<1x128xf32>
    %7 = vector.broadcast %6 : vector<1x128xf32> to vector<128x128xf32>
    %8 = arith.addf %5, %7 : vector<128x128xf32>
    %cst_7 = arith.constant 0.000000e+00 : f32
    %9 = vector.broadcast %cst_7 : f32 to vector<128x128xf32>
    %10 = arith.maximumf %8, %9 : vector<128x128xf32>
    %11 = arith.truncf %10 : vector<128x128xf32> to vector<128x128xbf16>
    %c0_8 = arith.constant 0 : index
    %c0_9 = arith.constant 0 : index
    %12 = vector.load %arg7[%c0_8, %c0_9] : memref<128x128xbf16, #tpu.memory_space<vmem>>, vector<128x128xbf16>
    tpu.vector_store %arg7[%c0_8, %c0_9], %11 {strides = array<i32>} : memref<128x128xbf16, #tpu.memory_space<vmem>>, vector<128x128xbf16>,
    return
  }
  func.func @transform_0(%arg0: i32, %arg1: i32, %arg2: i32) -> (i32, i32) {
    %c0_i32 = arith.constant 0 : i32
    return %arg0, %arg2 : i32, i32
  }
  func.func @transform_1(%arg0: i32, %arg1: i32, %arg2: i32) -> (i32, i32) {
    %c0_i32 = arith.constant 0 : i32
    return %arg2, %arg1 : i32, i32
  }
  func.func @transform_2(%arg0: i32, %arg1: i32, %arg2: i32) -> (i32, i32) {
    %c0_i32 = arith.constant 0 : i32
    %c0_i32_0 = arith.constant 0 : i32
    return %c0_i32, %arg1 : i32, i32
  }
  func.func @transform_3(%arg0: i32, %arg1: i32, %arg2: i32) -> (i32, i32) {
    %c0_i32 = arith.constant 0 : i32
    %c0_i32_0 = arith.constant 0 : i32
    return %c0_i32, %arg1 : i32, i32
  }
  func.func @transform_4(%arg0: i32, %arg1: i32, %arg2: i32) -> (i32, i32) {
    %c0_i32 = arith.constant 0 : i32
    return %arg0, %arg1 : i32, i32
  }
}

module attributes {stable_mosaic.version = 11 : i64} {
  func.func @_mm_affine_kernel(%arg0: i32, %arg1: i32, %arg2: i32, %arg3: memref<128x576xbf16, #tpu.memory_space<vmem>>, %arg4: memref<576x128xbf16, #tpu.memory_space<vmem>>, %arg5: memref<1x128xf32, #tpu.memory_space<vmem>>, %arg6: memref<1x128xf32, #tpu.memory_space<vmem>>, %arg7: memref<128x128xbf16, #tpu.memory_space<vmem>>, %arg8: memref<128x128xbf16, #tpu.memory_space<vmem>>) attributes {dimension_semantics = [#tpu.dimension_semantics<parallel>, #tpu.dimension_semantics<parallel>, #tpu.dimension_semantics<arbitrary>], iteration_bounds = array<i64: 1, 1, 1>, scalar_prefetch = 0 : i64, scratch_operands = 0 : i64, tpu.core_type = #tpu.core_type<tc>, window_params = [{transform_indices = @transform_0, window_bounds = array<i64: 128, 576>}, {transform_indices = @transform_1, window_bounds = array<i64: 576, 128>}, {transform_indices = @transform_2, window_bounds = array<i64: 1, 128>}, {transform_indices = @transform_3, window_bounds = array<i64: 1, 128>}, {transform_indices = @transform_4, window_bounds = array<i64: 128, 128>}, {transform_indices = @transform_5, window_bounds = array<i64: 128, 128>}]} {
    %c0 = arith.constant 0 : index
    %c0_0 = arith.constant 0 : index
    %0 = vector.load %arg3[%c0, %c0_0] : memref<128x576xbf16, #tpu.memory_space<vmem>>, vector<128x576xbf16>
    %c0_1 = arith.constant 0 : index
    %c0_2 = arith.constant 0 : index
    %1 = vector.load %arg4[%c0_1, %c0_2] : memref<576x128xbf16, #tpu.memory_space<vmem>>, vector<576x128xbf16>
    %cst = arith.constant dense<0.000000e+00> : vector<128x128xf32>
    %2 = tpu.matmul %0, %1, %cst {dimension_numbers = #tpu.dot_dimension_numbers<[1], [0], [0], [1], [0, 0, 1, 1], [], []>} : vector<128x576xbf16>, vector<576x128xbf16>, vector<128x128xf32> -> vector<128x128xf32>
    %c0_3 = arith.constant 0 : index
    %c0_4 = arith.constant 0 : index
    %3 = vector.load %arg5[%c0_3, %c0_4] : memref<1x128xf32, #tpu.memory_space<vmem>>, vector<1x128xf32>
    %4 = vector.broadcast %3 : vector<1x128xf32> to vector<128x128xf32>
    %5 = arith.mulf %2, %4 : vector<128x128xf32>
    %c0_5 = arith.constant 0 : index
    %c0_6 = arith.constant 0 : index
    %6 = vector.load %arg6[%c0_5, %c0_6] : memref<1x128xf32, #tpu.memory_space<vmem>>, vector<1x128xf32>
    %7 = vector.broadcast %6 : vector<1x128xf32> to vector<128x128xf32>
    %8 = arith.addf %5, %7 : vector<128x128xf32>
    %c0_7 = arith.constant 0 : index
    %c0_8 = arith.constant 0 : index
    %9 = vector.load %arg7[%c0_7, %c0_8] : memref<128x128xbf16, #tpu.memory_space<vmem>>, vector<128x128xbf16>
    %10 = arith.extf %9 : vector<128x128xbf16> to vector<128x128xf32>
    %11 = arith.addf %8, %10 : vector<128x128xf32>
    %cst_9 = arith.constant 0.000000e+00 : f32
    %12 = vector.broadcast %cst_9 : f32 to vector<128x128xf32>
    %13 = arith.maximumf %11, %12 : vector<128x128xf32>
    %14 = arith.truncf %13 : vector<128x128xf32> to vector<128x128xbf16>
    %c0_10 = arith.constant 0 : index
    %c0_11 = arith.constant 0 : index
    %15 = vector.load %arg8[%c0_10, %c0_11] : memref<128x128xbf16, #tpu.memory_space<vmem>>, vector<128x128xbf16>
    tpu.vector_store %arg8[%c0_10, %c0_11], %14 {strides = array<i32>} : memref<128x128xbf16, #tpu.memory_space<vmem>>, vector<128x128xbf16>,
    return
  }
  func.func @transform_0(%arg0: i32, %arg1: i32, %arg2: i32) -> (i32, i32) {
    %c0_i32 = arith.constant 0 : i32
    return %arg0, %arg2 : i32, i32
  }
  func.func @transform_1(%arg0: i32, %arg1: i32, %arg2: i32) -> (i32, i32) {
    %c0_i32 = arith.constant 0 : i32
    return %arg2, %arg1 : i32, i32
  }
  func.func @transform_2(%arg0: i32, %arg1: i32, %arg2: i32) -> (i32, i32) {
    %c0_i32 = arith.constant 0 : i32
    %c0_i32_0 = arith.constant 0 : i32
    return %c0_i32, %arg1 : i32, i32
  }
  func.func @transform_3(%arg0: i32, %arg1: i32, %arg2: i32) -> (i32, i32) {
    %c0_i32 = arith.constant 0 : i32
    %c0_i32_0 = arith.constant 0 : i32
    return %c0_i32, %arg1 : i32, i32
  }
  func.func @transform_4(%arg0: i32, %arg1: i32, %arg2: i32) -> (i32, i32) {
    %c0_i32 = arith.constant 0 : i32
    return %arg0, %arg1 : i32, i32
  }
  func.func @transform_5(%arg0: i32, %arg1: i32, %arg2: i32) -> (i32, i32) {
    %c0_i32 = arith.constant 0 : i32
    return %arg0, %arg1 : i32, i32
  }
}

module attributes {stable_mosaic.version = 11 : i64} {
  func.func @_mm_affine_batched_kernel(%arg0: i32, %arg1: i32, %arg2: i32, %arg3: memref<1x128x576xbf16, #tpu.memory_space<vmem>>, %arg4: memref<1x576x128xbf16, #tpu.memory_space<vmem>>, %arg5: memref<1x1x128xf32, #tpu.memory_space<vmem>>, %arg6: memref<1x1x128xf32, #tpu.memory_space<vmem>>, %arg7: memref<1x128x128xbf16, #tpu.memory_space<vmem>>) attributes {dimension_semantics = [#tpu.dimension_semantics<parallel>, #tpu.dimension_semantics<parallel>, #tpu.dimension_semantics<parallel>], iteration_bounds = array<i64: 3, 1, 1>, scalar_prefetch = 0 : i64, scratch_operands = 0 : i64, tpu.core_type = #tpu.core_type<tc>, window_params = [{transform_indices = @transform_0, window_bounds = array<i64: 1, 128, 576>}, {transform_indices = @transform_1, window_bounds = array<i64: 1, 576, 128>}, {transform_indices = @transform_2, window_bounds = array<i64: 1, 1, 128>}, {transform_indices = @transform_3, window_bounds = array<i64: 1, 1, 128>}, {transform_indices = @transform_4, window_bounds = array<i64: 1, 128, 128>}]} {
    %c0 = arith.constant 0 : index
    %c0_0 = arith.constant 0 : index
    %c0_1 = arith.constant 0 : index
    %0 = vector.load %arg3[%c0, %c0_0, %c0_1] : memref<1x128x576xbf16, #tpu.memory_space<vmem>>, vector<1x128x576xbf16>
    %1 = vector.shape_cast %0 : vector<1x128x576xbf16> to vector<128x576xbf16>
    %c0_2 = arith.constant 0 : index
    %c0_3 = arith.constant 0 : index
    %c0_4 = arith.constant 0 : index
    %2 = vector.load %arg4[%c0_2, %c0_3, %c0_4] : memref<1x576x128xbf16, #tpu.memory_space<vmem>>, vector<1x576x128xbf16>
    %3 = vector.shape_cast %2 : vector<1x576x128xbf16> to vector<576x128xbf16>
    %cst = arith.constant dense<0.000000e+00> : vector<128x128xf32>
    %4 = tpu.matmul %1, %3, %cst {dimension_numbers = #tpu.dot_dimension_numbers<[1], [0], [0], [1], [0, 0, 1, 1], [], []>} : vector<128x576xbf16>, vector<576x128xbf16>, vector<128x128xf32> -> vector<128x128xf32>
    %c0_5 = arith.constant 0 : index
    %c0_6 = arith.constant 0 : index
    %c0_7 = arith.constant 0 : index
    %5 = vector.load %arg5[%c0_5, %c0_6, %c0_7] : memref<1x1x128xf32, #tpu.memory_space<vmem>>, vector<1x1x128xf32>
    %6 = vector.shape_cast %5 : vector<1x1x128xf32> to vector<1x128xf32>
    %7 = vector.broadcast %6 : vector<1x128xf32> to vector<128x128xf32>
    %8 = arith.mulf %4, %7 : vector<128x128xf32>
    %c0_8 = arith.constant 0 : index
    %c0_9 = arith.constant 0 : index
    %c0_10 = arith.constant 0 : index
    %9 = vector.load %arg6[%c0_8, %c0_9, %c0_10] : memref<1x1x128xf32, #tpu.memory_space<vmem>>, vector<1x1x128xf32>
    %10 = vector.shape_cast %9 : vector<1x1x128xf32> to vector<1x128xf32>
    %11 = vector.broadcast %10 : vector<1x128xf32> to vector<128x128xf32>
    %12 = arith.addf %8, %11 : vector<128x128xf32>
    %cst_11 = arith.constant 0.000000e+00 : f32
    %13 = vector.broadcast %cst_11 : f32 to vector<128x128xf32>
    %14 = arith.maximumf %12, %13 : vector<128x128xf32>
    %15 = arith.truncf %14 : vector<128x128xf32> to vector<128x128xbf16>
    %c0_12 = arith.constant 0 : index
    %c0_13 = arith.constant 0 : index
    %c0_14 = arith.constant 0 : index
    %16 = vector.load %arg7[%c0_12, %c0_13, %c0_14] : memref<1x128x128xbf16, #tpu.memory_space<vmem>>, vector<1x128x128xbf16>
    %17 = vector.shape_cast %16 : vector<1x128x128xbf16> to vector<128x128xbf16>
    %18 = vector.shape_cast %15 : vector<128x128xbf16> to vector<1x128x128xbf16>
    tpu.vector_store %arg7[%c0_12, %c0_13, %c0_14], %18 {strides = array<i32>} : memref<1x128x128xbf16, #tpu.memory_space<vmem>>, vector<1x128x128xbf16>,
    return
  }
  func.func @transform_0(%arg0: i32, %arg1: i32, %arg2: i32) -> (i32, i32, i32) {
    %c0_i32 = arith.constant 0 : i32
    %c0_i32_0 = arith.constant 0 : i32
    return %arg0, %arg1, %c0_i32 : i32, i32, i32
  }
  func.func @transform_1(%arg0: i32, %arg1: i32, %arg2: i32) -> (i32, i32, i32) {
    %c0_i32 = arith.constant 0 : i32
    %c0_i32_0 = arith.constant 0 : i32
    return %arg0, %c0_i32, %arg2 : i32, i32, i32
  }
  func.func @transform_2(%arg0: i32, %arg1: i32, %arg2: i32) -> (i32, i32, i32) {
    %c0_i32 = arith.constant 0 : i32
    %c0_i32_0 = arith.constant 0 : i32
    return %arg0, %c0_i32, %arg2 : i32, i32, i32
  }
  func.func @transform_3(%arg0: i32, %arg1: i32, %arg2: i32) -> (i32, i32, i32) {
    %c0_i32 = arith.constant 0 : i32
    %c0_i32_0 = arith.constant 0 : i32
    return %arg0, %c0_i32, %arg2 : i32, i32, i32
  }
  func.func @transform_4(%arg0: i32, %arg1: i32, %arg2: i32) -> (i32, i32, i32) {
    %c0_i32 = arith.constant 0 : i32
    return %arg0, %arg1, %arg2 : i32, i32, i32
  }
}

module attributes {stable_mosaic.version = 11 : i64} {
  func.func @_mm_affine_kernel(%arg0: i32, %arg1: i32, %arg2: i32, %arg3: memref<128x576xbf16, #tpu.memory_space<vmem>>, %arg4: memref<576x128xbf16, #tpu.memory_space<vmem>>, %arg5: memref<1x128xf32, #tpu.memory_space<vmem>>, %arg6: memref<1x128xf32, #tpu.memory_space<vmem>>, %arg7: memref<128x128xbf16, #tpu.memory_space<vmem>>) attributes {dimension_semantics = [#tpu.dimension_semantics<parallel>, #tpu.dimension_semantics<parallel>, #tpu.dimension_semantics<arbitrary>], iteration_bounds = array<i64: 1, 1, 1>, scalar_prefetch = 0 : i64, scratch_operands = 0 : i64, tpu.core_type = #tpu.core_type<tc>, window_params = [{transform_indices = @transform_0, window_bounds = array<i64: 128, 576>}, {transform_indices = @transform_1, window_bounds = array<i64: 576, 128>}, {transform_indices = @transform_2, window_bounds = array<i64: 1, 128>}, {transform_indices = @transform_3, window_bounds = array<i64: 1, 128>}, {transform_indices = @transform_4, window_bounds = array<i64: 128, 128>}]} {
    %c0 = arith.constant 0 : index
    %c0_0 = arith.constant 0 : index
    %0 = vector.load %arg3[%c0, %c0_0] : memref<128x576xbf16, #tpu.memory_space<vmem>>, vector<128x576xbf16>
    %c0_1 = arith.constant 0 : index
    %c0_2 = arith.constant 0 : index
    %1 = vector.load %arg4[%c0_1, %c0_2] : memref<576x128xbf16, #tpu.memory_space<vmem>>, vector<576x128xbf16>
    %cst = arith.constant dense<0.000000e+00> : vector<128x128xf32>
    %2 = tpu.matmul %0, %1, %cst {dimension_numbers = #tpu.dot_dimension_numbers<[1], [0], [0], [1], [0, 0, 1, 1], [], []>} : vector<128x576xbf16>, vector<576x128xbf16>, vector<128x128xf32> -> vector<128x128xf32>
    %c0_3 = arith.constant 0 : index
    %c0_4 = arith.constant 0 : index
    %3 = vector.load %arg5[%c0_3, %c0_4] : memref<1x128xf32, #tpu.memory_space<vmem>>, vector<1x128xf32>
    %4 = vector.broadcast %3 : vector<1x128xf32> to vector<128x128xf32>
    %5 = arith.mulf %2, %4 : vector<128x128xf32>
    %c0_5 = arith.constant 0 : index
    %c0_6 = arith.constant 0 : index
    %6 = vector.load %arg6[%c0_5, %c0_6] : memref<1x128xf32, #tpu.memory_space<vmem>>, vector<1x128xf32>
    %7 = vector.broadcast %6 : vector<1x128xf32> to vector<128x128xf32>
    %8 = arith.addf %5, %7 : vector<128x128xf32>
    %9 = arith.truncf %8 : vector<128x128xf32> to vector<128x128xbf16>
    %c0_7 = arith.constant 0 : index
    %c0_8 = arith.constant 0 : index
    %10 = vector.load %arg7[%c0_7, %c0_8] : memref<128x128xbf16, #tpu.memory_space<vmem>>, vector<128x128xbf16>
    tpu.vector_store %arg7[%c0_7, %c0_8], %9 {strides = array<i32>} : memref<128x128xbf16, #tpu.memory_space<vmem>>, vector<128x128xbf16>,
    return
  }
  func.func @transform_0(%arg0: i32, %arg1: i32, %arg2: i32) -> (i32, i32) {
    %c0_i32 = arith.constant 0 : i32
    return %arg0, %arg2 : i32, i32
  }
  func.func @transform_1(%arg0: i32, %arg1: i32, %arg2: i32) -> (i32, i32) {
    %c0_i32 = arith.constant 0 : i32
    return %arg2, %arg1 : i32, i32
  }
  func.func @transform_2(%arg0: i32, %arg1: i32, %arg2: i32) -> (i32, i32) {
    %c0_i32 = arith.constant 0 : i32
    %c0_i32_0 = arith.constant 0 : i32
    return %c0_i32, %arg1 : i32, i32
  }
  func.func @transform_3(%arg0: i32, %arg1: i32, %arg2: i32) -> (i32, i32) {
    %c0_i32 = arith.constant 0 : i32
    %c0_i32_0 = arith.constant 0 : i32
    return %c0_i32, %arg1 : i32, i32
  }
  func.func @transform_4(%arg0: i32, %arg1: i32, %arg2: i32) -> (i32, i32) {
    %c0_i32 = arith.constant 0 : i32
    return %arg0, %arg1 : i32, i32
  }
}

</mosaic_0001>

<llo_original>
// kernel: _lambda_.13
$region0: #{_lambda_.13}
  #allocation0 [shape = 'u32[]', space=smem, size = 0x4, offset = 0x4, fixed_abs, tag = 'smem constant byte address 0x4 - core index']
  #allocation1 [shape = 'u32[144,128]{1,0:T(1,128)}', space=vmem, size = 0x12000, scoped, tag = 'internal scratch']
  %s0 = inlined_call_operand.vmem [shape: bf16[512,288], index: 0, kind: input, shape index: {}]
  %s1 = inlined_call_operand.vmem [shape: bf16[288,128], index: 1, kind: input, shape index: {}]
  %s2 = inlined_call_operand.vmem [shape: f32[1,128], index: 2, kind: input, shape index: {}]
  %s3 = inlined_call_operand.vmem [shape: f32[1,128], index: 3, kind: input, shape index: {}]
  %s4 = inlined_call_operand.vmem [shape: bf16[512,128], index: 4, kind: output, shape index: {}]
  %s5 = sld [smem:[#allocation0]]
  $region49: #{_lambda_.13} parent=0
    _
  %s7 = ssub.s32 1, %s5
  %s8 = scalar_select 0, %s7, %s5
  loop: start=0, step=1, limit=4
  $region2: #{_lambda_.13} parent=0 // loop_pre_header
    _
  $region3: #{_lambda_.13} parent=0 // loop_header
    %s10 = sphi 0, %s14
    %p11 = scmp.ge.s32.totalorder %s10, 4
    %s17 = sphi 0, %s36
    %s18 = sphi 0, %s32
    %s19 = sphi 0, %s28
    %s20 = sphi 0, %s17
    %s21 = sphi 0, %s18
    %s22 = sphi 0, %s19
    %s23 = sphi 0, %s20
    %s24 = sphi 0, %s21
    %s25 = sphi 0, %s22
    %s41 = sphi 0, %s43
    %s44 = sphi 0, %s41
    %s45 = sphi 0, %s44
    %s61 = sphi 0, %s45
    %s69 = sphi 0, %s71
    %s72 = sphi 0, %s69
    %s73 = sphi 0, %s72
    %s89 = sphi 0, %s73
    %s95 = sphi 0, %s97
    %s98 = sphi 0, %s95
    %s99 = sphi 0, %s98
    %s115 = sphi 0, %s99
    %s121 = sphi 0, %s123
    %s124 = sphi 0, %s121
    %s125 = sphi 0, %s124
    %s141 = sphi 0, %s125
    %s149 = sphi 0, %s151
    %s152 = sphi 0, %s149
    %s153 = sphi 0, %s152
    %s169 = sphi 0, %s153
  $region4: #{_lambda_.13} parent=0 // loop_header_branch
    %13 = sbr.rel (%p11) target = $region8
  $region5: #{_lambda_.13} parent=0 // loop_body
    %s15 = ssub.s32 %s10, 1
    %s16 = ssub.s32 %s10, 2
    %s26 = sadd.s32 1, %s19
    %p27 = scmp.ge.s32.totalorder %s26, 1
    %s28 = scalar_select %p27, 0, %s26
    %s29 = sadd.s32 1, %s18
    %s30 = scalar_select %p27, %s29, %s18
    %p31 = scmp.ge.s32.totalorder %s30, 1
    %s32 = scalar_select %p31, 0, %s30
    %s33 = sadd.s32 1, %s17
    %s34 = scalar_select %p31, %s33, %s17
    %p35 = scmp.ge.s32.totalorder %s34, 2
    %s36 = scalar_select %p35, 0, %s34
    %s37 = ssub.s32 %s17, %s36
    %s38 = ssub.s32 %s19, %s28
    %s39 = sor.u32 %s37, %s38
    %p40 = scmp.eq.s32.totalorder %s39, 0
    %s42 = sadd.s32 %s41, 1
    %s43 = scalar_select %p40, %s41, %s42
    %p46 = pneg %p40
    %p47 = scmp.eq.s32.totalorder %s10, 1
    %p48 = por %p46, %p47
    %p49 = scmp.ne.s32.totalorder %s41, %s44
    %p50 = scmp.eq.s32.totalorder %s10, 0
    %p51 = por %p49, %p50
    %p52 = scmp.ne.s32.totalorder %s41, %s44
    %p53 = scmp.eq.s32.totalorder %s15, 1
    %p54 = por %p52, %p53
    %p55 = scmp.ne.s32.totalorder %s44, %s45
    %p56 = scmp.eq.s32.totalorder %s15, 0
    %p57 = por %p55, %p56
    %p58 = scmp.ne.s32.totalorder %s44, %s45
    %p59 = scmp.eq.s32.totalorder %s16, 1
    %p60 = por %p58, %p59
    %p62 = scmp.ne.s32.totalorder %s45, %s61
    %p63 = scmp.eq.s32.totalorder %s16, 0
    %p64 = por %p62, %p63
    %s65 = ssub.s32 %s19, %s28
    %s66 = ssub.s32 %s18, %s32
    %s67 = sor.u32 %s65, %s66
    %p68 = scmp.eq.s32.totalorder %s67, 0
    %s70 = sadd.s32 %s69, 1
    %s71 = scalar_select %p68, %s69, %s70
    %p74 = pneg %p68
    %p75 = scmp.eq.s32.totalorder %s10, 1
    %p76 = por %p74, %p75
    %p77 = scmp.ne.s32.totalorder %s69, %s72
    %p78 = scmp.eq.s32.totalorder %s10, 0
    %p79 = por %p77, %p78
    %p80 = scmp.ne.s32.totalorder %s69, %s72
    %p81 = scmp.eq.s32.totalorder %s15, 1
    %p82 = por %p80, %p81
    %p83 = scmp.ne.s32.totalorder %s72, %s73
    %p84 = scmp.eq.s32.totalorder %s15, 0
    %p85 = por %p83, %p84
    %p86 = scmp.ne.s32.totalorder %s72, %s73
    %p87 = scmp.eq.s32.totalorder %s16, 1
    %p88 = por %p86, %p87
    %p90 = scmp.ne.s32.totalorder %s73, %s89
    %p91 = scmp.eq.s32.totalorder %s16, 0
    %p92 = por %p90, %p91
    %s93 = ssub.s32 %s18, %s32
    %p94 = scmp.eq.s32.totalorder %s93, 0
    %s96 = sadd.s32 %s95, 1
    %s97 = scalar_select %p94, %s95, %s96
    %p100 = pneg %p94
    %p101 = scmp.eq.s32.totalorder %s10, 1
    %p102 = por %p100, %p101
    %p103 = scmp.ne.s32.totalorder %s95, %s98
    %p104 = scmp.eq.s32.totalorder %s10, 0
    %p105 = por %p103, %p104
    %p106 = scmp.ne.s32.totalorder %s95, %s98
    %p107 = scmp.eq.s32.totalorder %s15, 1
    %p108 = por %p106, %p107
    %p109 = scmp.ne.s32.totalorder %s98, %s99
    %p110 = scmp.eq.s32.totalorder %s15, 0
    %p111 = por %p109, %p110
    %p112 = scmp.ne.s32.totalorder %s98, %s99
    %p113 = scmp.eq.s32.totalorder %s16, 1
    %p114 = por %p112, %p113
    %p116 = scmp.ne.s32.totalorder %s99, %s115
    %p117 = scmp.eq.s32.totalorder %s16, 0
    %p118 = por %p116, %p117
    %s119 = ssub.s32 %s18, %s32
    %p120 = scmp.eq.s32.totalorder %s119, 0
    %s122 = sadd.s32 %s121, 1
    %s123 = scalar_select %p120, %s121, %s122
    %p126 = pneg %p120
    %p127 = scmp.eq.s32.totalorder %s10, 1
    %p128 = por %p126, %p127
    %p129 = scmp.ne.s32.totalorder %s121, %s124
    %p130 = scmp.eq.s32.totalorder %s10, 0
    %p131 = por %p129, %p130
    %p132 = scmp.ne.s32.totalorder %s121, %s124
    %p133 = scmp.eq.s32.totalorder %s15, 1
    %p134 = por %p132, %p133
    %p135 = scmp.ne.s32.totalorder %s124, %s125
    %p136 = scmp.eq.s32.totalorder %s15, 0
    %p137 = por %p135, %p136
    %p138 = scmp.ne.s32.totalorder %s124, %s125
    %p139 = scmp.eq.s32.totalorder %s16, 1
    %p140 = por %p138, %p139
    %p142 = scmp.ne.s32.totalorder %s125, %s141
    %p143 = scmp.eq.s32.totalorder %s16, 0
    %p144 = por %p142, %p143
    %s145 = ssub.s32 %s17, %s36
    %s146 = ssub.s32 %s18, %s32
    %s147 = sor.u32 %s145, %s146
    %p148 = scmp.eq.s32.totalorder %s147, 0
    %s150 = sadd.s32 %s149, 1
    %s151 = scalar_select %p148, %s149, %s150
    %p154 = pneg %p148
    %p155 = scmp.eq.s32.totalorder %s10, 1
    %p156 = por %p154, %p155
    %p157 = scmp.ne.s32.totalorder %s149, %s152
    %p158 = scmp.eq.s32.totalorder %s10, 0
    %p159 = por %p157, %p158
    %p160 = scmp.ne.s32.totalorder %s149, %s152
    %p161 = scmp.eq.s32.totalorder %s15, 1
    %p162 = por %p160, %p161
    %p163 = scmp.ne.s32.totalorder %s152, %s153
    %p164 = scmp.eq.s32.totalorder %s15, 0
    %p165 = por %p163, %p164
    %p166 = scmp.ne.s32.totalorder %s152, %s153
    %p167 = scmp.eq.s32.totalorder %s16, 1
    %p168 = por %p166, %p167
    %p170 = scmp.ne.s32.totalorder %s153, %s169
    %p171 = scmp.eq.s32.totalorder %s16, 0
    %p172 = por %p170, %p171
    %p173 = scmp.le.s32.totalorder 1, %s10
    %p174 = scmp.lt.s32.totalorder %s10, 3
    %p175 = pnand %p173, %p174
    %p176 = pneg %p175
    // Predicated region
    $region9: #{_lambda_.13} parent=5 // pred_check
      _
    $region10: #{_lambda_.13} parent=5 // pred_check_branch
      %178 = sbr.rel (%p175) target = $region12
    $region11: #{_lambda_.13} parent=5 // pred_region
      %s179 = ssub.s32 %s10, 1
      // Predicated region
      $region13: #{_lambda_.13} parent=11 // pred_check
        %p180 = pneg %p85
      $region14: #{_lambda_.13} parent=11 // pred_check_branch
        %182 = sbr.rel (%p180) target = $region16
      $region15: #{_lambda_.13} parent=11 // pred_region
        %s183 = smul.u32 36, %s22
        %p184 = scmp.lt.s32.totalorder %s183, 35
        %s185 = scalar_select %p184, %s183, 35
        %p186 = scmp.lt.s32.totalorder %s21, 0
        %s187 = scalar_select %p186, %s21, 0
        %s188 = sadd.s32 %s187, %s185
        %s189 = smul.addr %s188, 4
        %s190 = scalar_lea.vmem %s1, %s189
        %s191 = smul.u32 36, %s22
      $region16: #{_lambda_.13} parent=11 // pred_fallthru
        _
      // Predicated region
      $region17: #{_lambda_.13} parent=11 // pred_check
        %p192 = pneg %p111
      $region18: #{_lambda_.13} parent=11 // pred_check_branch
        %194 = sbr.rel (%p192) target = $region20
      $region19: #{_lambda_.13} parent=11 // pred_region
        %p195 = scmp.lt.s32.totalorder %s21, 0
        %s196 = scalar_select %p195, %s21, 0
        %s197 = scalar_lea.vmem %s2, %s196
      $region20: #{_lambda_.13} parent=11 // pred_fallthru
        _
      // Predicated region
      $region21: #{_lambda_.13} parent=11 // pred_check
        %p198 = pneg %p137
      $region22: #{_lambda_.13} parent=11 // pred_check_branch
        %200 = sbr.rel (%p198) target = $region24
      $region23: #{_lambda_.13} parent=11 // pred_region
        %p201 = scmp.lt.s32.totalorder %s21, 0
        %s202 = scalar_select %p201, %s21, 0
        %s203 = scalar_lea.vmem %s3, %s202
      $region24: #{_lambda_.13} parent=11 // pred_fallthru
        _
    $region12: #{_lambda_.13} parent=5 // pred_fallthru
      _
    %p204 = scmp.lt.s32.totalorder %s10, 2
    // Predicated region
    $region25: #{_lambda_.13} parent=5 // pred_check
      %p205 = pneg %p204
    $region26: #{_lambda_.13} parent=5 // pred_check_branch
      %207 = sbr.rel (%p205) target = $region28
    $region27: #{_lambda_.13} parent=5 // pred_region
      // Predicated region
      $region29: #{_lambda_.13} parent=27 // pred_check
        %p208 = pneg %p51
      $region30: #{_lambda_.13} parent=27 // pred_check_branch
        %210 = sbr.rel (%p208) target = $region32
      $region31: #{_lambda_.13} parent=27 // pred_region
        %s211 = smul.u32 32, %s17
        %s212 = smul.u32 3, %s19
        %p213 = scmp.lt.s32.totalorder %s211, 63
        %s214 = scalar_select %p213, %s211, 63
        %p215 = scmp.lt.s32.totalorder %s212, 2
        %s216 = scalar_select %p215, %s212, 2
        %s217 = smul.addr %s214, 3
        %s218 = sadd.s32 %s216, %s217
        %s219 = smul.addr %s218, 4
        %s220 = scalar_lea.vmem %s0, %s219
        %s221 = smul.u32 32, %s17
        %s222 = smul.u32 3, %s19
      $region32: #{_lambda_.13} parent=27 // pred_fallthru
        _
    $region28: #{_lambda_.13} parent=5 // pred_fallthru
      _
    %p223 = scmp.le.s32.totalorder 1, %s10
    %p224 = scmp.lt.s32.totalorder %s10, 3
    %p225 = pnand %p223, %p224
    %p226 = pneg %p225
    // Predicated region
    $region33: #{_lambda_.13} parent=5 // pred_check
      _
    $region34: #{_lambda_.13} parent=5 // pred_check_branch
      %228 = sbr.rel (%p225) target = $region36
    $region35: #{_lambda_.13} parent=5 // pred_region
      %s229 = ssub.s32 %s10, 1
      %s230 = smul.u32 32, %s20
      %s231 = smul.u32 3, %s22
      %p232 = scmp.lt.s32.totalorder %s230, 63
      %s233 = scalar_select %p232, %s230, 63
      %p234 = scmp.lt.s32.totalorder %s231, 2
      %s235 = scalar_select %p234, %s231, 2
      %s236 = smul.addr %s233, 3
      %s237 = sadd.s32 %s235, %s236
      %s238 = smul.addr %s237, 4
      %s239 = scalar_lea.vmem %s0, %s238
      %p240 = pneg %p57
      %p241 = pneg %p54
      %s242 = smul.u32 36, %s22
      %p243 = scmp.lt.s32.totalorder %s242, 35
      %s244 = scalar_select %p243, %s242, 35
      %p245 = scmp.lt.s32.totalorder %s21, 0
      %s246 = scalar_select %p245, %s21, 0
      %s247 = sadd.s32 %s246, %s244
      %s248 = smul.addr %s247, 4
      %s249 = scalar_lea.vmem %s1, %s248
      %p250 = pneg %p85
      %p251 = pneg %p82
      %p252 = scmp.lt.s32.totalorder %s21, 0
      %s253 = scalar_select %p252, %s21, 0
      %s254 = scalar_lea.vmem %s2, %s253
      %p255 = pneg %p111
      %p256 = pneg %p108
      %p257 = scmp.lt.s32.totalorder %s21, 0
      %s258 = scalar_select %p257, %s21, 0
      %s259 = scalar_lea.vmem %s3, %s258
      %p260 = pneg %p137
      %p261 = pneg %p134
      %p262 = pneg %p165
      %p263 = pneg %p162
      %s264 = smul.u32 32, %s20
      %p265 = scmp.lt.s32.totalorder %s264, 63
      %s266 = scalar_select %p265, %s264, 63
      %p267 = scmp.lt.s32.totalorder %s21, 0
      %s268 = scalar_select %p267, %s21, 0
      %s269 = sadd.s32 %s268, %s266
      %s270 = smul.addr %s269, 4
      %s271 = scalar_lea.vmem %s4, %s270
      %s272 = smul.u32 32, %s20
      %s273 = smul.u32 3, %s22
      %p274 = scmp.lt.s32.totalorder %s272, 63
      %s275 = scalar_select %p274, %s272, 63
      %p276 = scmp.lt.s32.totalorder %s273, 2
      %s277 = scalar_select %p276, %s273, 2
      %s278 = smul.addr %s275, 3
      %s279 = sadd.s32 %s277, %s278
      %s280 = smul.addr %s279, 4
      %s281 = scalar_lea.vmem %s0, %s280
      %s282 = smul.u32 32, %s20
      %s283 = smul.u32 3, %s22
      %s284 = smul.u32 36, %s22
      %p285 = scmp.lt.s32.totalorder %s284, 35
      %s286 = scalar_select %p285, %s284, 35
      %p287 = scmp.lt.s32.totalorder %s21, 0
      %s288 = scalar_select %p287, %s21, 0
      %s289 = sadd.s32 %s288, %s286
      %s290 = smul.addr %s289, 4
      %s291 = scalar_lea.vmem %s1, %s290
      %s292 = smul.u32 36, %s22
      %p293 = scmp.lt.s32.totalorder %s21, 0
      %s294 = scalar_select %p293, %s21, 0
      %s295 = scalar_lea.vmem %s2, %s294
      %p296 = scmp.lt.s32.totalorder %s21, 0
      %s297 = scalar_select %p296, %s21, 0
      %s298 = scalar_lea.vmem %s3, %s297
      %s299 = smul.u32 32, %s20
      %p300 = scmp.lt.s32.totalorder %s299, 63
      %s301 = scalar_select %p300, %s299, 63
      %p302 = scmp.lt.s32.totalorder %s21, 0
      %s303 = scalar_select %p302, %s21, 0
      %s304 = sadd.s32 %s303, %s301
      %s305 = smul.addr %s304, 4
      %s306 = scalar_lea.vmem %s4, %s305
      %s307 = smul.u32 32, %s20
      %v309 = vld [vmem:[%s281] sm:$0xff]
      %v310 = vld [vmem:[%s281 + $0x8] sm:$0xf]
      %v311 = vld [vmem:[%s281 + $0xc] sm:$0xff]
      %v312 = vld [vmem:[%s281 + $0x14] sm:$0xf]
      %v313 = vld [vmem:[%s281 + $0x18] sm:$0xff]
      %v314 = vld [vmem:[%s281 + $0x20] sm:$0xf]
      %v315 = vld [vmem:[%s281 + $0x24] sm:$0xff]
      %v316 = vld [vmem:[%s281 + $0x2c] sm:$0xf]
      %v317 = vld [vmem:[%s281 + $0x30] sm:$0xff]
      %v318 = vld [vmem:[%s281 + $0x38] sm:$0xf]
      %v319 = vld [vmem:[%s281 + $0x3c] sm:$0xff]
      %v320 = vld [vmem:[%s281 + $0x44] sm:$0xf]
      %v321 = vld [vmem:[%s281 + $0x48] sm:$0xff]
      %v322 = vld [vmem:[%s281 + $0x50] sm:$0xf]
      %v323 = vld [vmem:[%s281 + $0x54] sm:$0xff]
      %v324 = vld [vmem:[%s281 + $0x5c] sm:$0xf]
      %v325 = vld [vmem:[%s281 + $0x60] sm:$0xff]
      %v326 = vld [vmem:[%s281 + $0x68] sm:$0xf]
      %v327 = vld [vmem:[%s281 + $0x6c] sm:$0xff]
      %v328 = vld [vmem:[%s281 + $0x74] sm:$0xf]
      %v329 = vld [vmem:[%s281 + $0x78] sm:$0xff]
      %v330 = vld [vmem:[%s281 + $0x80] sm:$0xf]
      %v331 = vld [vmem:[%s281 + $0x84] sm:$0xff]
      %v332 = vld [vmem:[%s281 + $0x8c] sm:$0xf]
      %v333 = vld [vmem:[%s281 + $0x90] sm:$0xff]
      %v334 = vld [vmem:[%s281 + $0x98] sm:$0xf]
      %v335 = vld [vmem:[%s281 + $0x9c] sm:$0xff]
      %v336 = vld [vmem:[%s281 + $0xa4] sm:$0xf]
      %v337 = vld [vmem:[%s281 + $0xa8] sm:$0xff]
      %v338 = vld [vmem:[%s281 + $0xb0] sm:$0xf]
      %v339 = vld [vmem:[%s281 + $0xb4] sm:$0xff]
      %v340 = vld [vmem:[%s281 + $0xbc] sm:$0xf]
      %v341 = vld [vmem:[%s281 + $0xc0] sm:$0xff]
      %v342 = vld [vmem:[%s281 + $0xc8] sm:$0xf]
      %v343 = vld [vmem:[%s281 + $0xcc] sm:$0xff]
      %v344 = vld [vmem:[%s281 + $0xd4] sm:$0xf]
      %v345 = vld [vmem:[%s281 + $0xd8] sm:$0xff]
      %v346 = vld [vmem:[%s281 + $0xe0] sm:$0xf]
      %v347 = vld [vmem:[%s281 + $0xe4] sm:$0xff]
      %v348 = vld [vmem:[%s281 + $0xec] sm:$0xf]
      %v349 = vld [vmem:[%s281 + $0xf0] sm:$0xff]
      %v350 = vld [vmem:[%s281 + $0xf8] sm:$0xf]
      %v351 = vld [vmem:[%s281 + $0xfc] sm:$0xff]
      %v352 = vld [vmem:[%s281 + $0x104] sm:$0xf]
      %v353 = vld [vmem:[%s281 + $0x108] sm:$0xff]
      %v354 = vld [vmem:[%s281 + $0x110] sm:$0xf]
      %v355 = vld [vmem:[%s281 + $0x114] sm:$0xff]
      %v356 = vld [vmem:[%s281 + $0x11c] sm:$0xf]
      %v357 = vld [vmem:[%s281 + $0x120] sm:$0xff]
      %v358 = vld [vmem:[%s281 + $0x128] sm:$0xf]
      %v359 = vld [vmem:[%s281 + $0x12c] sm:$0xff]
      %v360 = vld [vmem:[%s281 + $0x134] sm:$0xf]
      %v361 = vld [vmem:[%s281 + $0x138] sm:$0xff]
      %v362 = vld [vmem:[%s281 + $0x140] sm:$0xf]
      %v363 = vld [vmem:[%s281 + $0x144] sm:$0xff]
      %v364 = vld [vmem:[%s281 + $0x14c] sm:$0xf]
      %v365 = vld [vmem:[%s281 + $0x150] sm:$0xff]
      %v366 = vld [vmem:[%s281 + $0x158] sm:$0xf]
      %v367 = vld [vmem:[%s281 + $0x15c] sm:$0xff]
      %v368 = vld [vmem:[%s281 + $0x164] sm:$0xf]
      %v369 = vld [vmem:[%s281 + $0x168] sm:$0xff]
      %v370 = vld [vmem:[%s281 + $0x170] sm:$0xf]
      %v371 = vld [vmem:[%s281 + $0x174] sm:$0xff]
      %v372 = vld [vmem:[%s281 + $0x17c] sm:$0xf]
      %v373 = vld [vmem:[%s291] sm:$0xf]
      %v374 = vld [vmem:[%s291 + $0x4] sm:$0xf]
      %v375 = vld [vmem:[%s291 + $0x8] sm:$0xf]
      %v376 = vld [vmem:[%s291 + $0xc] sm:$0xf]
      %v377 = vld [vmem:[%s291 + $0x10] sm:$0xf]
      %v378 = vld [vmem:[%s291 + $0x14] sm:$0xf]
      %v379 = vld [vmem:[%s291 + $0x18] sm:$0xf]
      %v380 = vld [vmem:[%s291 + $0x1c] sm:$0xf]
      %v381 = vld [vmem:[%s291 + $0x20] sm:$0xf]
      %v382 = vld [vmem:[%s291 + $0x24] sm:$0xf]
      %v383 = vld [vmem:[%s291 + $0x28] sm:$0xf]
      %v384 = vld [vmem:[%s291 + $0x2c] sm:$0xf]
      %v385 = vld [vmem:[%s291 + $0x30] sm:$0xf]
      %v386 = vld [vmem:[%s291 + $0x34] sm:$0xf]
      %v387 = vld [vmem:[%s291 + $0x38] sm:$0xf]
      %v388 = vld [vmem:[%s291 + $0x3c] sm:$0xf]
      %v389 = vld [vmem:[%s291 + $0x40] sm:$0xf]
      %v390 = vld [vmem:[%s291 + $0x44] sm:$0xf]
      %v391 = vld [vmem:[%s291 + $0x48] sm:$0xf]
      %v392 = vld [vmem:[%s291 + $0x4c] sm:$0xf]
      %v393 = vld [vmem:[%s291 + $0x50] sm:$0xf]
      %v394 = vld [vmem:[%s291 + $0x54] sm:$0xf]
      %v395 = vld [vmem:[%s291 + $0x58] sm:$0xf]
      %v396 = vld [vmem:[%s291 + $0x5c] sm:$0xf]
      %v397 = vld [vmem:[%s291 + $0x60] sm:$0xf]
      %v398 = vld [vmem:[%s291 + $0x64] sm:$0xf]
      %v399 = vld [vmem:[%s291 + $0x68] sm:$0xf]
      %v400 = vld [vmem:[%s291 + $0x6c] sm:$0xf]
      %v401 = vld [vmem:[%s291 + $0x70] sm:$0xf]
      %v402 = vld [vmem:[%s291 + $0x74] sm:$0xf]
      %v403 = vld [vmem:[%s291 + $0x78] sm:$0xf]
      %v404 = vld [vmem:[%s291 + $0x7c] sm:$0xf]
      %v405 = vld [vmem:[%s291 + $0x80] sm:$0xf]
      %v406 = vld [vmem:[%s291 + $0x84] sm:$0xf]
      %v407 = vld [vmem:[%s291 + $0x88] sm:$0xf]
      %v408 = vld [vmem:[%s291 + $0x8c] sm:$0xf]
      %v473 = vunpack.c.l.b16 %v309
      %v474 = vunpack.c.h.b16 %v309
      %v475 = vunpack.c.l.b16 %v310
      %v476 = vunpack.c.l.b16 %v311
      %v477 = vunpack.c.h.b16 %v311
      %v478 = vunpack.c.l.b16 %v312
      %v479 = vunpack.c.l.b16 %v313
      %v480 = vunpack.c.h.b16 %v313
      %v481 = vunpack.c.l.b16 %v314
      %v482 = vunpack.c.l.b16 %v315
      %v483 = vunpack.c.h.b16 %v315
      %v484 = vunpack.c.l.b16 %v316
      %v485 = vunpack.c.l.b16 %v317
      %v486 = vunpack.c.h.b16 %v317
      %v487 = vunpack.c.l.b16 %v318
      %v488 = vunpack.c.l.b16 %v319
      %v489 = vunpack.c.h.b16 %v319
      %v490 = vunpack.c.l.b16 %v320
      %v491 = vunpack.c.l.b16 %v321
      %v492 = vunpack.c.h.b16 %v321
      %v493 = vunpack.c.l.b16 %v322
      %v494 = vunpack.c.l.b16 %v323
      %v495 = vunpack.c.h.b16 %v323
      %v496 = vunpack.c.l.b16 %v324
      %v497 = vunpack.c.l.b16 %v325
      %v498 = vunpack.c.h.b16 %v325
      %v499 = vunpack.c.l.b16 %v326
      %v500 = vunpack.c.l.b16 %v327
      %v501 = vunpack.c.h.b16 %v327
      %v502 = vunpack.c.l.b16 %v328
      %v503 = vunpack.c.l.b16 %v329
      %v504 = vunpack.c.h.b16 %v329
      %v505 = vunpack.c.l.b16 %v330
      %v506 = vunpack.c.l.b16 %v331
      %v507 = vunpack.c.h.b16 %v331
      %v508 = vunpack.c.l.b16 %v332
      %v509 = vunpack.c.l.b16 %v333
      %v510 = vunpack.c.h.b16 %v333
      %v511 = vunpack.c.l.b16 %v334
      %v512 = vunpack.c.l.b16 %v335
      %v513 = vunpack.c.h.b16 %v335
      %v514 = vunpack.c.l.b16 %v336
      %v515 = vunpack.c.l.b16 %v337
      %v516 = vunpack.c.h.b16 %v337
      %v517 = vunpack.c.l.b16 %v338
      %v518 = vunpack.c.l.b16 %v339
      %v519 = vunpack.c.h.b16 %v339
      %v520 = vunpack.c.l.b16 %v340
      %v521 = vunpack.c.l.b16 %v341
      %v522 = vunpack.c.h.b16 %v341
      %v523 = vunpack.c.l.b16 %v342
      %v524 = vunpack.c.l.b16 %v343
      %v525 = vunpack.c.h.b16 %v343
      %v526 = vunpack.c.l.b16 %v344
      %v527 = vunpack.c.l.b16 %v345
      %v528 = vunpack.c.h.b16 %v345
      %v529 = vunpack.c.l.b16 %v346
      %v530 = vunpack.c.l.b16 %v347
      %v531 = vunpack.c.h.b16 %v347
      %v532 = vunpack.c.l.b16 %v348
      %v533 = vunpack.c.l.b16 %v349
      %v534 = vunpack.c.h.b16 %v349
      %v535 = vunpack.c.l.b16 %v350
      %v536 = vunpack.c.l.b16 %v351
      %v537 = vunpack.c.h.b16 %v351
      %v538 = vunpack.c.l.b16 %v352
      %v539 = vunpack.c.l.b16 %v353
      %v540 = vunpack.c.h.b16 %v353
      %v541 = vunpack.c.l.b16 %v354
      %v542 = vunpack.c.l.b16 %v355
      %v543 = vunpack.c.h.b16 %v355
      %v544 = vunpack.c.l.b16 %v356
      %v545 = vunpack.c.l.b16 %v357
      %v546 = vunpack.c.h.b16 %v357
      %v547 = vunpack.c.l.b16 %v358
      %v548 = vunpack.c.l.b16 %v359
      %v549 = vunpack.c.h.b16 %v359
      %v550 = vunpack.c.l.b16 %v360
      %v551 = vunpack.c.l.b16 %v361
      %v552 = vunpack.c.h.b16 %v361
      %v553 = vunpack.c.l.b16 %v362
      %v554 = vunpack.c.l.b16 %v363
      %v555 = vunpack.c.h.b16 %v363
      %v556 = vunpack.c.l.b16 %v364
      %v557 = vunpack.c.l.b16 %v365
      %v558 = vunpack.c.h.b16 %v365
      %v559 = vunpack.c.l.b16 %v366
      %v560 = vunpack.c.l.b16 %v367
      %v561 = vunpack.c.h.b16 %v367
      %v562 = vunpack.c.l.b16 %v368
      %v563 = vunpack.c.l.b16 %v369
      %v564 = vunpack.c.h.b16 %v369
      %v565 = vunpack.c.l.b16 %v370
      %v566 = vunpack.c.l.b16 %v371
      %v567 = vunpack.c.h.b16 %v371
      %v568 = vunpack.c.l.b16 %v372
      %v569 = vpack.c.b16 %v476, %v473
      %v570 = vpack.c.b16 %v477, %v474
      %v571 = vpack.c.b16 %v478, %v475
      %v572 = vpack.c.b16 %v482, %v479
      %v573 = vpack.c.b16 %v483, %v480
      %v574 = vpack.c.b16 %v484, %v481
      %v575 = vpack.c.b16 %v488, %v485
      %v576 = vpack.c.b16 %v489, %v486
      %v577 = vpack.c.b16 %v490, %v487
      %v578 = vpack.c.b16 %v494, %v491
      %v579 = vpack.c.b16 %v495, %v492
      %v580 = vpack.c.b16 %v496, %v493
      %v581 = vpack.c.b16 %v500, %v497
      %v582 = vpack.c.b16 %v501, %v498
      %v583 = vpack.c.b16 %v502, %v499
      %v584 = vpack.c.b16 %v506, %v503
      %v585 = vpack.c.b16 %v507, %v504
      %v586 = vpack.c.b16 %v508, %v505
      %v587 = vpack.c.b16 %v512, %v509
      %v588 = vpack.c.b16 %v513, %v510
      %v589 = vpack.c.b16 %v514, %v511
      %v590 = vpack.c.b16 %v518, %v515
      %v591 = vpack.c.b16 %v519, %v516
      %v592 = vpack.c.b16 %v520, %v517
      %v593 = vpack.c.b16 %v524, %v521
      %v594 = vpack.c.b16 %v525, %v522
      %v595 = vpack.c.b16 %v526, %v523
      %v596 = vpack.c.b16 %v530, %v527
      %v597 = vpack.c.b16 %v531, %v528
      %v598 = vpack.c.b16 %v532, %v529
      %v599 = vpack.c.b16 %v536, %v533
      %v600 = vpack.c.b16 %v537, %v534
      %v601 = vpack.c.b16 %v538, %v535
      %v602 = vpack.c.b16 %v542, %v539
      %v603 = vpack.c.b16 %v543, %v540
      %v604 = vpack.c.b16 %v544, %v541
      %v605 = vpack.c.b16 %v548, %v545
      %v606 = vpack.c.b16 %v549, %v546
      %v607 = vpack.c.b16 %v550, %v547
      %v608 = vpack.c.b16 %v554, %v551
      %v609 = vpack.c.b16 %v555, %v552
      %v610 = vpack.c.b16 %v556, %v553
      %v611 = vpack.c.b16 %v560, %v557
      %v612 = vpack.c.b16 %v561, %v558
      %v613 = vpack.c.b16 %v562, %v559
      %v614 = vpack.c.b16 %v566, %v563
      %v615 = vpack.c.b16 %v567, %v564
      %v616 = vpack.c.b16 %v568, %v565
      %v685 = vunpack.c.l.b16 %v373
      %v686 = vunpack.c.l.b16 %v374
      %v687 = vunpack.c.l.b16 %v375
      %v688 = vunpack.c.l.b16 %v376
      %v689 = vunpack.c.l.b16 %v377
      %v690 = vunpack.c.l.b16 %v378
      %v691 = vunpack.c.l.b16 %v379
      %v692 = vunpack.c.l.b16 %v380
      %v693 = vunpack.c.l.b16 %v381
      %v694 = vunpack.c.l.b16 %v382
      %v695 = vunpack.c.l.b16 %v383
      %v696 = vunpack.c.l.b16 %v384
      %v697 = vunpack.c.l.b16 %v385
      %v698 = vunpack.c.l.b16 %v386
      %v699 = vunpack.c.l.b16 %v387
      %v700 = vunpack.c.l.b16 %v388
      %v701 = vunpack.c.l.b16 %v389
      %v702 = vunpack.c.l.b16 %v390
      %v703 = vunpack.c.l.b16 %v391
      %v704 = vunpack.c.l.b16 %v392
      %v705 = vunpack.c.l.b16 %v393
      %v706 = vunpack.c.l.b16 %v394
      %v707 = vunpack.c.l.b16 %v395
      %v708 = vunpack.c.l.b16 %v396
      %v709 = vunpack.c.l.b16 %v397
      %v710 = vunpack.c.l.b16 %v398
      %v711 = vunpack.c.l.b16 %v399
      %v712 = vunpack.c.l.b16 %v400
      %v713 = vunpack.c.l.b16 %v401
      %v714 = vunpack.c.l.b16 %v402
      %v715 = vunpack.c.l.b16 %v403
      %v716 = vunpack.c.l.b16 %v404
      %v717 = vunpack.c.l.b16 %v405
      %v718 = vunpack.c.l.b16 %v406
      %v719 = vunpack.c.l.b16 %v407
      %v720 = vunpack.c.l.b16 %v408
      %v721 = vpack.c.b16 %v686, %v685
      %v722 = vpack.c.b16 %v688, %v687
      %v723 = vpack.c.b16 %v690, %v689
      %v724 = vpack.c.b16 %v692, %v691
      %v725 = vpack.c.b16 %v694, %v693
      %v726 = vpack.c.b16 %v696, %v695
      %v727 = vpack.c.b16 %v698, %v697
      %v728 = vpack.c.b16 %v700, %v699
      %v729 = vpack.c.b16 %v702, %v701
      %v730 = vpack.c.b16 %v704, %v703
      %v731 = vpack.c.b16 %v706, %v705
      %v732 = vpack.c.b16 %v708, %v707
      %v733 = vpack.c.b16 %v710, %v709
      %v734 = vpack.c.b16 %v712, %v711
      %v735 = vpack.c.b16 %v714, %v713
      %v736 = vpack.c.b16 %v716, %v715
      %v737 = vpack.c.b16 %v718, %v717
      %v738 = vpack.c.b16 %v720, %v719
      %vm757 = vcmask 261120
      %v759 = vsel %vm757, %v571, 0
      %v762 = vsel %vm757, %v574, 0
      %v765 = vsel %vm757, %v577, 0
      %v768 = vsel %vm757, %v580, 0
      %v771 = vsel %vm757, %v583, 0
      %v774 = vsel %vm757, %v586, 0
      %v777 = vsel %vm757, %v589, 0
      %v780 = vsel %vm757, %v592, 0
      %v783 = vsel %vm757, %v595, 0
      %v786 = vsel %vm757, %v598, 0
      %v789 = vsel %vm757, %v601, 0
      %v792 = vsel %vm757, %v604, 0
      %v795 = vsel %vm757, %v607, 0
      %v798 = vsel %vm757, %v610, 0
      %v801 = vsel %vm757, %v613, 0
      %v804 = vsel %vm757, %v616, 0
      %806 = vmatprep.subr.bf16.mxu0 0
      %807 = vmatpush1.bf16.msra.mxu0 %v728
      %808 = vmatprep.subr.bf16.mxu0 0
      %809 = vmatpush1.bf16.msra.mxu0 %v727
      %810 = vmatprep.subr.bf16.mxu0 0
      %811 = vmatpush1.bf16.msra.mxu0 %v726
      %812 = vmatprep.subr.bf16.mxu0 0
      %813 = vmatpush1.bf16.msra.mxu0 %v725
      %814 = vmatprep.subr.bf16.mxu0 0
      %815 = vmatpush1.bf16.msra.mxu0 %v724
      %816 = vmatprep.subr.bf16.mxu0 0
      %817 = vmatpush1.bf16.msra.mxu0 %v723
      %818 = vmatprep.subr.bf16.mxu0 0
      %819 = vmatpush1.bf16.msra.mxu0 %v722
      %820 = vmatprep.subr.bf16.mxu0 0
      %821 = vmatpush1.bf16.msra.mxu0 %v721
      %822 = vmatprep.subr.bf16.mxu0 0
      %823 = vmatpush2.bf16.msra.mxu0 %v736
      %824 = vmatprep.subr.bf16.mxu0 0
      %825 = vmatpush2.bf16.msra.mxu0 %v735
      %826 = vmatprep.subr.bf16.mxu0 0
      %827 = vmatpush2.bf16.msra.mxu0 %v734
      %828 = vmatprep.subr.bf16.mxu0 0
      %829 = vmatpush2.bf16.msra.mxu0 %v733
      %830 = vmatprep.subr.bf16.mxu0 0
      %831 = vmatpush2.bf16.msra.mxu0 %v732
      %832 = vmatprep.subr.bf16.mxu0 0
      %833 = vmatpush2.bf16.msra.mxu0 %v731
      %834 = vmatprep.subr.bf16.mxu0 0
      %835 = vmatpush2.bf16.msra.mxu0 %v730
      %836 = vmatprep.subr.bf16.mxu0 0
      %837 = vmatpush2.bf16.msra.mxu0 %v729
      %838 = vmatprep.mubr.bf16.mxu0 %v570
      %839 = vmatmul.mubr.bf16.gmra.mxu0 %v569
      %v840 = vpop.f32.mrf.mxu0
      %v841 = vadd.f32 0.0, %v840
      %v842 = vpop.f32.mrf.mxu0
      %v843 = vpop.f32.mrf.mxu0
      %v844 = vadd.f32 0.0, %v843
      %v845 = vpop.f32.mrf.mxu0
      %846 = vmatprep.mubr.bf16.mxu0 %v573
      %847 = vmatmul.mubr.bf16.gmra.mxu0 %v572
      %v848 = vpop.f32.mrf.mxu0
      %v849 = vadd.f32 0.0, %v848
      %v850 = vpop.f32.mrf.mxu0
      %v851 = vpop.f32.mrf.mxu0
      %v852 = vadd.f32 0.0, %v851
      %v853 = vpop.f32.mrf.mxu0
      %854 = vmatprep.mubr.bf16.mxu0 %v576
      %855 = vmatmul.mubr.bf16.gmra.mxu0 %v575
      %v856 = vpop.f32.mrf.mxu0
      %v857 = vadd.f32 0.0, %v856
      %v858 = vpop.f32.mrf.mxu0
      %v859 = vpop.f32.mrf.mxu0
      %v860 = vadd.f32 0.0, %v859
      %v861 = vpop.f32.mrf.mxu0
      %862 = vmatprep.mubr.bf16.mxu0 %v579
      %863 = vmatmul.mubr.bf16.gmra.mxu0 %v578
      %v864 = vpop.f32.mrf.mxu0
      %v865 = vadd.f32 0.0, %v864
      %v866 = vpop.f32.mrf.mxu0
      %v867 = vpop.f32.mrf.mxu0
      %v868 = vadd.f32 0.0, %v867
      %v869 = vpop.f32.mrf.mxu0
      %870 = vmatprep.mubr.bf16.mxu0 %v582
      %871 = vmatmul.mubr.bf16.gmra.mxu0 %v581
      %v872 = vpop.f32.mrf.mxu0
      %v873 = vadd.f32 0.0, %v872
      %v874 = vpop.f32.mrf.mxu0
      %v875 = vpop.f32.mrf.mxu0
      %v876 = vadd.f32 0.0, %v875
      %v877 = vpop.f32.mrf.mxu0
      %878 = vmatprep.mubr.bf16.mxu0 %v585
      %879 = vmatmul.mubr.bf16.gmra.mxu0 %v584
      %v880 = vpop.f32.mrf.mxu0
      %v881 = vadd.f32 0.0, %v880
      %v882 = vpop.f32.mrf.mxu0
      %v883 = vpop.f32.mrf.mxu0
      %v884 = vadd.f32 0.0, %v883
      %v885 = vpop.f32.mrf.mxu0
      %886 = vmatprep.mubr.bf16.mxu0 %v588
      %887 = vmatmul.mubr.bf16.gmra.mxu0 %v587
      %v888 = vpop.f32.mrf.mxu0
      %v889 = vadd.f32 0.0, %v888
      %v890 = vpop.f32.mrf.mxu0
      %v891 = vpop.f32.mrf.mxu0
      %v892 = vadd.f32 0.0, %v891
      %v893 = vpop.f32.mrf.mxu0
      %894 = vmatprep.mubr.bf16.mxu0 %v591
      %895 = vmatmul.mubr.bf16.gmra.mxu0 %v590
      %v896 = vpop.f32.mrf.mxu0
      %v897 = vadd.f32 0.0, %v896
      %v898 = vpop.f32.mrf.mxu0
      %v899 = vpop.f32.mrf.mxu0
      %v900 = vadd.f32 0.0, %v899
      %v901 = vpop.f32.mrf.mxu0
      %902 = vmatprep.mubr.bf16.mxu0 %v594
      %903 = vmatmul.mubr.bf16.gmra.mxu0 %v593
      %v904 = vpop.f32.mrf.mxu0
      %v905 = vadd.f32 0.0, %v904
      %v906 = vpop.f32.mrf.mxu0
      %v907 = vpop.f32.mrf.mxu0
      %v908 = vadd.f32 0.0, %v907
      %v909 = vpop.f32.mrf.mxu0
      %910 = vmatprep.mubr.bf16.mxu0 %v597
      %911 = vmatmul.mubr.bf16.gmra.mxu0 %v596
      %v912 = vpop.f32.mrf.mxu0
      %v913 = vadd.f32 0.0, %v912
      %v914 = vpop.f32.mrf.mxu0
      %v915 = vpop.f32.mrf.mxu0
      %v916 = vadd.f32 0.0, %v915
      %v917 = vpop.f32.mrf.mxu0
      %918 = vmatprep.mubr.bf16.mxu0 %v600
      %919 = vmatmul.mubr.bf16.gmra.mxu0 %v599
      %v920 = vpop.f32.mrf.mxu0
      %v921 = vadd.f32 0.0, %v920
      %v922 = vpop.f32.mrf.mxu0
      %v923 = vpop.f32.mrf.mxu0
      %v924 = vadd.f32 0.0, %v923
      %v925 = vpop.f32.mrf.mxu0
      %926 = vmatprep.mubr.bf16.mxu0 %v603
      %927 = vmatmul.mubr.bf16.gmra.mxu0 %v602
      %v928 = vpop.f32.mrf.mxu0
      %v929 = vadd.f32 0.0, %v928
      %v930 = vpop.f32.mrf.mxu0
      %v931 = vpop.f32.mrf.mxu0
      %v932 = vadd.f32 0.0, %v931
      %v933 = vpop.f32.mrf.mxu0
      %934 = vmatprep.mubr.bf16.mxu0 %v606
      %935 = vmatmul.mubr.bf16.gmra.mxu0 %v605
      %v936 = vpop.f32.mrf.mxu0
      %v937 = vadd.f32 0.0, %v936
      %v938 = vpop.f32.mrf.mxu0
      %v939 = vpop.f32.mrf.mxu0
      %v940 = vadd.f32 0.0, %v939
      %v941 = vpop.f32.mrf.mxu0
      %942 = vmatprep.mubr.bf16.mxu0 %v609
      %943 = vmatmul.mubr.bf16.gmra.mxu0 %v608
      %v944 = vpop.f32.mrf.mxu0
      %v945 = vadd.f32 0.0, %v944
      %v946 = vpop.f32.mrf.mxu0
      %v947 = vpop.f32.mrf.mxu0
      %v948 = vadd.f32 0.0, %v947
      %v949 = vpop.f32.mrf.mxu0
      %950 = vmatprep.mubr.bf16.mxu0 %v612
      %951 = vmatmul.mubr.bf16.gmra.mxu0 %v611
      %v952 = vpop.f32.mrf.mxu0
      %v953 = vadd.f32 0.0, %v952
      %v954 = vpop.f32.mrf.mxu0
      %v955 = vpop.f32.mrf.mxu0
      %v956 = vadd.f32 0.0, %v955
      %v957 = vpop.f32.mrf.mxu0
      %958 = vmatprep.mubr.bf16.mxu0 %v615
      %959 = vmatmul.mubr.bf16.gmra.mxu0 %v614
      %v960 = vpop.f32.mrf.mxu0
      %v961 = vadd.f32 0.0, %v960
      %v962 = vpop.f32.mrf.mxu0
      %v963 = vpop.f32.mrf.mxu0
      %v964 = vadd.f32 0.0, %v963
      %v965 = vpop.f32.mrf.mxu0
      %966 = vdwg.mxu0
      %967 = vmatprep.subr.bf16.mxu0 0
      %968 = vmatpush1.bf16.msra.mxu0 0
      %969 = vmatprep.subr.bf16.mxu0 0
      %970 = vmatpush1.bf16.msra.mxu0 0
      %971 = vmatprep.subr.bf16.mxu0 0
      %972 = vmatpush1.bf16.msra.mxu0 0
      %973 = vmatprep.subr.bf16.mxu0 0
      %974 = vmatpush1.bf16.msra.mxu0 0
      %975 = vmatprep.subr.bf16.mxu0 0
      %976 = vmatpush1.bf16.msra.mxu0 0
      %977 = vmatprep.subr.bf16.mxu0 0
      %978 = vmatpush1.bf16.msra.mxu0 0
      %979 = vmatprep.subr.bf16.mxu0 0
      %980 = vmatpush1.bf16.msra.mxu0 %v738
      %981 = vmatprep.subr.bf16.mxu0 0
      %982 = vmatpush1.bf16.msra.mxu0 %v737
      %983 = vmatprep.subr.bf16.mxu0 0
      %984 = vmatpush2.bf16.msra.mxu0 0
      %985 = vmatprep.subr.bf16.mxu0 0
      %986 = vmatpush2.bf16.msra.mxu0 0
      %987 = vmatprep.subr.bf16.mxu0 0
      %988 = vmatpush2.bf16.msra.mxu0 0
      %989 = vmatprep.subr.bf16.mxu0 0
      %990 = vmatpush2.bf16.msra.mxu0 0
      %991 = vmatprep.subr.bf16.mxu0 0
      %992 = vmatpush2.bf16.msra.mxu0 0
      %993 = vmatprep.subr.bf16.mxu0 0
      %994 = vmatpush2.bf16.msra.mxu0 0
      %995 = vmatprep.subr.bf16.mxu0 0
      %996 = vmatpush2.bf16.msra.mxu0 0
      %997 = vmatprep.subr.bf16.mxu0 0
      %998 = vmatpush2.bf16.msra.mxu0 0
      %999 = vmatprep.mubr.bf16.mxu0 0
      %1000 = vmatmul.mubr.bf16.gmra.mxu0 %v759
      %v1001 = vpop.f32.mrf.mxu0
      %v1002 = vadd.f32 %v841, %v1001
      %v1003 = vpop.f32.mrf.mxu0
      %v1004 = vpop.f32.mrf.mxu0
      %v1005 = vadd.f32 %v844, %v1004
      %v1006 = vpop.f32.mrf.mxu0
      %1007 = vmatprep.mubr.bf16.mxu0 0
      %1008 = vmatmul.mubr.bf16.gmra.mxu0 %v762
      %v1009 = vpop.f32.mrf.mxu0
      %v1010 = vadd.f32 %v849, %v1009
      %v1011 = vpop.f32.mrf.mxu0
      %v1012 = vpop.f32.mrf.mxu0
      %v1013 = vadd.f32 %v852, %v1012
      %v1014 = vpop.f32.mrf.mxu0
      %1015 = vmatprep.mubr.bf16.mxu0 0
      %1016 = vmatmul.mubr.bf16.gmra.mxu0 %v765
      %v1017 = vpop.f32.mrf.mxu0
      %v1018 = vadd.f32 %v857, %v1017
      %v1019 = vpop.f32.mrf.mxu0
      %v1020 = vpop.f32.mrf.mxu0
      %v1021 = vadd.f32 %v860, %v1020
      %v1022 = vpop.f32.mrf.mxu0
      %1023 = vmatprep.mubr.bf16.mxu0 0
      %1024 = vmatmul.mubr.bf16.gmra.mxu0 %v768
      %v1025 = vpop.f32.mrf.mxu0
      %v1026 = vadd.f32 %v865, %v1025
      %v1027 = vpop.f32.mrf.mxu0
      %v1028 = vpop.f32.mrf.mxu0
      %v1029 = vadd.f32 %v868, %v1028
      %v1030 = vpop.f32.mrf.mxu0
      %1031 = vmatprep.mubr.bf16.mxu0 0
      %1032 = vmatmul.mubr.bf16.gmra.mxu0 %v771
      %v1033 = vpop.f32.mrf.mxu0
      %v1034 = vadd.f32 %v873, %v1033
      %v1035 = vpop.f32.mrf.mxu0
      %v1036 = vpop.f32.mrf.mxu0
      %v1037 = vadd.f32 %v876, %v1036
      %v1038 = vpop.f32.mrf.mxu0
      %1039 = vmatprep.mubr.bf16.mxu0 0
      %1040 = vmatmul.mubr.bf16.gmra.mxu0 %v774
      %v1041 = vpop.f32.mrf.mxu0
      %v1042 = vadd.f32 %v881, %v1041
      %v1043 = vpop.f32.mrf.mxu0
      %v1044 = vpop.f32.mrf.mxu0
      %v1045 = vadd.f32 %v884, %v1044
      %v1046 = vpop.f32.mrf.mxu0
      %1047 = vmatprep.mubr.bf16.mxu0 0
      %1048 = vmatmul.mubr.bf16.gmra.mxu0 %v777
      %v1049 = vpop.f32.mrf.mxu0
      %v1050 = vadd.f32 %v889, %v1049
      %v1051 = vpop.f32.mrf.mxu0
      %v1052 = vpop.f32.mrf.mxu0
      %v1053 = vadd.f32 %v892, %v1052
      %v1054 = vpop.f32.mrf.mxu0
      %1055 = vmatprep.mubr.bf16.mxu0 0
      %1056 = vmatmul.mubr.bf16.gmra.mxu0 %v780
      %v1057 = vpop.f32.mrf.mxu0
      %v1058 = vadd.f32 %v897, %v1057
      %v1059 = vpop.f32.mrf.mxu0
      %v1060 = vpop.f32.mrf.mxu0
      %v1061 = vadd.f32 %v900, %v1060
      %v1062 = vpop.f32.mrf.mxu0
      %1063 = vmatprep.mubr.bf16.mxu0 0
      %1064 = vmatmul.mubr.bf16.gmra.mxu0 %v783
      %v1065 = vpop.f32.mrf.mxu0
      %v1066 = vadd.f32 %v905, %v1065
      %v1067 = vpop.f32.mrf.mxu0
      %v1068 = vpop.f32.mrf.mxu0
      %v1069 = vadd.f32 %v908, %v1068
      %v1070 = vpop.f32.mrf.mxu0
      %1071 = vmatprep.mubr.bf16.mxu0 0
      %1072 = vmatmul.mubr.bf16.gmra.mxu0 %v786
      %v1073 = vpop.f32.mrf.mxu0
      %v1074 = vadd.f32 %v913, %v1073
      %v1075 = vpop.f32.mrf.mxu0
      %v1076 = vpop.f32.mrf.mxu0
      %v1077 = vadd.f32 %v916, %v1076
      %v1078 = vpop.f32.mrf.mxu0
      %1079 = vmatprep.mubr.bf16.mxu0 0
      %1080 = vmatmul.mubr.bf16.gmra.mxu0 %v789
      %v1081 = vpop.f32.mrf.mxu0
      %v1082 = vadd.f32 %v921, %v1081
      %v1083 = vpop.f32.mrf.mxu0
      %v1084 = vpop.f32.mrf.mxu0
      %v1085 = vadd.f32 %v924, %v1084
      %v1086 = vpop.f32.mrf.mxu0
      %1087 = vmatprep.mubr.bf16.mxu0 0
      %1088 = vmatmul.mubr.bf16.gmra.mxu0 %v792
      %v1089 = vpop.f32.mrf.mxu0
      %v1090 = vadd.f32 %v929, %v1089
      %v1091 = vpop.f32.mrf.mxu0
      %v1092 = vpop.f32.mrf.mxu0
      %v1093 = vadd.f32 %v932, %v1092
      %v1094 = vpop.f32.mrf.mxu0
      %1095 = vmatprep.mubr.bf16.mxu0 0
      %1096 = vmatmul.mubr.bf16.gmra.mxu0 %v795
      %v1097 = vpop.f32.mrf.mxu0
      %v1098 = vadd.f32 %v937, %v1097
      %v1099 = vpop.f32.mrf.mxu0
      %v1100 = vpop.f32.mrf.mxu0
      %v1101 = vadd.f32 %v940, %v1100
      %v1102 = vpop.f32.mrf.mxu0
      %1103 = vmatprep.mubr.bf16.mxu0 0
      %1104 = vmatmul.mubr.bf16.gmra.mxu0 %v798
      %v1105 = vpop.f32.mrf.mxu0
      %v1106 = vadd.f32 %v945, %v1105
      %v1107 = vpop.f32.mrf.mxu0
      %v1108 = vpop.f32.mrf.mxu0
      %v1109 = vadd.f32 %v948, %v1108
      %v1110 = vpop.f32.mrf.mxu0
      %1111 = vmatprep.mubr.bf16.mxu0 0
      %1112 = vmatmul.mubr.bf16.gmra.mxu0 %v801
      %v1113 = vpop.f32.mrf.mxu0
      %v1114 = vadd.f32 %v953, %v1113
      %v1115 = vpop.f32.mrf.mxu0
      %v1116 = vpop.f32.mrf.mxu0
      %v1117 = vadd.f32 %v956, %v1116
      %v1118 = vpop.f32.mrf.mxu0
      %1119 = vmatprep.mubr.bf16.mxu0 0
      %1120 = vmatmul.mubr.bf16.gmra.mxu0 %v804
      %v1121 = vpop.f32.mrf.mxu0
      %v1122 = vadd.f32 %v961, %v1121
      %v1123 = vpop.f32.mrf.mxu0
      %v1124 = vpop.f32.mrf.mxu0
      %v1125 = vadd.f32 %v964, %v1124
      %v1126 = vpop.f32.mrf.mxu0
      %1127 = vdwg.mxu0
      %v1128 = vld [vmem:[%s295] sm:$0x1]
      %v1130 = vlaneseq
      %v1131 = vshrl.u32 %v1130, 7
      %v1132 = vsub.s32 0, %v1131
      %v1133 = vrot.slane %v1128, %v1132
      %v1135 = vmul.f32 %v1002, %v1133
      %v1136 = vmul.f32 %v1005, %v1133
      %v1137 = vmul.f32 %v1010, %v1133
      %v1138 = vmul.f32 %v1013, %v1133
      %v1139 = vmul.f32 %v1018, %v1133
      %v1140 = vmul.f32 %v1021, %v1133
      %v1141 = vmul.f32 %v1026, %v1133
      %v1142 = vmul.f32 %v1029, %v1133
      %v1143 = vmul.f32 %v1034, %v1133
      %v1144 = vmul.f32 %v1037, %v1133
      %v1145 = vmul.f32 %v1042, %v1133
      %v1146 = vmul.f32 %v1045, %v1133
      %v1147 = vmul.f32 %v1050, %v1133
      %v1148 = vmul.f32 %v1053, %v1133
      %v1149 = vmul.f32 %v1058, %v1133
      %v1150 = vmul.f32 %v1061, %v1133
      %v1151 = vmul.f32 %v1066, %v1133
      %v1152 = vmul.f32 %v1069, %v1133
      %v1153 = vmul.f32 %v1074, %v1133
      %v1154 = vmul.f32 %v1077, %v1133
      %v1155 = vmul.f32 %v1082, %v1133
      %v1156 = vmul.f32 %v1085, %v1133
      %v1157 = vmul.f32 %v1090, %v1133
      %v1158 = vmul.f32 %v1093, %v1133
      %v1159 = vmul.f32 %v1098, %v1133
      %v1160 = vmul.f32 %v1101, %v1133
      %v1161 = vmul.f32 %v1106, %v1133
      %v1162 = vmul.f32 %v1109, %v1133
      %v1163 = vmul.f32 %v1114, %v1133
      %v1164 = vmul.f32 %v1117, %v1133
      %v1165 = vmul.f32 %v1122, %v1133
      %v1166 = vmul.f32 %v1125, %v1133
      %v1167 = vld [vmem:[%s298] sm:$0x1]
      %v1169 = vlaneseq
      %v1170 = vshrl.u32 %v1169, 7
      %v1171 = vsub.s32 0, %v1170
      %v1172 = vrot.slane %v1167, %v1171
      %v1174 = vadd.f32 %v1135, %v1172
      %v1175 = vadd.f32 %v1136, %v1172
      %v1176 = vadd.f32 %v1137, %v1172
      %v1177 = vadd.f32 %v1138, %v1172
      %v1178 = vadd.f32 %v1139, %v1172
      %v1179 = vadd.f32 %v1140, %v1172
      %v1180 = vadd.f32 %v1141, %v1172
      %v1181 = vadd.f32 %v1142, %v1172
      %v1182 = vadd.f32 %v1143, %v1172
      %v1183 = vadd.f32 %v1144, %v1172
      %v1184 = vadd.f32 %v1145, %v1172
      %v1185 = vadd.f32 %v1146, %v1172
      %v1186 = vadd.f32 %v1147, %v1172
      %v1187 = vadd.f32 %v1148, %v1172
      %v1188 = vadd.f32 %v1149, %v1172
      %v1189 = vadd.f32 %v1150, %v1172
      %v1190 = vadd.f32 %v1151, %v1172
      %v1191 = vadd.f32 %v1152, %v1172
      %v1192 = vadd.f32 %v1153, %v1172
      %v1193 = vadd.f32 %v1154, %v1172
      %v1194 = vadd.f32 %v1155, %v1172
      %v1195 = vadd.f32 %v1156, %v1172
      %v1196 = vadd.f32 %v1157, %v1172
      %v1197 = vadd.f32 %v1158, %v1172
      %v1198 = vadd.f32 %v1159, %v1172
      %v1199 = vadd.f32 %v1160, %v1172
      %v1200 = vadd.f32 %v1161, %v1172
      %v1201 = vadd.f32 %v1162, %v1172
      %v1202 = vadd.f32 %v1163, %v1172
      %v1203 = vadd.f32 %v1164, %v1172
      %v1204 = vadd.f32 %v1165, %v1172
      %v1205 = vadd.f32 %v1166, %v1172
      %v1206 = vmax.f32 %v1174, 0.0
      %v1207 = vmax.f32 %v1175, 0.0
      %v1208 = vmax.f32 %v1176, 0.0
      %v1209 = vmax.f32 %v1177, 0.0
      %v1210 = vmax.f32 %v1178, 0.0
      %v1211 = vmax.f32 %v1179, 0.0
      %v1212 = vmax.f32 %v1180, 0.0
      %v1213 = vmax.f32 %v1181, 0.0
      %v1214 = vmax.f32 %v1182, 0.0
      %v1215 = vmax.f32 %v1183, 0.0
      %v1216 = vmax.f32 %v1184, 0.0
      %v1217 = vmax.f32 %v1185, 0.0
      %v1218 = vmax.f32 %v1186, 0.0
      %v1219 = vmax.f32 %v1187, 0.0
      %v1220 = vmax.f32 %v1188, 0.0
      %v1221 = vmax.f32 %v1189, 0.0
      %v1222 = vmax.f32 %v1190, 0.0
      %v1223 = vmax.f32 %v1191, 0.0
      %v1224 = vmax.f32 %v1192, 0.0
      %v1225 = vmax.f32 %v1193, 0.0
      %v1226 = vmax.f32 %v1194, 0.0
      %v1227 = vmax.f32 %v1195, 0.0
      %v1228 = vmax.f32 %v1196, 0.0
      %v1229 = vmax.f32 %v1197, 0.0
      %v1230 = vmax.f32 %v1198, 0.0
      %v1231 = vmax.f32 %v1199, 0.0
      %v1232 = vmax.f32 %v1200, 0.0
      %v1233 = vmax.f32 %v1201, 0.0
      %v1234 = vmax.f32 %v1202, 0.0
      %v1235 = vmax.f32 %v1203, 0.0
      %v1236 = vmax.f32 %v1204, 0.0
      %v1237 = vmax.f32 %v1205, 0.0
      %v1238 = vpack.c.bf16 %v1207, %v1206
      %v1239 = vpack.c.bf16 %v1209, %v1208
      %v1240 = vpack.c.bf16 %v1211, %v1210
      %v1241 = vpack.c.bf16 %v1213, %v1212
      %v1242 = vpack.c.bf16 %v1215, %v1214
      %v1243 = vpack.c.bf16 %v1217, %v1216
      %v1244 = vpack.c.bf16 %v1219, %v1218
      %v1245 = vpack.c.bf16 %v1221, %v1220
      %v1246 = vpack.c.bf16 %v1223, %v1222
      %v1247 = vpack.c.bf16 %v1225, %v1224
      %v1248 = vpack.c.bf16 %v1227, %v1226
      %v1249 = vpack.c.bf16 %v1229, %v1228
      %v1250 = vpack.c.bf16 %v1231, %v1230
      %v1251 = vpack.c.bf16 %v1233, %v1232
      %v1252 = vpack.c.bf16 %v1235, %v1234
      %v1253 = vpack.c.bf16 %v1237, %v1236
      %v1270 = vunpack.c.l.b16 %v1238
      %v1271 = vunpack.c.h.b16 %v1238
      %v1272 = vunpack.c.l.b16 %v1239
      %v1273 = vunpack.c.h.b16 %v1239
      %v1274 = vunpack.c.l.b16 %v1240
      %v1275 = vunpack.c.h.b16 %v1240
      %v1276 = vunpack.c.l.b16 %v1241
      %v1277 = vunpack.c.h.b16 %v1241
      %v1278 = vunpack.c.l.b16 %v1242
      %v1279 = vunpack.c.h.b16 %v1242
      %v1280 = vunpack.c.l.b16 %v1243
      %v1281 = vunpack.c.h.b16 %v1243
      %v1282 = vunpack.c.l.b16 %v1244
      %v1283 = vunpack.c.h.b16 %v1244
      %v1284 = vunpack.c.l.b16 %v1245
      %v1285 = vunpack.c.h.b16 %v1245
      %v1286 = vunpack.c.l.b16 %v1246
      %v1287 = vunpack.c.h.b16 %v1246
      %v1288 = vunpack.c.l.b16 %v1247
      %v1289 = vunpack.c.h.b16 %v1247
      %v1290 = vunpack.c.l.b16 %v1248
      %v1291 = vunpack.c.h.b16 %v1248
      %v1292 = vunpack.c.l.b16 %v1249
      %v1293 = vunpack.c.h.b16 %v1249
      %v1294 = vunpack.c.l.b16 %v1250
      %v1295 = vunpack.c.h.b16 %v1250
      %v1296 = vunpack.c.l.b16 %v1251
      %v1297 = vunpack.c.h.b16 %v1251
      %v1298 = vunpack.c.l.b16 %v1252
      %v1299 = vunpack.c.h.b16 %v1252
      %v1300 = vunpack.c.l.b16 %v1253
      %v1301 = vunpack.c.h.b16 %v1253
      %v1302 = vpack.c.b16 %v1270, %v1270
      %v1303 = vpack.c.b16 %v1271, %v1271
      %v1304 = vpack.c.b16 %v1272, %v1272
      %v1305 = vpack.c.b16 %v1273, %v1273
      %v1306 = vpack.c.b16 %v1274, %v1274
      %v1307 = vpack.c.b16 %v1275, %v1275
      %v1308 = vpack.c.b16 %v1276, %v1276
      %v1309 = vpack.c.b16 %v1277, %v1277
      %v1310 = vpack.c.b16 %v1278, %v1278
      %v1311 = vpack.c.b16 %v1279, %v1279
      %v1312 = vpack.c.b16 %v1280, %v1280
      %v1313 = vpack.c.b16 %v1281, %v1281
      %v1314 = vpack.c.b16 %v1282, %v1282
      %v1315 = vpack.c.b16 %v1283, %v1283
      %v1316 = vpack.c.b16 %v1284, %v1284
      %v1317 = vpack.c.b16 %v1285, %v1285
      %v1318 = vpack.c.b16 %v1286, %v1286
      %v1319 = vpack.c.b16 %v1287, %v1287
      %v1320 = vpack.c.b16 %v1288, %v1288
      %v1321 = vpack.c.b16 %v1289, %v1289
      %v1322 = vpack.c.b16 %v1290, %v1290
      %v1323 = vpack.c.b16 %v1291, %v1291
      %v1324 = vpack.c.b16 %v1292, %v1292
      %v1325 = vpack.c.b16 %v1293, %v1293
      %v1326 = vpack.c.b16 %v1294, %v1294
      %v1327 = vpack.c.b16 %v1295, %v1295
      %v1328 = vpack.c.b16 %v1296, %v1296
      %v1329 = vpack.c.b16 %v1297, %v1297
      %v1330 = vpack.c.b16 %v1298, %v1298
      %v1331 = vpack.c.b16 %v1299, %v1299
      %v1332 = vpack.c.b16 %v1300, %v1300
      %v1333 = vpack.c.b16 %v1301, %v1301
      %1366 = vst [vmem:[%s306] sm:$0xf] %v1302
      %1367 = vst [vmem:[%s306 + $0x4] sm:$0xf] %v1303
      %1368 = vst [vmem:[%s306 + $0x8] sm:$0xf] %v1304
      %1369 = vst [vmem:[%s306 + $0xc] sm:$0xf] %v1305
      %1370 = vst [vmem:[%s306 + $0x10] sm:$0xf] %v1306
      %1371 = vst [vmem:[%s306 + $0x14] sm:$0xf] %v1307
      %1372 = vst [vmem:[%s306 + $0x18] sm:$0xf] %v1308
      %1373 = vst [vmem:[%s306 + $0x1c] sm:$0xf] %v1309
      %1374 = vst [vmem:[%s306 + $0x20] sm:$0xf] %v1310
      %1375 = vst [vmem:[%s306 + $0x24] sm:$0xf] %v1311
      %1376 = vst [vmem:[%s306 + $0x28] sm:$0xf] %v1312
      %1377 = vst [vmem:[%s306 + $0x2c] sm:$0xf] %v1313
      %1378 = vst [vmem:[%s306 + $0x30] sm:$0xf] %v1314
      %1379 = vst [vmem:[%s306 + $0x34] sm:$0xf] %v1315
      %1380 = vst [vmem:[%s306 + $0x38] sm:$0xf] %v1316
      %1381 = vst [vmem:[%s306 + $0x3c] sm:$0xf] %v1317
      %1382 = vst [vmem:[%s306 + $0x40] sm:$0xf] %v1318
      %1383 = vst [vmem:[%s306 + $0x44] sm:$0xf] %v1319
      %1384 = vst [vmem:[%s306 + $0x48] sm:$0xf] %v1320
      %1385 = vst [vmem:[%s306 + $0x4c] sm:$0xf] %v1321
      %1386 = vst [vmem:[%s306 + $0x50] sm:$0xf] %v1322
      %1387 = vst [vmem:[%s306 + $0x54] sm:$0xf] %v1323
      %1388 = vst [vmem:[%s306 + $0x58] sm:$0xf] %v1324
      %1389 = vst [vmem:[%s306 + $0x5c] sm:$0xf] %v1325
      %1390 = vst [vmem:[%s306 + $0x60] sm:$0xf] %v1326
      %1391 = vst [vmem:[%s306 + $0x64] sm:$0xf] %v1327
      %1392 = vst [vmem:[%s306 + $0x68] sm:$0xf] %v1328
      %1393 = vst [vmem:[%s306 + $0x6c] sm:$0xf] %v1329
      %1394 = vst [vmem:[%s306 + $0x70] sm:$0xf] %v1330
      %1395 = vst [vmem:[%s306 + $0x74] sm:$0xf] %v1331
      %1396 = vst [vmem:[%s306 + $0x78] sm:$0xf] %v1332
      %1397 = vst [vmem:[%s306 + $0x7c] sm:$0xf] %v1333
      %s1398 = smul.u32 32, %s20
      %p1399 = scmp.lt.s32.totalorder %s1398, 63
      %s1400 = scalar_select %p1399, %s1398, 63
      %p1401 = scmp.lt.s32.totalorder %s21, 0
      %s1402 = scalar_select %p1401, %s21, 0
      %s1403 = sadd.s32 %s1402, %s1400
      %s1404 = smul.addr %s1403, 4
      %s1405 = scalar_lea.vmem %s4, %s1404
      // Predicated region
      $region37: #{_lambda_.13} parent=35 // pred_check
        %p1406 = pneg %p162
      $region38: #{_lambda_.13} parent=35 // pred_check_branch
        %1408 = sbr.rel (%p1406) target = $region40
      $region39: #{_lambda_.13} parent=35 // pred_region
        %s1409 = smul.u32 32, %s20
      $region40: #{_lambda_.13} parent=35 // pred_fallthru
        _
    $region36: #{_lambda_.13} parent=5 // pred_fallthru
      _
    %p1410 = scmp.le.s32.totalorder 2, %s10
    // Predicated region
    $region41: #{_lambda_.13} parent=5 // pred_check
      %p1411 = pneg %p1410
    $region42: #{_lambda_.13} parent=5 // pred_check_branch
      %1413 = sbr.rel (%p1411) target = $region44
    $region43: #{_lambda_.13} parent=5 // pred_region
      %s1414 = ssub.s32 %s10, 2
      // Predicated region
      $region45: #{_lambda_.13} parent=43 // pred_check
        %p1415 = pneg %p168
      $region46: #{_lambda_.13} parent=43 // pred_check_branch
        %1417 = sbr.rel (%p1415) target = $region48
      $region47: #{_lambda_.13} parent=43 // pred_region
        %s1418 = smul.u32 32, %s23
        %p1419 = scmp.lt.s32.totalorder %s1418, 63
        %s1420 = scalar_select %p1419, %s1418, 63
        %p1421 = scmp.lt.s32.totalorder %s24, 0
        %s1422 = scalar_select %p1421, %s24, 0
        %s1423 = sadd.s32 %s1422, %s1420
        %s1424 = smul.addr %s1423, 4
        %s1425 = scalar_lea.vmem %s4, %s1424
      $region48: #{_lambda_.13} parent=43 // pred_fallthru
        _
    $region44: #{_lambda_.13} parent=5 // pred_fallthru
      _
  $region6: #{_lambda_.13} parent=0 // loop_footer
    %s14 = sadd.s32 1, %s10
  $region7: #{_lambda_.13} parent=0 // loop_footer_branch
    %9 = sbr.rel target = $region3
  $region8: #{_lambda_.13} parent=0 // loop_exit
    _

// kernel: _lambda_.14
$region0: #{_lambda_.14}
  #allocation0 [shape = 'u32[]', space=smem, size = 0x4, offset = 0x4, fixed_abs, tag = 'smem constant byte address 0x4 - core index']
  #allocation1 [shape = 'u32[144,128]{1,0:T(1,128)}', space=vmem, size = 0x12000, scoped, tag = 'internal scratch']
  %s0 = inlined_call_operand.vmem [shape: bf16[512,288], index: 0, kind: input, shape index: {}]
  %s1 = inlined_call_operand.vmem [shape: bf16[288,128], index: 1, kind: input, shape index: {}]
  %s2 = inlined_call_operand.vmem [shape: f32[1,128], index: 2, kind: input, shape index: {}]
  %s3 = inlined_call_operand.vmem [shape: f32[1,128], index: 3, kind: input, shape index: {}]
  %s4 = inlined_call_operand.vmem [shape: bf16[512,128], index: 4, kind: input, shape index: {}]
  %s5 = inlined_call_operand.vmem [shape: bf16[512,128], index: 5, kind: output, shape index: {}]
  %s6 = sld [smem:[#allocation0]]
  $region53: #{_lambda_.14} parent=0
    _
  %s8 = ssub.s32 1, %s6
  %s9 = scalar_select 0, %s8, %s6
  loop: start=0, step=1, limit=4
  $region2: #{_lambda_.14} parent=0 // loop_pre_header
    _
  $region3: #{_lambda_.14} parent=0 // loop_header
    %s11 = sphi 0, %s15
    %p12 = scmp.ge.s32.totalorder %s11, 4
    %s18 = sphi 0, %s37
    %s19 = sphi 0, %s33
    %s20 = sphi 0, %s29
    %s21 = sphi 0, %s18
    %s22 = sphi 0, %s19
    %s23 = sphi 0, %s20
    %s24 = sphi 0, %s21
    %s25 = sphi 0, %s22
    %s26 = sphi 0, %s23
    %s42 = sphi 0, %s44
    %s45 = sphi 0, %s42
    %s46 = sphi 0, %s45
    %s62 = sphi 0, %s46
    %s70 = sphi 0, %s72
    %s73 = sphi 0, %s70
    %s74 = sphi 0, %s73
    %s90 = sphi 0, %s74
    %s96 = sphi 0, %s98
    %s99 = sphi 0, %s96
    %s100 = sphi 0, %s99
    %s116 = sphi 0, %s100
    %s122 = sphi 0, %s124
    %s125 = sphi 0, %s122
    %s126 = sphi 0, %s125
    %s142 = sphi 0, %s126
    %s150 = sphi 0, %s152
    %s153 = sphi 0, %s150
    %s154 = sphi 0, %s153
    %s170 = sphi 0, %s154
    %s178 = sphi 0, %s180
    %s181 = sphi 0, %s178
    %s182 = sphi 0, %s181
    %s198 = sphi 0, %s182
  $region4: #{_lambda_.14} parent=0 // loop_header_branch
    %14 = sbr.rel (%p12) target = $region8
  $region5: #{_lambda_.14} parent=0 // loop_body
    %s16 = ssub.s32 %s11, 1
    %s17 = ssub.s32 %s11, 2
    %s27 = sadd.s32 1, %s20
    %p28 = scmp.ge.s32.totalorder %s27, 1
    %s29 = scalar_select %p28, 0, %s27
    %s30 = sadd.s32 1, %s19
    %s31 = scalar_select %p28, %s30, %s19
    %p32 = scmp.ge.s32.totalorder %s31, 1
    %s33 = scalar_select %p32, 0, %s31
    %s34 = sadd.s32 1, %s18
    %s35 = scalar_select %p32, %s34, %s18
    %p36 = scmp.ge.s32.totalorder %s35, 2
    %s37 = scalar_select %p36, 0, %s35
    %s38 = ssub.s32 %s18, %s37
    %s39 = ssub.s32 %s20, %s29
    %s40 = sor.u32 %s38, %s39
    %p41 = scmp.eq.s32.totalorder %s40, 0
    %s43 = sadd.s32 %s42, 1
    %s44 = scalar_select %p41, %s42, %s43
    %p47 = pneg %p41
    %p48 = scmp.eq.s32.totalorder %s11, 1
    %p49 = por %p47, %p48
    %p50 = scmp.ne.s32.totalorder %s42, %s45
    %p51 = scmp.eq.s32.totalorder %s11, 0
    %p52 = por %p50, %p51
    %p53 = scmp.ne.s32.totalorder %s42, %s45
    %p54 = scmp.eq.s32.totalorder %s16, 1
    %p55 = por %p53, %p54
    %p56 = scmp.ne.s32.totalorder %s45, %s46
    %p57 = scmp.eq.s32.totalorder %s16, 0
    %p58 = por %p56, %p57
    %p59 = scmp.ne.s32.totalorder %s45, %s46
    %p60 = scmp.eq.s32.totalorder %s17, 1
    %p61 = por %p59, %p60
    %p63 = scmp.ne.s32.totalorder %s46, %s62
    %p64 = scmp.eq.s32.totalorder %s17, 0
    %p65 = por %p63, %p64
    %s66 = ssub.s32 %s20, %s29
    %s67 = ssub.s32 %s19, %s33
    %s68 = sor.u32 %s66, %s67
    %p69 = scmp.eq.s32.totalorder %s68, 0
    %s71 = sadd.s32 %s70, 1
    %s72 = scalar_select %p69, %s70, %s71
    %p75 = pneg %p69
    %p76 = scmp.eq.s32.totalorder %s11, 1
    %p77 = por %p75, %p76
    %p78 = scmp.ne.s32.totalorder %s70, %s73
    %p79 = scmp.eq.s32.totalorder %s11, 0
    %p80 = por %p78, %p79
    %p81 = scmp.ne.s32.totalorder %s70, %s73
    %p82 = scmp.eq.s32.totalorder %s16, 1
    %p83 = por %p81, %p82
    %p84 = scmp.ne.s32.totalorder %s73, %s74
    %p85 = scmp.eq.s32.totalorder %s16, 0
    %p86 = por %p84, %p85
    %p87 = scmp.ne.s32.totalorder %s73, %s74
    %p88 = scmp.eq.s32.totalorder %s17, 1
    %p89 = por %p87, %p88
    %p91 = scmp.ne.s32.totalorder %s74, %s90
    %p92 = scmp.eq.s32.totalorder %s17, 0
    %p93 = por %p91, %p92
    %s94 = ssub.s32 %s19, %s33
    %p95 = scmp.eq.s32.totalorder %s94, 0
    %s97 = sadd.s32 %s96, 1
    %s98 = scalar_select %p95, %s96, %s97
    %p101 = pneg %p95
    %p102 = scmp.eq.s32.totalorder %s11, 1
    %p103 = por %p101, %p102
    %p104 = scmp.ne.s32.totalorder %s96, %s99
    %p105 = scmp.eq.s32.totalorder %s11, 0
    %p106 = por %p104, %p105
    %p107 = scmp.ne.s32.totalorder %s96, %s99
    %p108 = scmp.eq.s32.totalorder %s16, 1
    %p109 = por %p107, %p108
    %p110 = scmp.ne.s32.totalorder %s99, %s100
    %p111 = scmp.eq.s32.totalorder %s16, 0
    %p112 = por %p110, %p111
    %p113 = scmp.ne.s32.totalorder %s99, %s100
    %p114 = scmp.eq.s32.totalorder %s17, 1
    %p115 = por %p113, %p114
    %p117 = scmp.ne.s32.totalorder %s100, %s116
    %p118 = scmp.eq.s32.totalorder %s17, 0
    %p119 = por %p117, %p118
    %s120 = ssub.s32 %s19, %s33
    %p121 = scmp.eq.s32.totalorder %s120, 0
    %s123 = sadd.s32 %s122, 1
    %s124 = scalar_select %p121, %s122, %s123
    %p127 = pneg %p121
    %p128 = scmp.eq.s32.totalorder %s11, 1
    %p129 = por %p127, %p128
    %p130 = scmp.ne.s32.totalorder %s122, %s125
    %p131 = scmp.eq.s32.totalorder %s11, 0
    %p132 = por %p130, %p131
    %p133 = scmp.ne.s32.totalorder %s122, %s125
    %p134 = scmp.eq.s32.totalorder %s16, 1
    %p135 = por %p133, %p134
    %p136 = scmp.ne.s32.totalorder %s125, %s126
    %p137 = scmp.eq.s32.totalorder %s16, 0
    %p138 = por %p136, %p137
    %p139 = scmp.ne.s32.totalorder %s125, %s126
    %p140 = scmp.eq.s32.totalorder %s17, 1
    %p141 = por %p139, %p140
    %p143 = scmp.ne.s32.totalorder %s126, %s142
    %p144 = scmp.eq.s32.totalorder %s17, 0
    %p145 = por %p143, %p144
    %s146 = ssub.s32 %s18, %s37
    %s147 = ssub.s32 %s19, %s33
    %s148 = sor.u32 %s146, %s147
    %p149 = scmp.eq.s32.totalorder %s148, 0
    %s151 = sadd.s32 %s150, 1
    %s152 = scalar_select %p149, %s150, %s151
    %p155 = pneg %p149
    %p156 = scmp.eq.s32.totalorder %s11, 1
    %p157 = por %p155, %p156
    %p158 = scmp.ne.s32.totalorder %s150, %s153
    %p159 = scmp.eq.s32.totalorder %s11, 0
    %p160 = por %p158, %p159
    %p161 = scmp.ne.s32.totalorder %s150, %s153
    %p162 = scmp.eq.s32.totalorder %s16, 1
    %p163 = por %p161, %p162
    %p164 = scmp.ne.s32.totalorder %s153, %s154
    %p165 = scmp.eq.s32.totalorder %s16, 0
    %p166 = por %p164, %p165
    %p167 = scmp.ne.s32.totalorder %s153, %s154
    %p168 = scmp.eq.s32.totalorder %s17, 1
    %p169 = por %p167, %p168
    %p171 = scmp.ne.s32.totalorder %s154, %s170
    %p172 = scmp.eq.s32.totalorder %s17, 0
    %p173 = por %p171, %p172
    %s174 = ssub.s32 %s18, %s37
    %s175 = ssub.s32 %s19, %s33
    %s176 = sor.u32 %s174, %s175
    %p177 = scmp.eq.s32.totalorder %s176, 0
    %s179 = sadd.s32 %s178, 1
    %s180 = scalar_select %p177, %s178, %s179
    %p183 = pneg %p177
    %p184 = scmp.eq.s32.totalorder %s11, 1
    %p185 = por %p183, %p184
    %p186 = scmp.ne.s32.totalorder %s178, %s181
    %p187 = scmp.eq.s32.totalorder %s11, 0
    %p188 = por %p186, %p187
    %p189 = scmp.ne.s32.totalorder %s178, %s181
    %p190 = scmp.eq.s32.totalorder %s16, 1
    %p191 = por %p189, %p190
    %p192 = scmp.ne.s32.totalorder %s181, %s182
    %p193 = scmp.eq.s32.totalorder %s16, 0
    %p194 = por %p192, %p193
    %p195 = scmp.ne.s32.totalorder %s181, %s182
    %p196 = scmp.eq.s32.totalorder %s17, 1
    %p197 = por %p195, %p196
    %p199 = scmp.ne.s32.totalorder %s182, %s198
    %p200 = scmp.eq.s32.totalorder %s17, 0
    %p201 = por %p199, %p200
    %p202 = scmp.le.s32.totalorder 1, %s11
    %p203 = scmp.lt.s32.totalorder %s11, 3
    %p204 = pnand %p202, %p203
    %p205 = pneg %p204
    // Predicated region
    $region9: #{_lambda_.14} parent=5 // pred_check
      _
    $region10: #{_lambda_.14} parent=5 // pred_check_branch
      %207 = sbr.rel (%p204) target = $region12
    $region11: #{_lambda_.14} parent=5 // pred_region
      %s208 = ssub.s32 %s11, 1
      // Predicated region
      $region13: #{_lambda_.14} parent=11 // pred_check
        %p209 = pneg %p86
      $region14: #{_lambda_.14} parent=11 // pred_check_branch
        %211 = sbr.rel (%p209) target = $region16
      $region15: #{_lambda_.14} parent=11 // pred_region
        %s212 = smul.u32 36, %s23
        %p213 = scmp.lt.s32.totalorder %s212, 35
        %s214 = scalar_select %p213, %s212, 35
        %p215 = scmp.lt.s32.totalorder %s22, 0
        %s216 = scalar_select %p215, %s22, 0
        %s217 = sadd.s32 %s216, %s214
        %s218 = smul.addr %s217, 4
        %s219 = scalar_lea.vmem %s1, %s218
        %s220 = smul.u32 36, %s23
      $region16: #{_lambda_.14} parent=11 // pred_fallthru
        _
      // Predicated region
      $region17: #{_lambda_.14} parent=11 // pred_check
        %p221 = pneg %p112
      $region18: #{_lambda_.14} parent=11 // pred_check_branch
        %223 = sbr.rel (%p221) target = $region20
      $region19: #{_lambda_.14} parent=11 // pred_region
        %p224 = scmp.lt.s32.totalorder %s22, 0
        %s225 = scalar_select %p224, %s22, 0
        %s226 = scalar_lea.vmem %s2, %s225
      $region20: #{_lambda_.14} parent=11 // pred_fallthru
        _
      // Predicated region
      $region21: #{_lambda_.14} parent=11 // pred_check
        %p227 = pneg %p138
      $region22: #{_lambda_.14} parent=11 // pred_check_branch
        %229 = sbr.rel (%p227) target = $region24
      $region23: #{_lambda_.14} parent=11 // pred_region
        %p230 = scmp.lt.s32.totalorder %s22, 0
        %s231 = scalar_select %p230, %s22, 0
        %s232 = scalar_lea.vmem %s3, %s231
      $region24: #{_lambda_.14} parent=11 // pred_fallthru
        _
    $region12: #{_lambda_.14} parent=5 // pred_fallthru
      _
    %p233 = scmp.lt.s32.totalorder %s11, 2
    // Predicated region
    $region25: #{_lambda_.14} parent=5 // pred_check
      %p234 = pneg %p233
    $region26: #{_lambda_.14} parent=5 // pred_check_branch
      %236 = sbr.rel (%p234) target = $region28
    $region27: #{_lambda_.14} parent=5 // pred_region
      // Predicated region
      $region29: #{_lambda_.14} parent=27 // pred_check
        %p237 = pneg %p52
      $region30: #{_lambda_.14} parent=27 // pred_check_branch
        %239 = sbr.rel (%p237) target = $region32
      $region31: #{_lambda_.14} parent=27 // pred_region
        %s240 = smul.u32 32, %s18
        %s241 = smul.u32 3, %s20
        %p242 = scmp.lt.s32.totalorder %s240, 63
        %s243 = scalar_select %p242, %s240, 63
        %p244 = scmp.lt.s32.totalorder %s241, 2
        %s245 = scalar_select %p244, %s241, 2
        %s246 = smul.addr %s243, 3
        %s247 = sadd.s32 %s245, %s246
        %s248 = smul.addr %s247, 4
        %s249 = scalar_lea.vmem %s0, %s248
        %s250 = smul.u32 32, %s18
        %s251 = smul.u32 3, %s20
      $region32: #{_lambda_.14} parent=27 // pred_fallthru
        _
      // Predicated region
      $region33: #{_lambda_.14} parent=27 // pred_check
        %p252 = pneg %p160
      $region34: #{_lambda_.14} parent=27 // pred_check_branch
        %254 = sbr.rel (%p252) target = $region36
      $region35: #{_lambda_.14} parent=27 // pred_region
        %s255 = smul.u32 32, %s18
        %p256 = scmp.lt.s32.totalorder %s255, 63
        %s257 = scalar_select %p256, %s255, 63
        %p258 = scmp.lt.s32.totalorder %s19, 0
        %s259 = scalar_select %p258, %s19, 0
        %s260 = sadd.s32 %s259, %s257
        %s261 = smul.addr %s260, 4
        %s262 = scalar_lea.vmem %s4, %s261
        %s263 = smul.u32 32, %s18
      $region36: #{_lambda_.14} parent=27 // pred_fallthru
        _
    $region28: #{_lambda_.14} parent=5 // pred_fallthru
      _
    %p264 = scmp.le.s32.totalorder 1, %s11
    %p265 = scmp.lt.s32.totalorder %s11, 3
    %p266 = pnand %p264, %p265
    %p267 = pneg %p266
    // Predicated region
    $region37: #{_lambda_.14} parent=5 // pred_check
      _
    $region38: #{_lambda_.14} parent=5 // pred_check_branch
      %269 = sbr.rel (%p266) target = $region40
    $region39: #{_lambda_.14} parent=5 // pred_region
      %s270 = ssub.s32 %s11, 1
      %s271 = smul.u32 32, %s21
      %s272 = smul.u32 3, %s23
      %p273 = scmp.lt.s32.totalorder %s271, 63
      %s274 = scalar_select %p273, %s271, 63
      %p275 = scmp.lt.s32.totalorder %s272, 2
      %s276 = scalar_select %p275, %s272, 2
      %s277 = smul.addr %s274, 3
      %s278 = sadd.s32 %s276, %s277
      %s279 = smul.addr %s278, 4
      %s280 = scalar_lea.vmem %s0, %s279
      %p281 = pneg %p58
      %p282 = pneg %p55
      %s283 = smul.u32 36, %s23
      %p284 = scmp.lt.s32.totalorder %s283, 35
      %s285 = scalar_select %p284, %s283, 35
      %p286 = scmp.lt.s32.totalorder %s22, 0
      %s287 = scalar_select %p286, %s22, 0
      %s288 = sadd.s32 %s287, %s285
      %s289 = smul.addr %s288, 4
      %s290 = scalar_lea.vmem %s1, %s289
      %p291 = pneg %p86
      %p292 = pneg %p83
      %p293 = scmp.lt.s32.totalorder %s22, 0
      %s294 = scalar_select %p293, %s22, 0
      %s295 = scalar_lea.vmem %s2, %s294
      %p296 = pneg %p112
      %p297 = pneg %p109
      %p298 = scmp.lt.s32.totalorder %s22, 0
      %s299 = scalar_select %p298, %s22, 0
      %s300 = scalar_lea.vmem %s3, %s299
      %p301 = pneg %p138
      %p302 = pneg %p135
      %s303 = smul.u32 32, %s21
      %p304 = scmp.lt.s32.totalorder %s303, 63
      %s305 = scalar_select %p304, %s303, 63
      %p306 = scmp.lt.s32.totalorder %s22, 0
      %s307 = scalar_select %p306, %s22, 0
      %s308 = sadd.s32 %s307, %s305
      %s309 = smul.addr %s308, 4
      %s310 = scalar_lea.vmem %s4, %s309
      %p311 = pneg %p166
      %p312 = pneg %p163
      %p313 = pneg %p194
      %p314 = pneg %p191
      %s315 = smul.u32 32, %s21
      %p316 = scmp.lt.s32.totalorder %s315, 63
      %s317 = scalar_select %p316, %s315, 63
      %p318 = scmp.lt.s32.totalorder %s22, 0
      %s319 = scalar_select %p318, %s22, 0
      %s320 = sadd.s32 %s319, %s317
      %s321 = smul.addr %s320, 4
      %s322 = scalar_lea.vmem %s5, %s321
      %s323 = smul.u32 32, %s21
      %s324 = smul.u32 3, %s23
      %p325 = scmp.lt.s32.totalorder %s323, 63
      %s326 = scalar_select %p325, %s323, 63
      %p327 = scmp.lt.s32.totalorder %s324, 2
      %s328 = scalar_select %p327, %s324, 2
      %s329 = smul.addr %s326, 3
      %s330 = sadd.s32 %s328, %s329
      %s331 = smul.addr %s330, 4
      %s332 = scalar_lea.vmem %s0, %s331
      %s333 = smul.u32 32, %s21
      %s334 = smul.u32 3, %s23
      %s335 = smul.u32 36, %s23
      %p336 = scmp.lt.s32.totalorder %s335, 35
      %s337 = scalar_select %p336, %s335, 35
      %p338 = scmp.lt.s32.totalorder %s22, 0
      %s339 = scalar_select %p338, %s22, 0
      %s340 = sadd.s32 %s339, %s337
      %s341 = smul.addr %s340, 4
      %s342 = scalar_lea.vmem %s1, %s341
      %s343 = smul.u32 36, %s23
      %p344 = scmp.lt.s32.totalorder %s22, 0
      %s345 = scalar_select %p344, %s22, 0
      %s346 = scalar_lea.vmem %s2, %s345
      %p347 = scmp.lt.s32.totalorder %s22, 0
      %s348 = scalar_select %p347, %s22, 0
      %s349 = scalar_lea.vmem %s3, %s348
      %s350 = smul.u32 32, %s21
      %p351 = scmp.lt.s32.totalorder %s350, 63
      %s352 = scalar_select %p351, %s350, 63
      %p353 = scmp.lt.s32.totalorder %s22, 0
      %s354 = scalar_select %p353, %s22, 0
      %s355 = sadd.s32 %s354, %s352
      %s356 = smul.addr %s355, 4
      %s357 = scalar_lea.vmem %s4, %s356
      %s358 = smul.u32 32, %s21
      %s359 = smul.u32 32, %s21
      %p360 = scmp.lt.s32.totalorder %s359, 63
      %s361 = scalar_select %p360, %s359, 63
      %p362 = scmp.lt.s32.totalorder %s22, 0
      %s363 = scalar_select %p362, %s22, 0
      %s364 = sadd.s32 %s363, %s361
      %s365 = smul.addr %s364, 4
      %s366 = scalar_lea.vmem %s5, %s365
      %s367 = smul.u32 32, %s21
      %v369 = vld [vmem:[%s332] sm:$0xff]
      %v370 = vld [vmem:[%s332 + $0x8] sm:$0xf]
      %v371 = vld [vmem:[%s332 + $0xc] sm:$0xff]
      %v372 = vld [vmem:[%s332 + $0x14] sm:$0xf]
      %v373 = vld [vmem:[%s332 + $0x18] sm:$0xff]
      %v374 = vld [vmem:[%s332 + $0x20] sm:$0xf]
      %v375 = vld [vmem:[%s332 + $0x24] sm:$0xff]
      %v376 = vld [vmem:[%s332 + $0x2c] sm:$0xf]
      %v377 = vld [vmem:[%s332 + $0x30] sm:$0xff]
      %v378 = vld [vmem:[%s332 + $0x38] sm:$0xf]
      %v379 = vld [vmem:[%s332 + $0x3c] sm:$0xff]
      %v380 = vld [vmem:[%s332 + $0x44] sm:$0xf]
      %v381 = vld [vmem:[%s332 + $0x48] sm:$0xff]
      %v382 = vld [vmem:[%s332 + $0x50] sm:$0xf]
      %v383 = vld [vmem:[%s332 + $0x54] sm:$0xff]
      %v384 = vld [vmem:[%s332 + $0x5c] sm:$0xf]
      %v385 = vld [vmem:[%s332 + $0x60] sm:$0xff]
      %v386 = vld [vmem:[%s332 + $0x68] sm:$0xf]
      %v387 = vld [vmem:[%s332 + $0x6c] sm:$0xff]
      %v388 = vld [vmem:[%s332 + $0x74] sm:$0xf]
      %v389 = vld [vmem:[%s332 + $0x78] sm:$0xff]
      %v390 = vld [vmem:[%s332 + $0x80] sm:$0xf]
      %v391 = vld [vmem:[%s332 + $0x84] sm:$0xff]
      %v392 = vld [vmem:[%s332 + $0x8c] sm:$0xf]
      %v393 = vld [vmem:[%s332 + $0x90] sm:$0xff]
      %v394 = vld [vmem:[%s332 + $0x98] sm:$0xf]
      %v395 = vld [vmem:[%s332 + $0x9c] sm:$0xff]
      %v396 = vld [vmem:[%s332 + $0xa4] sm:$0xf]
      %v397 = vld [vmem:[%s332 + $0xa8] sm:$0xff]
      %v398 = vld [vmem:[%s332 + $0xb0] sm:$0xf]
      %v399 = vld [vmem:[%s332 + $0xb4] sm:$0xff]
      %v400 = vld [vmem:[%s332 + $0xbc] sm:$0xf]
      %v401 = vld [vmem:[%s332 + $0xc0] sm:$0xff]
      %v402 = vld [vmem:[%s332 + $0xc8] sm:$0xf]
      %v403 = vld [vmem:[%s332 + $0xcc] sm:$0xff]
      %v404 = vld [vmem:[%s332 + $0xd4] sm:$0xf]
      %v405 = vld [vmem:[%s332 + $0xd8] sm:$0xff]
      %v406 = vld [vmem:[%s332 + $0xe0] sm:$0xf]
      %v407 = vld [vmem:[%s332 + $0xe4] sm:$0xff]
      %v408 = vld [vmem:[%s332 + $0xec] sm:$0xf]
      %v409 = vld [vmem:[%s332 + $0xf0] sm:$0xff]
      %v410 = vld [vmem:[%s332 + $0xf8] sm:$0xf]
      %v411 = vld [vmem:[%s332 + $0xfc] sm:$0xff]
      %v412 = vld [vmem:[%s332 + $0x104] sm:$0xf]
      %v413 = vld [vmem:[%s332 + $0x108] sm:$0xff]
      %v414 = vld [vmem:[%s332 + $0x110] sm:$0xf]
      %v415 = vld [vmem:[%s332 + $0x114] sm:$0xff]
      %v416 = vld [vmem:[%s332 + $0x11c] sm:$0xf]
      %v417 = vld [vmem:[%s332 + $0x120] sm:$0xff]
      %v418 = vld [vmem:[%s332 + $0x128] sm:$0xf]
      %v419 = vld [vmem:[%s332 + $0x12c] sm:$0xff]
      %v420 = vld [vmem:[%s332 + $0x134] sm:$0xf]
      %v421 = vld [vmem:[%s332 + $0x138] sm:$0xff]
      %v422 = vld [vmem:[%s332 + $0x140] sm:$0xf]
      %v423 = vld [vmem:[%s332 + $0x144] sm:$0xff]
      %v424 = vld [vmem:[%s332 + $0x14c] sm:$0xf]
      %v425 = vld [vmem:[%s332 + $0x150] sm:$0xff]
      %v426 = vld [vmem:[%s332 + $0x158] sm:$0xf]
      %v427 = vld [vmem:[%s332 + $0x15c] sm:$0xff]
      %v428 = vld [vmem:[%s332 + $0x164] sm:$0xf]
      %v429 = vld [vmem:[%s332 + $0x168] sm:$0xff]
      %v430 = vld [vmem:[%s332 + $0x170] sm:$0xf]
      %v431 = vld [vmem:[%s332 + $0x174] sm:$0xff]
      %v432 = vld [vmem:[%s332 + $0x17c] sm:$0xf]
      %v433 = vld [vmem:[%s342] sm:$0xf]
      %v434 = vld [vmem:[%s342 + $0x4] sm:$0xf]
      %v435 = vld [vmem:[%s342 + $0x8] sm:$0xf]
      %v436 = vld [vmem:[%s342 + $0xc] sm:$0xf]
      %v437 = vld [vmem:[%s342 + $0x10] sm:$0xf]
      %v438 = vld [vmem:[%s342 + $0x14] sm:$0xf]
      %v439 = vld [vmem:[%s342 + $0x18] sm:$0xf]
      %v440 = vld [vmem:[%s342 + $0x1c] sm:$0xf]
      %v441 = vld [vmem:[%s342 + $0x20] sm:$0xf]
      %v442 = vld [vmem:[%s342 + $0x24] sm:$0xf]
      %v443 = vld [vmem:[%s342 + $0x28] sm:$0xf]
      %v444 = vld [vmem:[%s342 + $0x2c] sm:$0xf]
      %v445 = vld [vmem:[%s342 + $0x30] sm:$0xf]
      %v446 = vld [vmem:[%s342 + $0x34] sm:$0xf]
      %v447 = vld [vmem:[%s342 + $0x38] sm:$0xf]
      %v448 = vld [vmem:[%s342 + $0x3c] sm:$0xf]
      %v449 = vld [vmem:[%s342 + $0x40] sm:$0xf]
      %v450 = vld [vmem:[%s342 + $0x44] sm:$0xf]
      %v451 = vld [vmem:[%s342 + $0x48] sm:$0xf]
      %v452 = vld [vmem:[%s342 + $0x4c] sm:$0xf]
      %v453 = vld [vmem:[%s342 + $0x50] sm:$0xf]
      %v454 = vld [vmem:[%s342 + $0x54] sm:$0xf]
      %v455 = vld [vmem:[%s342 + $0x58] sm:$0xf]
      %v456 = vld [vmem:[%s342 + $0x5c] sm:$0xf]
      %v457 = vld [vmem:[%s342 + $0x60] sm:$0xf]
      %v458 = vld [vmem:[%s342 + $0x64] sm:$0xf]
      %v459 = vld [vmem:[%s342 + $0x68] sm:$0xf]
      %v460 = vld [vmem:[%s342 + $0x6c] sm:$0xf]
      %v461 = vld [vmem:[%s342 + $0x70] sm:$0xf]
      %v462 = vld [vmem:[%s342 + $0x74] sm:$0xf]
      %v463 = vld [vmem:[%s342 + $0x78] sm:$0xf]
      %v464 = vld [vmem:[%s342 + $0x7c] sm:$0xf]
      %v465 = vld [vmem:[%s342 + $0x80] sm:$0xf]
      %v466 = vld [vmem:[%s342 + $0x84] sm:$0xf]
      %v467 = vld [vmem:[%s342 + $0x88] sm:$0xf]
      %v468 = vld [vmem:[%s342 + $0x8c] sm:$0xf]
      %v533 = vunpack.c.l.b16 %v369
      %v534 = vunpack.c.h.b16 %v369
      %v535 = vunpack.c.l.b16 %v370
      %v536 = vunpack.c.l.b16 %v371
      %v537 = vunpack.c.h.b16 %v371
      %v538 = vunpack.c.l.b16 %v372
      %v539 = vunpack.c.l.b16 %v373
      %v540 = vunpack.c.h.b16 %v373
      %v541 = vunpack.c.l.b16 %v374
      %v542 = vunpack.c.l.b16 %v375
      %v543 = vunpack.c.h.b16 %v375
      %v544 = vunpack.c.l.b16 %v376
      %v545 = vunpack.c.l.b16 %v377
      %v546 = vunpack.c.h.b16 %v377
      %v547 = vunpack.c.l.b16 %v378
      %v548 = vunpack.c.l.b16 %v379
      %v549 = vunpack.c.h.b16 %v379
      %v550 = vunpack.c.l.b16 %v380
      %v551 = vunpack.c.l.b16 %v381
      %v552 = vunpack.c.h.b16 %v381
      %v553 = vunpack.c.l.b16 %v382
      %v554 = vunpack.c.l.b16 %v383
      %v555 = vunpack.c.h.b16 %v383
      %v556 = vunpack.c.l.b16 %v384
      %v557 = vunpack.c.l.b16 %v385
      %v558 = vunpack.c.h.b16 %v385
      %v559 = vunpack.c.l.b16 %v386
      %v560 = vunpack.c.l.b16 %v387
      %v561 = vunpack.c.h.b16 %v387
      %v562 = vunpack.c.l.b16 %v388
      %v563 = vunpack.c.l.b16 %v389
      %v564 = vunpack.c.h.b16 %v389
      %v565 = vunpack.c.l.b16 %v390
      %v566 = vunpack.c.l.b16 %v391
      %v567 = vunpack.c.h.b16 %v391
      %v568 = vunpack.c.l.b16 %v392
      %v569 = vunpack.c.l.b16 %v393
      %v570 = vunpack.c.h.b16 %v393
      %v571 = vunpack.c.l.b16 %v394
      %v572 = vunpack.c.l.b16 %v395
      %v573 = vunpack.c.h.b16 %v395
      %v574 = vunpack.c.l.b16 %v396
      %v575 = vunpack.c.l.b16 %v397
      %v576 = vunpack.c.h.b16 %v397
      %v577 = vunpack.c.l.b16 %v398
      %v578 = vunpack.c.l.b16 %v399
      %v579 = vunpack.c.h.b16 %v399
      %v580 = vunpack.c.l.b16 %v400
      %v581 = vunpack.c.l.b16 %v401
      %v582 = vunpack.c.h.b16 %v401
      %v583 = vunpack.c.l.b16 %v402
      %v584 = vunpack.c.l.b16 %v403
      %v585 = vunpack.c.h.b16 %v403
      %v586 = vunpack.c.l.b16 %v404
      %v587 = vunpack.c.l.b16 %v405
      %v588 = vunpack.c.h.b16 %v405
      %v589 = vunpack.c.l.b16 %v406
      %v590 = vunpack.c.l.b16 %v407
      %v591 = vunpack.c.h.b16 %v407
      %v592 = vunpack.c.l.b16 %v408
      %v593 = vunpack.c.l.b16 %v409
      %v594 = vunpack.c.h.b16 %v409
      %v595 = vunpack.c.l.b16 %v410
      %v596 = vunpack.c.l.b16 %v411
      %v597 = vunpack.c.h.b16 %v411
      %v598 = vunpack.c.l.b16 %v412
      %v599 = vunpack.c.l.b16 %v413
      %v600 = vunpack.c.h.b16 %v413
      %v601 = vunpack.c.l.b16 %v414
      %v602 = vunpack.c.l.b16 %v415
      %v603 = vunpack.c.h.b16 %v415
      %v604 = vunpack.c.l.b16 %v416
      %v605 = vunpack.c.l.b16 %v417
      %v606 = vunpack.c.h.b16 %v417
      %v607 = vunpack.c.l.b16 %v418
      %v608 = vunpack.c.l.b16 %v419
      %v609 = vunpack.c.h.b16 %v419
      %v610 = vunpack.c.l.b16 %v420
      %v611 = vunpack.c.l.b16 %v421
      %v612 = vunpack.c.h.b16 %v421
      %v613 = vunpack.c.l.b16 %v422
      %v614 = vunpack.c.l.b16 %v423
      %v615 = vunpack.c.h.b16 %v423
      %v616 = vunpack.c.l.b16 %v424
      %v617 = vunpack.c.l.b16 %v425
      %v618 = vunpack.c.h.b16 %v425
      %v619 = vunpack.c.l.b16 %v426
      %v620 = vunpack.c.l.b16 %v427
      %v621 = vunpack.c.h.b16 %v427
      %v622 = vunpack.c.l.b16 %v428
      %v623 = vunpack.c.l.b16 %v429
      %v624 = vunpack.c.h.b16 %v429
      %v625 = vunpack.c.l.b16 %v430
      %v626 = vunpack.c.l.b16 %v431
      %v627 = vunpack.c.h.b16 %v431
      %v628 = vunpack.c.l.b16 %v432
      %v629 = vpack.c.b16 %v536, %v533
      %v630 = vpack.c.b16 %v537, %v534
      %v631 = vpack.c.b16 %v538, %v535
      %v632 = vpack.c.b16 %v542, %v539
      %v633 = vpack.c.b16 %v543, %v540
      %v634 = vpack.c.b16 %v544, %v541
      %v635 = vpack.c.b16 %v548, %v545
      %v636 = vpack.c.b16 %v549, %v546
      %v637 = vpack.c.b16 %v550, %v547
      %v638 = vpack.c.b16 %v554, %v551
      %v639 = vpack.c.b16 %v555, %v552
      %v640 = vpack.c.b16 %v556, %v553
      %v641 = vpack.c.b16 %v560, %v557
      %v642 = vpack.c.b16 %v561, %v558
      %v643 = vpack.c.b16 %v562, %v559
      %v644 = vpack.c.b16 %v566, %v563
      %v645 = vpack.c.b16 %v567, %v564
      %v646 = vpack.c.b16 %v568, %v565
      %v647 = vpack.c.b16 %v572, %v569
      %v648 = vpack.c.b16 %v573, %v570
      %v649 = vpack.c.b16 %v574, %v571
      %v650 = vpack.c.b16 %v578, %v575
      %v651 = vpack.c.b16 %v579, %v576
      %v652 = vpack.c.b16 %v580, %v577
      %v653 = vpack.c.b16 %v584, %v581
      %v654 = vpack.c.b16 %v585, %v582
      %v655 = vpack.c.b16 %v586, %v583
      %v656 = vpack.c.b16 %v590, %v587
      %v657 = vpack.c.b16 %v591, %v588
      %v658 = vpack.c.b16 %v592, %v589
      %v659 = vpack.c.b16 %v596, %v593
      %v660 = vpack.c.b16 %v597, %v594
      %v661 = vpack.c.b16 %v598, %v595
      %v662 = vpack.c.b16 %v602, %v599
      %v663 = vpack.c.b16 %v603, %v600
      %v664 = vpack.c.b16 %v604, %v601
      %v665 = vpack.c.b16 %v608, %v605
      %v666 = vpack.c.b16 %v609, %v606
      %v667 = vpack.c.b16 %v610, %v607
      %v668 = vpack.c.b16 %v614, %v611
      %v669 = vpack.c.b16 %v615, %v612
      %v670 = vpack.c.b16 %v616, %v613
      %v671 = vpack.c.b16 %v620, %v617
      %v672 = vpack.c.b16 %v621, %v618
      %v673 = vpack.c.b16 %v622, %v619
      %v674 = vpack.c.b16 %v626, %v623
      %v675 = vpack.c.b16 %v627, %v624
      %v676 = vpack.c.b16 %v628, %v625
      %v745 = vunpack.c.l.b16 %v433
      %v746 = vunpack.c.l.b16 %v434
      %v747 = vunpack.c.l.b16 %v435
      %v748 = vunpack.c.l.b16 %v436
      %v749 = vunpack.c.l.b16 %v437
      %v750 = vunpack.c.l.b16 %v438
      %v751 = vunpack.c.l.b16 %v439
      %v752 = vunpack.c.l.b16 %v440
      %v753 = vunpack.c.l.b16 %v441
      %v754 = vunpack.c.l.b16 %v442
      %v755 = vunpack.c.l.b16 %v443
      %v756 = vunpack.c.l.b16 %v444
      %v757 = vunpack.c.l.b16 %v445
      %v758 = vunpack.c.l.b16 %v446
      %v759 = vunpack.c.l.b16 %v447
      %v760 = vunpack.c.l.b16 %v448
      %v761 = vunpack.c.l.b16 %v449
      %v762 = vunpack.c.l.b16 %v450
      %v763 = vunpack.c.l.b16 %v451
      %v764 = vunpack.c.l.b16 %v452
      %v765 = vunpack.c.l.b16 %v453
      %v766 = vunpack.c.l.b16 %v454
      %v767 = vunpack.c.l.b16 %v455
      %v768 = vunpack.c.l.b16 %v456
      %v769 = vunpack.c.l.b16 %v457
      %v770 = vunpack.c.l.b16 %v458
      %v771 = vunpack.c.l.b16 %v459
      %v772 = vunpack.c.l.b16 %v460
      %v773 = vunpack.c.l.b16 %v461
      %v774 = vunpack.c.l.b16 %v462
      %v775 = vunpack.c.l.b16 %v463
      %v776 = vunpack.c.l.b16 %v464
      %v777 = vunpack.c.l.b16 %v465
      %v778 = vunpack.c.l.b16 %v466
      %v779 = vunpack.c.l.b16 %v467
      %v780 = vunpack.c.l.b16 %v468
      %v781 = vpack.c.b16 %v746, %v745
      %v782 = vpack.c.b16 %v748, %v747
      %v783 = vpack.c.b16 %v750, %v749
      %v784 = vpack.c.b16 %v752, %v751
      %v785 = vpack.c.b16 %v754, %v753
      %v786 = vpack.c.b16 %v756, %v755
      %v787 = vpack.c.b16 %v758, %v757
      %v788 = vpack.c.b16 %v760, %v759
      %v789 = vpack.c.b16 %v762, %v761
      %v790 = vpack.c.b16 %v764, %v763
      %v791 = vpack.c.b16 %v766, %v765
      %v792 = vpack.c.b16 %v768, %v767
      %v793 = vpack.c.b16 %v770, %v769
      %v794 = vpack.c.b16 %v772, %v771
      %v795 = vpack.c.b16 %v774, %v773
      %v796 = vpack.c.b16 %v776, %v775
      %v797 = vpack.c.b16 %v778, %v777
      %v798 = vpack.c.b16 %v780, %v779
      %vm817 = vcmask 261120
      %v819 = vsel %vm817, %v631, 0
      %v822 = vsel %vm817, %v634, 0
      %v825 = vsel %vm817, %v637, 0
      %v828 = vsel %vm817, %v640, 0
      %v831 = vsel %vm817, %v643, 0
      %v834 = vsel %vm817, %v646, 0
      %v837 = vsel %vm817, %v649, 0
      %v840 = vsel %vm817, %v652, 0
      %v843 = vsel %vm817, %v655, 0
      %v846 = vsel %vm817, %v658, 0
      %v849 = vsel %vm817, %v661, 0
      %v852 = vsel %vm817, %v664, 0
      %v855 = vsel %vm817, %v667, 0
      %v858 = vsel %vm817, %v670, 0
      %v861 = vsel %vm817, %v673, 0
      %v864 = vsel %vm817, %v676, 0
      %866 = vmatprep.subr.bf16.mxu0 0
      %867 = vmatpush1.bf16.msra.mxu0 %v788
      %868 = vmatprep.subr.bf16.mxu0 0
      %869 = vmatpush1.bf16.msra.mxu0 %v787
      %870 = vmatprep.subr.bf16.mxu0 0
      %871 = vmatpush1.bf16.msra.mxu0 %v786
      %872 = vmatprep.subr.bf16.mxu0 0
      %873 = vmatpush1.bf16.msra.mxu0 %v785
      %874 = vmatprep.subr.bf16.mxu0 0
      %875 = vmatpush1.bf16.msra.mxu0 %v784
      %876 = vmatprep.subr.bf16.mxu0 0
      %877 = vmatpush1.bf16.msra.mxu0 %v783
      %878 = vmatprep.subr.bf16.mxu0 0
      %879 = vmatpush1.bf16.msra.mxu0 %v782
      %880 = vmatprep.subr.bf16.mxu0 0
      %881 = vmatpush1.bf16.msra.mxu0 %v781
      %882 = vmatprep.subr.bf16.mxu0 0
      %883 = vmatpush2.bf16.msra.mxu0 %v796
      %884 = vmatprep.subr.bf16.mxu0 0
      %885 = vmatpush2.bf16.msra.mxu0 %v795
      %886 = vmatprep.subr.bf16.mxu0 0
      %887 = vmatpush2.bf16.msra.mxu0 %v794
      %888 = vmatprep.subr.bf16.mxu0 0
      %889 = vmatpush2.bf16.msra.mxu0 %v793
      %890 = vmatprep.subr.bf16.mxu0 0
      %891 = vmatpush2.bf16.msra.mxu0 %v792
      %892 = vmatprep.subr.bf16.mxu0 0
      %893 = vmatpush2.bf16.msra.mxu0 %v791
      %894 = vmatprep.subr.bf16.mxu0 0
      %895 = vmatpush2.bf16.msra.mxu0 %v790
      %896 = vmatprep.subr.bf16.mxu0 0
      %897 = vmatpush2.bf16.msra.mxu0 %v789
      %898 = vmatprep.mubr.bf16.mxu0 %v630
      %899 = vmatmul.mubr.bf16.gmra.mxu0 %v629
      %v900 = vpop.f32.mrf.mxu0
      %v901 = vadd.f32 0.0, %v900
      %v902 = vpop.f32.mrf.mxu0
      %v903 = vpop.f32.mrf.mxu0
      %v904 = vadd.f32 0.0, %v903
      %v905 = vpop.f32.mrf.mxu0
      %906 = vmatprep.mubr.bf16.mxu0 %v633
      %907 = vmatmul.mubr.bf16.gmra.mxu0 %v632
      %v908 = vpop.f32.mrf.mxu0
      %v909 = vadd.f32 0.0, %v908
      %v910 = vpop.f32.mrf.mxu0
      %v911 = vpop.f32.mrf.mxu0
      %v912 = vadd.f32 0.0, %v911
      %v913 = vpop.f32.mrf.mxu0
      %914 = vmatprep.mubr.bf16.mxu0 %v636
      %915 = vmatmul.mubr.bf16.gmra.mxu0 %v635
      %v916 = vpop.f32.mrf.mxu0
      %v917 = vadd.f32 0.0, %v916
      %v918 = vpop.f32.mrf.mxu0
      %v919 = vpop.f32.mrf.mxu0
      %v920 = vadd.f32 0.0, %v919
      %v921 = vpop.f32.mrf.mxu0
      %922 = vmatprep.mubr.bf16.mxu0 %v639
      %923 = vmatmul.mubr.bf16.gmra.mxu0 %v638
      %v924 = vpop.f32.mrf.mxu0
      %v925 = vadd.f32 0.0, %v924
      %v926 = vpop.f32.mrf.mxu0
      %v927 = vpop.f32.mrf.mxu0
      %v928 = vadd.f32 0.0, %v927
      %v929 = vpop.f32.mrf.mxu0
      %930 = vmatprep.mubr.bf16.mxu0 %v642
      %931 = vmatmul.mubr.bf16.gmra.mxu0 %v641
      %v932 = vpop.f32.mrf.mxu0
      %v933 = vadd.f32 0.0, %v932
      %v934 = vpop.f32.mrf.mxu0
      %v935 = vpop.f32.mrf.mxu0
      %v936 = vadd.f32 0.0, %v935
      %v937 = vpop.f32.mrf.mxu0
      %938 = vmatprep.mubr.bf16.mxu0 %v645
      %939 = vmatmul.mubr.bf16.gmra.mxu0 %v644
      %v940 = vpop.f32.mrf.mxu0
      %v941 = vadd.f32 0.0, %v940
      %v942 = vpop.f32.mrf.mxu0
      %v943 = vpop.f32.mrf.mxu0
      %v944 = vadd.f32 0.0, %v943
      %v945 = vpop.f32.mrf.mxu0
      %946 = vmatprep.mubr.bf16.mxu0 %v648
      %947 = vmatmul.mubr.bf16.gmra.mxu0 %v647
      %v948 = vpop.f32.mrf.mxu0
      %v949 = vadd.f32 0.0, %v948
      %v950 = vpop.f32.mrf.mxu0
      %v951 = vpop.f32.mrf.mxu0
      %v952 = vadd.f32 0.0, %v951
      %v953 = vpop.f32.mrf.mxu0
      %954 = vmatprep.mubr.bf16.mxu0 %v651
      %955 = vmatmul.mubr.bf16.gmra.mxu0 %v650
      %v956 = vpop.f32.mrf.mxu0
      %v957 = vadd.f32 0.0, %v956
      %v958 = vpop.f32.mrf.mxu0
      %v959 = vpop.f32.mrf.mxu0
      %v960 = vadd.f32 0.0, %v959
      %v961 = vpop.f32.mrf.mxu0
      %962 = vmatprep.mubr.bf16.mxu0 %v654
      %963 = vmatmul.mubr.bf16.gmra.mxu0 %v653
      %v964 = vpop.f32.mrf.mxu0
      %v965 = vadd.f32 0.0, %v964
      %v966 = vpop.f32.mrf.mxu0
      %v967 = vpop.f32.mrf.mxu0
      %v968 = vadd.f32 0.0, %v967
      %v969 = vpop.f32.mrf.mxu0
      %970 = vmatprep.mubr.bf16.mxu0 %v657
      %971 = vmatmul.mubr.bf16.gmra.mxu0 %v656
      %v972 = vpop.f32.mrf.mxu0
      %v973 = vadd.f32 0.0, %v972
      %v974 = vpop.f32.mrf.mxu0
      %v975 = vpop.f32.mrf.mxu0
      %v976 = vadd.f32 0.0, %v975
      %v977 = vpop.f32.mrf.mxu0
      %978 = vmatprep.mubr.bf16.mxu0 %v660
      %979 = vmatmul.mubr.bf16.gmra.mxu0 %v659
      %v980 = vpop.f32.mrf.mxu0
      %v981 = vadd.f32 0.0, %v980
      %v982 = vpop.f32.mrf.mxu0
      %v983 = vpop.f32.mrf.mxu0
      %v984 = vadd.f32 0.0, %v983
      %v985 = vpop.f32.mrf.mxu0
      %986 = vmatprep.mubr.bf16.mxu0 %v663
      %987 = vmatmul.mubr.bf16.gmra.mxu0 %v662
      %v988 = vpop.f32.mrf.mxu0
      %v989 = vadd.f32 0.0, %v988
      %v990 = vpop.f32.mrf.mxu0
      %v991 = vpop.f32.mrf.mxu0
      %v992 = vadd.f32 0.0, %v991
      %v993 = vpop.f32.mrf.mxu0
      %994 = vmatprep.mubr.bf16.mxu0 %v666
      %995 = vmatmul.mubr.bf16.gmra.mxu0 %v665
      %v996 = vpop.f32.mrf.mxu0
      %v997 = vadd.f32 0.0, %v996
      %v998 = vpop.f32.mrf.mxu0
      %v999 = vpop.f32.mrf.mxu0
      %v1000 = vadd.f32 0.0, %v999
      %v1001 = vpop.f32.mrf.mxu0
      %1002 = vmatprep.mubr.bf16.mxu0 %v669
      %1003 = vmatmul.mubr.bf16.gmra.mxu0 %v668
      %v1004 = vpop.f32.mrf.mxu0
      %v1005 = vadd.f32 0.0, %v1004
      %v1006 = vpop.f32.mrf.mxu0
      %v1007 = vpop.f32.mrf.mxu0
      %v1008 = vadd.f32 0.0, %v1007
      %v1009 = vpop.f32.mrf.mxu0
      %1010 = vmatprep.mubr.bf16.mxu0 %v672
      %1011 = vmatmul.mubr.bf16.gmra.mxu0 %v671
      %v1012 = vpop.f32.mrf.mxu0
      %v1013 = vadd.f32 0.0, %v1012
      %v1014 = vpop.f32.mrf.mxu0
      %v1015 = vpop.f32.mrf.mxu0
      %v1016 = vadd.f32 0.0, %v1015
      %v1017 = vpop.f32.mrf.mxu0
      %1018 = vmatprep.mubr.bf16.mxu0 %v675
      %1019 = vmatmul.mubr.bf16.gmra.mxu0 %v674
      %v1020 = vpop.f32.mrf.mxu0
      %v1021 = vadd.f32 0.0, %v1020
      %v1022 = vpop.f32.mrf.mxu0
      %v1023 = vpop.f32.mrf.mxu0
      %v1024 = vadd.f32 0.0, %v1023
      %v1025 = vpop.f32.mrf.mxu0
      %1026 = vdwg.mxu0
      %1027 = vmatprep.subr.bf16.mxu0 0
      %1028 = vmatpush1.bf16.msra.mxu0 0
      %1029 = vmatprep.subr.bf16.mxu0 0
      %1030 = vmatpush1.bf16.msra.mxu0 0
      %1031 = vmatprep.subr.bf16.mxu0 0
      %1032 = vmatpush1.bf16.msra.mxu0 0
      %1033 = vmatprep.subr.bf16.mxu0 0
      %1034 = vmatpush1.bf16.msra.mxu0 0
      %1035 = vmatprep.subr.bf16.mxu0 0
      %1036 = vmatpush1.bf16.msra.mxu0 0
      %1037 = vmatprep.subr.bf16.mxu0 0
      %1038 = vmatpush1.bf16.msra.mxu0 0
      %1039 = vmatprep.subr.bf16.mxu0 0
      %1040 = vmatpush1.bf16.msra.mxu0 %v798
      %1041 = vmatprep.subr.bf16.mxu0 0
      %1042 = vmatpush1.bf16.msra.mxu0 %v797
      %1043 = vmatprep.subr.bf16.mxu0 0
      %1044 = vmatpush2.bf16.msra.mxu0 0
      %1045 = vmatprep.subr.bf16.mxu0 0
      %1046 = vmatpush2.bf16.msra.mxu0 0
      %1047 = vmatprep.subr.bf16.mxu0 0
      %1048 = vmatpush2.bf16.msra.mxu0 0
      %1049 = vmatprep.subr.bf16.mxu0 0
      %1050 = vmatpush2.bf16.msra.mxu0 0
      %1051 = vmatprep.subr.bf16.mxu0 0
      %1052 = vmatpush2.bf16.msra.mxu0 0
      %1053 = vmatprep.subr.bf16.mxu0 0
      %1054 = vmatpush2.bf16.msra.mxu0 0
      %1055 = vmatprep.subr.bf16.mxu0 0
      %1056 = vmatpush2.bf16.msra.mxu0 0
      %1057 = vmatprep.subr.bf16.mxu0 0
      %1058 = vmatpush2.bf16.msra.mxu0 0
      %1059 = vmatprep.mubr.bf16.mxu0 0
      %1060 = vmatmul.mubr.bf16.gmra.mxu0 %v819
      %v1061 = vpop.f32.mrf.mxu0
      %v1062 = vadd.f32 %v901, %v1061
      %v1063 = vpop.f32.mrf.mxu0
      %v1064 = vpop.f32.mrf.mxu0
      %v1065 = vadd.f32 %v904, %v1064
      %v1066 = vpop.f32.mrf.mxu0
      %1067 = vmatprep.mubr.bf16.mxu0 0
      %1068 = vmatmul.mubr.bf16.gmra.mxu0 %v822
      %v1069 = vpop.f32.mrf.mxu0
      %v1070 = vadd.f32 %v909, %v1069
      %v1071 = vpop.f32.mrf.mxu0
      %v1072 = vpop.f32.mrf.mxu0
      %v1073 = vadd.f32 %v912, %v1072
      %v1074 = vpop.f32.mrf.mxu0
      %1075 = vmatprep.mubr.bf16.mxu0 0
      %1076 = vmatmul.mubr.bf16.gmra.mxu0 %v825
      %v1077 = vpop.f32.mrf.mxu0
      %v1078 = vadd.f32 %v917, %v1077
      %v1079 = vpop.f32.mrf.mxu0
      %v1080 = vpop.f32.mrf.mxu0
      %v1081 = vadd.f32 %v920, %v1080
      %v1082 = vpop.f32.mrf.mxu0
      %1083 = vmatprep.mubr.bf16.mxu0 0
      %1084 = vmatmul.mubr.bf16.gmra.mxu0 %v828
      %v1085 = vpop.f32.mrf.mxu0
      %v1086 = vadd.f32 %v925, %v1085
      %v1087 = vpop.f32.mrf.mxu0
      %v1088 = vpop.f32.mrf.mxu0
      %v1089 = vadd.f32 %v928, %v1088
      %v1090 = vpop.f32.mrf.mxu0
      %1091 = vmatprep.mubr.bf16.mxu0 0
      %1092 = vmatmul.mubr.bf16.gmra.mxu0 %v831
      %v1093 = vpop.f32.mrf.mxu0
      %v1094 = vadd.f32 %v933, %v1093
      %v1095 = vpop.f32.mrf.mxu0
      %v1096 = vpop.f32.mrf.mxu0
      %v1097 = vadd.f32 %v936, %v1096
      %v1098 = vpop.f32.mrf.mxu0
      %1099 = vmatprep.mubr.bf16.mxu0 0
      %1100 = vmatmul.mubr.bf16.gmra.mxu0 %v834
      %v1101 = vpop.f32.mrf.mxu0
      %v1102 = vadd.f32 %v941, %v1101
      %v1103 = vpop.f32.mrf.mxu0
      %v1104 = vpop.f32.mrf.mxu0
      %v1105 = vadd.f32 %v944, %v1104
      %v1106 = vpop.f32.mrf.mxu0
      %1107 = vmatprep.mubr.bf16.mxu0 0
      %1108 = vmatmul.mubr.bf16.gmra.mxu0 %v837
      %v1109 = vpop.f32.mrf.mxu0
      %v1110 = vadd.f32 %v949, %v1109
      %v1111 = vpop.f32.mrf.mxu0
      %v1112 = vpop.f32.mrf.mxu0
      %v1113 = vadd.f32 %v952, %v1112
      %v1114 = vpop.f32.mrf.mxu0
      %1115 = vmatprep.mubr.bf16.mxu0 0
      %1116 = vmatmul.mubr.bf16.gmra.mxu0 %v840
      %v1117 = vpop.f32.mrf.mxu0
      %v1118 = vadd.f32 %v957, %v1117
      %v1119 = vpop.f32.mrf.mxu0
      %v1120 = vpop.f32.mrf.mxu0
      %v1121 = vadd.f32 %v960, %v1120
      %v1122 = vpop.f32.mrf.mxu0
      %1123 = vmatprep.mubr.bf16.mxu0 0
      %1124 = vmatmul.mubr.bf16.gmra.mxu0 %v843
      %v1125 = vpop.f32.mrf.mxu0
      %v1126 = vadd.f32 %v965, %v1125
      %v1127 = vpop.f32.mrf.mxu0
      %v1128 = vpop.f32.mrf.mxu0
      %v1129 = vadd.f32 %v968, %v1128
      %v1130 = vpop.f32.mrf.mxu0
      %1131 = vmatprep.mubr.bf16.mxu0 0
      %1132 = vmatmul.mubr.bf16.gmra.mxu0 %v846
      %v1133 = vpop.f32.mrf.mxu0
      %v1134 = vadd.f32 %v973, %v1133
      %v1135 = vpop.f32.mrf.mxu0
      %v1136 = vpop.f32.mrf.mxu0
      %v1137 = vadd.f32 %v976, %v1136
      %v1138 = vpop.f32.mrf.mxu0
      %1139 = vmatprep.mubr.bf16.mxu0 0
      %1140 = vmatmul.mubr.bf16.gmra.mxu0 %v849
      %v1141 = vpop.f32.mrf.mxu0
      %v1142 = vadd.f32 %v981, %v1141
      %v1143 = vpop.f32.mrf.mxu0
      %v1144 = vpop.f32.mrf.mxu0
      %v1145 = vadd.f32 %v984, %v1144
      %v1146 = vpop.f32.mrf.mxu0
      %1147 = vmatprep.mubr.bf16.mxu0 0
      %1148 = vmatmul.mubr.bf16.gmra.mxu0 %v852
      %v1149 = vpop.f32.mrf.mxu0
      %v1150 = vadd.f32 %v989, %v1149
      %v1151 = vpop.f32.mrf.mxu0
      %v1152 = vpop.f32.mrf.mxu0
      %v1153 = vadd.f32 %v992, %v1152
      %v1154 = vpop.f32.mrf.mxu0
      %1155 = vmatprep.mubr.bf16.mxu0 0
      %1156 = vmatmul.mubr.bf16.gmra.mxu0 %v855
      %v1157 = vpop.f32.mrf.mxu0
      %v1158 = vadd.f32 %v997, %v1157
      %v1159 = vpop.f32.mrf.mxu0
      %v1160 = vpop.f32.mrf.mxu0
      %v1161 = vadd.f32 %v1000, %v1160
      %v1162 = vpop.f32.mrf.mxu0
      %1163 = vmatprep.mubr.bf16.mxu0 0
      %1164 = vmatmul.mubr.bf16.gmra.mxu0 %v858
      %v1165 = vpop.f32.mrf.mxu0
      %v1166 = vadd.f32 %v1005, %v1165
      %v1167 = vpop.f32.mrf.mxu0
      %v1168 = vpop.f32.mrf.mxu0
      %v1169 = vadd.f32 %v1008, %v1168
      %v1170 = vpop.f32.mrf.mxu0
      %1171 = vmatprep.mubr.bf16.mxu0 0
      %1172 = vmatmul.mubr.bf16.gmra.mxu0 %v861
      %v1173 = vpop.f32.mrf.mxu0
      %v1174 = vadd.f32 %v1013, %v1173
      %v1175 = vpop.f32.mrf.mxu0
      %v1176 = vpop.f32.mrf.mxu0
      %v1177 = vadd.f32 %v1016, %v1176
      %v1178 = vpop.f32.mrf.mxu0
      %1179 = vmatprep.mubr.bf16.mxu0 0
      %1180 = vmatmul.mubr.bf16.gmra.mxu0 %v864
      %v1181 = vpop.f32.mrf.mxu0
      %v1182 = vadd.f32 %v1021, %v1181
      %v1183 = vpop.f32.mrf.mxu0
      %v1184 = vpop.f32.mrf.mxu0
      %v1185 = vadd.f32 %v1024, %v1184
      %v1186 = vpop.f32.mrf.mxu0
      %1187 = vdwg.mxu0
      %v1188 = vld [vmem:[%s346] sm:$0x1]
      %v1190 = vlaneseq
      %v1191 = vshrl.u32 %v1190, 7
      %v1192 = vsub.s32 0, %v1191
      %v1193 = vrot.slane %v1188, %v1192
      %v1195 = vmul.f32 %v1062, %v1193
      %v1196 = vmul.f32 %v1065, %v1193
      %v1197 = vmul.f32 %v1070, %v1193
      %v1198 = vmul.f32 %v1073, %v1193
      %v1199 = vmul.f32 %v1078, %v1193
      %v1200 = vmul.f32 %v1081, %v1193
      %v1201 = vmul.f32 %v1086, %v1193
      %v1202 = vmul.f32 %v1089, %v1193
      %v1203 = vmul.f32 %v1094, %v1193
      %v1204 = vmul.f32 %v1097, %v1193
      %v1205 = vmul.f32 %v1102, %v1193
      %v1206 = vmul.f32 %v1105, %v1193
      %v1207 = vmul.f32 %v1110, %v1193
      %v1208 = vmul.f32 %v1113, %v1193
      %v1209 = vmul.f32 %v1118, %v1193
      %v1210 = vmul.f32 %v1121, %v1193
      %v1211 = vmul.f32 %v1126, %v1193
      %v1212 = vmul.f32 %v1129, %v1193
      %v1213 = vmul.f32 %v1134, %v1193
      %v1214 = vmul.f32 %v1137, %v1193
      %v1215 = vmul.f32 %v1142, %v1193
      %v1216 = vmul.f32 %v1145, %v1193
      %v1217 = vmul.f32 %v1150, %v1193
      %v1218 = vmul.f32 %v1153, %v1193
      %v1219 = vmul.f32 %v1158, %v1193
      %v1220 = vmul.f32 %v1161, %v1193
      %v1221 = vmul.f32 %v1166, %v1193
      %v1222 = vmul.f32 %v1169, %v1193
      %v1223 = vmul.f32 %v1174, %v1193
      %v1224 = vmul.f32 %v1177, %v1193
      %v1225 = vmul.f32 %v1182, %v1193
      %v1226 = vmul.f32 %v1185, %v1193
      %v1227 = vld [vmem:[%s349] sm:$0x1]
      %v1229 = vlaneseq
      %v1230 = vshrl.u32 %v1229, 7
      %v1231 = vsub.s32 0, %v1230
      %v1232 = vrot.slane %v1227, %v1231
      %v1234 = vadd.f32 %v1195, %v1232
      %v1235 = vadd.f32 %v1196, %v1232
      %v1236 = vadd.f32 %v1197, %v1232
      %v1237 = vadd.f32 %v1198, %v1232
      %v1238 = vadd.f32 %v1199, %v1232
      %v1239 = vadd.f32 %v1200, %v1232
      %v1240 = vadd.f32 %v1201, %v1232
      %v1241 = vadd.f32 %v1202, %v1232
      %v1242 = vadd.f32 %v1203, %v1232
      %v1243 = vadd.f32 %v1204, %v1232
      %v1244 = vadd.f32 %v1205, %v1232
      %v1245 = vadd.f32 %v1206, %v1232
      %v1246 = vadd.f32 %v1207, %v1232
      %v1247 = vadd.f32 %v1208, %v1232
      %v1248 = vadd.f32 %v1209, %v1232
      %v1249 = vadd.f32 %v1210, %v1232
      %v1250 = vadd.f32 %v1211, %v1232
      %v1251 = vadd.f32 %v1212, %v1232
      %v1252 = vadd.f32 %v1213, %v1232
      %v1253 = vadd.f32 %v1214, %v1232
      %v1254 = vadd.f32 %v1215, %v1232
      %v1255 = vadd.f32 %v1216, %v1232
      %v1256 = vadd.f32 %v1217, %v1232
      %v1257 = vadd.f32 %v1218, %v1232
      %v1258 = vadd.f32 %v1219, %v1232
      %v1259 = vadd.f32 %v1220, %v1232
      %v1260 = vadd.f32 %v1221, %v1232
      %v1261 = vadd.f32 %v1222, %v1232
      %v1262 = vadd.f32 %v1223, %v1232
      %v1263 = vadd.f32 %v1224, %v1232
      %v1264 = vadd.f32 %v1225, %v1232
      %v1265 = vadd.f32 %v1226, %v1232
      %v1266 = vld [vmem:[%s357] sm:$0xf]
      %v1267 = vld [vmem:[%s357 + $0x4] sm:$0xf]
      %v1268 = vld [vmem:[%s357 + $0x8] sm:$0xf]
      %v1269 = vld [vmem:[%s357 + $0xc] sm:$0xf]
      %v1270 = vld [vmem:[%s357 + $0x10] sm:$0xf]
      %v1271 = vld [vmem:[%s357 + $0x14] sm:$0xf]
      %v1272 = vld [vmem:[%s357 + $0x18] sm:$0xf]
      %v1273 = vld [vmem:[%s357 + $0x1c] sm:$0xf]
      %v1274 = vld [vmem:[%s357 + $0x20] sm:$0xf]
      %v1275 = vld [vmem:[%s357 + $0x24] sm:$0xf]
      %v1276 = vld [vmem:[%s357 + $0x28] sm:$0xf]
      %v1277 = vld [vmem:[%s357 + $0x2c] sm:$0xf]
      %v1278 = vld [vmem:[%s357 + $0x30] sm:$0xf]
      %v1279 = vld [vmem:[%s357 + $0x34] sm:$0xf]
      %v1280 = vld [vmem:[%s357 + $0x38] sm:$0xf]
      %v1281 = vld [vmem:[%s357 + $0x3c] sm:$0xf]
      %v1282 = vld [vmem:[%s357 + $0x40] sm:$0xf]
      %v1283 = vld [vmem:[%s357 + $0x44] sm:$0xf]
      %v1284 = vld [vmem:[%s357 + $0x48] sm:$0xf]
      %v1285 = vld [vmem:[%s357 + $0x4c] sm:$0xf]
      %v1286 = vld [vmem:[%s357 + $0x50] sm:$0xf]
      %v1287 = vld [vmem:[%s357 + $0x54] sm:$0xf]
      %v1288 = vld [vmem:[%s357 + $0x58] sm:$0xf]
      %v1289 = vld [vmem:[%s357 + $0x5c] sm:$0xf]
      %v1290 = vld [vmem:[%s357 + $0x60] sm:$0xf]
      %v1291 = vld [vmem:[%s357 + $0x64] sm:$0xf]
      %v1292 = vld [vmem:[%s357 + $0x68] sm:$0xf]
      %v1293 = vld [vmem:[%s357 + $0x6c] sm:$0xf]
      %v1294 = vld [vmem:[%s357 + $0x70] sm:$0xf]
      %v1295 = vld [vmem:[%s357 + $0x74] sm:$0xf]
      %v1296 = vld [vmem:[%s357 + $0x78] sm:$0xf]
      %v1297 = vld [vmem:[%s357 + $0x7c] sm:$0xf]
      %v1298 = vunpack.c.l.bf16 %v1266
      %v1299 = vunpack.c.l.bf16 %v1267
      %v1300 = vunpack.c.l.bf16 %v1268
      %v1301 = vunpack.c.l.bf16 %v1269
      %v1302 = vunpack.c.l.bf16 %v1270
      %v1303 = vunpack.c.l.bf16 %v1271
      %v1304 = vunpack.c.l.bf16 %v1272
      %v1305 = vunpack.c.l.bf16 %v1273
      %v1306 = vunpack.c.l.bf16 %v1274
      %v1307 = vunpack.c.l.bf16 %v1275
      %v1308 = vunpack.c.l.bf16 %v1276
      %v1309 = vunpack.c.l.bf16 %v1277
      %v1310 = vunpack.c.l.bf16 %v1278
      %v1311 = vunpack.c.l.bf16 %v1279
      %v1312 = vunpack.c.l.bf16 %v1280
      %v1313 = vunpack.c.l.bf16 %v1281
      %v1314 = vunpack.c.l.bf16 %v1282
      %v1315 = vunpack.c.l.bf16 %v1283
      %v1316 = vunpack.c.l.bf16 %v1284
      %v1317 = vunpack.c.l.bf16 %v1285
      %v1318 = vunpack.c.l.bf16 %v1286
      %v1319 = vunpack.c.l.bf16 %v1287
      %v1320 = vunpack.c.l.bf16 %v1288
      %v1321 = vunpack.c.l.bf16 %v1289
      %v1322 = vunpack.c.l.bf16 %v1290
      %v1323 = vunpack.c.l.bf16 %v1291
      %v1324 = vunpack.c.l.bf16 %v1292
      %v1325 = vunpack.c.l.bf16 %v1293
      %v1326 = vunpack.c.l.bf16 %v1294
      %v1327 = vunpack.c.l.bf16 %v1295
      %v1328 = vunpack.c.l.bf16 %v1296
      %v1329 = vunpack.c.l.bf16 %v1297
      %v1330 = vadd.f32 %v1234, %v1298
      %v1331 = vadd.f32 %v1235, %v1299
      %v1332 = vadd.f32 %v1236, %v1300
      %v1333 = vadd.f32 %v1237, %v1301
      %v1334 = vadd.f32 %v1238, %v1302
      %v1335 = vadd.f32 %v1239, %v1303
      %v1336 = vadd.f32 %v1240, %v1304
      %v1337 = vadd.f32 %v1241, %v1305
      %v1338 = vadd.f32 %v1242, %v1306
      %v1339 = vadd.f32 %v1243, %v1307
      %v1340 = vadd.f32 %v1244, %v1308
      %v1341 = vadd.f32 %v1245, %v1309
      %v1342 = vadd.f32 %v1246, %v1310
      %v1343 = vadd.f32 %v1247, %v1311
      %v1344 = vadd.f32 %v1248, %v1312
      %v1345 = vadd.f32 %v1249, %v1313
      %v1346 = vadd.f32 %v1250, %v1314
      %v1347 = vadd.f32 %v1251, %v1315
      %v1348 = vadd.f32 %v1252, %v1316
      %v1349 = vadd.f32 %v1253, %v1317
      %v1350 = vadd.f32 %v1254, %v1318
      %v1351 = vadd.f32 %v1255, %v1319
      %v1352 = vadd.f32 %v1256, %v1320
      %v1353 = vadd.f32 %v1257, %v1321
      %v1354 = vadd.f32 %v1258, %v1322
      %v1355 = vadd.f32 %v1259, %v1323
      %v1356 = vadd.f32 %v1260, %v1324
      %v1357 = vadd.f32 %v1261, %v1325
      %v1358 = vadd.f32 %v1262, %v1326
      %v1359 = vadd.f32 %v1263, %v1327
      %v1360 = vadd.f32 %v1264, %v1328
      %v1361 = vadd.f32 %v1265, %v1329
      %v1362 = vmax.f32 %v1330, 0.0
      %v1363 = vmax.f32 %v1331, 0.0
      %v1364 = vmax.f32 %v1332, 0.0
      %v1365 = vmax.f32 %v1333, 0.0
      %v1366 = vmax.f32 %v1334, 0.0
      %v1367 = vmax.f32 %v1335, 0.0
      %v1368 = vmax.f32 %v1336, 0.0
      %v1369 = vmax.f32 %v1337, 0.0
      %v1370 = vmax.f32 %v1338, 0.0
      %v1371 = vmax.f32 %v1339, 0.0
      %v1372 = vmax.f32 %v1340, 0.0
      %v1373 = vmax.f32 %v1341, 0.0
      %v1374 = vmax.f32 %v1342, 0.0
      %v1375 = vmax.f32 %v1343, 0.0
      %v1376 = vmax.f32 %v1344, 0.0
      %v1377 = vmax.f32 %v1345, 0.0
      %v1378 = vmax.f32 %v1346, 0.0
      %v1379 = vmax.f32 %v1347, 0.0
      %v1380 = vmax.f32 %v1348, 0.0
      %v1381 = vmax.f32 %v1349, 0.0
      %v1382 = vmax.f32 %v1350, 0.0
      %v1383 = vmax.f32 %v1351, 0.0
      %v1384 = vmax.f32 %v1352, 0.0
      %v1385 = vmax.f32 %v1353, 0.0
      %v1386 = vmax.f32 %v1354, 0.0
      %v1387 = vmax.f32 %v1355, 0.0
      %v1388 = vmax.f32 %v1356, 0.0
      %v1389 = vmax.f32 %v1357, 0.0
      %v1390 = vmax.f32 %v1358, 0.0
      %v1391 = vmax.f32 %v1359, 0.0
      %v1392 = vmax.f32 %v1360, 0.0
      %v1393 = vmax.f32 %v1361, 0.0
      %v1394 = vpack.c.bf16 %v1363, %v1362
      %v1395 = vpack.c.bf16 %v1365, %v1364
      %v1396 = vpack.c.bf16 %v1367, %v1366
      %v1397 = vpack.c.bf16 %v1369, %v1368
      %v1398 = vpack.c.bf16 %v1371, %v1370
      %v1399 = vpack.c.bf16 %v1373, %v1372
      %v1400 = vpack.c.bf16 %v1375, %v1374
      %v1401 = vpack.c.bf16 %v1377, %v1376
      %v1402 = vpack.c.bf16 %v1379, %v1378
      %v1403 = vpack.c.bf16 %v1381, %v1380
      %v1404 = vpack.c.bf16 %v1383, %v1382
      %v1405 = vpack.c.bf16 %v1385, %v1384
      %v1406 = vpack.c.bf16 %v1387, %v1386
      %v1407 = vpack.c.bf16 %v1389, %v1388
      %v1408 = vpack.c.bf16 %v1391, %v1390
      %v1409 = vpack.c.bf16 %v1393, %v1392
      %v1426 = vunpack.c.l.b16 %v1394
      %v1427 = vunpack.c.h.b16 %v1394
      %v1428 = vunpack.c.l.b16 %v1395
      %v1429 = vunpack.c.h.b16 %v1395
      %v1430 = vunpack.c.l.b16 %v1396
      %v1431 = vunpack.c.h.b16 %v1396
      %v1432 = vunpack.c.l.b16 %v1397
      %v1433 = vunpack.c.h.b16 %v1397
      %v1434 = vunpack.c.l.b16 %v1398
      %v1435 = vunpack.c.h.b16 %v1398
      %v1436 = vunpack.c.l.b16 %v1399
      %v1437 = vunpack.c.h.b16 %v1399
      %v1438 = vunpack.c.l.b16 %v1400
      %v1439 = vunpack.c.h.b16 %v1400
      %v1440 = vunpack.c.l.b16 %v1401
      %v1441 = vunpack.c.h.b16 %v1401
      %v1442 = vunpack.c.l.b16 %v1402
      %v1443 = vunpack.c.h.b16 %v1402
      %v1444 = vunpack.c.l.b16 %v1403
      %v1445 = vunpack.c.h.b16 %v1403
      %v1446 = vunpack.c.l.b16 %v1404
      %v1447 = vunpack.c.h.b16 %v1404
      %v1448 = vunpack.c.l.b16 %v1405
      %v1449 = vunpack.c.h.b16 %v1405
      %v1450 = vunpack.c.l.b16 %v1406
      %v1451 = vunpack.c.h.b16 %v1406
      %v1452 = vunpack.c.l.b16 %v1407
      %v1453 = vunpack.c.h.b16 %v1407
      %v1454 = vunpack.c.l.b16 %v1408
      %v1455 = vunpack.c.h.b16 %v1408
      %v1456 = vunpack.c.l.b16 %v1409
      %v1457 = vunpack.c.h.b16 %v1409
      %v1458 = vpack.c.b16 %v1426, %v1426
      %v1459 = vpack.c.b16 %v1427, %v1427
      %v1460 = vpack.c.b16 %v1428, %v1428
      %v1461 = vpack.c.b16 %v1429, %v1429
      %v1462 = vpack.c.b16 %v1430, %v1430
      %v1463 = vpack.c.b16 %v1431, %v1431
      %v1464 = vpack.c.b16 %v1432, %v1432
      %v1465 = vpack.c.b16 %v1433, %v1433
      %v1466 = vpack.c.b16 %v1434, %v1434
      %v1467 = vpack.c.b16 %v1435, %v1435
      %v1468 = vpack.c.b16 %v1436, %v1436
      %v1469 = vpack.c.b16 %v1437, %v1437
      %v1470 = vpack.c.b16 %v1438, %v1438
      %v1471 = vpack.c.b16 %v1439, %v1439
      %v1472 = vpack.c.b16 %v1440, %v1440
      %v1473 = vpack.c.b16 %v1441, %v1441
      %v1474 = vpack.c.b16 %v1442, %v1442
      %v1475 = vpack.c.b16 %v1443, %v1443
      %v1476 = vpack.c.b16 %v1444, %v1444
      %v1477 = vpack.c.b16 %v1445, %v1445
      %v1478 = vpack.c.b16 %v1446, %v1446
      %v1479 = vpack.c.b16 %v1447, %v1447
      %v1480 = vpack.c.b16 %v1448, %v1448
      %v1481 = vpack.c.b16 %v1449, %v1449
      %v1482 = vpack.c.b16 %v1450, %v1450
      %v1483 = vpack.c.b16 %v1451, %v1451
      %v1484 = vpack.c.b16 %v1452, %v1452
      %v1485 = vpack.c.b16 %v1453, %v1453
      %v1486 = vpack.c.b16 %v1454, %v1454
      %v1487 = vpack.c.b16 %v1455, %v1455
      %v1488 = vpack.c.b16 %v1456, %v1456
      %v1489 = vpack.c.b16 %v1457, %v1457
      %1522 = vst [vmem:[%s366] sm:$0xf] %v1458
      %1523 = vst [vmem:[%s366 + $0x4] sm:$0xf] %v1459
      %1524 = vst [vmem:[%s366 + $0x8] sm:$0xf] %v1460
      %1525 = vst [vmem:[%s366 + $0xc] sm:$0xf] %v1461
      %1526 = vst [vmem:[%s366 + $0x10] sm:$0xf] %v1462
      %1527 = vst [vmem:[%s366 + $0x14] sm:$0xf] %v1463
      %1528 = vst [vmem:[%s366 + $0x18] sm:$0xf] %v1464
      %1529 = vst [vmem:[%s366 + $0x1c] sm:$0xf] %v1465
      %1530 = vst [vmem:[%s366 + $0x20] sm:$0xf] %v1466
      %1531 = vst [vmem:[%s366 + $0x24] sm:$0xf] %v1467
      %1532 = vst [vmem:[%s366 + $0x28] sm:$0xf] %v1468
      %1533 = vst [vmem:[%s366 + $0x2c] sm:$0xf] %v1469
      %1534 = vst [vmem:[%s366 + $0x30] sm:$0xf] %v1470
      %1535 = vst [vmem:[%s366 + $0x34] sm:$0xf] %v1471
      %1536 = vst [vmem:[%s366 + $0x38] sm:$0xf] %v1472
      %1537 = vst [vmem:[%s366 + $0x3c] sm:$0xf] %v1473
      %1538 = vst [vmem:[%s366 + $0x40] sm:$0xf] %v1474
      %1539 = vst [vmem:[%s366 + $0x44] sm:$0xf] %v1475
      %1540 = vst [vmem:[%s366 + $0x48] sm:$0xf] %v1476
      %1541 = vst [vmem:[%s366 + $0x4c] sm:$0xf] %v1477
      %1542 = vst [vmem:[%s366 + $0x50] sm:$0xf] %v1478
      %1543 = vst [vmem:[%s366 + $0x54] sm:$0xf] %v1479
      %1544 = vst [vmem:[%s366 + $0x58] sm:$0xf] %v1480
      %1545 = vst [vmem:[%s366 + $0x5c] sm:$0xf] %v1481
      %1546 = vst [vmem:[%s366 + $0x60] sm:$0xf] %v1482
      %1547 = vst [vmem:[%s366 + $0x64] sm:$0xf] %v1483
      %1548 = vst [vmem:[%s366 + $0x68] sm:$0xf] %v1484
      %1549 = vst [vmem:[%s366 + $0x6c] sm:$0xf] %v1485
      %1550 = vst [vmem:[%s366 + $0x70] sm:$0xf] %v1486
      %1551 = vst [vmem:[%s366 + $0x74] sm:$0xf] %v1487
      %1552 = vst [vmem:[%s366 + $0x78] sm:$0xf] %v1488
      %1553 = vst [vmem:[%s366 + $0x7c] sm:$0xf] %v1489
      %s1554 = smul.u32 32, %s21
      %p1555 = scmp.lt.s32.totalorder %s1554, 63
      %s1556 = scalar_select %p1555, %s1554, 63
      %p1557 = scmp.lt.s32.totalorder %s22, 0
      %s1558 = scalar_select %p1557, %s22, 0
      %s1559 = sadd.s32 %s1558, %s1556
      %s1560 = smul.addr %s1559, 4
      %s1561 = scalar_lea.vmem %s5, %s1560
      // Predicated region
      $region41: #{_lambda_.14} parent=39 // pred_check
        %p1562 = pneg %p191
      $region42: #{_lambda_.14} parent=39 // pred_check_branch
        %1564 = sbr.rel (%p1562) target = $region44
      $region43: #{_lambda_.14} parent=39 // pred_region
        %s1565 = smul.u32 32, %s21
      $region44: #{_lambda_.14} parent=39 // pred_fallthru
        _
    $region40: #{_lambda_.14} parent=5 // pred_fallthru
      _
    %p1566 = scmp.le.s32.totalorder 2, %s11
    // Predicated region
    $region45: #{_lambda_.14} parent=5 // pred_check
      %p1567 = pneg %p1566
    $region46: #{_lambda_.14} parent=5 // pred_check_branch
      %1569 = sbr.rel (%p1567) target = $region48
    $region47: #{_lambda_.14} parent=5 // pred_region
      %s1570 = ssub.s32 %s11, 2
      // Predicated region
      $region49: #{_lambda_.14} parent=47 // pred_check
        %p1571 = pneg %p197
      $region50: #{_lambda_.14} parent=47 // pred_check_branch
        %1573 = sbr.rel (%p1571) target = $region52
      $region51: #{_lambda_.14} parent=47 // pred_region
        %s1574 = smul.u32 32, %s24
        %p1575 = scmp.lt.s32.totalorder %s1574, 63
        %s1576 = scalar_select %p1575, %s1574, 63
        %p1577 = scmp.lt.s32.totalorder %s25, 0
        %s1578 = scalar_select %p1577, %s25, 0
        %s1579 = sadd.s32 %s1578, %s1576
        %s1580 = smul.addr %s1579, 4
        %s1581 = scalar_lea.vmem %s5, %s1580
      $region52: #{_lambda_.14} parent=47 // pred_fallthru
        _
    $region48: #{_lambda_.14} parent=5 // pred_fallthru
      _
  $region6: #{_lambda_.14} parent=0 // loop_footer
    %s15 = sadd.s32 1, %s11
  $region7: #{_lambda_.14} parent=0 // loop_footer_branch
    %10 = sbr.rel target = $region3
  $region8: #{_lambda_.14} parent=0 // loop_exit
    _

// kernel: _lambda_.22
$region0: #{_lambda_.22}
  #allocation0 [shape = 'u32[]', space=smem, size = 0x4, offset = 0x4, fixed_abs, tag = 'smem constant byte address 0x4 - core index']
  #allocation1 [shape = 'u32[144,128]{1,0:T(1,128)}', space=vmem, size = 0x12000, scoped, tag = 'internal scratch']
  %s0 = inlined_call_operand.vmem [shape: bf16[128,288], index: 0, kind: input, shape index: {}]
  %s1 = inlined_call_operand.vmem [shape: bf16[288,128], index: 1, kind: input, shape index: {}]
  %s2 = inlined_call_operand.vmem [shape: f32[1,128], index: 2, kind: input, shape index: {}]
  %s3 = inlined_call_operand.vmem [shape: f32[1,128], index: 3, kind: input, shape index: {}]
  %s4 = inlined_call_operand.vmem [shape: bf16[128,128], index: 4, kind: output, shape index: {}]
  %s5 = sld [smem:[#allocation0]]
  $region26: #{_lambda_.22} parent=0
    _
  %s7 = ssub.s32 1, %s5
  %s8 = scalar_select 0, %s7, %s5
  // Predicated region
  $region2: #{_lambda_.22} parent=0 // pred_check
    _
  $region3: #{_lambda_.22} parent=0 // pred_check_branch
    %10 = sbr.rel (0) target = $region5
  $region4: #{_lambda_.22} parent=0 // pred_region
    _
  $region5: #{_lambda_.22} parent=0 // pred_fallthru
    _
  // Predicated region
  $region6: #{_lambda_.22} parent=0 // pred_check
    _
  $region7: #{_lambda_.22} parent=0 // pred_check_branch
    %12 = sbr.rel (0) target = $region9
  $region8: #{_lambda_.22} parent=0 // pred_region
    _
  $region9: #{_lambda_.22} parent=0 // pred_fallthru
    _
  // Predicated region
  $region10: #{_lambda_.22} parent=0 // pred_check
    _
  $region11: #{_lambda_.22} parent=0 // pred_check_branch
    %14 = sbr.rel (0) target = $region13
  $region12: #{_lambda_.22} parent=0 // pred_region
    _
  $region13: #{_lambda_.22} parent=0 // pred_fallthru
    _
  // Predicated region
  $region14: #{_lambda_.22} parent=0 // pred_check
    _
  $region15: #{_lambda_.22} parent=0 // pred_check_branch
    %16 = sbr.rel (0) target = $region17
  $region16: #{_lambda_.22} parent=0 // pred_region
    _
  $region17: #{_lambda_.22} parent=0 // pred_fallthru
    _
  %v18 = vld [vmem:[%s0] sm:$0xff]
  %v19 = vld [vmem:[%s0 + $0x8] sm:$0xf]
  %v20 = vld [vmem:[%s0 + $0xc] sm:$0xff]
  %v21 = vld [vmem:[%s0 + $0x14] sm:$0xf]
  %v22 = vld [vmem:[%s0 + $0x18] sm:$0xff]
  %v23 = vld [vmem:[%s0 + $0x20] sm:$0xf]
  %v24 = vld [vmem:[%s0 + $0x24] sm:$0xff]
  %v25 = vld [vmem:[%s0 + $0x2c] sm:$0xf]
  %v26 = vld [vmem:[%s0 + $0x30] sm:$0xff]
  %v27 = vld [vmem:[%s0 + $0x38] sm:$0xf]
  %v28 = vld [vmem:[%s0 + $0x3c] sm:$0xff]
  %v29 = vld [vmem:[%s0 + $0x44] sm:$0xf]
  %v30 = vld [vmem:[%s0 + $0x48] sm:$0xff]
  %v31 = vld [vmem:[%s0 + $0x50] sm:$0xf]
  %v32 = vld [vmem:[%s0 + $0x54] sm:$0xff]
  %v33 = vld [vmem:[%s0 + $0x5c] sm:$0xf]
  %v34 = vld [vmem:[%s0 + $0x60] sm:$0xff]
  %v35 = vld [vmem:[%s0 + $0x68] sm:$0xf]
  %v36 = vld [vmem:[%s0 + $0x6c] sm:$0xff]
  %v37 = vld [vmem:[%s0 + $0x74] sm:$0xf]
  %v38 = vld [vmem:[%s0 + $0x78] sm:$0xff]
  %v39 = vld [vmem:[%s0 + $0x80] sm:$0xf]
  %v40 = vld [vmem:[%s0 + $0x84] sm:$0xff]
  %v41 = vld [vmem:[%s0 + $0x8c] sm:$0xf]
  %v42 = vld [vmem:[%s0 + $0x90] sm:$0xff]
  %v43 = vld [vmem:[%s0 + $0x98] sm:$0xf]
  %v44 = vld [vmem:[%s0 + $0x9c] sm:$0xff]
  %v45 = vld [vmem:[%s0 + $0xa4] sm:$0xf]
  %v46 = vld [vmem:[%s0 + $0xa8] sm:$0xff]
  %v47 = vld [vmem:[%s0 + $0xb0] sm:$0xf]
  %v48 = vld [vmem:[%s0 + $0xb4] sm:$0xff]
  %v49 = vld [vmem:[%s0 + $0xbc] sm:$0xf]
  %v50 = vld [vmem:[%s1] sm:$0xf]
  %v51 = vld [vmem:[%s1 + $0x4] sm:$0xf]
  %v52 = vld [vmem:[%s1 + $0x8] sm:$0xf]
  %v53 = vld [vmem:[%s1 + $0xc] sm:$0xf]
  %v54 = vld [vmem:[%s1 + $0x10] sm:$0xf]
  %v55 = vld [vmem:[%s1 + $0x14] sm:$0xf]
  %v56 = vld [vmem:[%s1 + $0x18] sm:$0xf]
  %v57 = vld [vmem:[%s1 + $0x1c] sm:$0xf]
  %v58 = vld [vmem:[%s1 + $0x20] sm:$0xf]
  %v59 = vld [vmem:[%s1 + $0x24] sm:$0xf]
  %v60 = vld [vmem:[%s1 + $0x28] sm:$0xf]
  %v61 = vld [vmem:[%s1 + $0x2c] sm:$0xf]
  %v62 = vld [vmem:[%s1 + $0x30] sm:$0xf]
  %v63 = vld [vmem:[%s1 + $0x34] sm:$0xf]
  %v64 = vld [vmem:[%s1 + $0x38] sm:$0xf]
  %v65 = vld [vmem:[%s1 + $0x3c] sm:$0xf]
  %v66 = vld [vmem:[%s1 + $0x40] sm:$0xf]
  %v67 = vld [vmem:[%s1 + $0x44] sm:$0xf]
  %v68 = vld [vmem:[%s1 + $0x48] sm:$0xf]
  %v69 = vld [vmem:[%s1 + $0x4c] sm:$0xf]
  %v70 = vld [vmem:[%s1 + $0x50] sm:$0xf]
  %v71 = vld [vmem:[%s1 + $0x54] sm:$0xf]
  %v72 = vld [vmem:[%s1 + $0x58] sm:$0xf]
  %v73 = vld [vmem:[%s1 + $0x5c] sm:$0xf]
  %v74 = vld [vmem:[%s1 + $0x60] sm:$0xf]
  %v75 = vld [vmem:[%s1 + $0x64] sm:$0xf]
  %v76 = vld [vmem:[%s1 + $0x68] sm:$0xf]
  %v77 = vld [vmem:[%s1 + $0x6c] sm:$0xf]
  %v78 = vld [vmem:[%s1 + $0x70] sm:$0xf]
  %v79 = vld [vmem:[%s1 + $0x74] sm:$0xf]
  %v80 = vld [vmem:[%s1 + $0x78] sm:$0xf]
  %v81 = vld [vmem:[%s1 + $0x7c] sm:$0xf]
  %v82 = vld [vmem:[%s1 + $0x80] sm:$0xf]
  %v83 = vld [vmem:[%s1 + $0x84] sm:$0xf]
  %v84 = vld [vmem:[%s1 + $0x88] sm:$0xf]
  %v85 = vld [vmem:[%s1 + $0x8c] sm:$0xf]
  %v118 = vunpack.c.l.b16 %v18
  %v119 = vunpack.c.h.b16 %v18
  %v120 = vunpack.c.l.b16 %v19
  %v121 = vunpack.c.l.b16 %v20
  %v122 = vunpack.c.h.b16 %v20
  %v123 = vunpack.c.l.b16 %v21
  %v124 = vunpack.c.l.b16 %v22
  %v125 = vunpack.c.h.b16 %v22
  %v126 = vunpack.c.l.b16 %v23
  %v127 = vunpack.c.l.b16 %v24
  %v128 = vunpack.c.h.b16 %v24
  %v129 = vunpack.c.l.b16 %v25
  %v130 = vunpack.c.l.b16 %v26
  %v131 = vunpack.c.h.b16 %v26
  %v132 = vunpack.c.l.b16 %v27
  %v133 = vunpack.c.l.b16 %v28
  %v134 = vunpack.c.h.b16 %v28
  %v135 = vunpack.c.l.b16 %v29
  %v136 = vunpack.c.l.b16 %v30
  %v137 = vunpack.c.h.b16 %v30
  %v138 = vunpack.c.l.b16 %v31
  %v139 = vunpack.c.l.b16 %v32
  %v140 = vunpack.c.h.b16 %v32
  %v141 = vunpack.c.l.b16 %v33
  %v142 = vunpack.c.l.b16 %v34
  %v143 = vunpack.c.h.b16 %v34
  %v144 = vunpack.c.l.b16 %v35
  %v145 = vunpack.c.l.b16 %v36
  %v146 = vunpack.c.h.b16 %v36
  %v147 = vunpack.c.l.b16 %v37
  %v148 = vunpack.c.l.b16 %v38
  %v149 = vunpack.c.h.b16 %v38
  %v150 = vunpack.c.l.b16 %v39
  %v151 = vunpack.c.l.b16 %v40
  %v152 = vunpack.c.h.b16 %v40
  %v153 = vunpack.c.l.b16 %v41
  %v154 = vunpack.c.l.b16 %v42
  %v155 = vunpack.c.h.b16 %v42
  %v156 = vunpack.c.l.b16 %v43
  %v157 = vunpack.c.l.b16 %v44
  %v158 = vunpack.c.h.b16 %v44
  %v159 = vunpack.c.l.b16 %v45
  %v160 = vunpack.c.l.b16 %v46
  %v161 = vunpack.c.h.b16 %v46
  %v162 = vunpack.c.l.b16 %v47
  %v163 = vunpack.c.l.b16 %v48
  %v164 = vunpack.c.h.b16 %v48
  %v165 = vunpack.c.l.b16 %v49
  %v166 = vpack.c.b16 %v121, %v118
  %v167 = vpack.c.b16 %v122, %v119
  %v168 = vpack.c.b16 %v123, %v120
  %v169 = vpack.c.b16 %v127, %v124
  %v170 = vpack.c.b16 %v128, %v125
  %v171 = vpack.c.b16 %v129, %v126
  %v172 = vpack.c.b16 %v133, %v130
  %v173 = vpack.c.b16 %v134, %v131
  %v174 = vpack.c.b16 %v135, %v132
  %v175 = vpack.c.b16 %v139, %v136
  %v176 = vpack.c.b16 %v140, %v137
  %v177 = vpack.c.b16 %v141, %v138
  %v178 = vpack.c.b16 %v145, %v142
  %v179 = vpack.c.b16 %v146, %v143
  %v180 = vpack.c.b16 %v147, %v144
  %v181 = vpack.c.b16 %v151, %v148
  %v182 = vpack.c.b16 %v152, %v149
  %v183 = vpack.c.b16 %v153, %v150
  %v184 = vpack.c.b16 %v157, %v154
  %v185 = vpack.c.b16 %v158, %v155
  %v186 = vpack.c.b16 %v159, %v156
  %v187 = vpack.c.b16 %v163, %v160
  %v188 = vpack.c.b16 %v164, %v161
  %v189 = vpack.c.b16 %v165, %v162
  %v242 = vunpack.c.l.b16 %v50
  %v243 = vunpack.c.l.b16 %v51
  %v244 = vunpack.c.l.b16 %v52
  %v245 = vunpack.c.l.b16 %v53
  %v246 = vunpack.c.l.b16 %v54
  %v247 = vunpack.c.l.b16 %v55
  %v248 = vunpack.c.l.b16 %v56
  %v249 = vunpack.c.l.b16 %v57
  %v250 = vunpack.c.l.b16 %v58
  %v251 = vunpack.c.l.b16 %v59
  %v252 = vunpack.c.l.b16 %v60
  %v253 = vunpack.c.l.b16 %v61
  %v254 = vunpack.c.l.b16 %v62
  %v255 = vunpack.c.l.b16 %v63
  %v256 = vunpack.c.l.b16 %v64
  %v257 = vunpack.c.l.b16 %v65
  %v258 = vunpack.c.l.b16 %v66
  %v259 = vunpack.c.l.b16 %v67
  %v260 = vunpack.c.l.b16 %v68
  %v261 = vunpack.c.l.b16 %v69
  %v262 = vunpack.c.l.b16 %v70
  %v263 = vunpack.c.l.b16 %v71
  %v264 = vunpack.c.l.b16 %v72
  %v265 = vunpack.c.l.b16 %v73
  %v266 = vunpack.c.l.b16 %v74
  %v267 = vunpack.c.l.b16 %v75
  %v268 = vunpack.c.l.b16 %v76
  %v269 = vunpack.c.l.b16 %v77
  %v270 = vunpack.c.l.b16 %v78
  %v271 = vunpack.c.l.b16 %v79
  %v272 = vunpack.c.l.b16 %v80
  %v273 = vunpack.c.l.b16 %v81
  %v274 = vunpack.c.l.b16 %v82
  %v275 = vunpack.c.l.b16 %v83
  %v276 = vunpack.c.l.b16 %v84
  %v277 = vunpack.c.l.b16 %v85
  %v278 = vpack.c.b16 %v243, %v242
  %v279 = vpack.c.b16 %v245, %v244
  %v280 = vpack.c.b16 %v247, %v246
  %v281 = vpack.c.b16 %v249, %v248
  %v282 = vpack.c.b16 %v251, %v250
  %v283 = vpack.c.b16 %v253, %v252
  %v284 = vpack.c.b16 %v255, %v254
  %v285 = vpack.c.b16 %v257, %v256
  %v286 = vpack.c.b16 %v259, %v258
  %v287 = vpack.c.b16 %v261, %v260
  %v288 = vpack.c.b16 %v263, %v262
  %v289 = vpack.c.b16 %v265, %v264
  %v290 = vpack.c.b16 %v267, %v266
  %v291 = vpack.c.b16 %v269, %v268
  %v292 = vpack.c.b16 %v271, %v270
  %v293 = vpack.c.b16 %v273, %v272
  %v294 = vpack.c.b16 %v275, %v274
  %v295 = vpack.c.b16 %v277, %v276
  %vm314 = vcmask 261120
  %v316 = vsel %vm314, %v168, 0
  %v319 = vsel %vm314, %v171, 0
  %v322 = vsel %vm314, %v174, 0
  %v325 = vsel %vm314, %v177, 0
  %v328 = vsel %vm314, %v180, 0
  %v331 = vsel %vm314, %v183, 0
  %v334 = vsel %vm314, %v186, 0
  %v337 = vsel %vm314, %v189, 0
  %339 = vmatprep.subr.bf16.mxu0 0
  %340 = vmatpush1.bf16.msra.mxu0 %v285
  %341 = vmatprep.subr.bf16.mxu0 0
  %342 = vmatpush1.bf16.msra.mxu0 %v284
  %343 = vmatprep.subr.bf16.mxu0 0
  %344 = vmatpush1.bf16.msra.mxu0 %v283
  %345 = vmatprep.subr.bf16.mxu0 0
  %346 = vmatpush1.bf16.msra.mxu0 %v282
  %347 = vmatprep.subr.bf16.mxu0 0
  %348 = vmatpush1.bf16.msra.mxu0 %v281
  %349 = vmatprep.subr.bf16.mxu0 0
  %350 = vmatpush1.bf16.msra.mxu0 %v280
  %351 = vmatprep.subr.bf16.mxu0 0
  %352 = vmatpush1.bf16.msra.mxu0 %v279
  %353 = vmatprep.subr.bf16.mxu0 0
  %354 = vmatpush1.bf16.msra.mxu0 %v278
  %355 = vmatprep.subr.bf16.mxu0 0
  %356 = vmatpush2.bf16.msra.mxu0 %v293
  %357 = vmatprep.subr.bf16.mxu0 0
  %358 = vmatpush2.bf16.msra.mxu0 %v292
  %359 = vmatprep.subr.bf16.mxu0 0
  %360 = vmatpush2.bf16.msra.mxu0 %v291
  %361 = vmatprep.subr.bf16.mxu0 0
  %362 = vmatpush2.bf16.msra.mxu0 %v290
  %363 = vmatprep.subr.bf16.mxu0 0
  %364 = vmatpush2.bf16.msra.mxu0 %v289
  %365 = vmatprep.subr.bf16.mxu0 0
  %366 = vmatpush2.bf16.msra.mxu0 %v288
  %367 = vmatprep.subr.bf16.mxu0 0
  %368 = vmatpush2.bf16.msra.mxu0 %v287
  %369 = vmatprep.subr.bf16.mxu0 0
  %370 = vmatpush2.bf16.msra.mxu0 %v286
  %371 = vmatprep.mubr.bf16.mxu0 %v167
  %372 = vmatmul.mubr.bf16.gmra.mxu0 %v166
  %v373 = vpop.f32.mrf.mxu0
  %v374 = vadd.f32 0.0, %v373
  %v375 = vpop.f32.mrf.mxu0
  %v376 = vpop.f32.mrf.mxu0
  %v377 = vadd.f32 0.0, %v376
  %v378 = vpop.f32.mrf.mxu0
  %379 = vmatprep.mubr.bf16.mxu0 %v170
  %380 = vmatmul.mubr.bf16.gmra.mxu0 %v169
  %v381 = vpop.f32.mrf.mxu0
  %v382 = vadd.f32 0.0, %v381
  %v383 = vpop.f32.mrf.mxu0
  %v384 = vpop.f32.mrf.mxu0
  %v385 = vadd.f32 0.0, %v384
  %v386 = vpop.f32.mrf.mxu0
  %387 = vmatprep.mubr.bf16.mxu0 %v173
  %388 = vmatmul.mubr.bf16.gmra.mxu0 %v172
  %v389 = vpop.f32.mrf.mxu0
  %v390 = vadd.f32 0.0, %v389
  %v391 = vpop.f32.mrf.mxu0
  %v392 = vpop.f32.mrf.mxu0
  %v393 = vadd.f32 0.0, %v392
  %v394 = vpop.f32.mrf.mxu0
  %395 = vmatprep.mubr.bf16.mxu0 %v176
  %396 = vmatmul.mubr.bf16.gmra.mxu0 %v175
  %v397 = vpop.f32.mrf.mxu0
  %v398 = vadd.f32 0.0, %v397
  %v399 = vpop.f32.mrf.mxu0
  %v400 = vpop.f32.mrf.mxu0
  %v401 = vadd.f32 0.0, %v400
  %v402 = vpop.f32.mrf.mxu0
  %403 = vmatprep.mubr.bf16.mxu0 %v179
  %404 = vmatmul.mubr.bf16.gmra.mxu0 %v178
  %v405 = vpop.f32.mrf.mxu0
  %v406 = vadd.f32 0.0, %v405
  %v407 = vpop.f32.mrf.mxu0
  %v408 = vpop.f32.mrf.mxu0
  %v409 = vadd.f32 0.0, %v408
  %v410 = vpop.f32.mrf.mxu0
  %411 = vmatprep.mubr.bf16.mxu0 %v182
  %412 = vmatmul.mubr.bf16.gmra.mxu0 %v181
  %v413 = vpop.f32.mrf.mxu0
  %v414 = vadd.f32 0.0, %v413
  %v415 = vpop.f32.mrf.mxu0
  %v416 = vpop.f32.mrf.mxu0
  %v417 = vadd.f32 0.0, %v416
  %v418 = vpop.f32.mrf.mxu0
  %419 = vmatprep.mubr.bf16.mxu0 %v185
  %420 = vmatmul.mubr.bf16.gmra.mxu0 %v184
  %v421 = vpop.f32.mrf.mxu0
  %v422 = vadd.f32 0.0, %v421
  %v423 = vpop.f32.mrf.mxu0
  %v424 = vpop.f32.mrf.mxu0
  %v425 = vadd.f32 0.0, %v424
  %v426 = vpop.f32.mrf.mxu0
  %427 = vmatprep.mubr.bf16.mxu0 %v188
  %428 = vmatmul.mubr.bf16.gmra.mxu0 %v187
  %v429 = vpop.f32.mrf.mxu0
  %v430 = vadd.f32 0.0, %v429
  %v431 = vpop.f32.mrf.mxu0
  %v432 = vpop.f32.mrf.mxu0
  %v433 = vadd.f32 0.0, %v432
  %v434 = vpop.f32.mrf.mxu0
  %435 = vdwg.mxu0
  %436 = vmatprep.subr.bf16.mxu0 0
  %437 = vmatpush1.bf16.msra.mxu0 0
  %438 = vmatprep.subr.bf16.mxu0 0
  %439 = vmatpush1.bf16.msra.mxu0 0
  %440 = vmatprep.subr.bf16.mxu0 0
  %441 = vmatpush1.bf16.msra.mxu0 0
  %442 = vmatprep.subr.bf16.mxu0 0
  %443 = vmatpush1.bf16.msra.mxu0 0
  %444 = vmatprep.subr.bf16.mxu0 0
  %445 = vmatpush1.bf16.msra.mxu0 0
  %446 = vmatprep.subr.bf16.mxu0 0
  %447 = vmatpush1.bf16.msra.mxu0 0
  %448 = vmatprep.subr.bf16.mxu0 0
  %449 = vmatpush1.bf16.msra.mxu0 %v295
  %450 = vmatprep.subr.bf16.mxu0 0
  %451 = vmatpush1.bf16.msra.mxu0 %v294
  %452 = vmatprep.subr.bf16.mxu0 0
  %453 = vmatpush2.bf16.msra.mxu0 0
  %454 = vmatprep.subr.bf16.mxu0 0
  %455 = vmatpush2.bf16.msra.mxu0 0
  %456 = vmatprep.subr.bf16.mxu0 0
  %457 = vmatpush2.bf16.msra.mxu0 0
  %458 = vmatprep.subr.bf16.mxu0 0
  %459 = vmatpush2.bf16.msra.mxu0 0
  %460 = vmatprep.subr.bf16.mxu0 0
  %461 = vmatpush2.bf16.msra.mxu0 0
  %462 = vmatprep.subr.bf16.mxu0 0
  %463 = vmatpush2.bf16.msra.mxu0 0
  %464 = vmatprep.subr.bf16.mxu0 0
  %465 = vmatpush2.bf16.msra.mxu0 0
  %466 = vmatprep.subr.bf16.mxu0 0
  %467 = vmatpush2.bf16.msra.mxu0 0
  %468 = vmatprep.mubr.bf16.mxu0 0
  %469 = vmatmul.mubr.bf16.gmra.mxu0 %v316
  %v470 = vpop.f32.mrf.mxu0
  %v471 = vadd.f32 %v374, %v470
  %v472 = vpop.f32.mrf.mxu0
  %v473 = vpop.f32.mrf.mxu0
  %v474 = vadd.f32 %v377, %v473
  %v475 = vpop.f32.mrf.mxu0
  %476 = vmatprep.mubr.bf16.mxu0 0
  %477 = vmatmul.mubr.bf16.gmra.mxu0 %v319
  %v478 = vpop.f32.mrf.mxu0
  %v479 = vadd.f32 %v382, %v478
  %v480 = vpop.f32.mrf.mxu0
  %v481 = vpop.f32.mrf.mxu0
  %v482 = vadd.f32 %v385, %v481
  %v483 = vpop.f32.mrf.mxu0
  %484 = vmatprep.mubr.bf16.mxu0 0
  %485 = vmatmul.mubr.bf16.gmra.mxu0 %v322
  %v486 = vpop.f32.mrf.mxu0
  %v487 = vadd.f32 %v390, %v486
  %v488 = vpop.f32.mrf.mxu0
  %v489 = vpop.f32.mrf.mxu0
  %v490 = vadd.f32 %v393, %v489
  %v491 = vpop.f32.mrf.mxu0
  %492 = vmatprep.mubr.bf16.mxu0 0
  %493 = vmatmul.mubr.bf16.gmra.mxu0 %v325
  %v494 = vpop.f32.mrf.mxu0
  %v495 = vadd.f32 %v398, %v494
  %v496 = vpop.f32.mrf.mxu0
  %v497 = vpop.f32.mrf.mxu0
  %v498 = vadd.f32 %v401, %v497
  %v499 = vpop.f32.mrf.mxu0
  %500 = vmatprep.mubr.bf16.mxu0 0
  %501 = vmatmul.mubr.bf16.gmra.mxu0 %v328
  %v502 = vpop.f32.mrf.mxu0
  %v503 = vadd.f32 %v406, %v502
  %v504 = vpop.f32.mrf.mxu0
  %v505 = vpop.f32.mrf.mxu0
  %v506 = vadd.f32 %v409, %v505
  %v507 = vpop.f32.mrf.mxu0
  %508 = vmatprep.mubr.bf16.mxu0 0
  %509 = vmatmul.mubr.bf16.gmra.mxu0 %v331
  %v510 = vpop.f32.mrf.mxu0
  %v511 = vadd.f32 %v414, %v510
  %v512 = vpop.f32.mrf.mxu0
  %v513 = vpop.f32.mrf.mxu0
  %v514 = vadd.f32 %v417, %v513
  %v515 = vpop.f32.mrf.mxu0
  %516 = vmatprep.mubr.bf16.mxu0 0
  %517 = vmatmul.mubr.bf16.gmra.mxu0 %v334
  %v518 = vpop.f32.mrf.mxu0
  %v519 = vadd.f32 %v422, %v518
  %v520 = vpop.f32.mrf.mxu0
  %v521 = vpop.f32.mrf.mxu0
  %v522 = vadd.f32 %v425, %v521
  %v523 = vpop.f32.mrf.mxu0
  %524 = vmatprep.mubr.bf16.mxu0 0
  %525 = vmatmul.mubr.bf16.gmra.mxu0 %v337
  %v526 = vpop.f32.mrf.mxu0
  %v527 = vadd.f32 %v430, %v526
  %v528 = vpop.f32.mrf.mxu0
  %v529 = vpop.f32.mrf.mxu0
  %v530 = vadd.f32 %v433, %v529
  %v531 = vpop.f32.mrf.mxu0
  %532 = vdwg.mxu0
  %v533 = vld [vmem:[%s2] sm:$0x1]
  %v535 = vlaneseq
  %v536 = vshrl.u32 %v535, 7
  %v537 = vsub.s32 0, %v536
  %v538 = vrot.slane %v533, %v537
  %v540 = vmul.f32 %v471, %v538
  %v541 = vmul.f32 %v474, %v538
  %v542 = vmul.f32 %v479, %v538
  %v543 = vmul.f32 %v482, %v538
  %v544 = vmul.f32 %v487, %v538
  %v545 = vmul.f32 %v490, %v538
  %v546 = vmul.f32 %v495, %v538
  %v547 = vmul.f32 %v498, %v538
  %v548 = vmul.f32 %v503, %v538
  %v549 = vmul.f32 %v506, %v538
  %v550 = vmul.f32 %v511, %v538
  %v551 = vmul.f32 %v514, %v538
  %v552 = vmul.f32 %v519, %v538
  %v553 = vmul.f32 %v522, %v538
  %v554 = vmul.f32 %v527, %v538
  %v555 = vmul.f32 %v530, %v538
  %v556 = vld [vmem:[%s3] sm:$0x1]
  %v558 = vlaneseq
  %v559 = vshrl.u32 %v558, 7
  %v560 = vsub.s32 0, %v559
  %v561 = vrot.slane %v556, %v560
  %v563 = vadd.f32 %v540, %v561
  %v564 = vadd.f32 %v541, %v561
  %v565 = vadd.f32 %v542, %v561
  %v566 = vadd.f32 %v543, %v561
  %v567 = vadd.f32 %v544, %v561
  %v568 = vadd.f32 %v545, %v561
  %v569 = vadd.f32 %v546, %v561
  %v570 = vadd.f32 %v547, %v561
  %v571 = vadd.f32 %v548, %v561
  %v572 = vadd.f32 %v549, %v561
  %v573 = vadd.f32 %v550, %v561
  %v574 = vadd.f32 %v551, %v561
  %v575 = vadd.f32 %v552, %v561
  %v576 = vadd.f32 %v553, %v561
  %v577 = vadd.f32 %v554, %v561
  %v578 = vadd.f32 %v555, %v561
  %v579 = vmax.f32 %v563, 0.0
  %v580 = vmax.f32 %v564, 0.0
  %v581 = vmax.f32 %v565, 0.0
  %v582 = vmax.f32 %v566, 0.0
  %v583 = vmax.f32 %v567, 0.0
  %v584 = vmax.f32 %v568, 0.0
  %v585 = vmax.f32 %v569, 0.0
  %v586 = vmax.f32 %v570, 0.0
  %v587 = vmax.f32 %v571, 0.0
  %v588 = vmax.f32 %v572, 0.0
  %v589 = vmax.f32 %v573, 0.0
  %v590 = vmax.f32 %v574, 0.0
  %v591 = vmax.f32 %v575, 0.0
  %v592 = vmax.f32 %v576, 0.0
  %v593 = vmax.f32 %v577, 0.0
  %v594 = vmax.f32 %v578, 0.0
  %v595 = vpack.c.bf16 %v580, %v579
  %v596 = vpack.c.bf16 %v582, %v581
  %v597 = vpack.c.bf16 %v584, %v583
  %v598 = vpack.c.bf16 %v586, %v585
  %v599 = vpack.c.bf16 %v588, %v587
  %v600 = vpack.c.bf16 %v590, %v589
  %v601 = vpack.c.bf16 %v592, %v591
  %v602 = vpack.c.bf16 %v594, %v593
  %v611 = vunpack.c.l.b16 %v595
  %v612 = vunpack.c.h.b16 %v595
  %v613 = vunpack.c.l.b16 %v596
  %v614 = vunpack.c.h.b16 %v596
  %v615 = vunpack.c.l.b16 %v597
  %v616 = vunpack.c.h.b16 %v597
  %v617 = vunpack.c.l.b16 %v598
  %v618 = vunpack.c.h.b16 %v598
  %v619 = vunpack.c.l.b16 %v599
  %v620 = vunpack.c.h.b16 %v599
  %v621 = vunpack.c.l.b16 %v600
  %v622 = vunpack.c.h.b16 %v600
  %v623 = vunpack.c.l.b16 %v601
  %v624 = vunpack.c.h.b16 %v601
  %v625 = vunpack.c.l.b16 %v602
  %v626 = vunpack.c.h.b16 %v602
  %v627 = vpack.c.b16 %v611, %v611
  %v628 = vpack.c.b16 %v612, %v612
  %v629 = vpack.c.b16 %v613, %v613
  %v630 = vpack.c.b16 %v614, %v614
  %v631 = vpack.c.b16 %v615, %v615
  %v632 = vpack.c.b16 %v616, %v616
  %v633 = vpack.c.b16 %v617, %v617
  %v634 = vpack.c.b16 %v618, %v618
  %v635 = vpack.c.b16 %v619, %v619
  %v636 = vpack.c.b16 %v620, %v620
  %v637 = vpack.c.b16 %v621, %v621
  %v638 = vpack.c.b16 %v622, %v622
  %v639 = vpack.c.b16 %v623, %v623
  %v640 = vpack.c.b16 %v624, %v624
  %v641 = vpack.c.b16 %v625, %v625
  %v642 = vpack.c.b16 %v626, %v626
  %659 = vst [vmem:[%s4] sm:$0xf] %v627
  %660 = vst [vmem:[%s4 + $0x4] sm:$0xf] %v628
  %661 = vst [vmem:[%s4 + $0x8] sm:$0xf] %v629
  %662 = vst [vmem:[%s4 + $0xc] sm:$0xf] %v630
  %663 = vst [vmem:[%s4 + $0x10] sm:$0xf] %v631
  %664 = vst [vmem:[%s4 + $0x14] sm:$0xf] %v632
  %665 = vst [vmem:[%s4 + $0x18] sm:$0xf] %v633
  %666 = vst [vmem:[%s4 + $0x1c] sm:$0xf] %v634
  %667 = vst [vmem:[%s4 + $0x20] sm:$0xf] %v635
  %668 = vst [vmem:[%s4 + $0x24] sm:$0xf] %v636
  %669 = vst [vmem:[%s4 + $0x28] sm:$0xf] %v637
  %670 = vst [vmem:[%s4 + $0x2c] sm:$0xf] %v638
  %671 = vst [vmem:[%s4 + $0x30] sm:$0xf] %v639
  %672 = vst [vmem:[%s4 + $0x34] sm:$0xf] %v640
  %673 = vst [vmem:[%s4 + $0x38] sm:$0xf] %v641
  %674 = vst [vmem:[%s4 + $0x3c] sm:$0xf] %v642
  // Predicated region
  $region18: #{_lambda_.22} parent=0 // pred_check
    _
  $region19: #{_lambda_.22} parent=0 // pred_check_branch
    %676 = sbr.rel (0) target = $region21
  $region20: #{_lambda_.22} parent=0 // pred_region
    _
  $region21: #{_lambda_.22} parent=0 // pred_fallthru
    _
  // Predicated region
  $region22: #{_lambda_.22} parent=0 // pred_check
    _
  $region23: #{_lambda_.22} parent=0 // pred_check_branch
    %678 = sbr.rel (0) target = $region25
  $region24: #{_lambda_.22} parent=0 // pred_region
    _
  $region25: #{_lambda_.22} parent=0 // pred_fallthru
    _

// kernel: _lambda_.18
$region0: #{_lambda_.18}
  #allocation0 [shape = 'u32[]', space=smem, size = 0x4, offset = 0x4, fixed_abs, tag = 'smem constant byte address 0x4 - core index']
  #allocation1 [shape = 'u32[144,128]{1,0:T(1,128)}', space=vmem, size = 0x12000, scoped, tag = 'internal scratch']
  %s0 = inlined_call_operand.vmem [shape: bf16[128,32], index: 0, kind: input, shape index: {}]
  %s1 = inlined_call_operand.vmem [shape: bf16[32,128], index: 1, kind: input, shape index: {}]
  %s2 = inlined_call_operand.vmem [shape: f32[1,128], index: 2, kind: input, shape index: {}]
  %s3 = inlined_call_operand.vmem [shape: f32[1,128], index: 3, kind: input, shape index: {}]
  %s4 = inlined_call_operand.vmem [shape: bf16[128,128], index: 4, kind: output, shape index: {}]
  %s5 = sld [smem:[#allocation0]]
  $region26: #{_lambda_.18} parent=0
    _
  %s7 = ssub.s32 1, %s5
  %s8 = scalar_select 0, %s7, %s5
  // Predicated region
  $region2: #{_lambda_.18} parent=0 // pred_check
    _
  $region3: #{_lambda_.18} parent=0 // pred_check_branch
    %10 = sbr.rel (0) target = $region5
  $region4: #{_lambda_.18} parent=0 // pred_region
    _
  $region5: #{_lambda_.18} parent=0 // pred_fallthru
    _
  // Predicated region
  $region6: #{_lambda_.18} parent=0 // pred_check
    _
  $region7: #{_lambda_.18} parent=0 // pred_check_branch
    %12 = sbr.rel (0) target = $region9
  $region8: #{_lambda_.18} parent=0 // pred_region
    _
  $region9: #{_lambda_.18} parent=0 // pred_fallthru
    _
  // Predicated region
  $region10: #{_lambda_.18} parent=0 // pred_check
    _
  $region11: #{_lambda_.18} parent=0 // pred_check_branch
    %14 = sbr.rel (0) target = $region13
  $region12: #{_lambda_.18} parent=0 // pred_region
    _
  $region13: #{_lambda_.18} parent=0 // pred_fallthru
    _
  // Predicated region
  $region14: #{_lambda_.18} parent=0 // pred_check
    _
  $region15: #{_lambda_.18} parent=0 // pred_check_branch
    %16 = sbr.rel (0) target = $region17
  $region16: #{_lambda_.18} parent=0 // pred_region
    _
  $region17: #{_lambda_.18} parent=0 // pred_fallthru
    _
  %v18 = vld [vmem:[%s0] sm:$0xf]
  %v19 = vld [vmem:[%s0 + $0x4] sm:$0xf]
  %v20 = vld [vmem:[%s0 + $0x8] sm:$0xf]
  %v21 = vld [vmem:[%s0 + $0xc] sm:$0xf]
  %v22 = vld [vmem:[%s0 + $0x10] sm:$0xf]
  %v23 = vld [vmem:[%s0 + $0x14] sm:$0xf]
  %v24 = vld [vmem:[%s0 + $0x18] sm:$0xf]
  %v25 = vld [vmem:[%s0 + $0x1c] sm:$0xf]
  %v26 = vld [vmem:[%s0 + $0x20] sm:$0xf]
  %v27 = vld [vmem:[%s0 + $0x24] sm:$0xf]
  %v28 = vld [vmem:[%s0 + $0x28] sm:$0xf]
  %v29 = vld [vmem:[%s0 + $0x2c] sm:$0xf]
  %v30 = vld [vmem:[%s0 + $0x30] sm:$0xf]
  %v31 = vld [vmem:[%s0 + $0x34] sm:$0xf]
  %v32 = vld [vmem:[%s0 + $0x38] sm:$0xf]
  %v33 = vld [vmem:[%s0 + $0x3c] sm:$0xf]
  %v34 = vld [vmem:[%s1] sm:$0xf]
  %v35 = vld [vmem:[%s1 + $0x4] sm:$0xf]
  %v36 = vld [vmem:[%s1 + $0x8] sm:$0xf]
  %v37 = vld [vmem:[%s1 + $0xc] sm:$0xf]
  %v54 = vunpack.c.l.b16 %v18
  %v55 = vunpack.c.l.b16 %v19
  %v56 = vunpack.c.l.b16 %v20
  %v57 = vunpack.c.l.b16 %v21
  %v58 = vunpack.c.l.b16 %v22
  %v59 = vunpack.c.l.b16 %v23
  %v60 = vunpack.c.l.b16 %v24
  %v61 = vunpack.c.l.b16 %v25
  %v62 = vunpack.c.l.b16 %v26
  %v63 = vunpack.c.l.b16 %v27
  %v64 = vunpack.c.l.b16 %v28
  %v65 = vunpack.c.l.b16 %v29
  %v66 = vunpack.c.l.b16 %v30
  %v67 = vunpack.c.l.b16 %v31
  %v68 = vunpack.c.l.b16 %v32
  %v69 = vunpack.c.l.b16 %v33
  %v70 = vpack.c.b16 %v55, %v54
  %v71 = vpack.c.b16 %v57, %v56
  %v72 = vpack.c.b16 %v59, %v58
  %v73 = vpack.c.b16 %v61, %v60
  %v74 = vpack.c.b16 %v63, %v62
  %v75 = vpack.c.b16 %v65, %v64
  %v76 = vpack.c.b16 %v67, %v66
  %v77 = vpack.c.b16 %v69, %v68
  %v82 = vunpack.c.l.b16 %v34
  %v83 = vunpack.c.l.b16 %v35
  %v84 = vunpack.c.l.b16 %v36
  %v85 = vunpack.c.l.b16 %v37
  %v86 = vpack.c.b16 %v83, %v82
  %v87 = vpack.c.b16 %v85, %v84
  %vm90 = vcmask 261120
  %v92 = vsel %vm90, %v70, 0
  %v95 = vsel %vm90, %v71, 0
  %v98 = vsel %vm90, %v72, 0
  %v101 = vsel %vm90, %v73, 0
  %v104 = vsel %vm90, %v74, 0
  %v107 = vsel %vm90, %v75, 0
  %v110 = vsel %vm90, %v76, 0
  %v113 = vsel %vm90, %v77, 0
  %115 = vmatprep.subr.bf16.mxu0 0
  %116 = vmatpush1.bf16.msra.mxu0 0
  %117 = vmatprep.subr.bf16.mxu0 0
  %118 = vmatpush1.bf16.msra.mxu0 0
  %119 = vmatprep.subr.bf16.mxu0 0
  %120 = vmatpush1.bf16.msra.mxu0 0
  %121 = vmatprep.subr.bf16.mxu0 0
  %122 = vmatpush1.bf16.msra.mxu0 0
  %123 = vmatprep.subr.bf16.mxu0 0
  %124 = vmatpush1.bf16.msra.mxu0 0
  %125 = vmatprep.subr.bf16.mxu0 0
  %126 = vmatpush1.bf16.msra.mxu0 0
  %127 = vmatprep.subr.bf16.mxu0 0
  %128 = vmatpush1.bf16.msra.mxu0 %v87
  %129 = vmatprep.subr.bf16.mxu0 0
  %130 = vmatpush1.bf16.msra.mxu0 %v86
  %131 = vmatprep.subr.bf16.mxu0 0
  %132 = vmatpush2.bf16.msra.mxu0 0
  %133 = vmatprep.subr.bf16.mxu0 0
  %134 = vmatpush2.bf16.msra.mxu0 0
  %135 = vmatprep.subr.bf16.mxu0 0
  %136 = vmatpush2.bf16.msra.mxu0 0
  %137 = vmatprep.subr.bf16.mxu0 0
  %138 = vmatpush2.bf16.msra.mxu0 0
  %139 = vmatprep.subr.bf16.mxu0 0
  %140 = vmatpush2.bf16.msra.mxu0 0
  %141 = vmatprep.subr.bf16.mxu0 0
  %142 = vmatpush2.bf16.msra.mxu0 0
  %143 = vmatprep.subr.bf16.mxu0 0
  %144 = vmatpush2.bf16.msra.mxu0 0
  %145 = vmatprep.subr.bf16.mxu0 0
  %146 = vmatpush2.bf16.msra.mxu0 0
  %147 = vmatprep.mubr.bf16.mxu0 0
  %148 = vmatmul.mubr.bf16.gmra.mxu0 %v92
  %v149 = vpop.f32.mrf.mxu0
  %v150 = vadd.f32 0.0, %v149
  %v151 = vpop.f32.mrf.mxu0
  %v152 = vpop.f32.mrf.mxu0
  %v153 = vadd.f32 0.0, %v152
  %v154 = vpop.f32.mrf.mxu0
  %155 = vmatprep.mubr.bf16.mxu0 0
  %156 = vmatmul.mubr.bf16.gmra.mxu0 %v95
  %v157 = vpop.f32.mrf.mxu0
  %v158 = vadd.f32 0.0, %v157
  %v159 = vpop.f32.mrf.mxu0
  %v160 = vpop.f32.mrf.mxu0
  %v161 = vadd.f32 0.0, %v160
  %v162 = vpop.f32.mrf.mxu0
  %163 = vmatprep.mubr.bf16.mxu0 0
  %164 = vmatmul.mubr.bf16.gmra.mxu0 %v98
  %v165 = vpop.f32.mrf.mxu0
  %v166 = vadd.f32 0.0, %v165
  %v167 = vpop.f32.mrf.mxu0
  %v168 = vpop.f32.mrf.mxu0
  %v169 = vadd.f32 0.0, %v168
  %v170 = vpop.f32.mrf.mxu0
  %171 = vmatprep.mubr.bf16.mxu0 0
  %172 = vmatmul.mubr.bf16.gmra.mxu0 %v101
  %v173 = vpop.f32.mrf.mxu0
  %v174 = vadd.f32 0.0, %v173
  %v175 = vpop.f32.mrf.mxu0
  %v176 = vpop.f32.mrf.mxu0
  %v177 = vadd.f32 0.0, %v176
  %v178 = vpop.f32.mrf.mxu0
  %179 = vmatprep.mubr.bf16.mxu0 0
  %180 = vmatmul.mubr.bf16.gmra.mxu0 %v104
  %v181 = vpop.f32.mrf.mxu0
  %v182 = vadd.f32 0.0, %v181
  %v183 = vpop.f32.mrf.mxu0
  %v184 = vpop.f32.mrf.mxu0
  %v185 = vadd.f32 0.0, %v184
  %v186 = vpop.f32.mrf.mxu0
  %187 = vmatprep.mubr.bf16.mxu0 0
  %188 = vmatmul.mubr.bf16.gmra.mxu0 %v107
  %v189 = vpop.f32.mrf.mxu0
  %v190 = vadd.f32 0.0, %v189
  %v191 = vpop.f32.mrf.mxu0
  %v192 = vpop.f32.mrf.mxu0
  %v193 = vadd.f32 0.0, %v192
  %v194 = vpop.f32.mrf.mxu0
  %195 = vmatprep.mubr.bf16.mxu0 0
  %196 = vmatmul.mubr.bf16.gmra.mxu0 %v110
  %v197 = vpop.f32.mrf.mxu0
  %v198 = vadd.f32 0.0, %v197
  %v199 = vpop.f32.mrf.mxu0
  %v200 = vpop.f32.mrf.mxu0
  %v201 = vadd.f32 0.0, %v200
  %v202 = vpop.f32.mrf.mxu0
  %203 = vmatprep.mubr.bf16.mxu0 0
  %204 = vmatmul.mubr.bf16.gmra.mxu0 %v113
  %v205 = vpop.f32.mrf.mxu0
  %v206 = vadd.f32 0.0, %v205
  %v207 = vpop.f32.mrf.mxu0
  %v208 = vpop.f32.mrf.mxu0
  %v209 = vadd.f32 0.0, %v208
  %v210 = vpop.f32.mrf.mxu0
  %211 = vdwg.mxu0
  %v212 = vld [vmem:[%s2] sm:$0x1]
  %v214 = vlaneseq
  %v215 = vshrl.u32 %v214, 7
  %v216 = vsub.s32 0, %v215
  %v217 = vrot.slane %v212, %v216
  %v219 = vmul.f32 %v150, %v217
  %v220 = vmul.f32 %v153, %v217
  %v221 = vmul.f32 %v158, %v217
  %v222 = vmul.f32 %v161, %v217
  %v223 = vmul.f32 %v166, %v217
  %v224 = vmul.f32 %v169, %v217
  %v225 = vmul.f32 %v174, %v217
  %v226 = vmul.f32 %v177, %v217
  %v227 = vmul.f32 %v182, %v217
  %v228 = vmul.f32 %v185, %v217
  %v229 = vmul.f32 %v190, %v217
  %v230 = vmul.f32 %v193, %v217
  %v231 = vmul.f32 %v198, %v217
  %v232 = vmul.f32 %v201, %v217
  %v233 = vmul.f32 %v206, %v217
  %v234 = vmul.f32 %v209, %v217
  %v235 = vld [vmem:[%s3] sm:$0x1]
  %v237 = vlaneseq
  %v238 = vshrl.u32 %v237, 7
  %v239 = vsub.s32 0, %v238
  %v240 = vrot.slane %v235, %v239
  %v242 = vadd.f32 %v219, %v240
  %v243 = vadd.f32 %v220, %v240
  %v244 = vadd.f32 %v221, %v240
  %v245 = vadd.f32 %v222, %v240
  %v246 = vadd.f32 %v223, %v240
  %v247 = vadd.f32 %v224, %v240
  %v248 = vadd.f32 %v225, %v240
  %v249 = vadd.f32 %v226, %v240
  %v250 = vadd.f32 %v227, %v240
  %v251 = vadd.f32 %v228, %v240
  %v252 = vadd.f32 %v229, %v240
  %v253 = vadd.f32 %v230, %v240
  %v254 = vadd.f32 %v231, %v240
  %v255 = vadd.f32 %v232, %v240
  %v256 = vadd.f32 %v233, %v240
  %v257 = vadd.f32 %v234, %v240
  %v258 = vpack.c.bf16 %v243, %v242
  %v259 = vpack.c.bf16 %v245, %v244
  %v260 = vpack.c.bf16 %v247, %v246
  %v261 = vpack.c.bf16 %v249, %v248
  %v262 = vpack.c.bf16 %v251, %v250
  %v263 = vpack.c.bf16 %v253, %v252
  %v264 = vpack.c.bf16 %v255, %v254
  %v265 = vpack.c.bf16 %v257, %v256
  %v274 = vunpack.c.l.b16 %v258
  %v275 = vunpack.c.h.b16 %v258
  %v276 = vunpack.c.l.b16 %v259
  %v277 = vunpack.c.h.b16 %v259
  %v278 = vunpack.c.l.b16 %v260
  %v279 = vunpack.c.h.b16 %v260
  %v280 = vunpack.c.l.b16 %v261
  %v281 = vunpack.c.h.b16 %v261
  %v282 = vunpack.c.l.b16 %v262
  %v283 = vunpack.c.h.b16 %v262
  %v284 = vunpack.c.l.b16 %v263
  %v285 = vunpack.c.h.b16 %v263
  %v286 = vunpack.c.l.b16 %v264
  %v287 = vunpack.c.h.b16 %v264
  %v288 = vunpack.c.l.b16 %v265
  %v289 = vunpack.c.h.b16 %v265
  %v290 = vpack.c.b16 %v274, %v274
  %v291 = vpack.c.b16 %v275, %v275
  %v292 = vpack.c.b16 %v276, %v276
  %v293 = vpack.c.b16 %v277, %v277
  %v294 = vpack.c.b16 %v278, %v278
  %v295 = vpack.c.b16 %v279, %v279
  %v296 = vpack.c.b16 %v280, %v280
  %v297 = vpack.c.b16 %v281, %v281
  %v298 = vpack.c.b16 %v282, %v282
  %v299 = vpack.c.b16 %v283, %v283
  %v300 = vpack.c.b16 %v284, %v284
  %v301 = vpack.c.b16 %v285, %v285
  %v302 = vpack.c.b16 %v286, %v286
  %v303 = vpack.c.b16 %v287, %v287
  %v304 = vpack.c.b16 %v288, %v288
  %v305 = vpack.c.b16 %v289, %v289
  %322 = vst [vmem:[%s4] sm:$0xf] %v290
  %323 = vst [vmem:[%s4 + $0x4] sm:$0xf] %v291
  %324 = vst [vmem:[%s4 + $0x8] sm:$0xf] %v292
  %325 = vst [vmem:[%s4 + $0xc] sm:$0xf] %v293
  %326 = vst [vmem:[%s4 + $0x10] sm:$0xf] %v294
  %327 = vst [vmem:[%s4 + $0x14] sm:$0xf] %v295
  %328 = vst [vmem:[%s4 + $0x18] sm:$0xf] %v296
  %329 = vst [vmem:[%s4 + $0x1c] sm:$0xf] %v297
  %330 = vst [vmem:[%s4 + $0x20] sm:$0xf] %v298
  %331 = vst [vmem:[%s4 + $0x24] sm:$0xf] %v299
  %332 = vst [vmem:[%s4 + $0x28] sm:$0xf] %v300
  %333 = vst [vmem:[%s4 + $0x2c] sm:$0xf] %v301
  %334 = vst [vmem:[%s4 + $0x30] sm:$0xf] %v302
  %335 = vst [vmem:[%s4 + $0x34] sm:$0xf] %v303
  %336 = vst [vmem:[%s4 + $0x38] sm:$0xf] %v304
  %337 = vst [vmem:[%s4 + $0x3c] sm:$0xf] %v305
  // Predicated region
  $region18: #{_lambda_.18} parent=0 // pred_check
    _
  $region19: #{_lambda_.18} parent=0 // pred_check_branch
    %339 = sbr.rel (0) target = $region21
  $region20: #{_lambda_.18} parent=0 // pred_region
    _
  $region21: #{_lambda_.18} parent=0 // pred_fallthru
    _
  // Predicated region
  $region22: #{_lambda_.18} parent=0 // pred_check
    _
  $region23: #{_lambda_.18} parent=0 // pred_check_branch
    %341 = sbr.rel (0) target = $region25
  $region24: #{_lambda_.18} parent=0 // pred_region
    _
  $region25: #{_lambda_.18} parent=0 // pred_fallthru
    _

// kernel: _lambda_.20
$region0: #{_lambda_.20}
  #allocation0 [shape = 'u32[]', space=smem, size = 0x4, offset = 0x4, fixed_abs, tag = 'smem constant byte address 0x4 - core index']
  #allocation1 [shape = 'u32[144,128]{1,0:T(1,128)}', space=vmem, size = 0x12000, scoped, tag = 'internal scratch']
  %s0 = inlined_call_operand.vmem [shape: bf16[128,576], index: 0, kind: input, shape index: {}]
  %s1 = inlined_call_operand.vmem [shape: bf16[576,128], index: 1, kind: input, shape index: {}]
  %s2 = inlined_call_operand.vmem [shape: f32[1,128], index: 2, kind: input, shape index: {}]
  %s3 = inlined_call_operand.vmem [shape: f32[1,128], index: 3, kind: input, shape index: {}]
  %s4 = inlined_call_operand.vmem [shape: bf16[128,128], index: 4, kind: output, shape index: {}]
  %s5 = sld [smem:[#allocation0]]
  $region26: #{_lambda_.20} parent=0
    _
  %s7 = ssub.s32 1, %s5
  %s8 = scalar_select 0, %s7, %s5
  // Predicated region
  $region2: #{_lambda_.20} parent=0 // pred_check
    _
  $region3: #{_lambda_.20} parent=0 // pred_check_branch
    %10 = sbr.rel (0) target = $region5
  $region4: #{_lambda_.20} parent=0 // pred_region
    _
  $region5: #{_lambda_.20} parent=0 // pred_fallthru
    _
  // Predicated region
  $region6: #{_lambda_.20} parent=0 // pred_check
    _
  $region7: #{_lambda_.20} parent=0 // pred_check_branch
    %12 = sbr.rel (0) target = $region9
  $region8: #{_lambda_.20} parent=0 // pred_region
    _
  $region9: #{_lambda_.20} parent=0 // pred_fallthru
    _
  // Predicated region
  $region10: #{_lambda_.20} parent=0 // pred_check
    _
  $region11: #{_lambda_.20} parent=0 // pred_check_branch
    %14 = sbr.rel (0) target = $region13
  $region12: #{_lambda_.20} parent=0 // pred_region
    _
  $region13: #{_lambda_.20} parent=0 // pred_fallthru
    _
  // Predicated region
  $region14: #{_lambda_.20} parent=0 // pred_check
    _
  $region15: #{_lambda_.20} parent=0 // pred_check_branch
    %16 = sbr.rel (0) target = $region17
  $region16: #{_lambda_.20} parent=0 // pred_region
    _
  $region17: #{_lambda_.20} parent=0 // pred_fallthru
    _
  %v18 = vld [vmem:[%s0] sm:$0xff]
  %v19 = vld [vmem:[%s0 + $0x8] sm:$0xff]
  %v20 = vld [vmem:[%s0 + $0x10] sm:$0xf]
  %v21 = vld [vmem:[%s0 + $0x14] sm:$0xff]
  %v22 = vld [vmem:[%s0 + $0x1c] sm:$0xff]
  %v23 = vld [vmem:[%s0 + $0x24] sm:$0xf]
  %v24 = vld [vmem:[%s0 + $0x28] sm:$0xff]
  %v25 = vld [vmem:[%s0 + $0x30] sm:$0xff]
  %v26 = vld [vmem:[%s0 + $0x38] sm:$0xf]
  %v27 = vld [vmem:[%s0 + $0x3c] sm:$0xff]
  %v28 = vld [vmem:[%s0 + $0x44] sm:$0xff]
  %v29 = vld [vmem:[%s0 + $0x4c] sm:$0xf]
  %v30 = vld [vmem:[%s0 + $0x50] sm:$0xff]
  %v31 = vld [vmem:[%s0 + $0x58] sm:$0xff]
  %v32 = vld [vmem:[%s0 + $0x60] sm:$0xf]
  %v33 = vld [vmem:[%s0 + $0x64] sm:$0xff]
  %v34 = vld [vmem:[%s0 + $0x6c] sm:$0xff]
  %v35 = vld [vmem:[%s0 + $0x74] sm:$0xf]
  %v36 = vld [vmem:[%s0 + $0x78] sm:$0xff]
  %v37 = vld [vmem:[%s0 + $0x80] sm:$0xff]
  %v38 = vld [vmem:[%s0 + $0x88] sm:$0xf]
  %v39 = vld [vmem:[%s0 + $0x8c] sm:$0xff]
  %v40 = vld [vmem:[%s0 + $0x94] sm:$0xff]
  %v41 = vld [vmem:[%s0 + $0x9c] sm:$0xf]
  %v42 = vld [vmem:[%s0 + $0xa0] sm:$0xff]
  %v43 = vld [vmem:[%s0 + $0xa8] sm:$0xff]
  %v44 = vld [vmem:[%s0 + $0xb0] sm:$0xf]
  %v45 = vld [vmem:[%s0 + $0xb4] sm:$0xff]
  %v46 = vld [vmem:[%s0 + $0xbc] sm:$0xff]
  %v47 = vld [vmem:[%s0 + $0xc4] sm:$0xf]
  %v48 = vld [vmem:[%s0 + $0xc8] sm:$0xff]
  %v49 = vld [vmem:[%s0 + $0xd0] sm:$0xff]
  %v50 = vld [vmem:[%s0 + $0xd8] sm:$0xf]
  %v51 = vld [vmem:[%s0 + $0xdc] sm:$0xff]
  %v52 = vld [vmem:[%s0 + $0xe4] sm:$0xff]
  %v53 = vld [vmem:[%s0 + $0xec] sm:$0xf]
  %v54 = vld [vmem:[%s0 + $0xf0] sm:$0xff]
  %v55 = vld [vmem:[%s0 + $0xf8] sm:$0xff]
  %v56 = vld [vmem:[%s0 + $0x100] sm:$0xf]
  %v57 = vld [vmem:[%s0 + $0x104] sm:$0xff]
  %v58 = vld [vmem:[%s0 + $0x10c] sm:$0xff]
  %v59 = vld [vmem:[%s0 + $0x114] sm:$0xf]
  %v60 = vld [vmem:[%s0 + $0x118] sm:$0xff]
  %v61 = vld [vmem:[%s0 + $0x120] sm:$0xff]
  %v62 = vld [vmem:[%s0 + $0x128] sm:$0xf]
  %v63 = vld [vmem:[%s0 + $0x12c] sm:$0xff]
  %v64 = vld [vmem:[%s0 + $0x134] sm:$0xff]
  %v65 = vld [vmem:[%s0 + $0x13c] sm:$0xf]
  %v66 = vld [vmem:[%s1] sm:$0xf]
  %v67 = vld [vmem:[%s1 + $0x4] sm:$0xf]
  %v68 = vld [vmem:[%s1 + $0x8] sm:$0xf]
  %v69 = vld [vmem:[%s1 + $0xc] sm:$0xf]
  %v70 = vld [vmem:[%s1 + $0x10] sm:$0xf]
  %v71 = vld [vmem:[%s1 + $0x14] sm:$0xf]
  %v72 = vld [vmem:[%s1 + $0x18] sm:$0xf]
  %v73 = vld [vmem:[%s1 + $0x1c] sm:$0xf]
  %v74 = vld [vmem:[%s1 + $0x20] sm:$0xf]
  %v75 = vld [vmem:[%s1 + $0x24] sm:$0xf]
  %v76 = vld [vmem:[%s1 + $0x28] sm:$0xf]
  %v77 = vld [vmem:[%s1 + $0x2c] sm:$0xf]
  %v78 = vld [vmem:[%s1 + $0x30] sm:$0xf]
  %v79 = vld [vmem:[%s1 + $0x34] sm:$0xf]
  %v80 = vld [vmem:[%s1 + $0x38] sm:$0xf]
  %v81 = vld [vmem:[%s1 + $0x3c] sm:$0xf]
  %v82 = vld [vmem:[%s1 + $0x40] sm:$0xf]
  %v83 = vld [vmem:[%s1 + $0x44] sm:$0xf]
  %v84 = vld [vmem:[%s1 + $0x48] sm:$0xf]
  %v85 = vld [vmem:[%s1 + $0x4c] sm:$0xf]
  %v86 = vld [vmem:[%s1 + $0x50] sm:$0xf]
  %v87 = vld [vmem:[%s1 + $0x54] sm:$0xf]
  %v88 = vld [vmem:[%s1 + $0x58] sm:$0xf]
  %v89 = vld [vmem:[%s1 + $0x5c] sm:$0xf]
  %v90 = vld [vmem:[%s1 + $0x60] sm:$0xf]
  %v91 = vld [vmem:[%s1 + $0x64] sm:$0xf]
  %v92 = vld [vmem:[%s1 + $0x68] sm:$0xf]
  %v93 = vld [vmem:[%s1 + $0x6c] sm:$0xf]
  %v94 = vld [vmem:[%s1 + $0x70] sm:$0xf]
  %v95 = vld [vmem:[%s1 + $0x74] sm:$0xf]
  %v96 = vld [vmem:[%s1 + $0x78] sm:$0xf]
  %v97 = vld [vmem:[%s1 + $0x7c] sm:$0xf]
  %v98 = vld [vmem:[%s1 + $0x80] sm:$0xf]
  %v99 = vld [vmem:[%s1 + $0x84] sm:$0xf]
  %v100 = vld [vmem:[%s1 + $0x88] sm:$0xf]
  %v101 = vld [vmem:[%s1 + $0x8c] sm:$0xf]
  %v102 = vld [vmem:[%s1 + $0x90] sm:$0xf]
  %v103 = vld [vmem:[%s1 + $0x94] sm:$0xf]
  %v104 = vld [vmem:[%s1 + $0x98] sm:$0xf]
  %v105 = vld [vmem:[%s1 + $0x9c] sm:$0xf]
  %v106 = vld [vmem:[%s1 + $0xa0] sm:$0xf]
  %v107 = vld [vmem:[%s1 + $0xa4] sm:$0xf]
  %v108 = vld [vmem:[%s1 + $0xa8] sm:$0xf]
  %v109 = vld [vmem:[%s1 + $0xac] sm:$0xf]
  %v110 = vld [vmem:[%s1 + $0xb0] sm:$0xf]
  %v111 = vld [vmem:[%s1 + $0xb4] sm:$0xf]
  %v112 = vld [vmem:[%s1 + $0xb8] sm:$0xf]
  %v113 = vld [vmem:[%s1 + $0xbc] sm:$0xf]
  %v114 = vld [vmem:[%s1 + $0xc0] sm:$0xf]
  %v115 = vld [vmem:[%s1 + $0xc4] sm:$0xf]
  %v116 = vld [vmem:[%s1 + $0xc8] sm:$0xf]
  %v117 = vld [vmem:[%s1 + $0xcc] sm:$0xf]
  %v118 = vld [vmem:[%s1 + $0xd0] sm:$0xf]
  %v119 = vld [vmem:[%s1 + $0xd4] sm:$0xf]
  %v120 = vld [vmem:[%s1 + $0xd8] sm:$0xf]
  %v121 = vld [vmem:[%s1 + $0xdc] sm:$0xf]
  %v122 = vld [vmem:[%s1 + $0xe0] sm:$0xf]
  %v123 = vld [vmem:[%s1 + $0xe4] sm:$0xf]
  %v124 = vld [vmem:[%s1 + $0xe8] sm:$0xf]
  %v125 = vld [vmem:[%s1 + $0xec] sm:$0xf]
  %v126 = vld [vmem:[%s1 + $0xf0] sm:$0xf]
  %v127 = vld [vmem:[%s1 + $0xf4] sm:$0xf]
  %v128 = vld [vmem:[%s1 + $0xf8] sm:$0xf]
  %v129 = vld [vmem:[%s1 + $0xfc] sm:$0xf]
  %v130 = vld [vmem:[%s1 + $0x100] sm:$0xf]
  %v131 = vld [vmem:[%s1 + $0x104] sm:$0xf]
  %v132 = vld [vmem:[%s1 + $0x108] sm:$0xf]
  %v133 = vld [vmem:[%s1 + $0x10c] sm:$0xf]
  %v134 = vld [vmem:[%s1 + $0x110] sm:$0xf]
  %v135 = vld [vmem:[%s1 + $0x114] sm:$0xf]
  %v136 = vld [vmem:[%s1 + $0x118] sm:$0xf]
  %v137 = vld [vmem:[%s1 + $0x11c] sm:$0xf]
  %v186 = vunpack.c.l.b16 %v18
  %v187 = vunpack.c.h.b16 %v18
  %v188 = vunpack.c.l.b16 %v19
  %v189 = vunpack.c.h.b16 %v19
  %v190 = vunpack.c.l.b16 %v20
  %v191 = vunpack.c.l.b16 %v21
  %v192 = vunpack.c.h.b16 %v21
  %v193 = vunpack.c.l.b16 %v22
  %v194 = vunpack.c.h.b16 %v22
  %v195 = vunpack.c.l.b16 %v23
  %v196 = vunpack.c.l.b16 %v24
  %v197 = vunpack.c.h.b16 %v24
  %v198 = vunpack.c.l.b16 %v25
  %v199 = vunpack.c.h.b16 %v25
  %v200 = vunpack.c.l.b16 %v26
  %v201 = vunpack.c.l.b16 %v27
  %v202 = vunpack.c.h.b16 %v27
  %v203 = vunpack.c.l.b16 %v28
  %v204 = vunpack.c.h.b16 %v28
  %v205 = vunpack.c.l.b16 %v29
  %v206 = vunpack.c.l.b16 %v30
  %v207 = vunpack.c.h.b16 %v30
  %v208 = vunpack.c.l.b16 %v31
  %v209 = vunpack.c.h.b16 %v31
  %v210 = vunpack.c.l.b16 %v32
  %v211 = vunpack.c.l.b16 %v33
  %v212 = vunpack.c.h.b16 %v33
  %v213 = vunpack.c.l.b16 %v34
  %v214 = vunpack.c.h.b16 %v34
  %v215 = vunpack.c.l.b16 %v35
  %v216 = vunpack.c.l.b16 %v36
  %v217 = vunpack.c.h.b16 %v36
  %v218 = vunpack.c.l.b16 %v37
  %v219 = vunpack.c.h.b16 %v37
  %v220 = vunpack.c.l.b16 %v38
  %v221 = vunpack.c.l.b16 %v39
  %v222 = vunpack.c.h.b16 %v39
  %v223 = vunpack.c.l.b16 %v40
  %v224 = vunpack.c.h.b16 %v40
  %v225 = vunpack.c.l.b16 %v41
  %v226 = vunpack.c.l.b16 %v42
  %v227 = vunpack.c.h.b16 %v42
  %v228 = vunpack.c.l.b16 %v43
  %v229 = vunpack.c.h.b16 %v43
  %v230 = vunpack.c.l.b16 %v44
  %v231 = vunpack.c.l.b16 %v45
  %v232 = vunpack.c.h.b16 %v45
  %v233 = vunpack.c.l.b16 %v46
  %v234 = vunpack.c.h.b16 %v46
  %v235 = vunpack.c.l.b16 %v47
  %v236 = vunpack.c.l.b16 %v48
  %v237 = vunpack.c.h.b16 %v48
  %v238 = vunpack.c.l.b16 %v49
  %v239 = vunpack.c.h.b16 %v49
  %v240 = vunpack.c.l.b16 %v50
  %v241 = vunpack.c.l.b16 %v51
  %v242 = vunpack.c.h.b16 %v51
  %v243 = vunpack.c.l.b16 %v52
  %v244 = vunpack.c.h.b16 %v52
  %v245 = vunpack.c.l.b16 %v53
  %v246 = vunpack.c.l.b16 %v54
  %v247 = vunpack.c.h.b16 %v54
  %v248 = vunpack.c.l.b16 %v55
  %v249 = vunpack.c.h.b16 %v55
  %v250 = vunpack.c.l.b16 %v56
  %v251 = vunpack.c.l.b16 %v57
  %v252 = vunpack.c.h.b16 %v57
  %v253 = vunpack.c.l.b16 %v58
  %v254 = vunpack.c.h.b16 %v58
  %v255 = vunpack.c.l.b16 %v59
  %v256 = vunpack.c.l.b16 %v60
  %v257 = vunpack.c.h.b16 %v60
  %v258 = vunpack.c.l.b16 %v61
  %v259 = vunpack.c.h.b16 %v61
  %v260 = vunpack.c.l.b16 %v62
  %v261 = vunpack.c.l.b16 %v63
  %v262 = vunpack.c.h.b16 %v63
  %v263 = vunpack.c.l.b16 %v64
  %v264 = vunpack.c.h.b16 %v64
  %v265 = vunpack.c.l.b16 %v65
  %v266 = vpack.c.b16 %v191, %v186
  %v267 = vpack.c.b16 %v192, %v187
  %v268 = vpack.c.b16 %v193, %v188
  %v269 = vpack.c.b16 %v194, %v189
  %v270 = vpack.c.b16 %v195, %v190
  %v271 = vpack.c.b16 %v201, %v196
  %v272 = vpack.c.b16 %v202, %v197
  %v273 = vpack.c.b16 %v203, %v198
  %v274 = vpack.c.b16 %v204, %v199
  %v275 = vpack.c.b16 %v205, %v200
  %v276 = vpack.c.b16 %v211, %v206
  %v277 = vpack.c.b16 %v212, %v207
  %v278 = vpack.c.b16 %v213, %v208
  %v279 = vpack.c.b16 %v214, %v209
  %v280 = vpack.c.b16 %v215, %v210
  %v281 = vpack.c.b16 %v221, %v216
  %v282 = vpack.c.b16 %v222, %v217
  %v283 = vpack.c.b16 %v223, %v218
  %v284 = vpack.c.b16 %v224, %v219
  %v285 = vpack.c.b16 %v225, %v220
  %v286 = vpack.c.b16 %v231, %v226
  %v287 = vpack.c.b16 %v232, %v227
  %v288 = vpack.c.b16 %v233, %v228
  %v289 = vpack.c.b16 %v234, %v229
  %v290 = vpack.c.b16 %v235, %v230
  %v291 = vpack.c.b16 %v241, %v236
  %v292 = vpack.c.b16 %v242, %v237
  %v293 = vpack.c.b16 %v243, %v238
  %v294 = vpack.c.b16 %v244, %v239
  %v295 = vpack.c.b16 %v245, %v240
  %v296 = vpack.c.b16 %v251, %v246
  %v297 = vpack.c.b16 %v252, %v247
  %v298 = vpack.c.b16 %v253, %v248
  %v299 = vpack.c.b16 %v254, %v249
  %v300 = vpack.c.b16 %v255, %v250
  %v301 = vpack.c.b16 %v261, %v256
  %v302 = vpack.c.b16 %v262, %v257
  %v303 = vpack.c.b16 %v263, %v258
  %v304 = vpack.c.b16 %v264, %v259
  %v305 = vpack.c.b16 %v265, %v260
  %v410 = vunpack.c.l.b16 %v66
  %v411 = vunpack.c.l.b16 %v67
  %v412 = vunpack.c.l.b16 %v68
  %v413 = vunpack.c.l.b16 %v69
  %v414 = vunpack.c.l.b16 %v70
  %v415 = vunpack.c.l.b16 %v71
  %v416 = vunpack.c.l.b16 %v72
  %v417 = vunpack.c.l.b16 %v73
  %v418 = vunpack.c.l.b16 %v74
  %v419 = vunpack.c.l.b16 %v75
  %v420 = vunpack.c.l.b16 %v76
  %v421 = vunpack.c.l.b16 %v77
  %v422 = vunpack.c.l.b16 %v78
  %v423 = vunpack.c.l.b16 %v79
  %v424 = vunpack.c.l.b16 %v80
  %v425 = vunpack.c.l.b16 %v81
  %v426 = vunpack.c.l.b16 %v82
  %v427 = vunpack.c.l.b16 %v83
  %v428 = vunpack.c.l.b16 %v84
  %v429 = vunpack.c.l.b16 %v85
  %v430 = vunpack.c.l.b16 %v86
  %v431 = vunpack.c.l.b16 %v87
  %v432 = vunpack.c.l.b16 %v88
  %v433 = vunpack.c.l.b16 %v89
  %v434 = vunpack.c.l.b16 %v90
  %v435 = vunpack.c.l.b16 %v91
  %v436 = vunpack.c.l.b16 %v92
  %v437 = vunpack.c.l.b16 %v93
  %v438 = vunpack.c.l.b16 %v94
  %v439 = vunpack.c.l.b16 %v95
  %v440 = vunpack.c.l.b16 %v96
  %v441 = vunpack.c.l.b16 %v97
  %v442 = vunpack.c.l.b16 %v98
  %v443 = vunpack.c.l.b16 %v99
  %v444 = vunpack.c.l.b16 %v100
  %v445 = vunpack.c.l.b16 %v101
  %v446 = vunpack.c.l.b16 %v102
  %v447 = vunpack.c.l.b16 %v103
  %v448 = vunpack.c.l.b16 %v104
  %v449 = vunpack.c.l.b16 %v105
  %v450 = vunpack.c.l.b16 %v106
  %v451 = vunpack.c.l.b16 %v107
  %v452 = vunpack.c.l.b16 %v108
  %v453 = vunpack.c.l.b16 %v109
  %v454 = vunpack.c.l.b16 %v110
  %v455 = vunpack.c.l.b16 %v111
  %v456 = vunpack.c.l.b16 %v112
  %v457 = vunpack.c.l.b16 %v113
  %v458 = vunpack.c.l.b16 %v114
  %v459 = vunpack.c.l.b16 %v115
  %v460 = vunpack.c.l.b16 %v116
  %v461 = vunpack.c.l.b16 %v117
  %v462 = vunpack.c.l.b16 %v118
  %v463 = vunpack.c.l.b16 %v119
  %v464 = vunpack.c.l.b16 %v120
  %v465 = vunpack.c.l.b16 %v121
  %v466 = vunpack.c.l.b16 %v122
  %v467 = vunpack.c.l.b16 %v123
  %v468 = vunpack.c.l.b16 %v124
  %v469 = vunpack.c.l.b16 %v125
  %v470 = vunpack.c.l.b16 %v126
  %v471 = vunpack.c.l.b16 %v127
  %v472 = vunpack.c.l.b16 %v128
  %v473 = vunpack.c.l.b16 %v129
  %v474 = vunpack.c.l.b16 %v130
  %v475 = vunpack.c.l.b16 %v131
  %v476 = vunpack.c.l.b16 %v132
  %v477 = vunpack.c.l.b16 %v133
  %v478 = vunpack.c.l.b16 %v134
  %v479 = vunpack.c.l.b16 %v135
  %v480 = vunpack.c.l.b16 %v136
  %v481 = vunpack.c.l.b16 %v137
  %v482 = vpack.c.b16 %v411, %v410
  %v483 = vpack.c.b16 %v413, %v412
  %v484 = vpack.c.b16 %v415, %v414
  %v485 = vpack.c.b16 %v417, %v416
  %v486 = vpack.c.b16 %v419, %v418
  %v487 = vpack.c.b16 %v421, %v420
  %v488 = vpack.c.b16 %v423, %v422
  %v489 = vpack.c.b16 %v425, %v424
  %v490 = vpack.c.b16 %v427, %v426
  %v491 = vpack.c.b16 %v429, %v428
  %v492 = vpack.c.b16 %v431, %v430
  %v493 = vpack.c.b16 %v433, %v432
  %v494 = vpack.c.b16 %v435, %v434
  %v495 = vpack.c.b16 %v437, %v436
  %v496 = vpack.c.b16 %v439, %v438
  %v497 = vpack.c.b16 %v441, %v440
  %v498 = vpack.c.b16 %v443, %v442
  %v499 = vpack.c.b16 %v445, %v444
  %v500 = vpack.c.b16 %v447, %v446
  %v501 = vpack.c.b16 %v449, %v448
  %v502 = vpack.c.b16 %v451, %v450
  %v503 = vpack.c.b16 %v453, %v452
  %v504 = vpack.c.b16 %v455, %v454
  %v505 = vpack.c.b16 %v457, %v456
  %v506 = vpack.c.b16 %v459, %v458
  %v507 = vpack.c.b16 %v461, %v460
  %v508 = vpack.c.b16 %v463, %v462
  %v509 = vpack.c.b16 %v465, %v464
  %v510 = vpack.c.b16 %v467, %v466
  %v511 = vpack.c.b16 %v469, %v468
  %v512 = vpack.c.b16 %v471, %v470
  %v513 = vpack.c.b16 %v473, %v472
  %v514 = vpack.c.b16 %v475, %v474
  %v515 = vpack.c.b16 %v477, %v476
  %v516 = vpack.c.b16 %v479, %v478
  %v517 = vpack.c.b16 %v481, %v480
  %vm554 = vcmask 523264
  %v556 = vsel %vm554, %v270, 0
  %v559 = vsel %vm554, %v275, 0
  %v562 = vsel %vm554, %v280, 0
  %v565 = vsel %vm554, %v285, 0
  %v568 = vsel %vm554, %v290, 0
  %v571 = vsel %vm554, %v295, 0
  %v574 = vsel %vm554, %v300, 0
  %v577 = vsel %vm554, %v305, 0
  %579 = vmatprep.subr.bf16.mxu0 0
  %580 = vmatpush1.bf16.msra.mxu0 %v489
  %581 = vmatprep.subr.bf16.mxu0 0
  %582 = vmatpush1.bf16.msra.mxu0 %v488
  %583 = vmatprep.subr.bf16.mxu0 0
  %584 = vmatpush1.bf16.msra.mxu0 %v487
  %585 = vmatprep.subr.bf16.mxu0 0
  %586 = vmatpush1.bf16.msra.mxu0 %v486
  %587 = vmatprep.subr.bf16.mxu0 0
  %588 = vmatpush1.bf16.msra.mxu0 %v485
  %589 = vmatprep.subr.bf16.mxu0 0
  %590 = vmatpush1.bf16.msra.mxu0 %v484
  %591 = vmatprep.subr.bf16.mxu0 0
  %592 = vmatpush1.bf16.msra.mxu0 %v483
  %593 = vmatprep.subr.bf16.mxu0 0
  %594 = vmatpush1.bf16.msra.mxu0 %v482
  %595 = vmatprep.subr.bf16.mxu0 0
  %596 = vmatpush2.bf16.msra.mxu0 %v497
  %597 = vmatprep.subr.bf16.mxu0 0
  %598 = vmatpush2.bf16.msra.mxu0 %v496
  %599 = vmatprep.subr.bf16.mxu0 0
  %600 = vmatpush2.bf16.msra.mxu0 %v495
  %601 = vmatprep.subr.bf16.mxu0 0
  %602 = vmatpush2.bf16.msra.mxu0 %v494
  %603 = vmatprep.subr.bf16.mxu0 0
  %604 = vmatpush2.bf16.msra.mxu0 %v493
  %605 = vmatprep.subr.bf16.mxu0 0
  %606 = vmatpush2.bf16.msra.mxu0 %v492
  %607 = vmatprep.subr.bf16.mxu0 0
  %608 = vmatpush2.bf16.msra.mxu0 %v491
  %609 = vmatprep.subr.bf16.mxu0 0
  %610 = vmatpush2.bf16.msra.mxu0 %v490
  %611 = vmatprep.mubr.bf16.mxu0 %v267
  %612 = vmatmul.mubr.bf16.gmra.mxu0 %v266
  %v613 = vpop.f32.mrf.mxu0
  %v614 = vadd.f32 0.0, %v613
  %v615 = vpop.f32.mrf.mxu0
  %v616 = vpop.f32.mrf.mxu0
  %v617 = vadd.f32 0.0, %v616
  %v618 = vpop.f32.mrf.mxu0
  %619 = vmatprep.mubr.bf16.mxu0 %v272
  %620 = vmatmul.mubr.bf16.gmra.mxu0 %v271
  %v621 = vpop.f32.mrf.mxu0
  %v622 = vadd.f32 0.0, %v621
  %v623 = vpop.f32.mrf.mxu0
  %v624 = vpop.f32.mrf.mxu0
  %v625 = vadd.f32 0.0, %v624
  %v626 = vpop.f32.mrf.mxu0
  %627 = vmatprep.mubr.bf16.mxu0 %v277
  %628 = vmatmul.mubr.bf16.gmra.mxu0 %v276
  %v629 = vpop.f32.mrf.mxu0
  %v630 = vadd.f32 0.0, %v629
  %v631 = vpop.f32.mrf.mxu0
  %v632 = vpop.f32.mrf.mxu0
  %v633 = vadd.f32 0.0, %v632
  %v634 = vpop.f32.mrf.mxu0
  %635 = vmatprep.mubr.bf16.mxu0 %v282
  %636 = vmatmul.mubr.bf16.gmra.mxu0 %v281
  %v637 = vpop.f32.mrf.mxu0
  %v638 = vadd.f32 0.0, %v637
  %v639 = vpop.f32.mrf.mxu0
  %v640 = vpop.f32.mrf.mxu0
  %v641 = vadd.f32 0.0, %v640
  %v642 = vpop.f32.mrf.mxu0
  %643 = vmatprep.mubr.bf16.mxu0 %v287
  %644 = vmatmul.mubr.bf16.gmra.mxu0 %v286
  %v645 = vpop.f32.mrf.mxu0
  %v646 = vadd.f32 0.0, %v645
  %v647 = vpop.f32.mrf.mxu0
  %v648 = vpop.f32.mrf.mxu0
  %v649 = vadd.f32 0.0, %v648
  %v650 = vpop.f32.mrf.mxu0
  %651 = vmatprep.mubr.bf16.mxu0 %v292
  %652 = vmatmul.mubr.bf16.gmra.mxu0 %v291
  %v653 = vpop.f32.mrf.mxu0
  %v654 = vadd.f32 0.0, %v653
  %v655 = vpop.f32.mrf.mxu0
  %v656 = vpop.f32.mrf.mxu0
  %v657 = vadd.f32 0.0, %v656
  %v658 = vpop.f32.mrf.mxu0
  %659 = vmatprep.mubr.bf16.mxu0 %v297
  %660 = vmatmul.mubr.bf16.gmra.mxu0 %v296
  %v661 = vpop.f32.mrf.mxu0
  %v662 = vadd.f32 0.0, %v661
  %v663 = vpop.f32.mrf.mxu0
  %v664 = vpop.f32.mrf.mxu0
  %v665 = vadd.f32 0.0, %v664
  %v666 = vpop.f32.mrf.mxu0
  %667 = vmatprep.mubr.bf16.mxu0 %v302
  %668 = vmatmul.mubr.bf16.gmra.mxu0 %v301
  %v669 = vpop.f32.mrf.mxu0
  %v670 = vadd.f32 0.0, %v669
  %v671 = vpop.f32.mrf.mxu0
  %v672 = vpop.f32.mrf.mxu0
  %v673 = vadd.f32 0.0, %v672
  %v674 = vpop.f32.mrf.mxu0
  %675 = vdwg.mxu0
  %676 = vmatprep.subr.bf16.mxu0 0
  %677 = vmatpush1.bf16.msra.mxu0 %v505
  %678 = vmatprep.subr.bf16.mxu0 0
  %679 = vmatpush1.bf16.msra.mxu0 %v504
  %680 = vmatprep.subr.bf16.mxu0 0
  %681 = vmatpush1.bf16.msra.mxu0 %v503
  %682 = vmatprep.subr.bf16.mxu0 0
  %683 = vmatpush1.bf16.msra.mxu0 %v502
  %684 = vmatprep.subr.bf16.mxu0 0
  %685 = vmatpush1.bf16.msra.mxu0 %v501
  %686 = vmatprep.subr.bf16.mxu0 0
  %687 = vmatpush1.bf16.msra.mxu0 %v500
  %688 = vmatprep.subr.bf16.mxu0 0
  %689 = vmatpush1.bf16.msra.mxu0 %v499
  %690 = vmatprep.subr.bf16.mxu0 0
  %691 = vmatpush1.bf16.msra.mxu0 %v498
  %692 = vmatprep.subr.bf16.mxu0 0
  %693 = vmatpush2.bf16.msra.mxu0 %v513
  %694 = vmatprep.subr.bf16.mxu0 0
  %695 = vmatpush2.bf16.msra.mxu0 %v512
  %696 = vmatprep.subr.bf16.mxu0 0
  %697 = vmatpush2.bf16.msra.mxu0 %v511
  %698 = vmatprep.subr.bf16.mxu0 0
  %699 = vmatpush2.bf16.msra.mxu0 %v510
  %700 = vmatprep.subr.bf16.mxu0 0
  %701 = vmatpush2.bf16.msra.mxu0 %v509
  %702 = vmatprep.subr.bf16.mxu0 0
  %703 = vmatpush2.bf16.msra.mxu0 %v508
  %704 = vmatprep.subr.bf16.mxu0 0
  %705 = vmatpush2.bf16.msra.mxu0 %v507
  %706 = vmatprep.subr.bf16.mxu0 0
  %707 = vmatpush2.bf16.msra.mxu0 %v506
  %708 = vmatprep.mubr.bf16.mxu0 %v269
  %709 = vmatmul.mubr.bf16.gmra.mxu0 %v268
  %v710 = vpop.f32.mrf.mxu0
  %v711 = vadd.f32 %v614, %v710
  %v712 = vpop.f32.mrf.mxu0
  %v713 = vpop.f32.mrf.mxu0
  %v714 = vadd.f32 %v617, %v713
  %v715 = vpop.f32.mrf.mxu0
  %716 = vmatprep.mubr.bf16.mxu0 %v274
  %717 = vmatmul.mubr.bf16.gmra.mxu0 %v273
  %v718 = vpop.f32.mrf.mxu0
  %v719 = vadd.f32 %v622, %v718
  %v720 = vpop.f32.mrf.mxu0
  %v721 = vpop.f32.mrf.mxu0
  %v722 = vadd.f32 %v625, %v721
  %v723 = vpop.f32.mrf.mxu0
  %724 = vmatprep.mubr.bf16.mxu0 %v279
  %725 = vmatmul.mubr.bf16.gmra.mxu0 %v278
  %v726 = vpop.f32.mrf.mxu0
  %v727 = vadd.f32 %v630, %v726
  %v728 = vpop.f32.mrf.mxu0
  %v729 = vpop.f32.mrf.mxu0
  %v730 = vadd.f32 %v633, %v729
  %v731 = vpop.f32.mrf.mxu0
  %732 = vmatprep.mubr.bf16.mxu0 %v284
  %733 = vmatmul.mubr.bf16.gmra.mxu0 %v283
  %v734 = vpop.f32.mrf.mxu0
  %v735 = vadd.f32 %v638, %v734
  %v736 = vpop.f32.mrf.mxu0
  %v737 = vpop.f32.mrf.mxu0
  %v738 = vadd.f32 %v641, %v737
  %v739 = vpop.f32.mrf.mxu0
  %740 = vmatprep.mubr.bf16.mxu0 %v289
  %741 = vmatmul.mubr.bf16.gmra.mxu0 %v288
  %v742 = vpop.f32.mrf.mxu0
  %v743 = vadd.f32 %v646, %v742
  %v744 = vpop.f32.mrf.mxu0
  %v745 = vpop.f32.mrf.mxu0
  %v746 = vadd.f32 %v649, %v745
  %v747 = vpop.f32.mrf.mxu0
  %748 = vmatprep.mubr.bf16.mxu0 %v294
  %749 = vmatmul.mubr.bf16.gmra.mxu0 %v293
  %v750 = vpop.f32.mrf.mxu0
  %v751 = vadd.f32 %v654, %v750
  %v752 = vpop.f32.mrf.mxu0
  %v753 = vpop.f32.mrf.mxu0
  %v754 = vadd.f32 %v657, %v753
  %v755 = vpop.f32.mrf.mxu0
  %756 = vmatprep.mubr.bf16.mxu0 %v299
  %757 = vmatmul.mubr.bf16.gmra.mxu0 %v298
  %v758 = vpop.f32.mrf.mxu0
  %v759 = vadd.f32 %v662, %v758
  %v760 = vpop.f32.mrf.mxu0
  %v761 = vpop.f32.mrf.mxu0
  %v762 = vadd.f32 %v665, %v761
  %v763 = vpop.f32.mrf.mxu0
  %764 = vmatprep.mubr.bf16.mxu0 %v304
  %765 = vmatmul.mubr.bf16.gmra.mxu0 %v303
  %v766 = vpop.f32.mrf.mxu0
  %v767 = vadd.f32 %v670, %v766
  %v768 = vpop.f32.mrf.mxu0
  %v769 = vpop.f32.mrf.mxu0
  %v770 = vadd.f32 %v673, %v769
  %v771 = vpop.f32.mrf.mxu0
  %772 = vdwg.mxu0
  %773 = vmatprep.subr.bf16.mxu0 0
  %774 = vmatpush1.bf16.msra.mxu0 0
  %775 = vmatprep.subr.bf16.mxu0 0
  %776 = vmatpush1.bf16.msra.mxu0 0
  %777 = vmatprep.subr.bf16.mxu0 0
  %778 = vmatpush1.bf16.msra.mxu0 0
  %779 = vmatprep.subr.bf16.mxu0 0
  %780 = vmatpush1.bf16.msra.mxu0 0
  %781 = vmatprep.subr.bf16.mxu0 0
  %782 = vmatpush1.bf16.msra.mxu0 %v517
  %783 = vmatprep.subr.bf16.mxu0 0
  %784 = vmatpush1.bf16.msra.mxu0 %v516
  %785 = vmatprep.subr.bf16.mxu0 0
  %786 = vmatpush1.bf16.msra.mxu0 %v515
  %787 = vmatprep.subr.bf16.mxu0 0
  %788 = vmatpush1.bf16.msra.mxu0 %v514
  %789 = vmatprep.subr.bf16.mxu0 0
  %790 = vmatpush2.bf16.msra.mxu0 0
  %791 = vmatprep.subr.bf16.mxu0 0
  %792 = vmatpush2.bf16.msra.mxu0 0
  %793 = vmatprep.subr.bf16.mxu0 0
  %794 = vmatpush2.bf16.msra.mxu0 0
  %795 = vmatprep.subr.bf16.mxu0 0
  %796 = vmatpush2.bf16.msra.mxu0 0
  %797 = vmatprep.subr.bf16.mxu0 0
  %798 = vmatpush2.bf16.msra.mxu0 0
  %799 = vmatprep.subr.bf16.mxu0 0
  %800 = vmatpush2.bf16.msra.mxu0 0
  %801 = vmatprep.subr.bf16.mxu0 0
  %802 = vmatpush2.bf16.msra.mxu0 0
  %803 = vmatprep.subr.bf16.mxu0 0
  %804 = vmatpush2.bf16.msra.mxu0 0
  %805 = vmatprep.mubr.bf16.mxu0 0
  %806 = vmatmul.mubr.bf16.gmra.mxu0 %v556
  %v807 = vpop.f32.mrf.mxu0
  %v808 = vadd.f32 %v711, %v807
  %v809 = vpop.f32.mrf.mxu0
  %v810 = vpop.f32.mrf.mxu0
  %v811 = vadd.f32 %v714, %v810
  %v812 = vpop.f32.mrf.mxu0
  %813 = vmatprep.mubr.bf16.mxu0 0
  %814 = vmatmul.mubr.bf16.gmra.mxu0 %v559
  %v815 = vpop.f32.mrf.mxu0
  %v816 = vadd.f32 %v719, %v815
  %v817 = vpop.f32.mrf.mxu0
  %v818 = vpop.f32.mrf.mxu0
  %v819 = vadd.f32 %v722, %v818
  %v820 = vpop.f32.mrf.mxu0
  %821 = vmatprep.mubr.bf16.mxu0 0
  %822 = vmatmul.mubr.bf16.gmra.mxu0 %v562
  %v823 = vpop.f32.mrf.mxu0
  %v824 = vadd.f32 %v727, %v823
  %v825 = vpop.f32.mrf.mxu0
  %v826 = vpop.f32.mrf.mxu0
  %v827 = vadd.f32 %v730, %v826
  %v828 = vpop.f32.mrf.mxu0
  %829 = vmatprep.mubr.bf16.mxu0 0
  %830 = vmatmul.mubr.bf16.gmra.mxu0 %v565
  %v831 = vpop.f32.mrf.mxu0
  %v832 = vadd.f32 %v735, %v831
  %v833 = vpop.f32.mrf.mxu0
  %v834 = vpop.f32.mrf.mxu0
  %v835 = vadd.f32 %v738, %v834
  %v836 = vpop.f32.mrf.mxu0
  %837 = vmatprep.mubr.bf16.mxu0 0
  %838 = vmatmul.mubr.bf16.gmra.mxu0 %v568
  %v839 = vpop.f32.mrf.mxu0
  %v840 = vadd.f32 %v743, %v839
  %v841 = vpop.f32.mrf.mxu0
  %v842 = vpop.f32.mrf.mxu0
  %v843 = vadd.f32 %v746, %v842
  %v844 = vpop.f32.mrf.mxu0
  %845 = vmatprep.mubr.bf16.mxu0 0
  %846 = vmatmul.mubr.bf16.gmra.mxu0 %v571
  %v847 = vpop.f32.mrf.mxu0
  %v848 = vadd.f32 %v751, %v847
  %v849 = vpop.f32.mrf.mxu0
  %v850 = vpop.f32.mrf.mxu0
  %v851 = vadd.f32 %v754, %v850
  %v852 = vpop.f32.mrf.mxu0
  %853 = vmatprep.mubr.bf16.mxu0 0
  %854 = vmatmul.mubr.bf16.gmra.mxu0 %v574
  %v855 = vpop.f32.mrf.mxu0
  %v856 = vadd.f32 %v759, %v855
  %v857 = vpop.f32.mrf.mxu0
  %v858 = vpop.f32.mrf.mxu0
  %v859 = vadd.f32 %v762, %v858
  %v860 = vpop.f32.mrf.mxu0
  %861 = vmatprep.mubr.bf16.mxu0 0
  %862 = vmatmul.mubr.bf16.gmra.mxu0 %v577
  %v863 = vpop.f32.mrf.mxu0
  %v864 = vadd.f32 %v767, %v863
  %v865 = vpop.f32.mrf.mxu0
  %v866 = vpop.f32.mrf.mxu0
  %v867 = vadd.f32 %v770, %v866
  %v868 = vpop.f32.mrf.mxu0
  %869 = vdwg.mxu0
  %v870 = vld [vmem:[%s2] sm:$0x1]
  %v872 = vlaneseq
  %v873 = vshrl.u32 %v872, 7
  %v874 = vsub.s32 0, %v873
  %v875 = vrot.slane %v870, %v874
  %v877 = vmul.f32 %v808, %v875
  %v878 = vmul.f32 %v811, %v875
  %v879 = vmul.f32 %v816, %v875
  %v880 = vmul.f32 %v819, %v875
  %v881 = vmul.f32 %v824, %v875
  %v882 = vmul.f32 %v827, %v875
  %v883 = vmul.f32 %v832, %v875
  %v884 = vmul.f32 %v835, %v875
  %v885 = vmul.f32 %v840, %v875
  %v886 = vmul.f32 %v843, %v875
  %v887 = vmul.f32 %v848, %v875
  %v888 = vmul.f32 %v851, %v875
  %v889 = vmul.f32 %v856, %v875
  %v890 = vmul.f32 %v859, %v875
  %v891 = vmul.f32 %v864, %v875
  %v892 = vmul.f32 %v867, %v875
  %v893 = vld [vmem:[%s3] sm:$0x1]
  %v895 = vlaneseq
  %v896 = vshrl.u32 %v895, 7
  %v897 = vsub.s32 0, %v896
  %v898 = vrot.slane %v893, %v897
  %v900 = vadd.f32 %v877, %v898
  %v901 = vadd.f32 %v878, %v898
  %v902 = vadd.f32 %v879, %v898
  %v903 = vadd.f32 %v880, %v898
  %v904 = vadd.f32 %v881, %v898
  %v905 = vadd.f32 %v882, %v898
  %v906 = vadd.f32 %v883, %v898
  %v907 = vadd.f32 %v884, %v898
  %v908 = vadd.f32 %v885, %v898
  %v909 = vadd.f32 %v886, %v898
  %v910 = vadd.f32 %v887, %v898
  %v911 = vadd.f32 %v888, %v898
  %v912 = vadd.f32 %v889, %v898
  %v913 = vadd.f32 %v890, %v898
  %v914 = vadd.f32 %v891, %v898
  %v915 = vadd.f32 %v892, %v898
  %v916 = vmax.f32 %v900, 0.0
  %v917 = vmax.f32 %v901, 0.0
  %v918 = vmax.f32 %v902, 0.0
  %v919 = vmax.f32 %v903, 0.0
  %v920 = vmax.f32 %v904, 0.0
  %v921 = vmax.f32 %v905, 0.0
  %v922 = vmax.f32 %v906, 0.0
  %v923 = vmax.f32 %v907, 0.0
  %v924 = vmax.f32 %v908, 0.0
  %v925 = vmax.f32 %v909, 0.0
  %v926 = vmax.f32 %v910, 0.0
  %v927 = vmax.f32 %v911, 0.0
  %v928 = vmax.f32 %v912, 0.0
  %v929 = vmax.f32 %v913, 0.0
  %v930 = vmax.f32 %v914, 0.0
  %v931 = vmax.f32 %v915, 0.0
  %v932 = vpack.c.bf16 %v917, %v916
  %v933 = vpack.c.bf16 %v919, %v918
  %v934 = vpack.c.bf16 %v921, %v920
  %v935 = vpack.c.bf16 %v923, %v922
  %v936 = vpack.c.bf16 %v925, %v924
  %v937 = vpack.c.bf16 %v927, %v926
  %v938 = vpack.c.bf16 %v929, %v928
  %v939 = vpack.c.bf16 %v931, %v930
  %v948 = vunpack.c.l.b16 %v932
  %v949 = vunpack.c.h.b16 %v932
  %v950 = vunpack.c.l.b16 %v933
  %v951 = vunpack.c.h.b16 %v933
  %v952 = vunpack.c.l.b16 %v934
  %v953 = vunpack.c.h.b16 %v934
  %v954 = vunpack.c.l.b16 %v935
  %v955 = vunpack.c.h.b16 %v935
  %v956 = vunpack.c.l.b16 %v936
  %v957 = vunpack.c.h.b16 %v936
  %v958 = vunpack.c.l.b16 %v937
  %v959 = vunpack.c.h.b16 %v937
  %v960 = vunpack.c.l.b16 %v938
  %v961 = vunpack.c.h.b16 %v938
  %v962 = vunpack.c.l.b16 %v939
  %v963 = vunpack.c.h.b16 %v939
  %v964 = vpack.c.b16 %v948, %v948
  %v965 = vpack.c.b16 %v949, %v949
  %v966 = vpack.c.b16 %v950, %v950
  %v967 = vpack.c.b16 %v951, %v951
  %v968 = vpack.c.b16 %v952, %v952
  %v969 = vpack.c.b16 %v953, %v953
  %v970 = vpack.c.b16 %v954, %v954
  %v971 = vpack.c.b16 %v955, %v955
  %v972 = vpack.c.b16 %v956, %v956
  %v973 = vpack.c.b16 %v957, %v957
  %v974 = vpack.c.b16 %v958, %v958
  %v975 = vpack.c.b16 %v959, %v959
  %v976 = vpack.c.b16 %v960, %v960
  %v977 = vpack.c.b16 %v961, %v961
  %v978 = vpack.c.b16 %v962, %v962
  %v979 = vpack.c.b16 %v963, %v963
  %996 = vst [vmem:[%s4] sm:$0xf] %v964
  %997 = vst [vmem:[%s4 + $0x4] sm:$0xf] %v965
  %998 = vst [vmem:[%s4 + $0x8] sm:$0xf] %v966
  %999 = vst [vmem:[%s4 + $0xc] sm:$0xf] %v967
  %1000 = vst [vmem:[%s4 + $0x10] sm:$0xf] %v968
  %1001 = vst [vmem:[%s4 + $0x14] sm:$0xf] %v969
  %1002 = vst [vmem:[%s4 + $0x18] sm:$0xf] %v970
  %1003 = vst [vmem:[%s4 + $0x1c] sm:$0xf] %v971
  %1004 = vst [vmem:[%s4 + $0x20] sm:$0xf] %v972
  %1005 = vst [vmem:[%s4 + $0x24] sm:$0xf] %v973
  %1006 = vst [vmem:[%s4 + $0x28] sm:$0xf] %v974
  %1007 = vst [vmem:[%s4 + $0x2c] sm:$0xf] %v975
  %1008 = vst [vmem:[%s4 + $0x30] sm:$0xf] %v976
  %1009 = vst [vmem:[%s4 + $0x34] sm:$0xf] %v977
  %1010 = vst [vmem:[%s4 + $0x38] sm:$0xf] %v978
  %1011 = vst [vmem:[%s4 + $0x3c] sm:$0xf] %v979
  // Predicated region
  $region18: #{_lambda_.20} parent=0 // pred_check
    _
  $region19: #{_lambda_.20} parent=0 // pred_check_branch
    %1013 = sbr.rel (0) target = $region21
  $region20: #{_lambda_.20} parent=0 // pred_region
    _
  $region21: #{_lambda_.20} parent=0 // pred_fallthru
    _
  // Predicated region
  $region22: #{_lambda_.20} parent=0 // pred_check
    _
  $region23: #{_lambda_.20} parent=0 // pred_check_branch
    %1015 = sbr.rel (0) target = $region25
  $region24: #{_lambda_.20} parent=0 // pred_region
    _
  $region25: #{_lambda_.20} parent=0 // pred_fallthru
    _

// kernel: _lambda_.19
$region0: #{_lambda_.19}
  #allocation0 [shape = 'u32[]', space=smem, size = 0x4, offset = 0x4, fixed_abs, tag = 'smem constant byte address 0x4 - core index']
  #allocation1 [shape = 'u32[144,128]{1,0:T(1,128)}', space=vmem, size = 0x12000, scoped, tag = 'internal scratch']
  %s0 = inlined_call_operand.vmem [shape: bf16[128,576], index: 0, kind: input, shape index: {}]
  %s1 = inlined_call_operand.vmem [shape: bf16[576,128], index: 1, kind: input, shape index: {}]
  %s2 = inlined_call_operand.vmem [shape: f32[1,128], index: 2, kind: input, shape index: {}]
  %s3 = inlined_call_operand.vmem [shape: f32[1,128], index: 3, kind: input, shape index: {}]
  %s4 = inlined_call_operand.vmem [shape: bf16[128,128], index: 4, kind: input, shape index: {}]
  %s5 = inlined_call_operand.vmem [shape: bf16[128,128], index: 5, kind: output, shape index: {}]
  %s6 = sld [smem:[#allocation0]]
  $region30: #{_lambda_.19} parent=0
    _
  %s8 = ssub.s32 1, %s6
  %s9 = scalar_select 0, %s8, %s6
  // Predicated region
  $region2: #{_lambda_.19} parent=0 // pred_check
    _
  $region3: #{_lambda_.19} parent=0 // pred_check_branch
    %11 = sbr.rel (0) target = $region5
  $region4: #{_lambda_.19} parent=0 // pred_region
    _
  $region5: #{_lambda_.19} parent=0 // pred_fallthru
    _
  // Predicated region
  $region6: #{_lambda_.19} parent=0 // pred_check
    _
  $region7: #{_lambda_.19} parent=0 // pred_check_branch
    %13 = sbr.rel (0) target = $region9
  $region8: #{_lambda_.19} parent=0 // pred_region
    _
  $region9: #{_lambda_.19} parent=0 // pred_fallthru
    _
  // Predicated region
  $region10: #{_lambda_.19} parent=0 // pred_check
    _
  $region11: #{_lambda_.19} parent=0 // pred_check_branch
    %15 = sbr.rel (0) target = $region13
  $region12: #{_lambda_.19} parent=0 // pred_region
    _
  $region13: #{_lambda_.19} parent=0 // pred_fallthru
    _
  // Predicated region
  $region14: #{_lambda_.19} parent=0 // pred_check
    _
  $region15: #{_lambda_.19} parent=0 // pred_check_branch
    %17 = sbr.rel (0) target = $region17
  $region16: #{_lambda_.19} parent=0 // pred_region
    _
  $region17: #{_lambda_.19} parent=0 // pred_fallthru
    _
  // Predicated region
  $region18: #{_lambda_.19} parent=0 // pred_check
    _
  $region19: #{_lambda_.19} parent=0 // pred_check_branch
    %19 = sbr.rel (0) target = $region21
  $region20: #{_lambda_.19} parent=0 // pred_region
    _
  $region21: #{_lambda_.19} parent=0 // pred_fallthru
    _
  %v21 = vld [vmem:[%s0] sm:$0xff]
  %v22 = vld [vmem:[%s0 + $0x8] sm:$0xff]
  %v23 = vld [vmem:[%s0 + $0x10] sm:$0xf]
  %v24 = vld [vmem:[%s0 + $0x14] sm:$0xff]
  %v25 = vld [vmem:[%s0 + $0x1c] sm:$0xff]
  %v26 = vld [vmem:[%s0 + $0x24] sm:$0xf]
  %v27 = vld [vmem:[%s0 + $0x28] sm:$0xff]
  %v28 = vld [vmem:[%s0 + $0x30] sm:$0xff]
  %v29 = vld [vmem:[%s0 + $0x38] sm:$0xf]
  %v30 = vld [vmem:[%s0 + $0x3c] sm:$0xff]
  %v31 = vld [vmem:[%s0 + $0x44] sm:$0xff]
  %v32 = vld [vmem:[%s0 + $0x4c] sm:$0xf]
  %v33 = vld [vmem:[%s0 + $0x50] sm:$0xff]
  %v34 = vld [vmem:[%s0 + $0x58] sm:$0xff]
  %v35 = vld [vmem:[%s0 + $0x60] sm:$0xf]
  %v36 = vld [vmem:[%s0 + $0x64] sm:$0xff]
  %v37 = vld [vmem:[%s0 + $0x6c] sm:$0xff]
  %v38 = vld [vmem:[%s0 + $0x74] sm:$0xf]
  %v39 = vld [vmem:[%s0 + $0x78] sm:$0xff]
  %v40 = vld [vmem:[%s0 + $0x80] sm:$0xff]
  %v41 = vld [vmem:[%s0 + $0x88] sm:$0xf]
  %v42 = vld [vmem:[%s0 + $0x8c] sm:$0xff]
  %v43 = vld [vmem:[%s0 + $0x94] sm:$0xff]
  %v44 = vld [vmem:[%s0 + $0x9c] sm:$0xf]
  %v45 = vld [vmem:[%s0 + $0xa0] sm:$0xff]
  %v46 = vld [vmem:[%s0 + $0xa8] sm:$0xff]
  %v47 = vld [vmem:[%s0 + $0xb0] sm:$0xf]
  %v48 = vld [vmem:[%s0 + $0xb4] sm:$0xff]
  %v49 = vld [vmem:[%s0 + $0xbc] sm:$0xff]
  %v50 = vld [vmem:[%s0 + $0xc4] sm:$0xf]
  %v51 = vld [vmem:[%s0 + $0xc8] sm:$0xff]
  %v52 = vld [vmem:[%s0 + $0xd0] sm:$0xff]
  %v53 = vld [vmem:[%s0 + $0xd8] sm:$0xf]
  %v54 = vld [vmem:[%s0 + $0xdc] sm:$0xff]
  %v55 = vld [vmem:[%s0 + $0xe4] sm:$0xff]
  %v56 = vld [vmem:[%s0 + $0xec] sm:$0xf]
  %v57 = vld [vmem:[%s0 + $0xf0] sm:$0xff]
  %v58 = vld [vmem:[%s0 + $0xf8] sm:$0xff]
  %v59 = vld [vmem:[%s0 + $0x100] sm:$0xf]
  %v60 = vld [vmem:[%s0 + $0x104] sm:$0xff]
  %v61 = vld [vmem:[%s0 + $0x10c] sm:$0xff]
  %v62 = vld [vmem:[%s0 + $0x114] sm:$0xf]
  %v63 = vld [vmem:[%s0 + $0x118] sm:$0xff]
  %v64 = vld [vmem:[%s0 + $0x120] sm:$0xff]
  %v65 = vld [vmem:[%s0 + $0x128] sm:$0xf]
  %v66 = vld [vmem:[%s0 + $0x12c] sm:$0xff]
  %v67 = vld [vmem:[%s0 + $0x134] sm:$0xff]
  %v68 = vld [vmem:[%s0 + $0x13c] sm:$0xf]
  %v69 = vld [vmem:[%s1] sm:$0xf]
  %v70 = vld [vmem:[%s1 + $0x4] sm:$0xf]
  %v71 = vld [vmem:[%s1 + $0x8] sm:$0xf]
  %v72 = vld [vmem:[%s1 + $0xc] sm:$0xf]
  %v73 = vld [vmem:[%s1 + $0x10] sm:$0xf]
  %v74 = vld [vmem:[%s1 + $0x14] sm:$0xf]
  %v75 = vld [vmem:[%s1 + $0x18] sm:$0xf]
  %v76 = vld [vmem:[%s1 + $0x1c] sm:$0xf]
  %v77 = vld [vmem:[%s1 + $0x20] sm:$0xf]
  %v78 = vld [vmem:[%s1 + $0x24] sm:$0xf]
  %v79 = vld [vmem:[%s1 + $0x28] sm:$0xf]
  %v80 = vld [vmem:[%s1 + $0x2c] sm:$0xf]
  %v81 = vld [vmem:[%s1 + $0x30] sm:$0xf]
  %v82 = vld [vmem:[%s1 + $0x34] sm:$0xf]
  %v83 = vld [vmem:[%s1 + $0x38] sm:$0xf]
  %v84 = vld [vmem:[%s1 + $0x3c] sm:$0xf]
  %v85 = vld [vmem:[%s1 + $0x40] sm:$0xf]
  %v86 = vld [vmem:[%s1 + $0x44] sm:$0xf]
  %v87 = vld [vmem:[%s1 + $0x48] sm:$0xf]
  %v88 = vld [vmem:[%s1 + $0x4c] sm:$0xf]
  %v89 = vld [vmem:[%s1 + $0x50] sm:$0xf]
  %v90 = vld [vmem:[%s1 + $0x54] sm:$0xf]
  %v91 = vld [vmem:[%s1 + $0x58] sm:$0xf]
  %v92 = vld [vmem:[%s1 + $0x5c] sm:$0xf]
  %v93 = vld [vmem:[%s1 + $0x60] sm:$0xf]
  %v94 = vld [vmem:[%s1 + $0x64] sm:$0xf]
  %v95 = vld [vmem:[%s1 + $0x68] sm:$0xf]
  %v96 = vld [vmem:[%s1 + $0x6c] sm:$0xf]
  %v97 = vld [vmem:[%s1 + $0x70] sm:$0xf]
  %v98 = vld [vmem:[%s1 + $0x74] sm:$0xf]
  %v99 = vld [vmem:[%s1 + $0x78] sm:$0xf]
  %v100 = vld [vmem:[%s1 + $0x7c] sm:$0xf]
  %v101 = vld [vmem:[%s1 + $0x80] sm:$0xf]
  %v102 = vld [vmem:[%s1 + $0x84] sm:$0xf]
  %v103 = vld [vmem:[%s1 + $0x88] sm:$0xf]
  %v104 = vld [vmem:[%s1 + $0x8c] sm:$0xf]
  %v105 = vld [vmem:[%s1 + $0x90] sm:$0xf]
  %v106 = vld [vmem:[%s1 + $0x94] sm:$0xf]
  %v107 = vld [vmem:[%s1 + $0x98] sm:$0xf]
  %v108 = vld [vmem:[%s1 + $0x9c] sm:$0xf]
  %v109 = vld [vmem:[%s1 + $0xa0] sm:$0xf]
  %v110 = vld [vmem:[%s1 + $0xa4] sm:$0xf]
  %v111 = vld [vmem:[%s1 + $0xa8] sm:$0xf]
  %v112 = vld [vmem:[%s1 + $0xac] sm:$0xf]
  %v113 = vld [vmem:[%s1 + $0xb0] sm:$0xf]
  %v114 = vld [vmem:[%s1 + $0xb4] sm:$0xf]
  %v115 = vld [vmem:[%s1 + $0xb8] sm:$0xf]
  %v116 = vld [vmem:[%s1 + $0xbc] sm:$0xf]
  %v117 = vld [vmem:[%s1 + $0xc0] sm:$0xf]
  %v118 = vld [vmem:[%s1 + $0xc4] sm:$0xf]
  %v119 = vld [vmem:[%s1 + $0xc8] sm:$0xf]
  %v120 = vld [vmem:[%s1 + $0xcc] sm:$0xf]
  %v121 = vld [vmem:[%s1 + $0xd0] sm:$0xf]
  %v122 = vld [vmem:[%s1 + $0xd4] sm:$0xf]
  %v123 = vld [vmem:[%s1 + $0xd8] sm:$0xf]
  %v124 = vld [vmem:[%s1 + $0xdc] sm:$0xf]
  %v125 = vld [vmem:[%s1 + $0xe0] sm:$0xf]
  %v126 = vld [vmem:[%s1 + $0xe4] sm:$0xf]
  %v127 = vld [vmem:[%s1 + $0xe8] sm:$0xf]
  %v128 = vld [vmem:[%s1 + $0xec] sm:$0xf]
  %v129 = vld [vmem:[%s1 + $0xf0] sm:$0xf]
  %v130 = vld [vmem:[%s1 + $0xf4] sm:$0xf]
  %v131 = vld [vmem:[%s1 + $0xf8] sm:$0xf]
  %v132 = vld [vmem:[%s1 + $0xfc] sm:$0xf]
  %v133 = vld [vmem:[%s1 + $0x100] sm:$0xf]
  %v134 = vld [vmem:[%s1 + $0x104] sm:$0xf]
  %v135 = vld [vmem:[%s1 + $0x108] sm:$0xf]
  %v136 = vld [vmem:[%s1 + $0x10c] sm:$0xf]
  %v137 = vld [vmem:[%s1 + $0x110] sm:$0xf]
  %v138 = vld [vmem:[%s1 + $0x114] sm:$0xf]
  %v139 = vld [vmem:[%s1 + $0x118] sm:$0xf]
  %v140 = vld [vmem:[%s1 + $0x11c] sm:$0xf]
  %v189 = vunpack.c.l.b16 %v21
  %v190 = vunpack.c.h.b16 %v21
  %v191 = vunpack.c.l.b16 %v22
  %v192 = vunpack.c.h.b16 %v22
  %v193 = vunpack.c.l.b16 %v23
  %v194 = vunpack.c.l.b16 %v24
  %v195 = vunpack.c.h.b16 %v24
  %v196 = vunpack.c.l.b16 %v25
  %v197 = vunpack.c.h.b16 %v25
  %v198 = vunpack.c.l.b16 %v26
  %v199 = vunpack.c.l.b16 %v27
  %v200 = vunpack.c.h.b16 %v27
  %v201 = vunpack.c.l.b16 %v28
  %v202 = vunpack.c.h.b16 %v28
  %v203 = vunpack.c.l.b16 %v29
  %v204 = vunpack.c.l.b16 %v30
  %v205 = vunpack.c.h.b16 %v30
  %v206 = vunpack.c.l.b16 %v31
  %v207 = vunpack.c.h.b16 %v31
  %v208 = vunpack.c.l.b16 %v32
  %v209 = vunpack.c.l.b16 %v33
  %v210 = vunpack.c.h.b16 %v33
  %v211 = vunpack.c.l.b16 %v34
  %v212 = vunpack.c.h.b16 %v34
  %v213 = vunpack.c.l.b16 %v35
  %v214 = vunpack.c.l.b16 %v36
  %v215 = vunpack.c.h.b16 %v36
  %v216 = vunpack.c.l.b16 %v37
  %v217 = vunpack.c.h.b16 %v37
  %v218 = vunpack.c.l.b16 %v38
  %v219 = vunpack.c.l.b16 %v39
  %v220 = vunpack.c.h.b16 %v39
  %v221 = vunpack.c.l.b16 %v40
  %v222 = vunpack.c.h.b16 %v40
  %v223 = vunpack.c.l.b16 %v41
  %v224 = vunpack.c.l.b16 %v42
  %v225 = vunpack.c.h.b16 %v42
  %v226 = vunpack.c.l.b16 %v43
  %v227 = vunpack.c.h.b16 %v43
  %v228 = vunpack.c.l.b16 %v44
  %v229 = vunpack.c.l.b16 %v45
  %v230 = vunpack.c.h.b16 %v45
  %v231 = vunpack.c.l.b16 %v46
  %v232 = vunpack.c.h.b16 %v46
  %v233 = vunpack.c.l.b16 %v47
  %v234 = vunpack.c.l.b16 %v48
  %v235 = vunpack.c.h.b16 %v48
  %v236 = vunpack.c.l.b16 %v49
  %v237 = vunpack.c.h.b16 %v49
  %v238 = vunpack.c.l.b16 %v50
  %v239 = vunpack.c.l.b16 %v51
  %v240 = vunpack.c.h.b16 %v51
  %v241 = vunpack.c.l.b16 %v52
  %v242 = vunpack.c.h.b16 %v52
  %v243 = vunpack.c.l.b16 %v53
  %v244 = vunpack.c.l.b16 %v54
  %v245 = vunpack.c.h.b16 %v54
  %v246 = vunpack.c.l.b16 %v55
  %v247 = vunpack.c.h.b16 %v55
  %v248 = vunpack.c.l.b16 %v56
  %v249 = vunpack.c.l.b16 %v57
  %v250 = vunpack.c.h.b16 %v57
  %v251 = vunpack.c.l.b16 %v58
  %v252 = vunpack.c.h.b16 %v58
  %v253 = vunpack.c.l.b16 %v59
  %v254 = vunpack.c.l.b16 %v60
  %v255 = vunpack.c.h.b16 %v60
  %v256 = vunpack.c.l.b16 %v61
  %v257 = vunpack.c.h.b16 %v61
  %v258 = vunpack.c.l.b16 %v62
  %v259 = vunpack.c.l.b16 %v63
  %v260 = vunpack.c.h.b16 %v63
  %v261 = vunpack.c.l.b16 %v64
  %v262 = vunpack.c.h.b16 %v64
  %v263 = vunpack.c.l.b16 %v65
  %v264 = vunpack.c.l.b16 %v66
  %v265 = vunpack.c.h.b16 %v66
  %v266 = vunpack.c.l.b16 %v67
  %v267 = vunpack.c.h.b16 %v67
  %v268 = vunpack.c.l.b16 %v68
  %v269 = vpack.c.b16 %v194, %v189
  %v270 = vpack.c.b16 %v195, %v190
  %v271 = vpack.c.b16 %v196, %v191
  %v272 = vpack.c.b16 %v197, %v192
  %v273 = vpack.c.b16 %v198, %v193
  %v274 = vpack.c.b16 %v204, %v199
  %v275 = vpack.c.b16 %v205, %v200
  %v276 = vpack.c.b16 %v206, %v201
  %v277 = vpack.c.b16 %v207, %v202
  %v278 = vpack.c.b16 %v208, %v203
  %v279 = vpack.c.b16 %v214, %v209
  %v280 = vpack.c.b16 %v215, %v210
  %v281 = vpack.c.b16 %v216, %v211
  %v282 = vpack.c.b16 %v217, %v212
  %v283 = vpack.c.b16 %v218, %v213
  %v284 = vpack.c.b16 %v224, %v219
  %v285 = vpack.c.b16 %v225, %v220
  %v286 = vpack.c.b16 %v226, %v221
  %v287 = vpack.c.b16 %v227, %v222
  %v288 = vpack.c.b16 %v228, %v223
  %v289 = vpack.c.b16 %v234, %v229
  %v290 = vpack.c.b16 %v235, %v230
  %v291 = vpack.c.b16 %v236, %v231
  %v292 = vpack.c.b16 %v237, %v232
  %v293 = vpack.c.b16 %v238, %v233
  %v294 = vpack.c.b16 %v244, %v239
  %v295 = vpack.c.b16 %v245, %v240
  %v296 = vpack.c.b16 %v246, %v241
  %v297 = vpack.c.b16 %v247, %v242
  %v298 = vpack.c.b16 %v248, %v243
  %v299 = vpack.c.b16 %v254, %v249
  %v300 = vpack.c.b16 %v255, %v250
  %v301 = vpack.c.b16 %v256, %v251
  %v302 = vpack.c.b16 %v257, %v252
  %v303 = vpack.c.b16 %v258, %v253
  %v304 = vpack.c.b16 %v264, %v259
  %v305 = vpack.c.b16 %v265, %v260
  %v306 = vpack.c.b16 %v266, %v261
  %v307 = vpack.c.b16 %v267, %v262
  %v308 = vpack.c.b16 %v268, %v263
  %v413 = vunpack.c.l.b16 %v69
  %v414 = vunpack.c.l.b16 %v70
  %v415 = vunpack.c.l.b16 %v71
  %v416 = vunpack.c.l.b16 %v72
  %v417 = vunpack.c.l.b16 %v73
  %v418 = vunpack.c.l.b16 %v74
  %v419 = vunpack.c.l.b16 %v75
  %v420 = vunpack.c.l.b16 %v76
  %v421 = vunpack.c.l.b16 %v77
  %v422 = vunpack.c.l.b16 %v78
  %v423 = vunpack.c.l.b16 %v79
  %v424 = vunpack.c.l.b16 %v80
  %v425 = vunpack.c.l.b16 %v81
  %v426 = vunpack.c.l.b16 %v82
  %v427 = vunpack.c.l.b16 %v83
  %v428 = vunpack.c.l.b16 %v84
  %v429 = vunpack.c.l.b16 %v85
  %v430 = vunpack.c.l.b16 %v86
  %v431 = vunpack.c.l.b16 %v87
  %v432 = vunpack.c.l.b16 %v88
  %v433 = vunpack.c.l.b16 %v89
  %v434 = vunpack.c.l.b16 %v90
  %v435 = vunpack.c.l.b16 %v91
  %v436 = vunpack.c.l.b16 %v92
  %v437 = vunpack.c.l.b16 %v93
  %v438 = vunpack.c.l.b16 %v94
  %v439 = vunpack.c.l.b16 %v95
  %v440 = vunpack.c.l.b16 %v96
  %v441 = vunpack.c.l.b16 %v97
  %v442 = vunpack.c.l.b16 %v98
  %v443 = vunpack.c.l.b16 %v99
  %v444 = vunpack.c.l.b16 %v100
  %v445 = vunpack.c.l.b16 %v101
  %v446 = vunpack.c.l.b16 %v102
  %v447 = vunpack.c.l.b16 %v103
  %v448 = vunpack.c.l.b16 %v104
  %v449 = vunpack.c.l.b16 %v105
  %v450 = vunpack.c.l.b16 %v106
  %v451 = vunpack.c.l.b16 %v107
  %v452 = vunpack.c.l.b16 %v108
  %v453 = vunpack.c.l.b16 %v109
  %v454 = vunpack.c.l.b16 %v110
  %v455 = vunpack.c.l.b16 %v111
  %v456 = vunpack.c.l.b16 %v112
  %v457 = vunpack.c.l.b16 %v113
  %v458 = vunpack.c.l.b16 %v114
  %v459 = vunpack.c.l.b16 %v115
  %v460 = vunpack.c.l.b16 %v116
  %v461 = vunpack.c.l.b16 %v117
  %v462 = vunpack.c.l.b16 %v118
  %v463 = vunpack.c.l.b16 %v119
  %v464 = vunpack.c.l.b16 %v120
  %v465 = vunpack.c.l.b16 %v121
  %v466 = vunpack.c.l.b16 %v122
  %v467 = vunpack.c.l.b16 %v123
  %v468 = vunpack.c.l.b16 %v124
  %v469 = vunpack.c.l.b16 %v125
  %v470 = vunpack.c.l.b16 %v126
  %v471 = vunpack.c.l.b16 %v127
  %v472 = vunpack.c.l.b16 %v128
  %v473 = vunpack.c.l.b16 %v129
  %v474 = vunpack.c.l.b16 %v130
  %v475 = vunpack.c.l.b16 %v131
  %v476 = vunpack.c.l.b16 %v132
  %v477 = vunpack.c.l.b16 %v133
  %v478 = vunpack.c.l.b16 %v134
  %v479 = vunpack.c.l.b16 %v135
  %v480 = vunpack.c.l.b16 %v136
  %v481 = vunpack.c.l.b16 %v137
  %v482 = vunpack.c.l.b16 %v138
  %v483 = vunpack.c.l.b16 %v139
  %v484 = vunpack.c.l.b16 %v140
  %v485 = vpack.c.b16 %v414, %v413
  %v486 = vpack.c.b16 %v416, %v415
  %v487 = vpack.c.b16 %v418, %v417
  %v488 = vpack.c.b16 %v420, %v419
  %v489 = vpack.c.b16 %v422, %v421
  %v490 = vpack.c.b16 %v424, %v423
  %v491 = vpack.c.b16 %v426, %v425
  %v492 = vpack.c.b16 %v428, %v427
  %v493 = vpack.c.b16 %v430, %v429
  %v494 = vpack.c.b16 %v432, %v431
  %v495 = vpack.c.b16 %v434, %v433
  %v496 = vpack.c.b16 %v436, %v435
  %v497 = vpack.c.b16 %v438, %v437
  %v498 = vpack.c.b16 %v440, %v439
  %v499 = vpack.c.b16 %v442, %v441
  %v500 = vpack.c.b16 %v444, %v443
  %v501 = vpack.c.b16 %v446, %v445
  %v502 = vpack.c.b16 %v448, %v447
  %v503 = vpack.c.b16 %v450, %v449
  %v504 = vpack.c.b16 %v452, %v451
  %v505 = vpack.c.b16 %v454, %v453
  %v506 = vpack.c.b16 %v456, %v455
  %v507 = vpack.c.b16 %v458, %v457
  %v508 = vpack.c.b16 %v460, %v459
  %v509 = vpack.c.b16 %v462, %v461
  %v510 = vpack.c.b16 %v464, %v463
  %v511 = vpack.c.b16 %v466, %v465
  %v512 = vpack.c.b16 %v468, %v467
  %v513 = vpack.c.b16 %v470, %v469
  %v514 = vpack.c.b16 %v472, %v471
  %v515 = vpack.c.b16 %v474, %v473
  %v516 = vpack.c.b16 %v476, %v475
  %v517 = vpack.c.b16 %v478, %v477
  %v518 = vpack.c.b16 %v480, %v479
  %v519 = vpack.c.b16 %v482, %v481
  %v520 = vpack.c.b16 %v484, %v483
  %vm557 = vcmask 523264
  %v559 = vsel %vm557, %v273, 0
  %v562 = vsel %vm557, %v278, 0
  %v565 = vsel %vm557, %v283, 0
  %v568 = vsel %vm557, %v288, 0
  %v571 = vsel %vm557, %v293, 0
  %v574 = vsel %vm557, %v298, 0
  %v577 = vsel %vm557, %v303, 0
  %v580 = vsel %vm557, %v308, 0
  %582 = vmatprep.subr.bf16.mxu0 0
  %583 = vmatpush1.bf16.msra.mxu0 %v492
  %584 = vmatprep.subr.bf16.mxu0 0
  %585 = vmatpush1.bf16.msra.mxu0 %v491
  %586 = vmatprep.subr.bf16.mxu0 0
  %587 = vmatpush1.bf16.msra.mxu0 %v490
  %588 = vmatprep.subr.bf16.mxu0 0
  %589 = vmatpush1.bf16.msra.mxu0 %v489
  %590 = vmatprep.subr.bf16.mxu0 0
  %591 = vmatpush1.bf16.msra.mxu0 %v488
  %592 = vmatprep.subr.bf16.mxu0 0
  %593 = vmatpush1.bf16.msra.mxu0 %v487
  %594 = vmatprep.subr.bf16.mxu0 0
  %595 = vmatpush1.bf16.msra.mxu0 %v486
  %596 = vmatprep.subr.bf16.mxu0 0
  %597 = vmatpush1.bf16.msra.mxu0 %v485
  %598 = vmatprep.subr.bf16.mxu0 0
  %599 = vmatpush2.bf16.msra.mxu0 %v500
  %600 = vmatprep.subr.bf16.mxu0 0
  %601 = vmatpush2.bf16.msra.mxu0 %v499
  %602 = vmatprep.subr.bf16.mxu0 0
  %603 = vmatpush2.bf16.msra.mxu0 %v498
  %604 = vmatprep.subr.bf16.mxu0 0
  %605 = vmatpush2.bf16.msra.mxu0 %v497
  %606 = vmatprep.subr.bf16.mxu0 0
  %607 = vmatpush2.bf16.msra.mxu0 %v496
  %608 = vmatprep.subr.bf16.mxu0 0
  %609 = vmatpush2.bf16.msra.mxu0 %v495
  %610 = vmatprep.subr.bf16.mxu0 0
  %611 = vmatpush2.bf16.msra.mxu0 %v494
  %612 = vmatprep.subr.bf16.mxu0 0
  %613 = vmatpush2.bf16.msra.mxu0 %v493
  %614 = vmatprep.mubr.bf16.mxu0 %v270
  %615 = vmatmul.mubr.bf16.gmra.mxu0 %v269
  %v616 = vpop.f32.mrf.mxu0
  %v617 = vadd.f32 0.0, %v616
  %v618 = vpop.f32.mrf.mxu0
  %v619 = vpop.f32.mrf.mxu0
  %v620 = vadd.f32 0.0, %v619
  %v621 = vpop.f32.mrf.mxu0
  %622 = vmatprep.mubr.bf16.mxu0 %v275
  %623 = vmatmul.mubr.bf16.gmra.mxu0 %v274
  %v624 = vpop.f32.mrf.mxu0
  %v625 = vadd.f32 0.0, %v624
  %v626 = vpop.f32.mrf.mxu0
  %v627 = vpop.f32.mrf.mxu0
  %v628 = vadd.f32 0.0, %v627
  %v629 = vpop.f32.mrf.mxu0
  %630 = vmatprep.mubr.bf16.mxu0 %v280
  %631 = vmatmul.mubr.bf16.gmra.mxu0 %v279
  %v632 = vpop.f32.mrf.mxu0
  %v633 = vadd.f32 0.0, %v632
  %v634 = vpop.f32.mrf.mxu0
  %v635 = vpop.f32.mrf.mxu0
  %v636 = vadd.f32 0.0, %v635
  %v637 = vpop.f32.mrf.mxu0
  %638 = vmatprep.mubr.bf16.mxu0 %v285
  %639 = vmatmul.mubr.bf16.gmra.mxu0 %v284
  %v640 = vpop.f32.mrf.mxu0
  %v641 = vadd.f32 0.0, %v640
  %v642 = vpop.f32.mrf.mxu0
  %v643 = vpop.f32.mrf.mxu0
  %v644 = vadd.f32 0.0, %v643
  %v645 = vpop.f32.mrf.mxu0
  %646 = vmatprep.mubr.bf16.mxu0 %v290
  %647 = vmatmul.mubr.bf16.gmra.mxu0 %v289
  %v648 = vpop.f32.mrf.mxu0
  %v649 = vadd.f32 0.0, %v648
  %v650 = vpop.f32.mrf.mxu0
  %v651 = vpop.f32.mrf.mxu0
  %v652 = vadd.f32 0.0, %v651
  %v653 = vpop.f32.mrf.mxu0
  %654 = vmatprep.mubr.bf16.mxu0 %v295
  %655 = vmatmul.mubr.bf16.gmra.mxu0 %v294
  %v656 = vpop.f32.mrf.mxu0
  %v657 = vadd.f32 0.0, %v656
  %v658 = vpop.f32.mrf.mxu0
  %v659 = vpop.f32.mrf.mxu0
  %v660 = vadd.f32 0.0, %v659
  %v661 = vpop.f32.mrf.mxu0
  %662 = vmatprep.mubr.bf16.mxu0 %v300
  %663 = vmatmul.mubr.bf16.gmra.mxu0 %v299
  %v664 = vpop.f32.mrf.mxu0
  %v665 = vadd.f32 0.0, %v664
  %v666 = vpop.f32.mrf.mxu0
  %v667 = vpop.f32.mrf.mxu0
  %v668 = vadd.f32 0.0, %v667
  %v669 = vpop.f32.mrf.mxu0
  %670 = vmatprep.mubr.bf16.mxu0 %v305
  %671 = vmatmul.mubr.bf16.gmra.mxu0 %v304
  %v672 = vpop.f32.mrf.mxu0
  %v673 = vadd.f32 0.0, %v672
  %v674 = vpop.f32.mrf.mxu0
  %v675 = vpop.f32.mrf.mxu0
  %v676 = vadd.f32 0.0, %v675
  %v677 = vpop.f32.mrf.mxu0
  %678 = vdwg.mxu0
  %679 = vmatprep.subr.bf16.mxu0 0
  %680 = vmatpush1.bf16.msra.mxu0 %v508
  %681 = vmatprep.subr.bf16.mxu0 0
  %682 = vmatpush1.bf16.msra.mxu0 %v507
  %683 = vmatprep.subr.bf16.mxu0 0
  %684 = vmatpush1.bf16.msra.mxu0 %v506
  %685 = vmatprep.subr.bf16.mxu0 0
  %686 = vmatpush1.bf16.msra.mxu0 %v505
  %687 = vmatprep.subr.bf16.mxu0 0
  %688 = vmatpush1.bf16.msra.mxu0 %v504
  %689 = vmatprep.subr.bf16.mxu0 0
  %690 = vmatpush1.bf16.msra.mxu0 %v503
  %691 = vmatprep.subr.bf16.mxu0 0
  %692 = vmatpush1.bf16.msra.mxu0 %v502
  %693 = vmatprep.subr.bf16.mxu0 0
  %694 = vmatpush1.bf16.msra.mxu0 %v501
  %695 = vmatprep.subr.bf16.mxu0 0
  %696 = vmatpush2.bf16.msra.mxu0 %v516
  %697 = vmatprep.subr.bf16.mxu0 0
  %698 = vmatpush2.bf16.msra.mxu0 %v515
  %699 = vmatprep.subr.bf16.mxu0 0
  %700 = vmatpush2.bf16.msra.mxu0 %v514
  %701 = vmatprep.subr.bf16.mxu0 0
  %702 = vmatpush2.bf16.msra.mxu0 %v513
  %703 = vmatprep.subr.bf16.mxu0 0
  %704 = vmatpush2.bf16.msra.mxu0 %v512
  %705 = vmatprep.subr.bf16.mxu0 0
  %706 = vmatpush2.bf16.msra.mxu0 %v511
  %707 = vmatprep.subr.bf16.mxu0 0
  %708 = vmatpush2.bf16.msra.mxu0 %v510
  %709 = vmatprep.subr.bf16.mxu0 0
  %710 = vmatpush2.bf16.msra.mxu0 %v509
  %711 = vmatprep.mubr.bf16.mxu0 %v272
  %712 = vmatmul.mubr.bf16.gmra.mxu0 %v271
  %v713 = vpop.f32.mrf.mxu0
  %v714 = vadd.f32 %v617, %v713
  %v715 = vpop.f32.mrf.mxu0
  %v716 = vpop.f32.mrf.mxu0
  %v717 = vadd.f32 %v620, %v716
  %v718 = vpop.f32.mrf.mxu0
  %719 = vmatprep.mubr.bf16.mxu0 %v277
  %720 = vmatmul.mubr.bf16.gmra.mxu0 %v276
  %v721 = vpop.f32.mrf.mxu0
  %v722 = vadd.f32 %v625, %v721
  %v723 = vpop.f32.mrf.mxu0
  %v724 = vpop.f32.mrf.mxu0
  %v725 = vadd.f32 %v628, %v724
  %v726 = vpop.f32.mrf.mxu0
  %727 = vmatprep.mubr.bf16.mxu0 %v282
  %728 = vmatmul.mubr.bf16.gmra.mxu0 %v281
  %v729 = vpop.f32.mrf.mxu0
  %v730 = vadd.f32 %v633, %v729
  %v731 = vpop.f32.mrf.mxu0
  %v732 = vpop.f32.mrf.mxu0
  %v733 = vadd.f32 %v636, %v732
  %v734 = vpop.f32.mrf.mxu0
  %735 = vmatprep.mubr.bf16.mxu0 %v287
  %736 = vmatmul.mubr.bf16.gmra.mxu0 %v286
  %v737 = vpop.f32.mrf.mxu0
  %v738 = vadd.f32 %v641, %v737
  %v739 = vpop.f32.mrf.mxu0
  %v740 = vpop.f32.mrf.mxu0
  %v741 = vadd.f32 %v644, %v740
  %v742 = vpop.f32.mrf.mxu0
  %743 = vmatprep.mubr.bf16.mxu0 %v292
  %744 = vmatmul.mubr.bf16.gmra.mxu0 %v291
  %v745 = vpop.f32.mrf.mxu0
  %v746 = vadd.f32 %v649, %v745
  %v747 = vpop.f32.mrf.mxu0
  %v748 = vpop.f32.mrf.mxu0
  %v749 = vadd.f32 %v652, %v748
  %v750 = vpop.f32.mrf.mxu0
  %751 = vmatprep.mubr.bf16.mxu0 %v297
  %752 = vmatmul.mubr.bf16.gmra.mxu0 %v296
  %v753 = vpop.f32.mrf.mxu0
  %v754 = vadd.f32 %v657, %v753
  %v755 = vpop.f32.mrf.mxu0
  %v756 = vpop.f32.mrf.mxu0
  %v757 = vadd.f32 %v660, %v756
  %v758 = vpop.f32.mrf.mxu0
  %759 = vmatprep.mubr.bf16.mxu0 %v302
  %760 = vmatmul.mubr.bf16.gmra.mxu0 %v301
  %v761 = vpop.f32.mrf.mxu0
  %v762 = vadd.f32 %v665, %v761
  %v763 = vpop.f32.mrf.mxu0
  %v764 = vpop.f32.mrf.mxu0
  %v765 = vadd.f32 %v668, %v764
  %v766 = vpop.f32.mrf.mxu0
  %767 = vmatprep.mubr.bf16.mxu0 %v307
  %768 = vmatmul.mubr.bf16.gmra.mxu0 %v306
  %v769 = vpop.f32.mrf.mxu0
  %v770 = vadd.f32 %v673, %v769
  %v771 = vpop.f32.mrf.mxu0
  %v772 = vpop.f32.mrf.mxu0
  %v773 = vadd.f32 %v676, %v772
  %v774 = vpop.f32.mrf.mxu0
  %775 = vdwg.mxu0
  %776 = vmatprep.subr.bf16.mxu0 0
  %777 = vmatpush1.bf16.msra.mxu0 0
  %778 = vmatprep.subr.bf16.mxu0 0
  %779 = vmatpush1.bf16.msra.mxu0 0
  %780 = vmatprep.subr.bf16.mxu0 0
  %781 = vmatpush1.bf16.msra.mxu0 0
  %782 = vmatprep.subr.bf16.mxu0 0
  %783 = vmatpush1.bf16.msra.mxu0 0
  %784 = vmatprep.subr.bf16.mxu0 0
  %785 = vmatpush1.bf16.msra.mxu0 %v520
  %786 = vmatprep.subr.bf16.mxu0 0
  %787 = vmatpush1.bf16.msra.mxu0 %v519
  %788 = vmatprep.subr.bf16.mxu0 0
  %789 = vmatpush1.bf16.msra.mxu0 %v518
  %790 = vmatprep.subr.bf16.mxu0 0
  %791 = vmatpush1.bf16.msra.mxu0 %v517
  %792 = vmatprep.subr.bf16.mxu0 0
  %793 = vmatpush2.bf16.msra.mxu0 0
  %794 = vmatprep.subr.bf16.mxu0 0
  %795 = vmatpush2.bf16.msra.mxu0 0
  %796 = vmatprep.subr.bf16.mxu0 0
  %797 = vmatpush2.bf16.msra.mxu0 0
  %798 = vmatprep.subr.bf16.mxu0 0
  %799 = vmatpush2.bf16.msra.mxu0 0
  %800 = vmatprep.subr.bf16.mxu0 0
  %801 = vmatpush2.bf16.msra.mxu0 0
  %802 = vmatprep.subr.bf16.mxu0 0
  %803 = vmatpush2.bf16.msra.mxu0 0
  %804 = vmatprep.subr.bf16.mxu0 0
  %805 = vmatpush2.bf16.msra.mxu0 0
  %806 = vmatprep.subr.bf16.mxu0 0
  %807 = vmatpush2.bf16.msra.mxu0 0
  %808 = vmatprep.mubr.bf16.mxu0 0
  %809 = vmatmul.mubr.bf16.gmra.mxu0 %v559
  %v810 = vpop.f32.mrf.mxu0
  %v811 = vadd.f32 %v714, %v810
  %v812 = vpop.f32.mrf.mxu0
  %v813 = vpop.f32.mrf.mxu0
  %v814 = vadd.f32 %v717, %v813
  %v815 = vpop.f32.mrf.mxu0
  %816 = vmatprep.mubr.bf16.mxu0 0
  %817 = vmatmul.mubr.bf16.gmra.mxu0 %v562
  %v818 = vpop.f32.mrf.mxu0
  %v819 = vadd.f32 %v722, %v818
  %v820 = vpop.f32.mrf.mxu0
  %v821 = vpop.f32.mrf.mxu0
  %v822 = vadd.f32 %v725, %v821
  %v823 = vpop.f32.mrf.mxu0
  %824 = vmatprep.mubr.bf16.mxu0 0
  %825 = vmatmul.mubr.bf16.gmra.mxu0 %v565
  %v826 = vpop.f32.mrf.mxu0
  %v827 = vadd.f32 %v730, %v826
  %v828 = vpop.f32.mrf.mxu0
  %v829 = vpop.f32.mrf.mxu0
  %v830 = vadd.f32 %v733, %v829
  %v831 = vpop.f32.mrf.mxu0
  %832 = vmatprep.mubr.bf16.mxu0 0
  %833 = vmatmul.mubr.bf16.gmra.mxu0 %v568
  %v834 = vpop.f32.mrf.mxu0
  %v835 = vadd.f32 %v738, %v834
  %v836 = vpop.f32.mrf.mxu0
  %v837 = vpop.f32.mrf.mxu0
  %v838 = vadd.f32 %v741, %v837
  %v839 = vpop.f32.mrf.mxu0
  %840 = vmatprep.mubr.bf16.mxu0 0
  %841 = vmatmul.mubr.bf16.gmra.mxu0 %v571
  %v842 = vpop.f32.mrf.mxu0
  %v843 = vadd.f32 %v746, %v842
  %v844 = vpop.f32.mrf.mxu0
  %v845 = vpop.f32.mrf.mxu0
  %v846 = vadd.f32 %v749, %v845
  %v847 = vpop.f32.mrf.mxu0
  %848 = vmatprep.mubr.bf16.mxu0 0
  %849 = vmatmul.mubr.bf16.gmra.mxu0 %v574
  %v850 = vpop.f32.mrf.mxu0
  %v851 = vadd.f32 %v754, %v850
  %v852 = vpop.f32.mrf.mxu0
  %v853 = vpop.f32.mrf.mxu0
  %v854 = vadd.f32 %v757, %v853
  %v855 = vpop.f32.mrf.mxu0
  %856 = vmatprep.mubr.bf16.mxu0 0
  %857 = vmatmul.mubr.bf16.gmra.mxu0 %v577
  %v858 = vpop.f32.mrf.mxu0
  %v859 = vadd.f32 %v762, %v858
  %v860 = vpop.f32.mrf.mxu0
  %v861 = vpop.f32.mrf.mxu0
  %v862 = vadd.f32 %v765, %v861
  %v863 = vpop.f32.mrf.mxu0
  %864 = vmatprep.mubr.bf16.mxu0 0
  %865 = vmatmul.mubr.bf16.gmra.mxu0 %v580
  %v866 = vpop.f32.mrf.mxu0
  %v867 = vadd.f32 %v770, %v866
  %v868 = vpop.f32.mrf.mxu0
  %v869 = vpop.f32.mrf.mxu0
  %v870 = vadd.f32 %v773, %v869
  %v871 = vpop.f32.mrf.mxu0
  %872 = vdwg.mxu0
  %v873 = vld [vmem:[%s2] sm:$0x1]
  %v875 = vlaneseq
  %v876 = vshrl.u32 %v875, 7
  %v877 = vsub.s32 0, %v876
  %v878 = vrot.slane %v873, %v877
  %v880 = vmul.f32 %v811, %v878
  %v881 = vmul.f32 %v814, %v878
  %v882 = vmul.f32 %v819, %v878
  %v883 = vmul.f32 %v822, %v878
  %v884 = vmul.f32 %v827, %v878
  %v885 = vmul.f32 %v830, %v878
  %v886 = vmul.f32 %v835, %v878
  %v887 = vmul.f32 %v838, %v878
  %v888 = vmul.f32 %v843, %v878
  %v889 = vmul.f32 %v846, %v878
  %v890 = vmul.f32 %v851, %v878
  %v891 = vmul.f32 %v854, %v878
  %v892 = vmul.f32 %v859, %v878
  %v893 = vmul.f32 %v862, %v878
  %v894 = vmul.f32 %v867, %v878
  %v895 = vmul.f32 %v870, %v878
  %v896 = vld [vmem:[%s3] sm:$0x1]
  %v898 = vlaneseq
  %v899 = vshrl.u32 %v898, 7
  %v900 = vsub.s32 0, %v899
  %v901 = vrot.slane %v896, %v900
  %v903 = vadd.f32 %v880, %v901
  %v904 = vadd.f32 %v881, %v901
  %v905 = vadd.f32 %v882, %v901
  %v906 = vadd.f32 %v883, %v901
  %v907 = vadd.f32 %v884, %v901
  %v908 = vadd.f32 %v885, %v901
  %v909 = vadd.f32 %v886, %v901
  %v910 = vadd.f32 %v887, %v901
  %v911 = vadd.f32 %v888, %v901
  %v912 = vadd.f32 %v889, %v901
  %v913 = vadd.f32 %v890, %v901
  %v914 = vadd.f32 %v891, %v901
  %v915 = vadd.f32 %v892, %v901
  %v916 = vadd.f32 %v893, %v901
  %v917 = vadd.f32 %v894, %v901
  %v918 = vadd.f32 %v895, %v901
  %v919 = vld [vmem:[%s4] sm:$0xf]
  %v920 = vld [vmem:[%s4 + $0x4] sm:$0xf]
  %v921 = vld [vmem:[%s4 + $0x8] sm:$0xf]
  %v922 = vld [vmem:[%s4 + $0xc] sm:$0xf]
  %v923 = vld [vmem:[%s4 + $0x10] sm:$0xf]
  %v924 = vld [vmem:[%s4 + $0x14] sm:$0xf]
  %v925 = vld [vmem:[%s4 + $0x18] sm:$0xf]
  %v926 = vld [vmem:[%s4 + $0x1c] sm:$0xf]
  %v927 = vld [vmem:[%s4 + $0x20] sm:$0xf]
  %v928 = vld [vmem:[%s4 + $0x24] sm:$0xf]
  %v929 = vld [vmem:[%s4 + $0x28] sm:$0xf]
  %v930 = vld [vmem:[%s4 + $0x2c] sm:$0xf]
  %v931 = vld [vmem:[%s4 + $0x30] sm:$0xf]
  %v932 = vld [vmem:[%s4 + $0x34] sm:$0xf]
  %v933 = vld [vmem:[%s4 + $0x38] sm:$0xf]
  %v934 = vld [vmem:[%s4 + $0x3c] sm:$0xf]
  %v935 = vunpack.c.l.bf16 %v919
  %v936 = vunpack.c.l.bf16 %v920
  %v937 = vunpack.c.l.bf16 %v921
  %v938 = vunpack.c.l.bf16 %v922
  %v939 = vunpack.c.l.bf16 %v923
  %v940 = vunpack.c.l.bf16 %v924
  %v941 = vunpack.c.l.bf16 %v925
  %v942 = vunpack.c.l.bf16 %v926
  %v943 = vunpack.c.l.bf16 %v927
  %v944 = vunpack.c.l.bf16 %v928
  %v945 = vunpack.c.l.bf16 %v929
  %v946 = vunpack.c.l.bf16 %v930
  %v947 = vunpack.c.l.bf16 %v931
  %v948 = vunpack.c.l.bf16 %v932
  %v949 = vunpack.c.l.bf16 %v933
  %v950 = vunpack.c.l.bf16 %v934
  %v951 = vadd.f32 %v903, %v935
  %v952 = vadd.f32 %v904, %v936
  %v953 = vadd.f32 %v905, %v937
  %v954 = vadd.f32 %v906, %v938
  %v955 = vadd.f32 %v907, %v939
  %v956 = vadd.f32 %v908, %v940
  %v957 = vadd.f32 %v909, %v941
  %v958 = vadd.f32 %v910, %v942
  %v959 = vadd.f32 %v911, %v943
  %v960 = vadd.f32 %v912, %v944
  %v961 = vadd.f32 %v913, %v945
  %v962 = vadd.f32 %v914, %v946
  %v963 = vadd.f32 %v915, %v947
  %v964 = vadd.f32 %v916, %v948
  %v965 = vadd.f32 %v917, %v949
  %v966 = vadd.f32 %v918, %v950
  %v967 = vmax.f32 %v951, 0.0
  %v968 = vmax.f32 %v952, 0.0
  %v969 = vmax.f32 %v953, 0.0
  %v970 = vmax.f32 %v954, 0.0
  %v971 = vmax.f32 %v955, 0.0
  %v972 = vmax.f32 %v956, 0.0
  %v973 = vmax.f32 %v957, 0.0
  %v974 = vmax.f32 %v958, 0.0
  %v975 = vmax.f32 %v959, 0.0
  %v976 = vmax.f32 %v960, 0.0
  %v977 = vmax.f32 %v961, 0.0
  %v978 = vmax.f32 %v962, 0.0
  %v979 = vmax.f32 %v963, 0.0
  %v980 = vmax.f32 %v964, 0.0
  %v981 = vmax.f32 %v965, 0.0
  %v982 = vmax.f32 %v966, 0.0
  %v983 = vpack.c.bf16 %v968, %v967
  %v984 = vpack.c.bf16 %v970, %v969
  %v985 = vpack.c.bf16 %v972, %v971
  %v986 = vpack.c.bf16 %v974, %v973
  %v987 = vpack.c.bf16 %v976, %v975
  %v988 = vpack.c.bf16 %v978, %v977
  %v989 = vpack.c.bf16 %v980, %v979
  %v990 = vpack.c.bf16 %v982, %v981
  %v999 = vunpack.c.l.b16 %v983
  %v1000 = vunpack.c.h.b16 %v983
  %v1001 = vunpack.c.l.b16 %v984
  %v1002 = vunpack.c.h.b16 %v984
  %v1003 = vunpack.c.l.b16 %v985
  %v1004 = vunpack.c.h.b16 %v985
  %v1005 = vunpack.c.l.b16 %v986
  %v1006 = vunpack.c.h.b16 %v986
  %v1007 = vunpack.c.l.b16 %v987
  %v1008 = vunpack.c.h.b16 %v987
  %v1009 = vunpack.c.l.b16 %v988
  %v1010 = vunpack.c.h.b16 %v988
  %v1011 = vunpack.c.l.b16 %v989
  %v1012 = vunpack.c.h.b16 %v989
  %v1013 = vunpack.c.l.b16 %v990
  %v1014 = vunpack.c.h.b16 %v990
  %v1015 = vpack.c.b16 %v999, %v999
  %v1016 = vpack.c.b16 %v1000, %v1000
  %v1017 = vpack.c.b16 %v1001, %v1001
  %v1018 = vpack.c.b16 %v1002, %v1002
  %v1019 = vpack.c.b16 %v1003, %v1003
  %v1020 = vpack.c.b16 %v1004, %v1004
  %v1021 = vpack.c.b16 %v1005, %v1005
  %v1022 = vpack.c.b16 %v1006, %v1006
  %v1023 = vpack.c.b16 %v1007, %v1007
  %v1024 = vpack.c.b16 %v1008, %v1008
  %v1025 = vpack.c.b16 %v1009, %v1009
  %v1026 = vpack.c.b16 %v1010, %v1010
  %v1027 = vpack.c.b16 %v1011, %v1011
  %v1028 = vpack.c.b16 %v1012, %v1012
  %v1029 = vpack.c.b16 %v1013, %v1013
  %v1030 = vpack.c.b16 %v1014, %v1014
  %1047 = vst [vmem:[%s5] sm:$0xf] %v1015
  %1048 = vst [vmem:[%s5 + $0x4] sm:$0xf] %v1016
  %1049 = vst [vmem:[%s5 + $0x8] sm:$0xf] %v1017
  %1050 = vst [vmem:[%s5 + $0xc] sm:$0xf] %v1018
  %1051 = vst [vmem:[%s5 + $0x10] sm:$0xf] %v1019
  %1052 = vst [vmem:[%s5 + $0x14] sm:$0xf] %v1020
  %1053 = vst [vmem:[%s5 + $0x18] sm:$0xf] %v1021
  %1054 = vst [vmem:[%s5 + $0x1c] sm:$0xf] %v1022
  %1055 = vst [vmem:[%s5 + $0x20] sm:$0xf] %v1023
  %1056 = vst [vmem:[%s5 + $0x24] sm:$0xf] %v1024
  %1057 = vst [vmem:[%s5 + $0x28] sm:$0xf] %v1025
  %1058 = vst [vmem:[%s5 + $0x2c] sm:$0xf] %v1026
  %1059 = vst [vmem:[%s5 + $0x30] sm:$0xf] %v1027
  %1060 = vst [vmem:[%s5 + $0x34] sm:$0xf] %v1028
  %1061 = vst [vmem:[%s5 + $0x38] sm:$0xf] %v1029
  %1062 = vst [vmem:[%s5 + $0x3c] sm:$0xf] %v1030
  // Predicated region
  $region22: #{_lambda_.19} parent=0 // pred_check
    _
  $region23: #{_lambda_.19} parent=0 // pred_check_branch
    %1064 = sbr.rel (0) target = $region25
  $region24: #{_lambda_.19} parent=0 // pred_region
    _
  $region25: #{_lambda_.19} parent=0 // pred_fallthru
    _
  // Predicated region
  $region26: #{_lambda_.19} parent=0 // pred_check
    _
  $region27: #{_lambda_.19} parent=0 // pred_check_branch
    %1066 = sbr.rel (0) target = $region29
  $region28: #{_lambda_.19} parent=0 // pred_region
    _
  $region29: #{_lambda_.19} parent=0 // pred_fallthru
    _

// kernel: _lambda_.23
$region0: #{_lambda_.23}
  #allocation0 [shape = 'u32[]', space=smem, size = 0x4, offset = 0x4, fixed_abs, tag = 'smem constant byte address 0x4 - core index']
  #allocation1 [shape = 'u32[144,128]{1,0:T(1,128)}', space=vmem, size = 0x12000, scoped, tag = 'internal scratch']
  %s0 = inlined_call_operand.vmem [shape: bf16[3,128,576], index: 0, kind: input, shape index: {}]
  %s1 = inlined_call_operand.vmem [shape: bf16[3,576,128], index: 1, kind: input, shape index: {}]
  %s2 = inlined_call_operand.vmem [shape: f32[3,1,128], index: 2, kind: input, shape index: {}]
  %s3 = inlined_call_operand.vmem [shape: f32[3,1,128], index: 3, kind: input, shape index: {}]
  %s4 = inlined_call_operand.vmem [shape: bf16[3,128,128], index: 4, kind: output, shape index: {}]
  %s5 = sld [smem:[#allocation0]]
  $region49: #{_lambda_.23} parent=0
    _
  %s7 = ssub.s32 1, %s5
  %s8 = scalar_select 0, %s7, %s5
  loop: start=0, step=1, limit=5
  $region2: #{_lambda_.23} parent=0 // loop_pre_header
    _
  $region3: #{_lambda_.23} parent=0 // loop_header
    %s10 = sphi 0, %s14
    %p11 = scmp.ge.s32.totalorder %s10, 5
    %s17 = sphi 0, %s36
    %s18 = sphi 0, %s32
    %s19 = sphi 0, %s28
    %s20 = sphi 0, %s17
    %s21 = sphi 0, %s18
    %s22 = sphi 0, %s19
    %s23 = sphi 0, %s20
    %s24 = sphi 0, %s21
    %s25 = sphi 0, %s22
    %s41 = sphi 0, %s43
    %s44 = sphi 0, %s41
    %s45 = sphi 0, %s44
    %s61 = sphi 0, %s45
    %s69 = sphi 0, %s71
    %s72 = sphi 0, %s69
    %s73 = sphi 0, %s72
    %s89 = sphi 0, %s73
    %s97 = sphi 0, %s99
    %s100 = sphi 0, %s97
    %s101 = sphi 0, %s100
    %s117 = sphi 0, %s101
    %s125 = sphi 0, %s127
    %s128 = sphi 0, %s125
    %s129 = sphi 0, %s128
    %s145 = sphi 0, %s129
    %s155 = sphi 0, %s157
    %s158 = sphi 0, %s155
    %s159 = sphi 0, %s158
    %s175 = sphi 0, %s159
  $region4: #{_lambda_.23} parent=0 // loop_header_branch
    %13 = sbr.rel (%p11) target = $region8
  $region5: #{_lambda_.23} parent=0 // loop_body
    %s15 = ssub.s32 %s10, 1
    %s16 = ssub.s32 %s10, 2
    %s26 = sadd.s32 1, %s19
    %p27 = scmp.ge.s32.totalorder %s26, 1
    %s28 = scalar_select %p27, 0, %s26
    %s29 = sadd.s32 1, %s18
    %s30 = scalar_select %p27, %s29, %s18
    %p31 = scmp.ge.s32.totalorder %s30, 1
    %s32 = scalar_select %p31, 0, %s30
    %s33 = sadd.s32 1, %s17
    %s34 = scalar_select %p31, %s33, %s17
    %p35 = scmp.ge.s32.totalorder %s34, 3
    %s36 = scalar_select %p35, 0, %s34
    %s37 = ssub.s32 %s17, %s36
    %s38 = ssub.s32 %s18, %s32
    %s39 = sor.u32 %s37, %s38
    %p40 = scmp.eq.s32.totalorder %s39, 0
    %s42 = sadd.s32 %s41, 1
    %s43 = scalar_select %p40, %s41, %s42
    %p46 = pneg %p40
    %p47 = scmp.eq.s32.totalorder %s10, 2
    %p48 = por %p46, %p47
    %p49 = scmp.ne.s32.totalorder %s41, %s44
    %p50 = scmp.eq.s32.totalorder %s10, 0
    %p51 = por %p49, %p50
    %p52 = scmp.ne.s32.totalorder %s41, %s44
    %p53 = scmp.eq.s32.totalorder %s15, 2
    %p54 = por %p52, %p53
    %p55 = scmp.ne.s32.totalorder %s44, %s45
    %p56 = scmp.eq.s32.totalorder %s15, 0
    %p57 = por %p55, %p56
    %p58 = scmp.ne.s32.totalorder %s44, %s45
    %p59 = scmp.eq.s32.totalorder %s16, 2
    %p60 = por %p58, %p59
    %p62 = scmp.ne.s32.totalorder %s45, %s61
    %p63 = scmp.eq.s32.totalorder %s16, 0
    %p64 = por %p62, %p63
    %s65 = ssub.s32 %s17, %s36
    %s66 = ssub.s32 %s19, %s28
    %s67 = sor.u32 %s65, %s66
    %p68 = scmp.eq.s32.totalorder %s67, 0
    %s70 = sadd.s32 %s69, 1
    %s71 = scalar_select %p68, %s69, %s70
    %p74 = pneg %p68
    %p75 = scmp.eq.s32.totalorder %s10, 2
    %p76 = por %p74, %p75
    %p77 = scmp.ne.s32.totalorder %s69, %s72
    %p78 = scmp.eq.s32.totalorder %s10, 0
    %p79 = por %p77, %p78
    %p80 = scmp.ne.s32.totalorder %s69, %s72
    %p81 = scmp.eq.s32.totalorder %s15, 2
    %p82 = por %p80, %p81
    %p83 = scmp.ne.s32.totalorder %s72, %s73
    %p84 = scmp.eq.s32.totalorder %s15, 0
    %p85 = por %p83, %p84
    %p86 = scmp.ne.s32.totalorder %s72, %s73
    %p87 = scmp.eq.s32.totalorder %s16, 2
    %p88 = por %p86, %p87
    %p90 = scmp.ne.s32.totalorder %s73, %s89
    %p91 = scmp.eq.s32.totalorder %s16, 0
    %p92 = por %p90, %p91
    %s93 = ssub.s32 %s17, %s36
    %s94 = ssub.s32 %s19, %s28
    %s95 = sor.u32 %s93, %s94
    %p96 = scmp.eq.s32.totalorder %s95, 0
    %s98 = sadd.s32 %s97, 1
    %s99 = scalar_select %p96, %s97, %s98
    %p102 = pneg %p96
    %p103 = scmp.eq.s32.totalorder %s10, 2
    %p104 = por %p102, %p103
    %p105 = scmp.ne.s32.totalorder %s97, %s100
    %p106 = scmp.eq.s32.totalorder %s10, 0
    %p107 = por %p105, %p106
    %p108 = scmp.ne.s32.totalorder %s97, %s100
    %p109 = scmp.eq.s32.totalorder %s15, 2
    %p110 = por %p108, %p109
    %p111 = scmp.ne.s32.totalorder %s100, %s101
    %p112 = scmp.eq.s32.totalorder %s15, 0
    %p113 = por %p111, %p112
    %p114 = scmp.ne.s32.totalorder %s100, %s101
    %p115 = scmp.eq.s32.totalorder %s16, 2
    %p116 = por %p114, %p115
    %p118 = scmp.ne.s32.totalorder %s101, %s117
    %p119 = scmp.eq.s32.totalorder %s16, 0
    %p120 = por %p118, %p119
    %s121 = ssub.s32 %s17, %s36
    %s122 = ssub.s32 %s19, %s28
    %s123 = sor.u32 %s121, %s122
    %p124 = scmp.eq.s32.totalorder %s123, 0
    %s126 = sadd.s32 %s125, 1
    %s127 = scalar_select %p124, %s125, %s126
    %p130 = pneg %p124
    %p131 = scmp.eq.s32.totalorder %s10, 2
    %p132 = por %p130, %p131
    %p133 = scmp.ne.s32.totalorder %s125, %s128
    %p134 = scmp.eq.s32.totalorder %s10, 0
    %p135 = por %p133, %p134
    %p136 = scmp.ne.s32.totalorder %s125, %s128
    %p137 = scmp.eq.s32.totalorder %s15, 2
    %p138 = por %p136, %p137
    %p139 = scmp.ne.s32.totalorder %s128, %s129
    %p140 = scmp.eq.s32.totalorder %s15, 0
    %p141 = por %p139, %p140
    %p142 = scmp.ne.s32.totalorder %s128, %s129
    %p143 = scmp.eq.s32.totalorder %s16, 2
    %p144 = por %p142, %p143
    %p146 = scmp.ne.s32.totalorder %s129, %s145
    %p147 = scmp.eq.s32.totalorder %s16, 0
    %p148 = por %p146, %p147
    %s149 = ssub.s32 %s17, %s36
    %s150 = ssub.s32 %s18, %s32
    %s151 = sor.u32 %s149, %s150
    %s152 = ssub.s32 %s19, %s28
    %s153 = sor.u32 %s151, %s152
    %p154 = scmp.eq.s32.totalorder %s153, 0
    %s156 = sadd.s32 %s155, 1
    %s157 = scalar_select %p154, %s155, %s156
    %p160 = pneg %p154
    %p161 = scmp.eq.s32.totalorder %s10, 2
    %p162 = por %p160, %p161
    %p163 = scmp.ne.s32.totalorder %s155, %s158
    %p164 = scmp.eq.s32.totalorder %s10, 0
    %p165 = por %p163, %p164
    %p166 = scmp.ne.s32.totalorder %s155, %s158
    %p167 = scmp.eq.s32.totalorder %s15, 2
    %p168 = por %p166, %p167
    %p169 = scmp.ne.s32.totalorder %s158, %s159
    %p170 = scmp.eq.s32.totalorder %s15, 0
    %p171 = por %p169, %p170
    %p172 = scmp.ne.s32.totalorder %s158, %s159
    %p173 = scmp.eq.s32.totalorder %s16, 2
    %p174 = por %p172, %p173
    %p176 = scmp.ne.s32.totalorder %s159, %s175
    %p177 = scmp.eq.s32.totalorder %s16, 0
    %p178 = por %p176, %p177
    %p179 = scmp.le.s32.totalorder 1, %s10
    %p180 = scmp.lt.s32.totalorder %s10, 4
    %p181 = pnand %p179, %p180
    %p182 = pneg %p181
    // Predicated region
    $region9: #{_lambda_.23} parent=5 // pred_check
      _
    $region10: #{_lambda_.23} parent=5 // pred_check_branch
      %184 = sbr.rel (%p181) target = $region12
    $region11: #{_lambda_.23} parent=5 // pred_region
      %s185 = ssub.s32 %s10, 1
    $region12: #{_lambda_.23} parent=5 // pred_fallthru
      _
    %p186 = scmp.lt.s32.totalorder %s10, 3
    // Predicated region
    $region13: #{_lambda_.23} parent=5 // pred_check
      %p187 = pneg %p186
    $region14: #{_lambda_.23} parent=5 // pred_check_branch
      %189 = sbr.rel (%p187) target = $region16
    $region15: #{_lambda_.23} parent=5 // pred_region
      // Predicated region
      $region17: #{_lambda_.23} parent=15 // pred_check
        %p190 = pneg %p51
      $region18: #{_lambda_.23} parent=15 // pred_check_branch
        %192 = sbr.rel (%p190) target = $region20
      $region19: #{_lambda_.23} parent=15 // pred_region
        %s193 = smul.u32 16, %s18
        %p194 = scmp.lt.s32.totalorder %s17, 2
        %s195 = scalar_select %p194, %s17, 2
        %p196 = scmp.lt.s32.totalorder %s193, 15
        %s197 = scalar_select %p196, %s193, 15
        %s198 = smul.addr %s197, 5
        %s199 = smul.addr %s195, 80
        %s200 = sadd.s32 %s198, %s199
        %s201 = smul.addr %s200, 4
        %s202 = scalar_lea.vmem %s0, %s201
        %s203 = smul.u32 16, %s18
      $region20: #{_lambda_.23} parent=15 // pred_fallthru
        _
      // Predicated region
      $region21: #{_lambda_.23} parent=15 // pred_check
        %p204 = pneg %p79
      $region22: #{_lambda_.23} parent=15 // pred_check_branch
        %206 = sbr.rel (%p204) target = $region24
      $region23: #{_lambda_.23} parent=15 // pred_region
        %p207 = scmp.lt.s32.totalorder %s17, 2
        %s208 = scalar_select %p207, %s17, 2
        %p209 = scmp.lt.s32.totalorder %s19, 0
        %s210 = scalar_select %p209, %s19, 0
        %s211 = smul.addr %s208, 72
        %s212 = sadd.s32 %s210, %s211
        %s213 = smul.addr %s212, 4
        %s214 = scalar_lea.vmem %s1, %s213
      $region24: #{_lambda_.23} parent=15 // pred_fallthru
        _
      // Predicated region
      $region25: #{_lambda_.23} parent=15 // pred_check
        %p215 = pneg %p107
      $region26: #{_lambda_.23} parent=15 // pred_check_branch
        %217 = sbr.rel (%p215) target = $region28
      $region27: #{_lambda_.23} parent=15 // pred_region
        %p218 = scmp.lt.s32.totalorder %s17, 2
        %s219 = scalar_select %p218, %s17, 2
        %p220 = scmp.lt.s32.totalorder %s19, 0
        %s221 = scalar_select %p220, %s19, 0
        %s222 = sadd.s32 %s221, %s219
        %s223 = scalar_lea.vmem %s2, %s222
      $region28: #{_lambda_.23} parent=15 // pred_fallthru
        _
      // Predicated region
      $region29: #{_lambda_.23} parent=15 // pred_check
        %p224 = pneg %p135
      $region30: #{_lambda_.23} parent=15 // pred_check_branch
        %226 = sbr.rel (%p224) target = $region32
      $region31: #{_lambda_.23} parent=15 // pred_region
        %p227 = scmp.lt.s32.totalorder %s17, 2
        %s228 = scalar_select %p227, %s17, 2
        %p229 = scmp.lt.s32.totalorder %s19, 0
        %s230 = scalar_select %p229, %s19, 0
        %s231 = sadd.s32 %s230, %s228
        %s232 = scalar_lea.vmem %s3, %s231
      $region32: #{_lambda_.23} parent=15 // pred_fallthru
        _
    $region16: #{_lambda_.23} parent=5 // pred_fallthru
      _
    %p233 = scmp.le.s32.totalorder 1, %s10
    %p234 = scmp.lt.s32.totalorder %s10, 4
    %p235 = pnand %p233, %p234
    %p236 = pneg %p235
    // Predicated region
    $region33: #{_lambda_.23} parent=5 // pred_check
      _
    $region34: #{_lambda_.23} parent=5 // pred_check_branch
      %238 = sbr.rel (%p235) target = $region36
    $region35: #{_lambda_.23} parent=5 // pred_region
      %s239 = ssub.s32 %s10, 1
      %s240 = smul.u32 16, %s21
      %p241 = scmp.lt.s32.totalorder %s20, 2
      %s242 = scalar_select %p241, %s20, 2
      %p243 = scmp.lt.s32.totalorder %s240, 15
      %s244 = scalar_select %p243, %s240, 15
      %s245 = smul.addr %s244, 5
      %s246 = smul.addr %s242, 80
      %s247 = sadd.s32 %s245, %s246
      %s248 = smul.addr %s247, 4
      %s249 = scalar_lea.vmem %s0, %s248
      %p250 = pneg %p57
      %p251 = pneg %p54
      %p252 = scmp.lt.s32.totalorder %s20, 2
      %s253 = scalar_select %p252, %s20, 2
      %p254 = scmp.lt.s32.totalorder %s22, 0
      %s255 = scalar_select %p254, %s22, 0
      %s256 = smul.addr %s253, 72
      %s257 = sadd.s32 %s255, %s256
      %s258 = smul.addr %s257, 4
      %s259 = scalar_lea.vmem %s1, %s258
      %p260 = pneg %p85
      %p261 = pneg %p82
      %p262 = scmp.lt.s32.totalorder %s20, 2
      %s263 = scalar_select %p262, %s20, 2
      %p264 = scmp.lt.s32.totalorder %s22, 0
      %s265 = scalar_select %p264, %s22, 0
      %s266 = sadd.s32 %s265, %s263
      %s267 = scalar_lea.vmem %s2, %s266
      %p268 = pneg %p113
      %p269 = pneg %p110
      %p270 = scmp.lt.s32.totalorder %s20, 2
      %s271 = scalar_select %p270, %s20, 2
      %p272 = scmp.lt.s32.totalorder %s22, 0
      %s273 = scalar_select %p272, %s22, 0
      %s274 = sadd.s32 %s273, %s271
      %s275 = scalar_lea.vmem %s3, %s274
      %p276 = pneg %p141
      %p277 = pneg %p138
      %p278 = pneg %p171
      %p279 = pneg %p168
      %s280 = smul.u32 16, %s21
      %p281 = scmp.lt.s32.totalorder %s20, 2
      %s282 = scalar_select %p281, %s20, 2
      %p283 = scmp.lt.s32.totalorder %s280, 15
      %s284 = scalar_select %p283, %s280, 15
      %p285 = scmp.lt.s32.totalorder %s22, 0
      %s286 = scalar_select %p285, %s22, 0
      %s287 = sadd.s32 %s286, %s284
      %s288 = smul.addr %s282, 16
      %s289 = sadd.s32 %s287, %s288
      %s290 = smul.addr %s289, 4
      %s291 = scalar_lea.vmem %s4, %s290
      %s292 = smul.u32 16, %s21
      %p293 = scmp.lt.s32.totalorder %s20, 2
      %s294 = scalar_select %p293, %s20, 2
      %p295 = scmp.lt.s32.totalorder %s292, 15
      %s296 = scalar_select %p295, %s292, 15
      %s297 = smul.addr %s296, 5
      %s298 = smul.addr %s294, 80
      %s299 = sadd.s32 %s297, %s298
      %s300 = smul.addr %s299, 4
      %s301 = scalar_lea.vmem %s0, %s300
      %s302 = smul.u32 16, %s21
      %p303 = scmp.lt.s32.totalorder %s20, 2
      %s304 = scalar_select %p303, %s20, 2
      %p305 = scmp.lt.s32.totalorder %s22, 0
      %s306 = scalar_select %p305, %s22, 0
      %s307 = smul.addr %s304, 72
      %s308 = sadd.s32 %s306, %s307
      %s309 = smul.addr %s308, 4
      %s310 = scalar_lea.vmem %s1, %s309
      %p311 = scmp.lt.s32.totalorder %s20, 2
      %s312 = scalar_select %p311, %s20, 2
      %p313 = scmp.lt.s32.totalorder %s22, 0
      %s314 = scalar_select %p313, %s22, 0
      %s315 = sadd.s32 %s314, %s312
      %s316 = scalar_lea.vmem %s2, %s315
      %p317 = scmp.lt.s32.totalorder %s20, 2
      %s318 = scalar_select %p317, %s20, 2
      %p319 = scmp.lt.s32.totalorder %s22, 0
      %s320 = scalar_select %p319, %s22, 0
      %s321 = sadd.s32 %s320, %s318
      %s322 = scalar_lea.vmem %s3, %s321
      %s323 = smul.u32 16, %s21
      %p324 = scmp.lt.s32.totalorder %s20, 2
      %s325 = scalar_select %p324, %s20, 2
      %p326 = scmp.lt.s32.totalorder %s323, 15
      %s327 = scalar_select %p326, %s323, 15
      %p328 = scmp.lt.s32.totalorder %s22, 0
      %s329 = scalar_select %p328, %s22, 0
      %s330 = sadd.s32 %s329, %s327
      %s331 = smul.addr %s325, 16
      %s332 = sadd.s32 %s330, %s331
      %s333 = smul.addr %s332, 4
      %s334 = scalar_lea.vmem %s4, %s333
      %s335 = smul.u32 16, %s21
      %v337 = vld [vmem:[%s301] sm:$0xff]
      %v338 = vld [vmem:[%s301 + $0x8] sm:$0xff]
      %v339 = vld [vmem:[%s301 + $0x10] sm:$0xf]
      %v340 = vld [vmem:[%s301 + $0x14] sm:$0xff]
      %v341 = vld [vmem:[%s301 + $0x1c] sm:$0xff]
      %v342 = vld [vmem:[%s301 + $0x24] sm:$0xf]
      %v343 = vld [vmem:[%s301 + $0x28] sm:$0xff]
      %v344 = vld [vmem:[%s301 + $0x30] sm:$0xff]
      %v345 = vld [vmem:[%s301 + $0x38] sm:$0xf]
      %v346 = vld [vmem:[%s301 + $0x3c] sm:$0xff]
      %v347 = vld [vmem:[%s301 + $0x44] sm:$0xff]
      %v348 = vld [vmem:[%s301 + $0x4c] sm:$0xf]
      %v349 = vld [vmem:[%s301 + $0x50] sm:$0xff]
      %v350 = vld [vmem:[%s301 + $0x58] sm:$0xff]
      %v351 = vld [vmem:[%s301 + $0x60] sm:$0xf]
      %v352 = vld [vmem:[%s301 + $0x64] sm:$0xff]
      %v353 = vld [vmem:[%s301 + $0x6c] sm:$0xff]
      %v354 = vld [vmem:[%s301 + $0x74] sm:$0xf]
      %v355 = vld [vmem:[%s301 + $0x78] sm:$0xff]
      %v356 = vld [vmem:[%s301 + $0x80] sm:$0xff]
      %v357 = vld [vmem:[%s301 + $0x88] sm:$0xf]
      %v358 = vld [vmem:[%s301 + $0x8c] sm:$0xff]
      %v359 = vld [vmem:[%s301 + $0x94] sm:$0xff]
      %v360 = vld [vmem:[%s301 + $0x9c] sm:$0xf]
      %v361 = vld [vmem:[%s301 + $0xa0] sm:$0xff]
      %v362 = vld [vmem:[%s301 + $0xa8] sm:$0xff]
      %v363 = vld [vmem:[%s301 + $0xb0] sm:$0xf]
      %v364 = vld [vmem:[%s301 + $0xb4] sm:$0xff]
      %v365 = vld [vmem:[%s301 + $0xbc] sm:$0xff]
      %v366 = vld [vmem:[%s301 + $0xc4] sm:$0xf]
      %v367 = vld [vmem:[%s301 + $0xc8] sm:$0xff]
      %v368 = vld [vmem:[%s301 + $0xd0] sm:$0xff]
      %v369 = vld [vmem:[%s301 + $0xd8] sm:$0xf]
      %v370 = vld [vmem:[%s301 + $0xdc] sm:$0xff]
      %v371 = vld [vmem:[%s301 + $0xe4] sm:$0xff]
      %v372 = vld [vmem:[%s301 + $0xec] sm:$0xf]
      %v373 = vld [vmem:[%s301 + $0xf0] sm:$0xff]
      %v374 = vld [vmem:[%s301 + $0xf8] sm:$0xff]
      %v375 = vld [vmem:[%s301 + $0x100] sm:$0xf]
      %v376 = vld [vmem:[%s301 + $0x104] sm:$0xff]
      %v377 = vld [vmem:[%s301 + $0x10c] sm:$0xff]
      %v378 = vld [vmem:[%s301 + $0x114] sm:$0xf]
      %v379 = vld [vmem:[%s301 + $0x118] sm:$0xff]
      %v380 = vld [vmem:[%s301 + $0x120] sm:$0xff]
      %v381 = vld [vmem:[%s301 + $0x128] sm:$0xf]
      %v382 = vld [vmem:[%s301 + $0x12c] sm:$0xff]
      %v383 = vld [vmem:[%s301 + $0x134] sm:$0xff]
      %v384 = vld [vmem:[%s301 + $0x13c] sm:$0xf]
      %v385 = vld [vmem:[%s310] sm:$0xf]
      %v386 = vld [vmem:[%s310 + $0x4] sm:$0xf]
      %v387 = vld [vmem:[%s310 + $0x8] sm:$0xf]
      %v388 = vld [vmem:[%s310 + $0xc] sm:$0xf]
      %v389 = vld [vmem:[%s310 + $0x10] sm:$0xf]
      %v390 = vld [vmem:[%s310 + $0x14] sm:$0xf]
      %v391 = vld [vmem:[%s310 + $0x18] sm:$0xf]
      %v392 = vld [vmem:[%s310 + $0x1c] sm:$0xf]
      %v393 = vld [vmem:[%s310 + $0x20] sm:$0xf]
      %v394 = vld [vmem:[%s310 + $0x24] sm:$0xf]
      %v395 = vld [vmem:[%s310 + $0x28] sm:$0xf]
      %v396 = vld [vmem:[%s310 + $0x2c] sm:$0xf]
      %v397 = vld [vmem:[%s310 + $0x30] sm:$0xf]
      %v398 = vld [vmem:[%s310 + $0x34] sm:$0xf]
      %v399 = vld [vmem:[%s310 + $0x38] sm:$0xf]
      %v400 = vld [vmem:[%s310 + $0x3c] sm:$0xf]
      %v401 = vld [vmem:[%s310 + $0x40] sm:$0xf]
      %v402 = vld [vmem:[%s310 + $0x44] sm:$0xf]
      %v403 = vld [vmem:[%s310 + $0x48] sm:$0xf]
      %v404 = vld [vmem:[%s310 + $0x4c] sm:$0xf]
      %v405 = vld [vmem:[%s310 + $0x50] sm:$0xf]
      %v406 = vld [vmem:[%s310 + $0x54] sm:$0xf]
      %v407 = vld [vmem:[%s310 + $0x58] sm:$0xf]
      %v408 = vld [vmem:[%s310 + $0x5c] sm:$0xf]
      %v409 = vld [vmem:[%s310 + $0x60] sm:$0xf]
      %v410 = vld [vmem:[%s310 + $0x64] sm:$0xf]
      %v411 = vld [vmem:[%s310 + $0x68] sm:$0xf]
      %v412 = vld [vmem:[%s310 + $0x6c] sm:$0xf]
      %v413 = vld [vmem:[%s310 + $0x70] sm:$0xf]
      %v414 = vld [vmem:[%s310 + $0x74] sm:$0xf]
      %v415 = vld [vmem:[%s310 + $0x78] sm:$0xf]
      %v416 = vld [vmem:[%s310 + $0x7c] sm:$0xf]
      %v417 = vld [vmem:[%s310 + $0x80] sm:$0xf]
      %v418 = vld [vmem:[%s310 + $0x84] sm:$0xf]
      %v419 = vld [vmem:[%s310 + $0x88] sm:$0xf]
      %v420 = vld [vmem:[%s310 + $0x8c] sm:$0xf]
      %v421 = vld [vmem:[%s310 + $0x90] sm:$0xf]
      %v422 = vld [vmem:[%s310 + $0x94] sm:$0xf]
      %v423 = vld [vmem:[%s310 + $0x98] sm:$0xf]
      %v424 = vld [vmem:[%s310 + $0x9c] sm:$0xf]
      %v425 = vld [vmem:[%s310 + $0xa0] sm:$0xf]
      %v426 = vld [vmem:[%s310 + $0xa4] sm:$0xf]
      %v427 = vld [vmem:[%s310 + $0xa8] sm:$0xf]
      %v428 = vld [vmem:[%s310 + $0xac] sm:$0xf]
      %v429 = vld [vmem:[%s310 + $0xb0] sm:$0xf]
      %v430 = vld [vmem:[%s310 + $0xb4] sm:$0xf]
      %v431 = vld [vmem:[%s310 + $0xb8] sm:$0xf]
      %v432 = vld [vmem:[%s310 + $0xbc] sm:$0xf]
      %v433 = vld [vmem:[%s310 + $0xc0] sm:$0xf]
      %v434 = vld [vmem:[%s310 + $0xc4] sm:$0xf]
      %v435 = vld [vmem:[%s310 + $0xc8] sm:$0xf]
      %v436 = vld [vmem:[%s310 + $0xcc] sm:$0xf]
      %v437 = vld [vmem:[%s310 + $0xd0] sm:$0xf]
      %v438 = vld [vmem:[%s310 + $0xd4] sm:$0xf]
      %v439 = vld [vmem:[%s310 + $0xd8] sm:$0xf]
      %v440 = vld [vmem:[%s310 + $0xdc] sm:$0xf]
      %v441 = vld [vmem:[%s310 + $0xe0] sm:$0xf]
      %v442 = vld [vmem:[%s310 + $0xe4] sm:$0xf]
      %v443 = vld [vmem:[%s310 + $0xe8] sm:$0xf]
      %v444 = vld [vmem:[%s310 + $0xec] sm:$0xf]
      %v445 = vld [vmem:[%s310 + $0xf0] sm:$0xf]
      %v446 = vld [vmem:[%s310 + $0xf4] sm:$0xf]
      %v447 = vld [vmem:[%s310 + $0xf8] sm:$0xf]
      %v448 = vld [vmem:[%s310 + $0xfc] sm:$0xf]
      %v449 = vld [vmem:[%s310 + $0x100] sm:$0xf]
      %v450 = vld [vmem:[%s310 + $0x104] sm:$0xf]
      %v451 = vld [vmem:[%s310 + $0x108] sm:$0xf]
      %v452 = vld [vmem:[%s310 + $0x10c] sm:$0xf]
      %v453 = vld [vmem:[%s310 + $0x110] sm:$0xf]
      %v454 = vld [vmem:[%s310 + $0x114] sm:$0xf]
      %v455 = vld [vmem:[%s310 + $0x118] sm:$0xf]
      %v456 = vld [vmem:[%s310 + $0x11c] sm:$0xf]
      %v505 = vunpack.c.l.b16 %v337
      %v506 = vunpack.c.h.b16 %v337
      %v507 = vunpack.c.l.b16 %v338
      %v508 = vunpack.c.h.b16 %v338
      %v509 = vunpack.c.l.b16 %v339
      %v510 = vunpack.c.l.b16 %v340
      %v511 = vunpack.c.h.b16 %v340
      %v512 = vunpack.c.l.b16 %v341
      %v513 = vunpack.c.h.b16 %v341
      %v514 = vunpack.c.l.b16 %v342
      %v515 = vunpack.c.l.b16 %v343
      %v516 = vunpack.c.h.b16 %v343
      %v517 = vunpack.c.l.b16 %v344
      %v518 = vunpack.c.h.b16 %v344
      %v519 = vunpack.c.l.b16 %v345
      %v520 = vunpack.c.l.b16 %v346
      %v521 = vunpack.c.h.b16 %v346
      %v522 = vunpack.c.l.b16 %v347
      %v523 = vunpack.c.h.b16 %v347
      %v524 = vunpack.c.l.b16 %v348
      %v525 = vunpack.c.l.b16 %v349
      %v526 = vunpack.c.h.b16 %v349
      %v527 = vunpack.c.l.b16 %v350
      %v528 = vunpack.c.h.b16 %v350
      %v529 = vunpack.c.l.b16 %v351
      %v530 = vunpack.c.l.b16 %v352
      %v531 = vunpack.c.h.b16 %v352
      %v532 = vunpack.c.l.b16 %v353
      %v533 = vunpack.c.h.b16 %v353
      %v534 = vunpack.c.l.b16 %v354
      %v535 = vunpack.c.l.b16 %v355
      %v536 = vunpack.c.h.b16 %v355
      %v537 = vunpack.c.l.b16 %v356
      %v538 = vunpack.c.h.b16 %v356
      %v539 = vunpack.c.l.b16 %v357
      %v540 = vunpack.c.l.b16 %v358
      %v541 = vunpack.c.h.b16 %v358
      %v542 = vunpack.c.l.b16 %v359
      %v543 = vunpack.c.h.b16 %v359
      %v544 = vunpack.c.l.b16 %v360
      %v545 = vunpack.c.l.b16 %v361
      %v546 = vunpack.c.h.b16 %v361
      %v547 = vunpack.c.l.b16 %v362
      %v548 = vunpack.c.h.b16 %v362
      %v549 = vunpack.c.l.b16 %v363
      %v550 = vunpack.c.l.b16 %v364
      %v551 = vunpack.c.h.b16 %v364
      %v552 = vunpack.c.l.b16 %v365
      %v553 = vunpack.c.h.b16 %v365
      %v554 = vunpack.c.l.b16 %v366
      %v555 = vunpack.c.l.b16 %v367
      %v556 = vunpack.c.h.b16 %v367
      %v557 = vunpack.c.l.b16 %v368
      %v558 = vunpack.c.h.b16 %v368
      %v559 = vunpack.c.l.b16 %v369
      %v560 = vunpack.c.l.b16 %v370
      %v561 = vunpack.c.h.b16 %v370
      %v562 = vunpack.c.l.b16 %v371
      %v563 = vunpack.c.h.b16 %v371
      %v564 = vunpack.c.l.b16 %v372
      %v565 = vunpack.c.l.b16 %v373
      %v566 = vunpack.c.h.b16 %v373
      %v567 = vunpack.c.l.b16 %v374
      %v568 = vunpack.c.h.b16 %v374
      %v569 = vunpack.c.l.b16 %v375
      %v570 = vunpack.c.l.b16 %v376
      %v571 = vunpack.c.h.b16 %v376
      %v572 = vunpack.c.l.b16 %v377
      %v573 = vunpack.c.h.b16 %v377
      %v574 = vunpack.c.l.b16 %v378
      %v575 = vunpack.c.l.b16 %v379
      %v576 = vunpack.c.h.b16 %v379
      %v577 = vunpack.c.l.b16 %v380
      %v578 = vunpack.c.h.b16 %v380
      %v579 = vunpack.c.l.b16 %v381
      %v580 = vunpack.c.l.b16 %v382
      %v581 = vunpack.c.h.b16 %v382
      %v582 = vunpack.c.l.b16 %v383
      %v583 = vunpack.c.h.b16 %v383
      %v584 = vunpack.c.l.b16 %v384
      %v585 = vpack.c.b16 %v510, %v505
      %v586 = vpack.c.b16 %v511, %v506
      %v587 = vpack.c.b16 %v512, %v507
      %v588 = vpack.c.b16 %v513, %v508
      %v589 = vpack.c.b16 %v514, %v509
      %v590 = vpack.c.b16 %v520, %v515
      %v591 = vpack.c.b16 %v521, %v516
      %v592 = vpack.c.b16 %v522, %v517
      %v593 = vpack.c.b16 %v523, %v518
      %v594 = vpack.c.b16 %v524, %v519
      %v595 = vpack.c.b16 %v530, %v525
      %v596 = vpack.c.b16 %v531, %v526
      %v597 = vpack.c.b16 %v532, %v527
      %v598 = vpack.c.b16 %v533, %v528
      %v599 = vpack.c.b16 %v534, %v529
      %v600 = vpack.c.b16 %v540, %v535
      %v601 = vpack.c.b16 %v541, %v536
      %v602 = vpack.c.b16 %v542, %v537
      %v603 = vpack.c.b16 %v543, %v538
      %v604 = vpack.c.b16 %v544, %v539
      %v605 = vpack.c.b16 %v550, %v545
      %v606 = vpack.c.b16 %v551, %v546
      %v607 = vpack.c.b16 %v552, %v547
      %v608 = vpack.c.b16 %v553, %v548
      %v609 = vpack.c.b16 %v554, %v549
      %v610 = vpack.c.b16 %v560, %v555
      %v611 = vpack.c.b16 %v561, %v556
      %v612 = vpack.c.b16 %v562, %v557
      %v613 = vpack.c.b16 %v563, %v558
      %v614 = vpack.c.b16 %v564, %v559
      %v615 = vpack.c.b16 %v570, %v565
      %v616 = vpack.c.b16 %v571, %v566
      %v617 = vpack.c.b16 %v572, %v567
      %v618 = vpack.c.b16 %v573, %v568
      %v619 = vpack.c.b16 %v574, %v569
      %v620 = vpack.c.b16 %v580, %v575
      %v621 = vpack.c.b16 %v581, %v576
      %v622 = vpack.c.b16 %v582, %v577
      %v623 = vpack.c.b16 %v583, %v578
      %v624 = vpack.c.b16 %v584, %v579
      %v729 = vunpack.c.l.b16 %v385
      %v730 = vunpack.c.l.b16 %v386
      %v731 = vunpack.c.l.b16 %v387
      %v732 = vunpack.c.l.b16 %v388
      %v733 = vunpack.c.l.b16 %v389
      %v734 = vunpack.c.l.b16 %v390
      %v735 = vunpack.c.l.b16 %v391
      %v736 = vunpack.c.l.b16 %v392
      %v737 = vunpack.c.l.b16 %v393
      %v738 = vunpack.c.l.b16 %v394
      %v739 = vunpack.c.l.b16 %v395
      %v740 = vunpack.c.l.b16 %v396
      %v741 = vunpack.c.l.b16 %v397
      %v742 = vunpack.c.l.b16 %v398
      %v743 = vunpack.c.l.b16 %v399
      %v744 = vunpack.c.l.b16 %v400
      %v745 = vunpack.c.l.b16 %v401
      %v746 = vunpack.c.l.b16 %v402
      %v747 = vunpack.c.l.b16 %v403
      %v748 = vunpack.c.l.b16 %v404
      %v749 = vunpack.c.l.b16 %v405
      %v750 = vunpack.c.l.b16 %v406
      %v751 = vunpack.c.l.b16 %v407
      %v752 = vunpack.c.l.b16 %v408
      %v753 = vunpack.c.l.b16 %v409
      %v754 = vunpack.c.l.b16 %v410
      %v755 = vunpack.c.l.b16 %v411
      %v756 = vunpack.c.l.b16 %v412
      %v757 = vunpack.c.l.b16 %v413
      %v758 = vunpack.c.l.b16 %v414
      %v759 = vunpack.c.l.b16 %v415
      %v760 = vunpack.c.l.b16 %v416
      %v761 = vunpack.c.l.b16 %v417
      %v762 = vunpack.c.l.b16 %v418
      %v763 = vunpack.c.l.b16 %v419
      %v764 = vunpack.c.l.b16 %v420
      %v765 = vunpack.c.l.b16 %v421
      %v766 = vunpack.c.l.b16 %v422
      %v767 = vunpack.c.l.b16 %v423
      %v768 = vunpack.c.l.b16 %v424
      %v769 = vunpack.c.l.b16 %v425
      %v770 = vunpack.c.l.b16 %v426
      %v771 = vunpack.c.l.b16 %v427
      %v772 = vunpack.c.l.b16 %v428
      %v773 = vunpack.c.l.b16 %v429
      %v774 = vunpack.c.l.b16 %v430
      %v775 = vunpack.c.l.b16 %v431
      %v776 = vunpack.c.l.b16 %v432
      %v777 = vunpack.c.l.b16 %v433
      %v778 = vunpack.c.l.b16 %v434
      %v779 = vunpack.c.l.b16 %v435
      %v780 = vunpack.c.l.b16 %v436
      %v781 = vunpack.c.l.b16 %v437
      %v782 = vunpack.c.l.b16 %v438
      %v783 = vunpack.c.l.b16 %v439
      %v784 = vunpack.c.l.b16 %v440
      %v785 = vunpack.c.l.b16 %v441
      %v786 = vunpack.c.l.b16 %v442
      %v787 = vunpack.c.l.b16 %v443
      %v788 = vunpack.c.l.b16 %v444
      %v789 = vunpack.c.l.b16 %v445
      %v790 = vunpack.c.l.b16 %v446
      %v791 = vunpack.c.l.b16 %v447
      %v792 = vunpack.c.l.b16 %v448
      %v793 = vunpack.c.l.b16 %v449
      %v794 = vunpack.c.l.b16 %v450
      %v795 = vunpack.c.l.b16 %v451
      %v796 = vunpack.c.l.b16 %v452
      %v797 = vunpack.c.l.b16 %v453
      %v798 = vunpack.c.l.b16 %v454
      %v799 = vunpack.c.l.b16 %v455
      %v800 = vunpack.c.l.b16 %v456
      %v801 = vpack.c.b16 %v730, %v729
      %v802 = vpack.c.b16 %v732, %v731
      %v803 = vpack.c.b16 %v734, %v733
      %v804 = vpack.c.b16 %v736, %v735
      %v805 = vpack.c.b16 %v738, %v737
      %v806 = vpack.c.b16 %v740, %v739
      %v807 = vpack.c.b16 %v742, %v741
      %v808 = vpack.c.b16 %v744, %v743
      %v809 = vpack.c.b16 %v746, %v745
      %v810 = vpack.c.b16 %v748, %v747
      %v811 = vpack.c.b16 %v750, %v749
      %v812 = vpack.c.b16 %v752, %v751
      %v813 = vpack.c.b16 %v754, %v753
      %v814 = vpack.c.b16 %v756, %v755
      %v815 = vpack.c.b16 %v758, %v757
      %v816 = vpack.c.b16 %v760, %v759
      %v817 = vpack.c.b16 %v762, %v761
      %v818 = vpack.c.b16 %v764, %v763
      %v819 = vpack.c.b16 %v766, %v765
      %v820 = vpack.c.b16 %v768, %v767
      %v821 = vpack.c.b16 %v770, %v769
      %v822 = vpack.c.b16 %v772, %v771
      %v823 = vpack.c.b16 %v774, %v773
      %v824 = vpack.c.b16 %v776, %v775
      %v825 = vpack.c.b16 %v778, %v777
      %v826 = vpack.c.b16 %v780, %v779
      %v827 = vpack.c.b16 %v782, %v781
      %v828 = vpack.c.b16 %v784, %v783
      %v829 = vpack.c.b16 %v786, %v785
      %v830 = vpack.c.b16 %v788, %v787
      %v831 = vpack.c.b16 %v790, %v789
      %v832 = vpack.c.b16 %v792, %v791
      %v833 = vpack.c.b16 %v794, %v793
      %v834 = vpack.c.b16 %v796, %v795
      %v835 = vpack.c.b16 %v798, %v797
      %v836 = vpack.c.b16 %v800, %v799
      %vm873 = vcmask 523264
      %v875 = vsel %vm873, %v589, 0
      %v878 = vsel %vm873, %v594, 0
      %v881 = vsel %vm873, %v599, 0
      %v884 = vsel %vm873, %v604, 0
      %v887 = vsel %vm873, %v609, 0
      %v890 = vsel %vm873, %v614, 0
      %v893 = vsel %vm873, %v619, 0
      %v896 = vsel %vm873, %v624, 0
      %898 = vmatprep.subr.bf16.mxu0 0
      %899 = vmatpush1.bf16.msra.mxu0 %v808
      %900 = vmatprep.subr.bf16.mxu0 0
      %901 = vmatpush1.bf16.msra.mxu0 %v807
      %902 = vmatprep.subr.bf16.mxu0 0
      %903 = vmatpush1.bf16.msra.mxu0 %v806
      %904 = vmatprep.subr.bf16.mxu0 0
      %905 = vmatpush1.bf16.msra.mxu0 %v805
      %906 = vmatprep.subr.bf16.mxu0 0
      %907 = vmatpush1.bf16.msra.mxu0 %v804
      %908 = vmatprep.subr.bf16.mxu0 0
      %909 = vmatpush1.bf16.msra.mxu0 %v803
      %910 = vmatprep.subr.bf16.mxu0 0
      %911 = vmatpush1.bf16.msra.mxu0 %v802
      %912 = vmatprep.subr.bf16.mxu0 0
      %913 = vmatpush1.bf16.msra.mxu0 %v801
      %914 = vmatprep.subr.bf16.mxu0 0
      %915 = vmatpush2.bf16.msra.mxu0 %v816
      %916 = vmatprep.subr.bf16.mxu0 0
      %917 = vmatpush2.bf16.msra.mxu0 %v815
      %918 = vmatprep.subr.bf16.mxu0 0
      %919 = vmatpush2.bf16.msra.mxu0 %v814
      %920 = vmatprep.subr.bf16.mxu0 0
      %921 = vmatpush2.bf16.msra.mxu0 %v813
      %922 = vmatprep.subr.bf16.mxu0 0
      %923 = vmatpush2.bf16.msra.mxu0 %v812
      %924 = vmatprep.subr.bf16.mxu0 0
      %925 = vmatpush2.bf16.msra.mxu0 %v811
      %926 = vmatprep.subr.bf16.mxu0 0
      %927 = vmatpush2.bf16.msra.mxu0 %v810
      %928 = vmatprep.subr.bf16.mxu0 0
      %929 = vmatpush2.bf16.msra.mxu0 %v809
      %930 = vmatprep.mubr.bf16.mxu0 %v586
      %931 = vmatmul.mubr.bf16.gmra.mxu0 %v585
      %v932 = vpop.f32.mrf.mxu0
      %v933 = vadd.f32 0.0, %v932
      %v934 = vpop.f32.mrf.mxu0
      %v935 = vpop.f32.mrf.mxu0
      %v936 = vadd.f32 0.0, %v935
      %v937 = vpop.f32.mrf.mxu0
      %938 = vmatprep.mubr.bf16.mxu0 %v591
      %939 = vmatmul.mubr.bf16.gmra.mxu0 %v590
      %v940 = vpop.f32.mrf.mxu0
      %v941 = vadd.f32 0.0, %v940
      %v942 = vpop.f32.mrf.mxu0
      %v943 = vpop.f32.mrf.mxu0
      %v944 = vadd.f32 0.0, %v943
      %v945 = vpop.f32.mrf.mxu0
      %946 = vmatprep.mubr.bf16.mxu0 %v596
      %947 = vmatmul.mubr.bf16.gmra.mxu0 %v595
      %v948 = vpop.f32.mrf.mxu0
      %v949 = vadd.f32 0.0, %v948
      %v950 = vpop.f32.mrf.mxu0
      %v951 = vpop.f32.mrf.mxu0
      %v952 = vadd.f32 0.0, %v951
      %v953 = vpop.f32.mrf.mxu0
      %954 = vmatprep.mubr.bf16.mxu0 %v601
      %955 = vmatmul.mubr.bf16.gmra.mxu0 %v600
      %v956 = vpop.f32.mrf.mxu0
      %v957 = vadd.f32 0.0, %v956
      %v958 = vpop.f32.mrf.mxu0
      %v959 = vpop.f32.mrf.mxu0
      %v960 = vadd.f32 0.0, %v959
      %v961 = vpop.f32.mrf.mxu0
      %962 = vmatprep.mubr.bf16.mxu0 %v606
      %963 = vmatmul.mubr.bf16.gmra.mxu0 %v605
      %v964 = vpop.f32.mrf.mxu0
      %v965 = vadd.f32 0.0, %v964
      %v966 = vpop.f32.mrf.mxu0
      %v967 = vpop.f32.mrf.mxu0
      %v968 = vadd.f32 0.0, %v967
      %v969 = vpop.f32.mrf.mxu0
      %970 = vmatprep.mubr.bf16.mxu0 %v611
      %971 = vmatmul.mubr.bf16.gmra.mxu0 %v610
      %v972 = vpop.f32.mrf.mxu0
      %v973 = vadd.f32 0.0, %v972
      %v974 = vpop.f32.mrf.mxu0
      %v975 = vpop.f32.mrf.mxu0
      %v976 = vadd.f32 0.0, %v975
      %v977 = vpop.f32.mrf.mxu0
      %978 = vmatprep.mubr.bf16.mxu0 %v616
      %979 = vmatmul.mubr.bf16.gmra.mxu0 %v615
      %v980 = vpop.f32.mrf.mxu0
      %v981 = vadd.f32 0.0, %v980
      %v982 = vpop.f32.mrf.mxu0
      %v983 = vpop.f32.mrf.mxu0
      %v984 = vadd.f32 0.0, %v983
      %v985 = vpop.f32.mrf.mxu0
      %986 = vmatprep.mubr.bf16.mxu0 %v621
      %987 = vmatmul.mubr.bf16.gmra.mxu0 %v620
      %v988 = vpop.f32.mrf.mxu0
      %v989 = vadd.f32 0.0, %v988
      %v990 = vpop.f32.mrf.mxu0
      %v991 = vpop.f32.mrf.mxu0
      %v992 = vadd.f32 0.0, %v991
      %v993 = vpop.f32.mrf.mxu0
      %994 = vdwg.mxu0
      %995 = vmatprep.subr.bf16.mxu0 0
      %996 = vmatpush1.bf16.msra.mxu0 %v824
      %997 = vmatprep.subr.bf16.mxu0 0
      %998 = vmatpush1.bf16.msra.mxu0 %v823
      %999 = vmatprep.subr.bf16.mxu0 0
      %1000 = vmatpush1.bf16.msra.mxu0 %v822
      %1001 = vmatprep.subr.bf16.mxu0 0
      %1002 = vmatpush1.bf16.msra.mxu0 %v821
      %1003 = vmatprep.subr.bf16.mxu0 0
      %1004 = vmatpush1.bf16.msra.mxu0 %v820
      %1005 = vmatprep.subr.bf16.mxu0 0
      %1006 = vmatpush1.bf16.msra.mxu0 %v819
      %1007 = vmatprep.subr.bf16.mxu0 0
      %1008 = vmatpush1.bf16.msra.mxu0 %v818
      %1009 = vmatprep.subr.bf16.mxu0 0
      %1010 = vmatpush1.bf16.msra.mxu0 %v817
      %1011 = vmatprep.subr.bf16.mxu0 0
      %1012 = vmatpush2.bf16.msra.mxu0 %v832
      %1013 = vmatprep.subr.bf16.mxu0 0
      %1014 = vmatpush2.bf16.msra.mxu0 %v831
      %1015 = vmatprep.subr.bf16.mxu0 0
      %1016 = vmatpush2.bf16.msra.mxu0 %v830
      %1017 = vmatprep.subr.bf16.mxu0 0
      %1018 = vmatpush2.bf16.msra.mxu0 %v829
      %1019 = vmatprep.subr.bf16.mxu0 0
      %1020 = vmatpush2.bf16.msra.mxu0 %v828
      %1021 = vmatprep.subr.bf16.mxu0 0
      %1022 = vmatpush2.bf16.msra.mxu0 %v827
      %1023 = vmatprep.subr.bf16.mxu0 0
      %1024 = vmatpush2.bf16.msra.mxu0 %v826
      %1025 = vmatprep.subr.bf16.mxu0 0
      %1026 = vmatpush2.bf16.msra.mxu0 %v825
      %1027 = vmatprep.mubr.bf16.mxu0 %v588
      %1028 = vmatmul.mubr.bf16.gmra.mxu0 %v587
      %v1029 = vpop.f32.mrf.mxu0
      %v1030 = vadd.f32 %v933, %v1029
      %v1031 = vpop.f32.mrf.mxu0
      %v1032 = vpop.f32.mrf.mxu0
      %v1033 = vadd.f32 %v936, %v1032
      %v1034 = vpop.f32.mrf.mxu0
      %1035 = vmatprep.mubr.bf16.mxu0 %v593
      %1036 = vmatmul.mubr.bf16.gmra.mxu0 %v592
      %v1037 = vpop.f32.mrf.mxu0
      %v1038 = vadd.f32 %v941, %v1037
      %v1039 = vpop.f32.mrf.mxu0
      %v1040 = vpop.f32.mrf.mxu0
      %v1041 = vadd.f32 %v944, %v1040
      %v1042 = vpop.f32.mrf.mxu0
      %1043 = vmatprep.mubr.bf16.mxu0 %v598
      %1044 = vmatmul.mubr.bf16.gmra.mxu0 %v597
      %v1045 = vpop.f32.mrf.mxu0
      %v1046 = vadd.f32 %v949, %v1045
      %v1047 = vpop.f32.mrf.mxu0
      %v1048 = vpop.f32.mrf.mxu0
      %v1049 = vadd.f32 %v952, %v1048
      %v1050 = vpop.f32.mrf.mxu0
      %1051 = vmatprep.mubr.bf16.mxu0 %v603
      %1052 = vmatmul.mubr.bf16.gmra.mxu0 %v602
      %v1053 = vpop.f32.mrf.mxu0
      %v1054 = vadd.f32 %v957, %v1053
      %v1055 = vpop.f32.mrf.mxu0
      %v1056 = vpop.f32.mrf.mxu0
      %v1057 = vadd.f32 %v960, %v1056
      %v1058 = vpop.f32.mrf.mxu0
      %1059 = vmatprep.mubr.bf16.mxu0 %v608
      %1060 = vmatmul.mubr.bf16.gmra.mxu0 %v607
      %v1061 = vpop.f32.mrf.mxu0
      %v1062 = vadd.f32 %v965, %v1061
      %v1063 = vpop.f32.mrf.mxu0
      %v1064 = vpop.f32.mrf.mxu0
      %v1065 = vadd.f32 %v968, %v1064
      %v1066 = vpop.f32.mrf.mxu0
      %1067 = vmatprep.mubr.bf16.mxu0 %v613
      %1068 = vmatmul.mubr.bf16.gmra.mxu0 %v612
      %v1069 = vpop.f32.mrf.mxu0
      %v1070 = vadd.f32 %v973, %v1069
      %v1071 = vpop.f32.mrf.mxu0
      %v1072 = vpop.f32.mrf.mxu0
      %v1073 = vadd.f32 %v976, %v1072
      %v1074 = vpop.f32.mrf.mxu0
      %1075 = vmatprep.mubr.bf16.mxu0 %v618
      %1076 = vmatmul.mubr.bf16.gmra.mxu0 %v617
      %v1077 = vpop.f32.mrf.mxu0
      %v1078 = vadd.f32 %v981, %v1077
      %v1079 = vpop.f32.mrf.mxu0
      %v1080 = vpop.f32.mrf.mxu0
      %v1081 = vadd.f32 %v984, %v1080
      %v1082 = vpop.f32.mrf.mxu0
      %1083 = vmatprep.mubr.bf16.mxu0 %v623
      %1084 = vmatmul.mubr.bf16.gmra.mxu0 %v622
      %v1085 = vpop.f32.mrf.mxu0
      %v1086 = vadd.f32 %v989, %v1085
      %v1087 = vpop.f32.mrf.mxu0
      %v1088 = vpop.f32.mrf.mxu0
      %v1089 = vadd.f32 %v992, %v1088
      %v1090 = vpop.f32.mrf.mxu0
      %1091 = vdwg.mxu0
      %1092 = vmatprep.subr.bf16.mxu0 0
      %1093 = vmatpush1.bf16.msra.mxu0 0
      %1094 = vmatprep.subr.bf16.mxu0 0
      %1095 = vmatpush1.bf16.msra.mxu0 0
      %1096 = vmatprep.subr.bf16.mxu0 0
      %1097 = vmatpush1.bf16.msra.mxu0 0
      %1098 = vmatprep.subr.bf16.mxu0 0
      %1099 = vmatpush1.bf16.msra.mxu0 0
      %1100 = vmatprep.subr.bf16.mxu0 0
      %1101 = vmatpush1.bf16.msra.mxu0 %v836
      %1102 = vmatprep.subr.bf16.mxu0 0
      %1103 = vmatpush1.bf16.msra.mxu0 %v835
      %1104 = vmatprep.subr.bf16.mxu0 0
      %1105 = vmatpush1.bf16.msra.mxu0 %v834
      %1106 = vmatprep.subr.bf16.mxu0 0
      %1107 = vmatpush1.bf16.msra.mxu0 %v833
      %1108 = vmatprep.subr.bf16.mxu0 0
      %1109 = vmatpush2.bf16.msra.mxu0 0
      %1110 = vmatprep.subr.bf16.mxu0 0
      %1111 = vmatpush2.bf16.msra.mxu0 0
      %1112 = vmatprep.subr.bf16.mxu0 0
      %1113 = vmatpush2.bf16.msra.mxu0 0
      %1114 = vmatprep.subr.bf16.mxu0 0
      %1115 = vmatpush2.bf16.msra.mxu0 0
      %1116 = vmatprep.subr.bf16.mxu0 0
      %1117 = vmatpush2.bf16.msra.mxu0 0
      %1118 = vmatprep.subr.bf16.mxu0 0
      %1119 = vmatpush2.bf16.msra.mxu0 0
      %1120 = vmatprep.subr.bf16.mxu0 0
      %1121 = vmatpush2.bf16.msra.mxu0 0
      %1122 = vmatprep.subr.bf16.mxu0 0
      %1123 = vmatpush2.bf16.msra.mxu0 0
      %1124 = vmatprep.mubr.bf16.mxu0 0
      %1125 = vmatmul.mubr.bf16.gmra.mxu0 %v875
      %v1126 = vpop.f32.mrf.mxu0
      %v1127 = vadd.f32 %v1030, %v1126
      %v1128 = vpop.f32.mrf.mxu0
      %v1129 = vpop.f32.mrf.mxu0
      %v1130 = vadd.f32 %v1033, %v1129
      %v1131 = vpop.f32.mrf.mxu0
      %1132 = vmatprep.mubr.bf16.mxu0 0
      %1133 = vmatmul.mubr.bf16.gmra.mxu0 %v878
      %v1134 = vpop.f32.mrf.mxu0
      %v1135 = vadd.f32 %v1038, %v1134
      %v1136 = vpop.f32.mrf.mxu0
      %v1137 = vpop.f32.mrf.mxu0
      %v1138 = vadd.f32 %v1041, %v1137
      %v1139 = vpop.f32.mrf.mxu0
      %1140 = vmatprep.mubr.bf16.mxu0 0
      %1141 = vmatmul.mubr.bf16.gmra.mxu0 %v881
      %v1142 = vpop.f32.mrf.mxu0
      %v1143 = vadd.f32 %v1046, %v1142
      %v1144 = vpop.f32.mrf.mxu0
      %v1145 = vpop.f32.mrf.mxu0
      %v1146 = vadd.f32 %v1049, %v1145
      %v1147 = vpop.f32.mrf.mxu0
      %1148 = vmatprep.mubr.bf16.mxu0 0
      %1149 = vmatmul.mubr.bf16.gmra.mxu0 %v884
      %v1150 = vpop.f32.mrf.mxu0
      %v1151 = vadd.f32 %v1054, %v1150
      %v1152 = vpop.f32.mrf.mxu0
      %v1153 = vpop.f32.mrf.mxu0
      %v1154 = vadd.f32 %v1057, %v1153
      %v1155 = vpop.f32.mrf.mxu0
      %1156 = vmatprep.mubr.bf16.mxu0 0
      %1157 = vmatmul.mubr.bf16.gmra.mxu0 %v887
      %v1158 = vpop.f32.mrf.mxu0
      %v1159 = vadd.f32 %v1062, %v1158
      %v1160 = vpop.f32.mrf.mxu0
      %v1161 = vpop.f32.mrf.mxu0
      %v1162 = vadd.f32 %v1065, %v1161
      %v1163 = vpop.f32.mrf.mxu0
      %1164 = vmatprep.mubr.bf16.mxu0 0
      %1165 = vmatmul.mubr.bf16.gmra.mxu0 %v890
      %v1166 = vpop.f32.mrf.mxu0
      %v1167 = vadd.f32 %v1070, %v1166
      %v1168 = vpop.f32.mrf.mxu0
      %v1169 = vpop.f32.mrf.mxu0
      %v1170 = vadd.f32 %v1073, %v1169
      %v1171 = vpop.f32.mrf.mxu0
      %1172 = vmatprep.mubr.bf16.mxu0 0
      %1173 = vmatmul.mubr.bf16.gmra.mxu0 %v893
      %v1174 = vpop.f32.mrf.mxu0
      %v1175 = vadd.f32 %v1078, %v1174
      %v1176 = vpop.f32.mrf.mxu0
      %v1177 = vpop.f32.mrf.mxu0
      %v1178 = vadd.f32 %v1081, %v1177
      %v1179 = vpop.f32.mrf.mxu0
      %1180 = vmatprep.mubr.bf16.mxu0 0
      %1181 = vmatmul.mubr.bf16.gmra.mxu0 %v896
      %v1182 = vpop.f32.mrf.mxu0
      %v1183 = vadd.f32 %v1086, %v1182
      %v1184 = vpop.f32.mrf.mxu0
      %v1185 = vpop.f32.mrf.mxu0
      %v1186 = vadd.f32 %v1089, %v1185
      %v1187 = vpop.f32.mrf.mxu0
      %1188 = vdwg.mxu0
      %v1189 = vld [vmem:[%s316] sm:$0x1]
      %v1191 = vlaneseq
      %v1192 = vshrl.u32 %v1191, 7
      %v1193 = vsub.s32 0, %v1192
      %v1194 = vrot.slane %v1189, %v1193
      %v1196 = vmul.f32 %v1127, %v1194
      %v1197 = vmul.f32 %v1130, %v1194
      %v1198 = vmul.f32 %v1135, %v1194
      %v1199 = vmul.f32 %v1138, %v1194
      %v1200 = vmul.f32 %v1143, %v1194
      %v1201 = vmul.f32 %v1146, %v1194
      %v1202 = vmul.f32 %v1151, %v1194
      %v1203 = vmul.f32 %v1154, %v1194
      %v1204 = vmul.f32 %v1159, %v1194
      %v1205 = vmul.f32 %v1162, %v1194
      %v1206 = vmul.f32 %v1167, %v1194
      %v1207 = vmul.f32 %v1170, %v1194
      %v1208 = vmul.f32 %v1175, %v1194
      %v1209 = vmul.f32 %v1178, %v1194
      %v1210 = vmul.f32 %v1183, %v1194
      %v1211 = vmul.f32 %v1186, %v1194
      %v1212 = vld [vmem:[%s322] sm:$0x1]
      %v1214 = vlaneseq
      %v1215 = vshrl.u32 %v1214, 7
      %v1216 = vsub.s32 0, %v1215
      %v1217 = vrot.slane %v1212, %v1216
      %v1219 = vadd.f32 %v1196, %v1217
      %v1220 = vadd.f32 %v1197, %v1217
      %v1221 = vadd.f32 %v1198, %v1217
      %v1222 = vadd.f32 %v1199, %v1217
      %v1223 = vadd.f32 %v1200, %v1217
      %v1224 = vadd.f32 %v1201, %v1217
      %v1225 = vadd.f32 %v1202, %v1217
      %v1226 = vadd.f32 %v1203, %v1217
      %v1227 = vadd.f32 %v1204, %v1217
      %v1228 = vadd.f32 %v1205, %v1217
      %v1229 = vadd.f32 %v1206, %v1217
      %v1230 = vadd.f32 %v1207, %v1217
      %v1231 = vadd.f32 %v1208, %v1217
      %v1232 = vadd.f32 %v1209, %v1217
      %v1233 = vadd.f32 %v1210, %v1217
      %v1234 = vadd.f32 %v1211, %v1217
      %v1235 = vmax.f32 %v1219, 0.0
      %v1236 = vmax.f32 %v1220, 0.0
      %v1237 = vmax.f32 %v1221, 0.0
      %v1238 = vmax.f32 %v1222, 0.0
      %v1239 = vmax.f32 %v1223, 0.0
      %v1240 = vmax.f32 %v1224, 0.0
      %v1241 = vmax.f32 %v1225, 0.0
      %v1242 = vmax.f32 %v1226, 0.0
      %v1243 = vmax.f32 %v1227, 0.0
      %v1244 = vmax.f32 %v1228, 0.0
      %v1245 = vmax.f32 %v1229, 0.0
      %v1246 = vmax.f32 %v1230, 0.0
      %v1247 = vmax.f32 %v1231, 0.0
      %v1248 = vmax.f32 %v1232, 0.0
      %v1249 = vmax.f32 %v1233, 0.0
      %v1250 = vmax.f32 %v1234, 0.0
      %v1251 = vpack.c.bf16 %v1236, %v1235
      %v1252 = vpack.c.bf16 %v1238, %v1237
      %v1253 = vpack.c.bf16 %v1240, %v1239
      %v1254 = vpack.c.bf16 %v1242, %v1241
      %v1255 = vpack.c.bf16 %v1244, %v1243
      %v1256 = vpack.c.bf16 %v1246, %v1245
      %v1257 = vpack.c.bf16 %v1248, %v1247
      %v1258 = vpack.c.bf16 %v1250, %v1249
      %v1267 = vunpack.c.l.b16 %v1251
      %v1268 = vunpack.c.h.b16 %v1251
      %v1269 = vunpack.c.l.b16 %v1252
      %v1270 = vunpack.c.h.b16 %v1252
      %v1271 = vunpack.c.l.b16 %v1253
      %v1272 = vunpack.c.h.b16 %v1253
      %v1273 = vunpack.c.l.b16 %v1254
      %v1274 = vunpack.c.h.b16 %v1254
      %v1275 = vunpack.c.l.b16 %v1255
      %v1276 = vunpack.c.h.b16 %v1255
      %v1277 = vunpack.c.l.b16 %v1256
      %v1278 = vunpack.c.h.b16 %v1256
      %v1279 = vunpack.c.l.b16 %v1257
      %v1280 = vunpack.c.h.b16 %v1257
      %v1281 = vunpack.c.l.b16 %v1258
      %v1282 = vunpack.c.h.b16 %v1258
      %v1283 = vpack.c.b16 %v1267, %v1267
      %v1284 = vpack.c.b16 %v1268, %v1268
      %v1285 = vpack.c.b16 %v1269, %v1269
      %v1286 = vpack.c.b16 %v1270, %v1270
      %v1287 = vpack.c.b16 %v1271, %v1271
      %v1288 = vpack.c.b16 %v1272, %v1272
      %v1289 = vpack.c.b16 %v1273, %v1273
      %v1290 = vpack.c.b16 %v1274, %v1274
      %v1291 = vpack.c.b16 %v1275, %v1275
      %v1292 = vpack.c.b16 %v1276, %v1276
      %v1293 = vpack.c.b16 %v1277, %v1277
      %v1294 = vpack.c.b16 %v1278, %v1278
      %v1295 = vpack.c.b16 %v1279, %v1279
      %v1296 = vpack.c.b16 %v1280, %v1280
      %v1297 = vpack.c.b16 %v1281, %v1281
      %v1298 = vpack.c.b16 %v1282, %v1282
      %1315 = vst [vmem:[%s334] sm:$0xf] %v1283
      %1316 = vst [vmem:[%s334 + $0x4] sm:$0xf] %v1284
      %1317 = vst [vmem:[%s334 + $0x8] sm:$0xf] %v1285
      %1318 = vst [vmem:[%s334 + $0xc] sm:$0xf] %v1286
      %1319 = vst [vmem:[%s334 + $0x10] sm:$0xf] %v1287
      %1320 = vst [vmem:[%s334 + $0x14] sm:$0xf] %v1288
      %1321 = vst [vmem:[%s334 + $0x18] sm:$0xf] %v1289
      %1322 = vst [vmem:[%s334 + $0x1c] sm:$0xf] %v1290
      %1323 = vst [vmem:[%s334 + $0x20] sm:$0xf] %v1291
      %1324 = vst [vmem:[%s334 + $0x24] sm:$0xf] %v1292
      %1325 = vst [vmem:[%s334 + $0x28] sm:$0xf] %v1293
      %1326 = vst [vmem:[%s334 + $0x2c] sm:$0xf] %v1294
      %1327 = vst [vmem:[%s334 + $0x30] sm:$0xf] %v1295
      %1328 = vst [vmem:[%s334 + $0x34] sm:$0xf] %v1296
      %1329 = vst [vmem:[%s334 + $0x38] sm:$0xf] %v1297
      %1330 = vst [vmem:[%s334 + $0x3c] sm:$0xf] %v1298
      %s1331 = smul.u32 16, %s21
      %p1332 = scmp.lt.s32.totalorder %s20, 2
      %s1333 = scalar_select %p1332, %s20, 2
      %p1334 = scmp.lt.s32.totalorder %s1331, 15
      %s1335 = scalar_select %p1334, %s1331, 15
      %p1336 = scmp.lt.s32.totalorder %s22, 0
      %s1337 = scalar_select %p1336, %s22, 0
      %s1338 = sadd.s32 %s1337, %s1335
      %s1339 = smul.addr %s1333, 16
      %s1340 = sadd.s32 %s1338, %s1339
      %s1341 = smul.addr %s1340, 4
      %s1342 = scalar_lea.vmem %s4, %s1341
      // Predicated region
      $region37: #{_lambda_.23} parent=35 // pred_check
        %p1343 = pneg %p168
      $region38: #{_lambda_.23} parent=35 // pred_check_branch
        %1345 = sbr.rel (%p1343) target = $region40
      $region39: #{_lambda_.23} parent=35 // pred_region
        %s1346 = smul.u32 16, %s21
      $region40: #{_lambda_.23} parent=35 // pred_fallthru
        _
    $region36: #{_lambda_.23} parent=5 // pred_fallthru
      _
    %p1347 = scmp.le.s32.totalorder 2, %s10
    // Predicated region
    $region41: #{_lambda_.23} parent=5 // pred_check
      %p1348 = pneg %p1347
    $region42: #{_lambda_.23} parent=5 // pred_check_branch
      %1350 = sbr.rel (%p1348) target = $region44
    $region43: #{_lambda_.23} parent=5 // pred_region
      %s1351 = ssub.s32 %s10, 2
      // Predicated region
      $region45: #{_lambda_.23} parent=43 // pred_check
        %p1352 = pneg %p174
      $region46: #{_lambda_.23} parent=43 // pred_check_branch
        %1354 = sbr.rel (%p1352) target = $region48
      $region47: #{_lambda_.23} parent=43 // pred_region
        %s1355 = smul.u32 16, %s24
        %p1356 = scmp.lt.s32.totalorder %s23, 2
        %s1357 = scalar_select %p1356, %s23, 2
        %p1358 = scmp.lt.s32.totalorder %s1355, 15
        %s1359 = scalar_select %p1358, %s1355, 15
        %p1360 = scmp.lt.s32.totalorder %s25, 0
        %s1361 = scalar_select %p1360, %s25, 0
        %s1362 = sadd.s32 %s1361, %s1359
        %s1363 = smul.addr %s1357, 16
        %s1364 = sadd.s32 %s1362, %s1363
        %s1365 = smul.addr %s1364, 4
        %s1366 = scalar_lea.vmem %s4, %s1365
      $region48: #{_lambda_.23} parent=43 // pred_fallthru
        _
    $region44: #{_lambda_.23} parent=5 // pred_fallthru
      _
  $region6: #{_lambda_.23} parent=0 // loop_footer
    %s14 = sadd.s32 1, %s10
  $region7: #{_lambda_.23} parent=0 // loop_footer_branch
    %9 = sbr.rel target = $region3
  $region8: #{_lambda_.23} parent=0 // loop_exit
    _

// kernel: _lambda_.25
$region0: #{_lambda_.25}
  #allocation0 [shape = 'u32[]', space=smem, size = 0x4, offset = 0x4, fixed_abs, tag = 'smem constant byte address 0x4 - core index']
  #allocation1 [shape = 'u32[144,128]{1,0:T(1,128)}', space=vmem, size = 0x12000, scoped, tag = 'internal scratch']
  %s0 = inlined_call_operand.vmem [shape: bf16[128,576], index: 0, kind: input, shape index: {}]
  %s1 = inlined_call_operand.vmem [shape: bf16[576,128], index: 1, kind: input, shape index: {}]
  %s2 = inlined_call_operand.vmem [shape: f32[1,128], index: 2, kind: input, shape index: {}]
  %s3 = inlined_call_operand.vmem [shape: f32[1,128], index: 3, kind: input, shape index: {}]
  %s4 = inlined_call_operand.vmem [shape: bf16[128,128], index: 4, kind: output, shape index: {}]
  %s5 = sld [smem:[#allocation0]]
  $region26: #{_lambda_.25} parent=0
    _
  %s7 = ssub.s32 1, %s5
  %s8 = scalar_select 0, %s7, %s5
  // Predicated region
  $region2: #{_lambda_.25} parent=0 // pred_check
    _
  $region3: #{_lambda_.25} parent=0 // pred_check_branch
    %10 = sbr.rel (0) target = $region5
  $region4: #{_lambda_.25} parent=0 // pred_region
    _
  $region5: #{_lambda_.25} parent=0 // pred_fallthru
    _
  // Predicated region
  $region6: #{_lambda_.25} parent=0 // pred_check
    _
  $region7: #{_lambda_.25} parent=0 // pred_check_branch
    %12 = sbr.rel (0) target = $region9
  $region8: #{_lambda_.25} parent=0 // pred_region
    _
  $region9: #{_lambda_.25} parent=0 // pred_fallthru
    _
  // Predicated region
  $region10: #{_lambda_.25} parent=0 // pred_check
    _
  $region11: #{_lambda_.25} parent=0 // pred_check_branch
    %14 = sbr.rel (0) target = $region13
  $region12: #{_lambda_.25} parent=0 // pred_region
    _
  $region13: #{_lambda_.25} parent=0 // pred_fallthru
    _
  // Predicated region
  $region14: #{_lambda_.25} parent=0 // pred_check
    _
  $region15: #{_lambda_.25} parent=0 // pred_check_branch
    %16 = sbr.rel (0) target = $region17
  $region16: #{_lambda_.25} parent=0 // pred_region
    _
  $region17: #{_lambda_.25} parent=0 // pred_fallthru
    _
  %v18 = vld [vmem:[%s0] sm:$0xff]
  %v19 = vld [vmem:[%s0 + $0x8] sm:$0xff]
  %v20 = vld [vmem:[%s0 + $0x10] sm:$0xf]
  %v21 = vld [vmem:[%s0 + $0x14] sm:$0xff]
  %v22 = vld [vmem:[%s0 + $0x1c] sm:$0xff]
  %v23 = vld [vmem:[%s0 + $0x24] sm:$0xf]
  %v24 = vld [vmem:[%s0 + $0x28] sm:$0xff]
  %v25 = vld [vmem:[%s0 + $0x30] sm:$0xff]
  %v26 = vld [vmem:[%s0 + $0x38] sm:$0xf]
  %v27 = vld [vmem:[%s0 + $0x3c] sm:$0xff]
  %v28 = vld [vmem:[%s0 + $0x44] sm:$0xff]
  %v29 = vld [vmem:[%s0 + $0x4c] sm:$0xf]
  %v30 = vld [vmem:[%s0 + $0x50] sm:$0xff]
  %v31 = vld [vmem:[%s0 + $0x58] sm:$0xff]
  %v32 = vld [vmem:[%s0 + $0x60] sm:$0xf]
  %v33 = vld [vmem:[%s0 + $0x64] sm:$0xff]
  %v34 = vld [vmem:[%s0 + $0x6c] sm:$0xff]
  %v35 = vld [vmem:[%s0 + $0x74] sm:$0xf]
  %v36 = vld [vmem:[%s0 + $0x78] sm:$0xff]
  %v37 = vld [vmem:[%s0 + $0x80] sm:$0xff]
  %v38 = vld [vmem:[%s0 + $0x88] sm:$0xf]
  %v39 = vld [vmem:[%s0 + $0x8c] sm:$0xff]
  %v40 = vld [vmem:[%s0 + $0x94] sm:$0xff]
  %v41 = vld [vmem:[%s0 + $0x9c] sm:$0xf]
  %v42 = vld [vmem:[%s0 + $0xa0] sm:$0xff]
  %v43 = vld [vmem:[%s0 + $0xa8] sm:$0xff]
  %v44 = vld [vmem:[%s0 + $0xb0] sm:$0xf]
  %v45 = vld [vmem:[%s0 + $0xb4] sm:$0xff]
  %v46 = vld [vmem:[%s0 + $0xbc] sm:$0xff]
  %v47 = vld [vmem:[%s0 + $0xc4] sm:$0xf]
  %v48 = vld [vmem:[%s0 + $0xc8] sm:$0xff]
  %v49 = vld [vmem:[%s0 + $0xd0] sm:$0xff]
  %v50 = vld [vmem:[%s0 + $0xd8] sm:$0xf]
  %v51 = vld [vmem:[%s0 + $0xdc] sm:$0xff]
  %v52 = vld [vmem:[%s0 + $0xe4] sm:$0xff]
  %v53 = vld [vmem:[%s0 + $0xec] sm:$0xf]
  %v54 = vld [vmem:[%s0 + $0xf0] sm:$0xff]
  %v55 = vld [vmem:[%s0 + $0xf8] sm:$0xff]
  %v56 = vld [vmem:[%s0 + $0x100] sm:$0xf]
  %v57 = vld [vmem:[%s0 + $0x104] sm:$0xff]
  %v58 = vld [vmem:[%s0 + $0x10c] sm:$0xff]
  %v59 = vld [vmem:[%s0 + $0x114] sm:$0xf]
  %v60 = vld [vmem:[%s0 + $0x118] sm:$0xff]
  %v61 = vld [vmem:[%s0 + $0x120] sm:$0xff]
  %v62 = vld [vmem:[%s0 + $0x128] sm:$0xf]
  %v63 = vld [vmem:[%s0 + $0x12c] sm:$0xff]
  %v64 = vld [vmem:[%s0 + $0x134] sm:$0xff]
  %v65 = vld [vmem:[%s0 + $0x13c] sm:$0xf]
  %v66 = vld [vmem:[%s1] sm:$0xf]
  %v67 = vld [vmem:[%s1 + $0x4] sm:$0xf]
  %v68 = vld [vmem:[%s1 + $0x8] sm:$0xf]
  %v69 = vld [vmem:[%s1 + $0xc] sm:$0xf]
  %v70 = vld [vmem:[%s1 + $0x10] sm:$0xf]
  %v71 = vld [vmem:[%s1 + $0x14] sm:$0xf]
  %v72 = vld [vmem:[%s1 + $0x18] sm:$0xf]
  %v73 = vld [vmem:[%s1 + $0x1c] sm:$0xf]
  %v74 = vld [vmem:[%s1 + $0x20] sm:$0xf]
  %v75 = vld [vmem:[%s1 + $0x24] sm:$0xf]
  %v76 = vld [vmem:[%s1 + $0x28] sm:$0xf]
  %v77 = vld [vmem:[%s1 + $0x2c] sm:$0xf]
  %v78 = vld [vmem:[%s1 + $0x30] sm:$0xf]
  %v79 = vld [vmem:[%s1 + $0x34] sm:$0xf]
  %v80 = vld [vmem:[%s1 + $0x38] sm:$0xf]
  %v81 = vld [vmem:[%s1 + $0x3c] sm:$0xf]
  %v82 = vld [vmem:[%s1 + $0x40] sm:$0xf]
  %v83 = vld [vmem:[%s1 + $0x44] sm:$0xf]
  %v84 = vld [vmem:[%s1 + $0x48] sm:$0xf]
  %v85 = vld [vmem:[%s1 + $0x4c] sm:$0xf]
  %v86 = vld [vmem:[%s1 + $0x50] sm:$0xf]
  %v87 = vld [vmem:[%s1 + $0x54] sm:$0xf]
  %v88 = vld [vmem:[%s1 + $0x58] sm:$0xf]
  %v89 = vld [vmem:[%s1 + $0x5c] sm:$0xf]
  %v90 = vld [vmem:[%s1 + $0x60] sm:$0xf]
  %v91 = vld [vmem:[%s1 + $0x64] sm:$0xf]
  %v92 = vld [vmem:[%s1 + $0x68] sm:$0xf]
  %v93 = vld [vmem:[%s1 + $0x6c] sm:$0xf]
  %v94 = vld [vmem:[%s1 + $0x70] sm:$0xf]
  %v95 = vld [vmem:[%s1 + $0x74] sm:$0xf]
  %v96 = vld [vmem:[%s1 + $0x78] sm:$0xf]
  %v97 = vld [vmem:[%s1 + $0x7c] sm:$0xf]
  %v98 = vld [vmem:[%s1 + $0x80] sm:$0xf]
  %v99 = vld [vmem:[%s1 + $0x84] sm:$0xf]
  %v100 = vld [vmem:[%s1 + $0x88] sm:$0xf]
  %v101 = vld [vmem:[%s1 + $0x8c] sm:$0xf]
  %v102 = vld [vmem:[%s1 + $0x90] sm:$0xf]
  %v103 = vld [vmem:[%s1 + $0x94] sm:$0xf]
  %v104 = vld [vmem:[%s1 + $0x98] sm:$0xf]
  %v105 = vld [vmem:[%s1 + $0x9c] sm:$0xf]
  %v106 = vld [vmem:[%s1 + $0xa0] sm:$0xf]
  %v107 = vld [vmem:[%s1 + $0xa4] sm:$0xf]
  %v108 = vld [vmem:[%s1 + $0xa8] sm:$0xf]
  %v109 = vld [vmem:[%s1 + $0xac] sm:$0xf]
  %v110 = vld [vmem:[%s1 + $0xb0] sm:$0xf]
  %v111 = vld [vmem:[%s1 + $0xb4] sm:$0xf]
  %v112 = vld [vmem:[%s1 + $0xb8] sm:$0xf]
  %v113 = vld [vmem:[%s1 + $0xbc] sm:$0xf]
  %v114 = vld [vmem:[%s1 + $0xc0] sm:$0xf]
  %v115 = vld [vmem:[%s1 + $0xc4] sm:$0xf]
  %v116 = vld [vmem:[%s1 + $0xc8] sm:$0xf]
  %v117 = vld [vmem:[%s1 + $0xcc] sm:$0xf]
  %v118 = vld [vmem:[%s1 + $0xd0] sm:$0xf]
  %v119 = vld [vmem:[%s1 + $0xd4] sm:$0xf]
  %v120 = vld [vmem:[%s1 + $0xd8] sm:$0xf]
  %v121 = vld [vmem:[%s1 + $0xdc] sm:$0xf]
  %v122 = vld [vmem:[%s1 + $0xe0] sm:$0xf]
  %v123 = vld [vmem:[%s1 + $0xe4] sm:$0xf]
  %v124 = vld [vmem:[%s1 + $0xe8] sm:$0xf]
  %v125 = vld [vmem:[%s1 + $0xec] sm:$0xf]
  %v126 = vld [vmem:[%s1 + $0xf0] sm:$0xf]
  %v127 = vld [vmem:[%s1 + $0xf4] sm:$0xf]
  %v128 = vld [vmem:[%s1 + $0xf8] sm:$0xf]
  %v129 = vld [vmem:[%s1 + $0xfc] sm:$0xf]
  %v130 = vld [vmem:[%s1 + $0x100] sm:$0xf]
  %v131 = vld [vmem:[%s1 + $0x104] sm:$0xf]
  %v132 = vld [vmem:[%s1 + $0x108] sm:$0xf]
  %v133 = vld [vmem:[%s1 + $0x10c] sm:$0xf]
  %v134 = vld [vmem:[%s1 + $0x110] sm:$0xf]
  %v135 = vld [vmem:[%s1 + $0x114] sm:$0xf]
  %v136 = vld [vmem:[%s1 + $0x118] sm:$0xf]
  %v137 = vld [vmem:[%s1 + $0x11c] sm:$0xf]
  %v186 = vunpack.c.l.b16 %v18
  %v187 = vunpack.c.h.b16 %v18
  %v188 = vunpack.c.l.b16 %v19
  %v189 = vunpack.c.h.b16 %v19
  %v190 = vunpack.c.l.b16 %v20
  %v191 = vunpack.c.l.b16 %v21
  %v192 = vunpack.c.h.b16 %v21
  %v193 = vunpack.c.l.b16 %v22
  %v194 = vunpack.c.h.b16 %v22
  %v195 = vunpack.c.l.b16 %v23
  %v196 = vunpack.c.l.b16 %v24
  %v197 = vunpack.c.h.b16 %v24
  %v198 = vunpack.c.l.b16 %v25
  %v199 = vunpack.c.h.b16 %v25
  %v200 = vunpack.c.l.b16 %v26
  %v201 = vunpack.c.l.b16 %v27
  %v202 = vunpack.c.h.b16 %v27
  %v203 = vunpack.c.l.b16 %v28
  %v204 = vunpack.c.h.b16 %v28
  %v205 = vunpack.c.l.b16 %v29
  %v206 = vunpack.c.l.b16 %v30
  %v207 = vunpack.c.h.b16 %v30
  %v208 = vunpack.c.l.b16 %v31
  %v209 = vunpack.c.h.b16 %v31
  %v210 = vunpack.c.l.b16 %v32
  %v211 = vunpack.c.l.b16 %v33
  %v212 = vunpack.c.h.b16 %v33
  %v213 = vunpack.c.l.b16 %v34
  %v214 = vunpack.c.h.b16 %v34
  %v215 = vunpack.c.l.b16 %v35
  %v216 = vunpack.c.l.b16 %v36
  %v217 = vunpack.c.h.b16 %v36
  %v218 = vunpack.c.l.b16 %v37
  %v219 = vunpack.c.h.b16 %v37
  %v220 = vunpack.c.l.b16 %v38
  %v221 = vunpack.c.l.b16 %v39
  %v222 = vunpack.c.h.b16 %v39
  %v223 = vunpack.c.l.b16 %v40
  %v224 = vunpack.c.h.b16 %v40
  %v225 = vunpack.c.l.b16 %v41
  %v226 = vunpack.c.l.b16 %v42
  %v227 = vunpack.c.h.b16 %v42
  %v228 = vunpack.c.l.b16 %v43
  %v229 = vunpack.c.h.b16 %v43
  %v230 = vunpack.c.l.b16 %v44
  %v231 = vunpack.c.l.b16 %v45
  %v232 = vunpack.c.h.b16 %v45
  %v233 = vunpack.c.l.b16 %v46
  %v234 = vunpack.c.h.b16 %v46
  %v235 = vunpack.c.l.b16 %v47
  %v236 = vunpack.c.l.b16 %v48
  %v237 = vunpack.c.h.b16 %v48
  %v238 = vunpack.c.l.b16 %v49
  %v239 = vunpack.c.h.b16 %v49
  %v240 = vunpack.c.l.b16 %v50
  %v241 = vunpack.c.l.b16 %v51
  %v242 = vunpack.c.h.b16 %v51
  %v243 = vunpack.c.l.b16 %v52
  %v244 = vunpack.c.h.b16 %v52
  %v245 = vunpack.c.l.b16 %v53
  %v246 = vunpack.c.l.b16 %v54
  %v247 = vunpack.c.h.b16 %v54
  %v248 = vunpack.c.l.b16 %v55
  %v249 = vunpack.c.h.b16 %v55
  %v250 = vunpack.c.l.b16 %v56
  %v251 = vunpack.c.l.b16 %v57
  %v252 = vunpack.c.h.b16 %v57
  %v253 = vunpack.c.l.b16 %v58
  %v254 = vunpack.c.h.b16 %v58
  %v255 = vunpack.c.l.b16 %v59
  %v256 = vunpack.c.l.b16 %v60
  %v257 = vunpack.c.h.b16 %v60
  %v258 = vunpack.c.l.b16 %v61
  %v259 = vunpack.c.h.b16 %v61
  %v260 = vunpack.c.l.b16 %v62
  %v261 = vunpack.c.l.b16 %v63
  %v262 = vunpack.c.h.b16 %v63
  %v263 = vunpack.c.l.b16 %v64
  %v264 = vunpack.c.h.b16 %v64
  %v265 = vunpack.c.l.b16 %v65
  %v266 = vpack.c.b16 %v191, %v186
  %v267 = vpack.c.b16 %v192, %v187
  %v268 = vpack.c.b16 %v193, %v188
  %v269 = vpack.c.b16 %v194, %v189
  %v270 = vpack.c.b16 %v195, %v190
  %v271 = vpack.c.b16 %v201, %v196
  %v272 = vpack.c.b16 %v202, %v197
  %v273 = vpack.c.b16 %v203, %v198
  %v274 = vpack.c.b16 %v204, %v199
  %v275 = vpack.c.b16 %v205, %v200
  %v276 = vpack.c.b16 %v211, %v206
  %v277 = vpack.c.b16 %v212, %v207
  %v278 = vpack.c.b16 %v213, %v208
  %v279 = vpack.c.b16 %v214, %v209
  %v280 = vpack.c.b16 %v215, %v210
  %v281 = vpack.c.b16 %v221, %v216
  %v282 = vpack.c.b16 %v222, %v217
  %v283 = vpack.c.b16 %v223, %v218
  %v284 = vpack.c.b16 %v224, %v219
  %v285 = vpack.c.b16 %v225, %v220
  %v286 = vpack.c.b16 %v231, %v226
  %v287 = vpack.c.b16 %v232, %v227
  %v288 = vpack.c.b16 %v233, %v228
  %v289 = vpack.c.b16 %v234, %v229
  %v290 = vpack.c.b16 %v235, %v230
  %v291 = vpack.c.b16 %v241, %v236
  %v292 = vpack.c.b16 %v242, %v237
  %v293 = vpack.c.b16 %v243, %v238
  %v294 = vpack.c.b16 %v244, %v239
  %v295 = vpack.c.b16 %v245, %v240
  %v296 = vpack.c.b16 %v251, %v246
  %v297 = vpack.c.b16 %v252, %v247
  %v298 = vpack.c.b16 %v253, %v248
  %v299 = vpack.c.b16 %v254, %v249
  %v300 = vpack.c.b16 %v255, %v250
  %v301 = vpack.c.b16 %v261, %v256
  %v302 = vpack.c.b16 %v262, %v257
  %v303 = vpack.c.b16 %v263, %v258
  %v304 = vpack.c.b16 %v264, %v259
  %v305 = vpack.c.b16 %v265, %v260
  %v410 = vunpack.c.l.b16 %v66
  %v411 = vunpack.c.l.b16 %v67
  %v412 = vunpack.c.l.b16 %v68
  %v413 = vunpack.c.l.b16 %v69
  %v414 = vunpack.c.l.b16 %v70
  %v415 = vunpack.c.l.b16 %v71
  %v416 = vunpack.c.l.b16 %v72
  %v417 = vunpack.c.l.b16 %v73
  %v418 = vunpack.c.l.b16 %v74
  %v419 = vunpack.c.l.b16 %v75
  %v420 = vunpack.c.l.b16 %v76
  %v421 = vunpack.c.l.b16 %v77
  %v422 = vunpack.c.l.b16 %v78
  %v423 = vunpack.c.l.b16 %v79
  %v424 = vunpack.c.l.b16 %v80
  %v425 = vunpack.c.l.b16 %v81
  %v426 = vunpack.c.l.b16 %v82
  %v427 = vunpack.c.l.b16 %v83
  %v428 = vunpack.c.l.b16 %v84
  %v429 = vunpack.c.l.b16 %v85
  %v430 = vunpack.c.l.b16 %v86
  %v431 = vunpack.c.l.b16 %v87
  %v432 = vunpack.c.l.b16 %v88
  %v433 = vunpack.c.l.b16 %v89
  %v434 = vunpack.c.l.b16 %v90
  %v435 = vunpack.c.l.b16 %v91
  %v436 = vunpack.c.l.b16 %v92
  %v437 = vunpack.c.l.b16 %v93
  %v438 = vunpack.c.l.b16 %v94
  %v439 = vunpack.c.l.b16 %v95
  %v440 = vunpack.c.l.b16 %v96
  %v441 = vunpack.c.l.b16 %v97
  %v442 = vunpack.c.l.b16 %v98
  %v443 = vunpack.c.l.b16 %v99
  %v444 = vunpack.c.l.b16 %v100
  %v445 = vunpack.c.l.b16 %v101
  %v446 = vunpack.c.l.b16 %v102
  %v447 = vunpack.c.l.b16 %v103
  %v448 = vunpack.c.l.b16 %v104
  %v449 = vunpack.c.l.b16 %v105
  %v450 = vunpack.c.l.b16 %v106
  %v451 = vunpack.c.l.b16 %v107
  %v452 = vunpack.c.l.b16 %v108
  %v453 = vunpack.c.l.b16 %v109
  %v454 = vunpack.c.l.b16 %v110
  %v455 = vunpack.c.l.b16 %v111
  %v456 = vunpack.c.l.b16 %v112
  %v457 = vunpack.c.l.b16 %v113
  %v458 = vunpack.c.l.b16 %v114
  %v459 = vunpack.c.l.b16 %v115
  %v460 = vunpack.c.l.b16 %v116
  %v461 = vunpack.c.l.b16 %v117
  %v462 = vunpack.c.l.b16 %v118
  %v463 = vunpack.c.l.b16 %v119
  %v464 = vunpack.c.l.b16 %v120
  %v465 = vunpack.c.l.b16 %v121
  %v466 = vunpack.c.l.b16 %v122
  %v467 = vunpack.c.l.b16 %v123
  %v468 = vunpack.c.l.b16 %v124
  %v469 = vunpack.c.l.b16 %v125
  %v470 = vunpack.c.l.b16 %v126
  %v471 = vunpack.c.l.b16 %v127
  %v472 = vunpack.c.l.b16 %v128
  %v473 = vunpack.c.l.b16 %v129
  %v474 = vunpack.c.l.b16 %v130
  %v475 = vunpack.c.l.b16 %v131
  %v476 = vunpack.c.l.b16 %v132
  %v477 = vunpack.c.l.b16 %v133
  %v478 = vunpack.c.l.b16 %v134
  %v479 = vunpack.c.l.b16 %v135
  %v480 = vunpack.c.l.b16 %v136
  %v481 = vunpack.c.l.b16 %v137
  %v482 = vpack.c.b16 %v411, %v410
  %v483 = vpack.c.b16 %v413, %v412
  %v484 = vpack.c.b16 %v415, %v414
  %v485 = vpack.c.b16 %v417, %v416
  %v486 = vpack.c.b16 %v419, %v418
  %v487 = vpack.c.b16 %v421, %v420
  %v488 = vpack.c.b16 %v423, %v422
  %v489 = vpack.c.b16 %v425, %v424
  %v490 = vpack.c.b16 %v427, %v426
  %v491 = vpack.c.b16 %v429, %v428
  %v492 = vpack.c.b16 %v431, %v430
  %v493 = vpack.c.b16 %v433, %v432
  %v494 = vpack.c.b16 %v435, %v434
  %v495 = vpack.c.b16 %v437, %v436
  %v496 = vpack.c.b16 %v439, %v438
  %v497 = vpack.c.b16 %v441, %v440
  %v498 = vpack.c.b16 %v443, %v442
  %v499 = vpack.c.b16 %v445, %v444
  %v500 = vpack.c.b16 %v447, %v446
  %v501 = vpack.c.b16 %v449, %v448
  %v502 = vpack.c.b16 %v451, %v450
  %v503 = vpack.c.b16 %v453, %v452
  %v504 = vpack.c.b16 %v455, %v454
  %v505 = vpack.c.b16 %v457, %v456
  %v506 = vpack.c.b16 %v459, %v458
  %v507 = vpack.c.b16 %v461, %v460
  %v508 = vpack.c.b16 %v463, %v462
  %v509 = vpack.c.b16 %v465, %v464
  %v510 = vpack.c.b16 %v467, %v466
  %v511 = vpack.c.b16 %v469, %v468
  %v512 = vpack.c.b16 %v471, %v470
  %v513 = vpack.c.b16 %v473, %v472
  %v514 = vpack.c.b16 %v475, %v474
  %v515 = vpack.c.b16 %v477, %v476
  %v516 = vpack.c.b16 %v479, %v478
  %v517 = vpack.c.b16 %v481, %v480
  %vm554 = vcmask 523264
  %v556 = vsel %vm554, %v270, 0
  %v559 = vsel %vm554, %v275, 0
  %v562 = vsel %vm554, %v280, 0
  %v565 = vsel %vm554, %v285, 0
  %v568 = vsel %vm554, %v290, 0
  %v571 = vsel %vm554, %v295, 0
  %v574 = vsel %vm554, %v300, 0
  %v577 = vsel %vm554, %v305, 0
  %579 = vmatprep.subr.bf16.mxu0 0
  %580 = vmatpush1.bf16.msra.mxu0 %v489
  %581 = vmatprep.subr.bf16.mxu0 0
  %582 = vmatpush1.bf16.msra.mxu0 %v488
  %583 = vmatprep.subr.bf16.mxu0 0
  %584 = vmatpush1.bf16.msra.mxu0 %v487
  %585 = vmatprep.subr.bf16.mxu0 0
  %586 = vmatpush1.bf16.msra.mxu0 %v486
  %587 = vmatprep.subr.bf16.mxu0 0
  %588 = vmatpush1.bf16.msra.mxu0 %v485
  %589 = vmatprep.subr.bf16.mxu0 0
  %590 = vmatpush1.bf16.msra.mxu0 %v484
  %591 = vmatprep.subr.bf16.mxu0 0
  %592 = vmatpush1.bf16.msra.mxu0 %v483
  %593 = vmatprep.subr.bf16.mxu0 0
  %594 = vmatpush1.bf16.msra.mxu0 %v482
  %595 = vmatprep.subr.bf16.mxu0 0
  %596 = vmatpush2.bf16.msra.mxu0 %v497
  %597 = vmatprep.subr.bf16.mxu0 0
  %598 = vmatpush2.bf16.msra.mxu0 %v496
  %599 = vmatprep.subr.bf16.mxu0 0
  %600 = vmatpush2.bf16.msra.mxu0 %v495
  %601 = vmatprep.subr.bf16.mxu0 0
  %602 = vmatpush2.bf16.msra.mxu0 %v494
  %603 = vmatprep.subr.bf16.mxu0 0
  %604 = vmatpush2.bf16.msra.mxu0 %v493
  %605 = vmatprep.subr.bf16.mxu0 0
  %606 = vmatpush2.bf16.msra.mxu0 %v492
  %607 = vmatprep.subr.bf16.mxu0 0
  %608 = vmatpush2.bf16.msra.mxu0 %v491
  %609 = vmatprep.subr.bf16.mxu0 0
  %610 = vmatpush2.bf16.msra.mxu0 %v490
  %611 = vmatprep.mubr.bf16.mxu0 %v267
  %612 = vmatmul.mubr.bf16.gmra.mxu0 %v266
  %v613 = vpop.f32.mrf.mxu0
  %v614 = vadd.f32 0.0, %v613
  %v615 = vpop.f32.mrf.mxu0
  %v616 = vpop.f32.mrf.mxu0
  %v617 = vadd.f32 0.0, %v616
  %v618 = vpop.f32.mrf.mxu0
  %619 = vmatprep.mubr.bf16.mxu0 %v272
  %620 = vmatmul.mubr.bf16.gmra.mxu0 %v271
  %v621 = vpop.f32.mrf.mxu0
  %v622 = vadd.f32 0.0, %v621
  %v623 = vpop.f32.mrf.mxu0
  %v624 = vpop.f32.mrf.mxu0
  %v625 = vadd.f32 0.0, %v624
  %v626 = vpop.f32.mrf.mxu0
  %627 = vmatprep.mubr.bf16.mxu0 %v277
  %628 = vmatmul.mubr.bf16.gmra.mxu0 %v276
  %v629 = vpop.f32.mrf.mxu0
  %v630 = vadd.f32 0.0, %v629
  %v631 = vpop.f32.mrf.mxu0
  %v632 = vpop.f32.mrf.mxu0
  %v633 = vadd.f32 0.0, %v632
  %v634 = vpop.f32.mrf.mxu0
  %635 = vmatprep.mubr.bf16.mxu0 %v282
  %636 = vmatmul.mubr.bf16.gmra.mxu0 %v281
  %v637 = vpop.f32.mrf.mxu0
  %v638 = vadd.f32 0.0, %v637
  %v639 = vpop.f32.mrf.mxu0
  %v640 = vpop.f32.mrf.mxu0
  %v641 = vadd.f32 0.0, %v640
  %v642 = vpop.f32.mrf.mxu0
  %643 = vmatprep.mubr.bf16.mxu0 %v287
  %644 = vmatmul.mubr.bf16.gmra.mxu0 %v286
  %v645 = vpop.f32.mrf.mxu0
  %v646 = vadd.f32 0.0, %v645
  %v647 = vpop.f32.mrf.mxu0
  %v648 = vpop.f32.mrf.mxu0
  %v649 = vadd.f32 0.0, %v648
  %v650 = vpop.f32.mrf.mxu0
  %651 = vmatprep.mubr.bf16.mxu0 %v292
  %652 = vmatmul.mubr.bf16.gmra.mxu0 %v291
  %v653 = vpop.f32.mrf.mxu0
  %v654 = vadd.f32 0.0, %v653
  %v655 = vpop.f32.mrf.mxu0
  %v656 = vpop.f32.mrf.mxu0
  %v657 = vadd.f32 0.0, %v656
  %v658 = vpop.f32.mrf.mxu0
  %659 = vmatprep.mubr.bf16.mxu0 %v297
  %660 = vmatmul.mubr.bf16.gmra.mxu0 %v296
  %v661 = vpop.f32.mrf.mxu0
  %v662 = vadd.f32 0.0, %v661
  %v663 = vpop.f32.mrf.mxu0
  %v664 = vpop.f32.mrf.mxu0
  %v665 = vadd.f32 0.0, %v664
  %v666 = vpop.f32.mrf.mxu0
  %667 = vmatprep.mubr.bf16.mxu0 %v302
  %668 = vmatmul.mubr.bf16.gmra.mxu0 %v301
  %v669 = vpop.f32.mrf.mxu0
  %v670 = vadd.f32 0.0, %v669
  %v671 = vpop.f32.mrf.mxu0
  %v672 = vpop.f32.mrf.mxu0
  %v673 = vadd.f32 0.0, %v672
  %v674 = vpop.f32.mrf.mxu0
  %675 = vdwg.mxu0
  %676 = vmatprep.subr.bf16.mxu0 0
  %677 = vmatpush1.bf16.msra.mxu0 %v505
  %678 = vmatprep.subr.bf16.mxu0 0
  %679 = vmatpush1.bf16.msra.mxu0 %v504
  %680 = vmatprep.subr.bf16.mxu0 0
  %681 = vmatpush1.bf16.msra.mxu0 %v503
  %682 = vmatprep.subr.bf16.mxu0 0
  %683 = vmatpush1.bf16.msra.mxu0 %v502
  %684 = vmatprep.subr.bf16.mxu0 0
  %685 = vmatpush1.bf16.msra.mxu0 %v501
  %686 = vmatprep.subr.bf16.mxu0 0
  %687 = vmatpush1.bf16.msra.mxu0 %v500
  %688 = vmatprep.subr.bf16.mxu0 0
  %689 = vmatpush1.bf16.msra.mxu0 %v499
  %690 = vmatprep.subr.bf16.mxu0 0
  %691 = vmatpush1.bf16.msra.mxu0 %v498
  %692 = vmatprep.subr.bf16.mxu0 0
  %693 = vmatpush2.bf16.msra.mxu0 %v513
  %694 = vmatprep.subr.bf16.mxu0 0
  %695 = vmatpush2.bf16.msra.mxu0 %v512
  %696 = vmatprep.subr.bf16.mxu0 0
  %697 = vmatpush2.bf16.msra.mxu0 %v511
  %698 = vmatprep.subr.bf16.mxu0 0
  %699 = vmatpush2.bf16.msra.mxu0 %v510
  %700 = vmatprep.subr.bf16.mxu0 0
  %701 = vmatpush2.bf16.msra.mxu0 %v509
  %702 = vmatprep.subr.bf16.mxu0 0
  %703 = vmatpush2.bf16.msra.mxu0 %v508
  %704 = vmatprep.subr.bf16.mxu0 0
  %705 = vmatpush2.bf16.msra.mxu0 %v507
  %706 = vmatprep.subr.bf16.mxu0 0
  %707 = vmatpush2.bf16.msra.mxu0 %v506
  %708 = vmatprep.mubr.bf16.mxu0 %v269
  %709 = vmatmul.mubr.bf16.gmra.mxu0 %v268
  %v710 = vpop.f32.mrf.mxu0
  %v711 = vadd.f32 %v614, %v710
  %v712 = vpop.f32.mrf.mxu0
  %v713 = vpop.f32.mrf.mxu0
  %v714 = vadd.f32 %v617, %v713
  %v715 = vpop.f32.mrf.mxu0
  %716 = vmatprep.mubr.bf16.mxu0 %v274
  %717 = vmatmul.mubr.bf16.gmra.mxu0 %v273
  %v718 = vpop.f32.mrf.mxu0
  %v719 = vadd.f32 %v622, %v718
  %v720 = vpop.f32.mrf.mxu0
  %v721 = vpop.f32.mrf.mxu0
  %v722 = vadd.f32 %v625, %v721
  %v723 = vpop.f32.mrf.mxu0
  %724 = vmatprep.mubr.bf16.mxu0 %v279
  %725 = vmatmul.mubr.bf16.gmra.mxu0 %v278
  %v726 = vpop.f32.mrf.mxu0
  %v727 = vadd.f32 %v630, %v726
  %v728 = vpop.f32.mrf.mxu0
  %v729 = vpop.f32.mrf.mxu0
  %v730 = vadd.f32 %v633, %v729
  %v731 = vpop.f32.mrf.mxu0
  %732 = vmatprep.mubr.bf16.mxu0 %v284
  %733 = vmatmul.mubr.bf16.gmra.mxu0 %v283
  %v734 = vpop.f32.mrf.mxu0
  %v735 = vadd.f32 %v638, %v734
  %v736 = vpop.f32.mrf.mxu0
  %v737 = vpop.f32.mrf.mxu0
  %v738 = vadd.f32 %v641, %v737
  %v739 = vpop.f32.mrf.mxu0
  %740 = vmatprep.mubr.bf16.mxu0 %v289
  %741 = vmatmul.mubr.bf16.gmra.mxu0 %v288
  %v742 = vpop.f32.mrf.mxu0
  %v743 = vadd.f32 %v646, %v742
  %v744 = vpop.f32.mrf.mxu0
  %v745 = vpop.f32.mrf.mxu0
  %v746 = vadd.f32 %v649, %v745
  %v747 = vpop.f32.mrf.mxu0
  %748 = vmatprep.mubr.bf16.mxu0 %v294
  %749 = vmatmul.mubr.bf16.gmra.mxu0 %v293
  %v750 = vpop.f32.mrf.mxu0
  %v751 = vadd.f32 %v654, %v750
  %v752 = vpop.f32.mrf.mxu0
  %v753 = vpop.f32.mrf.mxu0
  %v754 = vadd.f32 %v657, %v753
  %v755 = vpop.f32.mrf.mxu0
  %756 = vmatprep.mubr.bf16.mxu0 %v299
  %757 = vmatmul.mubr.bf16.gmra.mxu0 %v298
  %v758 = vpop.f32.mrf.mxu0
  %v759 = vadd.f32 %v662, %v758
  %v760 = vpop.f32.mrf.mxu0
  %v761 = vpop.f32.mrf.mxu0
  %v762 = vadd.f32 %v665, %v761
  %v763 = vpop.f32.mrf.mxu0
  %764 = vmatprep.mubr.bf16.mxu0 %v304
  %765 = vmatmul.mubr.bf16.gmra.mxu0 %v303
  %v766 = vpop.f32.mrf.mxu0
  %v767 = vadd.f32 %v670, %v766
  %v768 = vpop.f32.mrf.mxu0
  %v769 = vpop.f32.mrf.mxu0
  %v770 = vadd.f32 %v673, %v769
  %v771 = vpop.f32.mrf.mxu0
  %772 = vdwg.mxu0
  %773 = vmatprep.subr.bf16.mxu0 0
  %774 = vmatpush1.bf16.msra.mxu0 0
  %775 = vmatprep.subr.bf16.mxu0 0
  %776 = vmatpush1.bf16.msra.mxu0 0
  %777 = vmatprep.subr.bf16.mxu0 0
  %778 = vmatpush1.bf16.msra.mxu0 0
  %779 = vmatprep.subr.bf16.mxu0 0
  %780 = vmatpush1.bf16.msra.mxu0 0
  %781 = vmatprep.subr.bf16.mxu0 0
  %782 = vmatpush1.bf16.msra.mxu0 %v517
  %783 = vmatprep.subr.bf16.mxu0 0
  %784 = vmatpush1.bf16.msra.mxu0 %v516
  %785 = vmatprep.subr.bf16.mxu0 0
  %786 = vmatpush1.bf16.msra.mxu0 %v515
  %787 = vmatprep.subr.bf16.mxu0 0
  %788 = vmatpush1.bf16.msra.mxu0 %v514
  %789 = vmatprep.subr.bf16.mxu0 0
  %790 = vmatpush2.bf16.msra.mxu0 0
  %791 = vmatprep.subr.bf16.mxu0 0
  %792 = vmatpush2.bf16.msra.mxu0 0
  %793 = vmatprep.subr.bf16.mxu0 0
  %794 = vmatpush2.bf16.msra.mxu0 0
  %795 = vmatprep.subr.bf16.mxu0 0
  %796 = vmatpush2.bf16.msra.mxu0 0
  %797 = vmatprep.subr.bf16.mxu0 0
  %798 = vmatpush2.bf16.msra.mxu0 0
  %799 = vmatprep.subr.bf16.mxu0 0
  %800 = vmatpush2.bf16.msra.mxu0 0
  %801 = vmatprep.subr.bf16.mxu0 0
  %802 = vmatpush2.bf16.msra.mxu0 0
  %803 = vmatprep.subr.bf16.mxu0 0
  %804 = vmatpush2.bf16.msra.mxu0 0
  %805 = vmatprep.mubr.bf16.mxu0 0
  %806 = vmatmul.mubr.bf16.gmra.mxu0 %v556
  %v807 = vpop.f32.mrf.mxu0
  %v808 = vadd.f32 %v711, %v807
  %v809 = vpop.f32.mrf.mxu0
  %v810 = vpop.f32.mrf.mxu0
  %v811 = vadd.f32 %v714, %v810
  %v812 = vpop.f32.mrf.mxu0
  %813 = vmatprep.mubr.bf16.mxu0 0
  %814 = vmatmul.mubr.bf16.gmra.mxu0 %v559
  %v815 = vpop.f32.mrf.mxu0
  %v816 = vadd.f32 %v719, %v815
  %v817 = vpop.f32.mrf.mxu0
  %v818 = vpop.f32.mrf.mxu0
  %v819 = vadd.f32 %v722, %v818
  %v820 = vpop.f32.mrf.mxu0
  %821 = vmatprep.mubr.bf16.mxu0 0
  %822 = vmatmul.mubr.bf16.gmra.mxu0 %v562
  %v823 = vpop.f32.mrf.mxu0
  %v824 = vadd.f32 %v727, %v823
  %v825 = vpop.f32.mrf.mxu0
  %v826 = vpop.f32.mrf.mxu0
  %v827 = vadd.f32 %v730, %v826
  %v828 = vpop.f32.mrf.mxu0
  %829 = vmatprep.mubr.bf16.mxu0 0
  %830 = vmatmul.mubr.bf16.gmra.mxu0 %v565
  %v831 = vpop.f32.mrf.mxu0
  %v832 = vadd.f32 %v735, %v831
  %v833 = vpop.f32.mrf.mxu0
  %v834 = vpop.f32.mrf.mxu0
  %v835 = vadd.f32 %v738, %v834
  %v836 = vpop.f32.mrf.mxu0
  %837 = vmatprep.mubr.bf16.mxu0 0
  %838 = vmatmul.mubr.bf16.gmra.mxu0 %v568
  %v839 = vpop.f32.mrf.mxu0
  %v840 = vadd.f32 %v743, %v839
  %v841 = vpop.f32.mrf.mxu0
  %v842 = vpop.f32.mrf.mxu0
  %v843 = vadd.f32 %v746, %v842
  %v844 = vpop.f32.mrf.mxu0
  %845 = vmatprep.mubr.bf16.mxu0 0
  %846 = vmatmul.mubr.bf16.gmra.mxu0 %v571
  %v847 = vpop.f32.mrf.mxu0
  %v848 = vadd.f32 %v751, %v847
  %v849 = vpop.f32.mrf.mxu0
  %v850 = vpop.f32.mrf.mxu0
  %v851 = vadd.f32 %v754, %v850
  %v852 = vpop.f32.mrf.mxu0
  %853 = vmatprep.mubr.bf16.mxu0 0
  %854 = vmatmul.mubr.bf16.gmra.mxu0 %v574
  %v855 = vpop.f32.mrf.mxu0
  %v856 = vadd.f32 %v759, %v855
  %v857 = vpop.f32.mrf.mxu0
  %v858 = vpop.f32.mrf.mxu0
  %v859 = vadd.f32 %v762, %v858
  %v860 = vpop.f32.mrf.mxu0
  %861 = vmatprep.mubr.bf16.mxu0 0
  %862 = vmatmul.mubr.bf16.gmra.mxu0 %v577
  %v863 = vpop.f32.mrf.mxu0
  %v864 = vadd.f32 %v767, %v863
  %v865 = vpop.f32.mrf.mxu0
  %v866 = vpop.f32.mrf.mxu0
  %v867 = vadd.f32 %v770, %v866
  %v868 = vpop.f32.mrf.mxu0
  %869 = vdwg.mxu0
  %v870 = vld [vmem:[%s2] sm:$0x1]
  %v872 = vlaneseq
  %v873 = vshrl.u32 %v872, 7
  %v874 = vsub.s32 0, %v873
  %v875 = vrot.slane %v870, %v874
  %v877 = vmul.f32 %v808, %v875
  %v878 = vmul.f32 %v811, %v875
  %v879 = vmul.f32 %v816, %v875
  %v880 = vmul.f32 %v819, %v875
  %v881 = vmul.f32 %v824, %v875
  %v882 = vmul.f32 %v827, %v875
  %v883 = vmul.f32 %v832, %v875
  %v884 = vmul.f32 %v835, %v875
  %v885 = vmul.f32 %v840, %v875
  %v886 = vmul.f32 %v843, %v875
  %v887 = vmul.f32 %v848, %v875
  %v888 = vmul.f32 %v851, %v875
  %v889 = vmul.f32 %v856, %v875
  %v890 = vmul.f32 %v859, %v875
  %v891 = vmul.f32 %v864, %v875
  %v892 = vmul.f32 %v867, %v875
  %v893 = vld [vmem:[%s3] sm:$0x1]
  %v895 = vlaneseq
  %v896 = vshrl.u32 %v895, 7
  %v897 = vsub.s32 0, %v896
  %v898 = vrot.slane %v893, %v897
  %v900 = vadd.f32 %v877, %v898
  %v901 = vadd.f32 %v878, %v898
  %v902 = vadd.f32 %v879, %v898
  %v903 = vadd.f32 %v880, %v898
  %v904 = vadd.f32 %v881, %v898
  %v905 = vadd.f32 %v882, %v898
  %v906 = vadd.f32 %v883, %v898
  %v907 = vadd.f32 %v884, %v898
  %v908 = vadd.f32 %v885, %v898
  %v909 = vadd.f32 %v886, %v898
  %v910 = vadd.f32 %v887, %v898
  %v911 = vadd.f32 %v888, %v898
  %v912 = vadd.f32 %v889, %v898
  %v913 = vadd.f32 %v890, %v898
  %v914 = vadd.f32 %v891, %v898
  %v915 = vadd.f32 %v892, %v898
  %v916 = vpack.c.bf16 %v901, %v900
  %v917 = vpack.c.bf16 %v903, %v902
  %v918 = vpack.c.bf16 %v905, %v904
  %v919 = vpack.c.bf16 %v907, %v906
  %v920 = vpack.c.bf16 %v909, %v908
  %v921 = vpack.c.bf16 %v911, %v910
  %v922 = vpack.c.bf16 %v913, %v912
  %v923 = vpack.c.bf16 %v915, %v914
  %v932 = vunpack.c.l.b16 %v916
  %v933 = vunpack.c.h.b16 %v916
  %v934 = vunpack.c.l.b16 %v917
  %v935 = vunpack.c.h.b16 %v917
  %v936 = vunpack.c.l.b16 %v918
  %v937 = vunpack.c.h.b16 %v918
  %v938 = vunpack.c.l.b16 %v919
  %v939 = vunpack.c.h.b16 %v919
  %v940 = vunpack.c.l.b16 %v920
  %v941 = vunpack.c.h.b16 %v920
  %v942 = vunpack.c.l.b16 %v921
  %v943 = vunpack.c.h.b16 %v921
  %v944 = vunpack.c.l.b16 %v922
  %v945 = vunpack.c.h.b16 %v922
  %v946 = vunpack.c.l.b16 %v923
  %v947 = vunpack.c.h.b16 %v923
  %v948 = vpack.c.b16 %v932, %v932
  %v949 = vpack.c.b16 %v933, %v933
  %v950 = vpack.c.b16 %v934, %v934
  %v951 = vpack.c.b16 %v935, %v935
  %v952 = vpack.c.b16 %v936, %v936
  %v953 = vpack.c.b16 %v937, %v937
  %v954 = vpack.c.b16 %v938, %v938
  %v955 = vpack.c.b16 %v939, %v939
  %v956 = vpack.c.b16 %v940, %v940
  %v957 = vpack.c.b16 %v941, %v941
  %v958 = vpack.c.b16 %v942, %v942
  %v959 = vpack.c.b16 %v943, %v943
  %v960 = vpack.c.b16 %v944, %v944
  %v961 = vpack.c.b16 %v945, %v945
  %v962 = vpack.c.b16 %v946, %v946
  %v963 = vpack.c.b16 %v947, %v947
  %980 = vst [vmem:[%s4] sm:$0xf] %v948
  %981 = vst [vmem:[%s4 + $0x4] sm:$0xf] %v949
  %982 = vst [vmem:[%s4 + $0x8] sm:$0xf] %v950
  %983 = vst [vmem:[%s4 + $0xc] sm:$0xf] %v951
  %984 = vst [vmem:[%s4 + $0x10] sm:$0xf] %v952
  %985 = vst [vmem:[%s4 + $0x14] sm:$0xf] %v953
  %986 = vst [vmem:[%s4 + $0x18] sm:$0xf] %v954
  %987 = vst [vmem:[%s4 + $0x1c] sm:$0xf] %v955
  %988 = vst [vmem:[%s4 + $0x20] sm:$0xf] %v956
  %989 = vst [vmem:[%s4 + $0x24] sm:$0xf] %v957
  %990 = vst [vmem:[%s4 + $0x28] sm:$0xf] %v958
  %991 = vst [vmem:[%s4 + $0x2c] sm:$0xf] %v959
  %992 = vst [vmem:[%s4 + $0x30] sm:$0xf] %v960
  %993 = vst [vmem:[%s4 + $0x34] sm:$0xf] %v961
  %994 = vst [vmem:[%s4 + $0x38] sm:$0xf] %v962
  %995 = vst [vmem:[%s4 + $0x3c] sm:$0xf] %v963
  // Predicated region
  $region18: #{_lambda_.25} parent=0 // pred_check
    _
  $region19: #{_lambda_.25} parent=0 // pred_check_branch
    %997 = sbr.rel (0) target = $region21
  $region20: #{_lambda_.25} parent=0 // pred_region
    _
  $region21: #{_lambda_.25} parent=0 // pred_fallthru
    _
  // Predicated region
  $region22: #{_lambda_.25} parent=0 // pred_check
    _
  $region23: #{_lambda_.25} parent=0 // pred_check_branch
    %999 = sbr.rel (0) target = $region25
  $region24: #{_lambda_.25} parent=0 // pred_region
    _
  $region25: #{_lambda_.25} parent=0 // pred_fallthru
    _

</llo_original>
